<compile_context>
chip_gen: v7x
topology: tpu7x:2x2x1
jax: 0.10.0
libtpu: 0.0.40
codegen_flags: <defaults>
</compile_context>

<pallas_src>
import functools
import math

import jax
import jax.numpy as jnp
from jax.experimental import pallas as pl
from jax.experimental.pallas import tpu as pltpu


# ----------------------------------------------------------------------------
# In-kernel building blocks (pure functions on values; called from kernel body)
# ----------------------------------------------------------------------------

def _layernorm(x, g, b):
    """torch.nn.LayerNorm: biased variance, eps=1e-5, elementwise affine."""
    mean = jnp.mean(x, axis=-1, keepdims=True)
    var = jnp.mean(jnp.square(x - mean), axis=-1, keepdims=True)
    return (x - mean) * jax.lax.rsqrt(var + 1e-5) * g + b


def _multihead_attend(q, k, v, nhead, scr_ref):
    """Per-head softmax attention. q: (L, E), k/v: (S, E).

    Heads are contiguous Dh-wide column blocks (same layout torch MHA uses after its
    in-projection). Head outputs are written into the VMEM scratch `scr_ref` and the
    combined (L, E) result is read back (avoids an unaligned lane concatenate).
    """
    L, E = q.shape
    Dh = E // nhead
    scale = 1.0 / math.sqrt(Dh)
    for h in range(nhead):
        lo, hi = h * Dh, (h + 1) * Dh
        qh = q[:, lo:hi]
        kh = k[:, lo:hi]
        vh = v[:, lo:hi]
        s = jax.lax.dot_general(
            qh, kh, (((1,), (1,)), ((), ())),
            preferred_element_type=jnp.float32) * scale              # (L, S)
        m = jnp.max(s, axis=-1, keepdims=True)
        p = jnp.exp(s - m)
        # EUP approximate reciprocal: keeps the divide off the VALU slot.
        p = p * pl.reciprocal(jnp.sum(p, axis=-1, keepdims=True), approx=True)
        oh = jnp.dot(p, vh, preferred_element_type=jnp.float32)      # (L, Dh)
        scr_ref[0:L, lo:hi] = oh
    return scr_ref[0:L, :]


def _encoder_layer(x, wqkv, bqkv, wo, bo, ln1g, ln1b,
                   w1, b1, w2, b2, ln2g, ln2b, nhead, scr_ref):
    """Post-norm TransformerEncoderLayer (torch default, ReLU activation)."""
    E = x.shape[-1]
    qkv = jnp.dot(x, wqkv, preferred_element_type=jnp.float32) + bqkv
    a = _multihead_attend(qkv[:, :E], qkv[:, E:2 * E], qkv[:, 2 * E:], nhead, scr_ref)
    a = jnp.dot(a, wo, preferred_element_type=jnp.float32) + bo
    x = _layernorm(x + a, ln1g, ln1b)
    h = jnp.maximum(jnp.dot(x, w1, preferred_element_type=jnp.float32) + b1, 0.0)
    h = jnp.dot(h, w2, preferred_element_type=jnp.float32) + b2
    return _layernorm(x + h, ln2g, ln2b)


def _decoder_layer(y, mem, wqkv, bqkv, wo, bo, ln1g, ln1b,
                   wqc, bqc, wkvc, bkvc, woc, boc, ln2g, ln2b,
                   w1, b1, w2, b2, ln3g, ln3b, nhead, scr_ref):
    """Post-norm TransformerDecoderLayer (self-attn, cross-attn, FFN)."""
    E = y.shape[-1]
    # self-attention
    qkv = jnp.dot(y, wqkv, preferred_element_type=jnp.float32) + bqkv
    a = _multihead_attend(qkv[:, :E], qkv[:, E:2 * E], qkv[:, 2 * E:], nhead, scr_ref)
    a = jnp.dot(a, wo, preferred_element_type=jnp.float32) + bo
    y = _layernorm(y + a, ln1g, ln1b)
    # cross-attention (query from decoder, key/value from encoder memory)
    qc = jnp.dot(y, wqc, preferred_element_type=jnp.float32) + bqc
    kv = jnp.dot(mem, wkvc, preferred_element_type=jnp.float32) + bkvc
    a = _multihead_attend(qc, kv[:, :E], kv[:, E:], nhead, scr_ref)
    a = jnp.dot(a, woc, preferred_element_type=jnp.float32) + boc
    y = _layernorm(y + a, ln2g, ln2b)
    # feed-forward
    h = jnp.maximum(jnp.dot(y, w1, preferred_element_type=jnp.float32) + b1, 0.0)
    h = jnp.dot(h, w2, preferred_element_type=jnp.float32) + b2
    return _layernorm(y + h, ln3g, ln3b)


# ----------------------------------------------------------------------------
# The single fused kernel
# ----------------------------------------------------------------------------

def _fused_transformer_kernel(
    # per-batch inputs
    src_ref, tgt_ref,
    # input projection Linear(30 -> d_model)
    in_w_ref, in_b_ref,
    # encoder stack (each stacked over n_enc layers)
    e_wqkv_ref, e_bqkv_ref, e_wo_ref, e_bo_ref,
    e_ln1g_ref, e_ln1b_ref,
    e_w1_ref, e_b1_ref, e_w2_ref, e_b2_ref,
    e_ln2g_ref, e_ln2b_ref,
    enc_ng_ref, enc_nb_ref,
    # decoder stack (each stacked over n_dec layers)
    d_wqkv_ref, d_bqkv_ref, d_wo_ref, d_bo_ref,
    d_ln1g_ref, d_ln1b_ref,
    d_wqc_ref, d_bqc_ref, d_wkvc_ref, d_bkvc_ref, d_woc_ref, d_boc_ref,
    d_ln2g_ref, d_ln2b_ref,
    d_w1_ref, d_b1_ref, d_w2_ref, d_b2_ref,
    d_ln3g_ref, d_ln3b_ref,
    dec_ng_ref, dec_nb_ref,
    # output projection ("self.decoder") Linear(d_model -> d_out)
    out_w_ref, out_b_ref,
    # output
    o_ref,
    # scratch
    attn_scr,
    *, nhead, n_enc, n_dec):

    # ---- input projection: src.view(-1, 30) @ W + b -----------------------
    x = jnp.dot(src_ref[0], in_w_ref[...],
                preferred_element_type=jnp.float32) + in_b_ref[...]       # (S, E)

    # ---- encoder stack + final encoder LayerNorm ---------------------------
    for l in range(n_enc):
        x = _encoder_layer(
            x,
            e_wqkv_ref[l], e_bqkv_ref[l], e_wo_ref[l], e_bo_ref[l],
            e_ln1g_ref[l], e_ln1b_ref[l],
            e_w1_ref[l], e_b1_ref[l], e_w2_ref[l], e_b2_ref[l],
            e_ln2g_ref[l], e_ln2b_ref[l],
            nhead, attn_scr)
    mem = _layernorm(x, enc_ng_ref[...], enc_nb_ref[...])                 # (S, E)

    # ---- decoder stack + final decoder LayerNorm ---------------------------
    y = tgt_ref[0]                                                        # (T, E)
    for l in range(n_dec):
        y = _decoder_layer(
            y, mem,
            d_wqkv_ref[l], d_bqkv_ref[l], d_wo_ref[l], d_bo_ref[l],
            d_ln1g_ref[l], d_ln1b_ref[l],
            d_wqc_ref[l], d_bqc_ref[l], d_wkvc_ref[l], d_bkvc_ref[l],
            d_woc_ref[l], d_boc_ref[l], d_ln2g_ref[l], d_ln2b_ref[l],
            d_w1_ref[l], d_b1_ref[l], d_w2_ref[l], d_b2_ref[l],
            d_ln3g_ref[l], d_ln3b_ref[l],
            nhead, attn_scr)
    y = _layernorm(y, dec_ng_ref[...], dec_nb_ref[...])                   # (T, E)

    # ---- output projection + log_softmax (fused epilogue) ------------------
    logits = jnp.dot(y, out_w_ref[...],
                     preferred_element_type=jnp.float32) + out_b_ref[...]  # (T, d_out)
    m = jnp.max(logits, axis=-1, keepdims=True)
    s = logits - m
    lse = jnp.log(jnp.sum(jnp.exp(s), axis=-1, keepdims=True))
    o_ref[0] = (s - lse).astype(o_ref.dtype)


# ----------------------------------------------------------------------------
# Wrapper: one pallas_call for the whole forward pass
# ----------------------------------------------------------------------------

def own_transformer_forward(src, tgt, params, nhead):
    """Replicates OwnTransformerModel.forward (eval mode; masks unused, as in the spec)."""
    B, _, L30 = src.shape
    S = L30 // 30
    E = params["in_w"].shape[1]
    T = tgt.shape[0]
    d_out = params["out_w"].shape[1]
    n_enc = params["e_wqkv"].shape[0]
    n_dec = params["d_wqkv"].shape[0]

    src_b = src.reshape(B, S, 30)            # src.view(-1, 1, 30): 30-sample windows per batch
    tgt_b = jnp.transpose(tgt, (1, 0, 2))    # (T, B, E) -> (B, T, E): one batch elem per grid step

    order = [
        "in_w", "in_b",
        "e_wqkv", "e_bqkv", "e_wo", "e_bo",
        "e_ln1g", "e_ln1b",
        "e_w1", "e_b1", "e_w2", "e_b2",
        "e_ln2g", "e_ln2b",
        "enc_ng", "enc_nb",
        "d_wqkv", "d_bqkv", "d_wo", "d_bo",
        "d_ln1g", "d_ln1b",
        "d_wqc", "d_bqc", "d_wkvc", "d_bkvc", "d_woc", "d_boc",
        "d_ln2g", "d_ln2b",
        "d_w1", "d_b1", "d_w2", "d_b2",
        "d_ln3g", "d_ln3b",
        "dec_ng", "dec_nb",
        "out_w", "out_b",
    ]
    weights = [params[k] for k in order]

    def _full(a):
        # Whole-array block, constant index map -> weight stays resident in VMEM
        # across grid steps (fetched once).
        nd = a.ndim
        shape = a.shape
        return pl.BlockSpec(shape, lambda b: (0,) * nd)

    in_specs = ([pl.BlockSpec((1, S, 30), lambda b: (b, 0, 0)),
                 pl.BlockSpec((1, T, E), lambda b: (b, 0, 0))]
                + [_full(a) for a in weights])

    kernel = functools.partial(_fused_transformer_kernel,
                               nhead=nhead, n_enc=n_enc, n_dec=n_dec)

    out = pl.pallas_call(
        kernel,
        out_shape=jax.ShapeDtypeStruct((B, T, d_out), jnp.float32),
        grid=(B,),
        in_specs=in_specs,
        out_specs=pl.BlockSpec((1, T, d_out), lambda b: (b, 0, 0)),
        scratch_shapes=[pltpu.VMEM((max(S, T), E), jnp.float32)],  # head-concat scratch
        compiler_params=pltpu.CompilerParams(
            dimension_semantics=("parallel",),   # batch axis: 2nd TensorCore on v7x
        ),
    )(src_b, tgt_b, *weights)

    return jnp.transpose(out, (1, 0, 2))      # (T, B, d_out): torch batch_first=False layout


# ----------------------------------------------------------------------------
# Deterministic parameter construction
# ----------------------------------------------------------------------------

class _KeyGen:
    def __init__(self, key):
        self._key = key

    def __call__(self):
        self._key, sub = jax.random.split(self._key)
        return sub


def init_params(key, d_model, nhead, n_enc, n_dec, dff, d_out):
    del nhead
    kg = _KeyGen(key)
    E = d_model
    u = lambda shape: jax.random.uniform(kg(), shape, jnp.float32, -0.1, 0.1)
    ones = lambda n, d: jnp.ones((n, 1, d), jnp.float32)
    zeros = lambda n, d: jnp.zeros((n, 1, d), jnp.float32)
    return {
        # input projection Linear(30 -> d_model)
        "in_w": u((30, E)), "in_b": u((1, E)),
        # encoder layers (stacked over layer axis); QKV fused into one (E, 3E) matmul
        "e_wqkv": u((n_enc, E, 3 * E)), "e_bqkv": u((n_enc, 1, 3 * E)),
        "e_wo": u((n_enc, E, E)), "e_bo": u((n_enc, 1, E)),
        "e_ln1g": ones(n_enc, E), "e_ln1b": zeros(n_enc, E),
        "e_w1": u((n_enc, E, dff)), "e_b1": u((n_enc, 1, dff)),
        "e_w2": u((n_enc, dff, E)), "e_b2": u((n_enc, 1, E)),
        "e_ln2g": ones(n_enc, E), "e_ln2b": zeros(n_enc, E),
        "enc_ng": jnp.ones((1, E), jnp.float32), "enc_nb": jnp.zeros((1, E), jnp.float32),
        # decoder layers; self-attn QKV fused (E,3E), cross-attn K/V fused (E,2E)
        "d_wqkv": u((n_dec, E, 3 * E)), "d_bqkv": u((n_dec, 1, 3 * E)),
        "d_wo": u((n_dec, E, E)), "d_bo": u((n_dec, 1, E)),
        "d_ln1g": ones(n_dec, E), "d_ln1b": zeros(n_dec, E),
        "d_wqc": u((n_dec, E, E)), "d_bqc": u((n_dec, 1, E)),
        "d_wkvc": u((n_dec, E, 2 * E)), "d_bkvc": u((n_dec, 1, 2 * E)),
        "d_woc": u((n_dec, E, E)), "d_boc": u((n_dec, 1, E)),
        "d_ln2g": ones(n_dec, E), "d_ln2b": zeros(n_dec, E),
        "d_w1": u((n_dec, E, dff)), "d_b1": u((n_dec, 1, dff)),
        "d_w2": u((n_dec, dff, E)), "d_b2": u((n_dec, 1, E)),
        "d_ln3g": ones(n_dec, E), "d_ln3b": zeros(n_dec, E),
        "dec_ng": jnp.ones((1, E), jnp.float32), "dec_nb": jnp.zeros((1, E), jnp.float32),
        # output projection ("self.decoder") + log_softmax
        "out_w": u((E, d_out)), "out_b": u((1, d_out)),
    }


# ----------------------------------------------------------------------------
# Demo
# ----------------------------------------------------------------------------

if __name__ == "__main__":
    # Small but consistent hyperparameters (d_model divisible by nhead).
    d_out = 5
    batch = 2
    d_model = 32
    nhead = 4
    num_encoder_layers = 2
    num_decoder_layers = 2
    dim_feedforward = 64
    seq_len = 4          # src last dim = seq_len * 30
    tgt_len = 4

    key = jax.random.PRNGKey(0)
    k_param, k_src, k_tgt = jax.random.split(key, 3)

    params = init_params(k_param, d_model, nhead,
                         num_encoder_layers, num_decoder_layers,
                         dim_feedforward, d_out)

    src = jax.random.normal(k_src, (batch, 1, seq_len * 30), jnp.float32)   # (B, C=1, S*30)
    tgt = jax.random.normal(k_tgt, (tgt_len, batch, d_model), jnp.float32)  # (T, B, d_model)

    fwd = jax.jit(own_transformer_forward, static_argnums=3)
    out = fwd(src, tgt, params, nhead)
    out = jax.block_until_ready(out)

    assert out.shape == (tgt_len, batch, d_out), out.shape
    assert bool(jnp.all(jnp.isfinite(out)))
    # log_softmax sanity: each row sums (in prob space) to ~1
    assert jnp.allclose(jnp.exp(out).sum(-1), 1.0, atol=1e-4)
    print("KERNEL_OK")
</pallas_src>

<mosaic_0001>
module attributes {stable_mosaic.version = 11 : i64} {
  func.func @_fused_transformer_kernel(%arg0: i32, %arg1: memref<1x4x30xf32, #tpu.memory_space<vmem>>, %arg2: memref<1x4x32xf32, #tpu.memory_space<vmem>>, %arg3: memref<30x32xf32, #tpu.memory_space<vmem>>, %arg4: memref<1x32xf32, #tpu.memory_space<vmem>>, %arg5: memref<2x32x96xf32, #tpu.memory_space<vmem>>, %arg6: memref<2x1x96xf32, #tpu.memory_space<vmem>>, %arg7: memref<2x32x32xf32, #tpu.memory_space<vmem>>, %arg8: memref<2x1x32xf32, #tpu.memory_space<vmem>>, %arg9: memref<2x1x32xf32, #tpu.memory_space<vmem>>, %arg10: memref<2x1x32xf32, #tpu.memory_space<vmem>>, %arg11: memref<2x32x64xf32, #tpu.memory_space<vmem>>, %arg12: memref<2x1x64xf32, #tpu.memory_space<vmem>>, %arg13: memref<2x64x32xf32, #tpu.memory_space<vmem>>, %arg14: memref<2x1x32xf32, #tpu.memory_space<vmem>>, %arg15: memref<2x1x32xf32, #tpu.memory_space<vmem>>, %arg16: memref<2x1x32xf32, #tpu.memory_space<vmem>>, %arg17: memref<1x32xf32, #tpu.memory_space<vmem>>, %arg18: memref<1x32xf32, #tpu.memory_space<vmem>>, %arg19: memref<2x32x96xf32, #tpu.memory_space<vmem>>, %arg20: memref<2x1x96xf32, #tpu.memory_space<vmem>>, %arg21: memref<2x32x32xf32, #tpu.memory_space<vmem>>, %arg22: memref<2x1x32xf32, #tpu.memory_space<vmem>>, %arg23: memref<2x1x32xf32, #tpu.memory_space<vmem>>, %arg24: memref<2x1x32xf32, #tpu.memory_space<vmem>>, %arg25: memref<2x32x32xf32, #tpu.memory_space<vmem>>, %arg26: memref<2x1x32xf32, #tpu.memory_space<vmem>>, %arg27: memref<2x32x64xf32, #tpu.memory_space<vmem>>, %arg28: memref<2x1x64xf32, #tpu.memory_space<vmem>>, %arg29: memref<2x32x32xf32, #tpu.memory_space<vmem>>, %arg30: memref<2x1x32xf32, #tpu.memory_space<vmem>>, %arg31: memref<2x1x32xf32, #tpu.memory_space<vmem>>, %arg32: memref<2x1x32xf32, #tpu.memory_space<vmem>>, %arg33: memref<2x32x64xf32, #tpu.memory_space<vmem>>, %arg34: memref<2x1x64xf32, #tpu.memory_space<vmem>>, %arg35: memref<2x64x32xf32, #tpu.memory_space<vmem>>, %arg36: memref<2x1x32xf32, #tpu.memory_space<vmem>>, %arg37: memref<2x1x32xf32, #tpu.memory_space<vmem>>, %arg38: memref<2x1x32xf32, #tpu.memory_space<vmem>>, %arg39: memref<1x32xf32, #tpu.memory_space<vmem>>, %arg40: memref<1x32xf32, #tpu.memory_space<vmem>>, %arg41: memref<32x5xf32, #tpu.memory_space<vmem>>, %arg42: memref<1x5xf32, #tpu.memory_space<vmem>>, %arg43: memref<1x4x5xf32, #tpu.memory_space<vmem>>, %arg44: memref<4x32xf32, #tpu.memory_space<vmem>>) attributes {dimension_semantics = [#tpu.dimension_semantics<parallel>], iteration_bounds = array<i64: 2>, scalar_prefetch = 0 : i64, scratch_operands = 1 : i64, tpu.core_type = #tpu.core_type<tc>, window_params = [{transform_indices = @transform_0, window_bounds = array<i64: 1, 4, 30>}, {transform_indices = @transform_1, window_bounds = array<i64: 1, 4, 32>}, {pipeline_mode = #tpu.pipeline_mode<synchronous>, transform_indices = @transform_2, window_bounds = array<i64: 30, 32>}, {pipeline_mode = #tpu.pipeline_mode<synchronous>, transform_indices = @transform_3, window_bounds = array<i64: 1, 32>}, {pipeline_mode = #tpu.pipeline_mode<synchronous>, transform_indices = @transform_4, window_bounds = array<i64: 2, 32, 96>}, {pipeline_mode = #tpu.pipeline_mode<synchronous>, transform_indices = @transform_5, window_bounds = array<i64: 2, 1, 96>}, {pipeline_mode = #tpu.pipeline_mode<synchronous>, transform_indices = @transform_6, window_bounds = array<i64: 2, 32, 32>}, {pipeline_mode = #tpu.pipeline_mode<synchronous>, transform_indices = @transform_7, window_bounds = array<i64: 2, 1, 32>}, {pipeline_mode = #tpu.pipeline_mode<synchronous>, transform_indices = @transform_8, window_bounds = array<i64: 2, 1, 32>}, {pipeline_mode = #tpu.pipeline_mode<synchronous>, transform_indices = @transform_9, window_bounds = array<i64: 2, 1, 32>}, {pipeline_mode = #tpu.pipeline_mode<synchronous>, transform_indices = @transform_10, window_bounds = array<i64: 2, 32, 64>}, {pipeline_mode = #tpu.pipeline_mode<synchronous>, transform_indices = @transform_11, window_bounds = array<i64: 2, 1, 64>}, {pipeline_mode = #tpu.pipeline_mode<synchronous>, transform_indices = @transform_12, window_bounds = array<i64: 2, 64, 32>}, {pipeline_mode = #tpu.pipeline_mode<synchronous>, transform_indices = @transform_13, window_bounds = array<i64: 2, 1, 32>}, {pipeline_mode = #tpu.pipeline_mode<synchronous>, transform_indices = @transform_14, window_bounds = array<i64: 2, 1, 32>}, {pipeline_mode = #tpu.pipeline_mode<synchronous>, transform_indices = @transform_15, window_bounds = array<i64: 2, 1, 32>}, {pipeline_mode = #tpu.pipeline_mode<synchronous>, transform_indices = @transform_16, window_bounds = array<i64: 1, 32>}, {pipeline_mode = #tpu.pipeline_mode<synchronous>, transform_indices = @transform_17, window_bounds = array<i64: 1, 32>}, {pipeline_mode = #tpu.pipeline_mode<synchronous>, transform_indices = @transform_18, window_bounds = array<i64: 2, 32, 96>}, {pipeline_mode = #tpu.pipeline_mode<synchronous>, transform_indices = @transform_19, window_bounds = array<i64: 2, 1, 96>}, {pipeline_mode = #tpu.pipeline_mode<synchronous>, transform_indices = @transform_20, window_bounds = array<i64: 2, 32, 32>}, {pipeline_mode = #tpu.pipeline_mode<synchronous>, transform_indices = @transform_21, window_bounds = array<i64: 2, 1, 32>}, {pipeline_mode = #tpu.pipeline_mode<synchronous>, transform_indices = @transform_22, window_bounds = array<i64: 2, 1, 32>}, {pipeline_mode = #tpu.pipeline_mode<synchronous>, transform_indices = @transform_23, window_bounds = array<i64: 2, 1, 32>}, {pipeline_mode = #tpu.pipeline_mode<synchronous>, transform_indices = @transform_24, window_bounds = array<i64: 2, 32, 32>}, {pipeline_mode = #tpu.pipeline_mode<synchronous>, transform_indices = @transform_25, window_bounds = array<i64: 2, 1, 32>}, {pipeline_mode = #tpu.pipeline_mode<synchronous>, transform_indices = @transform_26, window_bounds = array<i64: 2, 32, 64>}, {pipeline_mode = #tpu.pipeline_mode<synchronous>, transform_indices = @transform_27, window_bounds = array<i64: 2, 1, 64>}, {pipeline_mode = #tpu.pipeline_mode<synchronous>, transform_indices = @transform_28, window_bounds = array<i64: 2, 32, 32>}, {pipeline_mode = #tpu.pipeline_mode<synchronous>, transform_indices = @transform_29, window_bounds = array<i64: 2, 1, 32>}, {pipeline_mode = #tpu.pipeline_mode<synchronous>, transform_indices = @transform_30, window_bounds = array<i64: 2, 1, 32>}, {pipeline_mode = #tpu.pipeline_mode<synchronous>, transform_indices = @transform_31, window_bounds = array<i64: 2, 1, 32>}, {pipeline_mode = #tpu.pipeline_mode<synchronous>, transform_indices = @transform_32, window_bounds = array<i64: 2, 32, 64>}, {pipeline_mode = #tpu.pipeline_mode<synchronous>, transform_indices = @transform_33, window_bounds = array<i64: 2, 1, 64>}, {pipeline_mode = #tpu.pipeline_mode<synchronous>, transform_indices = @transform_34, window_bounds = array<i64: 2, 64, 32>}, {pipeline_mode = #tpu.pipeline_mode<synchronous>, transform_indices = @transform_35, window_bounds = array<i64: 2, 1, 32>}, {pipeline_mode = #tpu.pipeline_mode<synchronous>, transform_indices = @transform_36, window_bounds = array<i64: 2, 1, 32>}, {pipeline_mode = #tpu.pipeline_mode<synchronous>, transform_indices = @transform_37, window_bounds = array<i64: 2, 1, 32>}, {pipeline_mode = #tpu.pipeline_mode<synchronous>, transform_indices = @transform_38, window_bounds = array<i64: 1, 32>}, {pipeline_mode = #tpu.pipeline_mode<synchronous>, transform_indices = @transform_39, window_bounds = array<i64: 1, 32>}, {pipeline_mode = #tpu.pipeline_mode<synchronous>, transform_indices = @transform_40, window_bounds = array<i64: 32, 5>}, {pipeline_mode = #tpu.pipeline_mode<synchronous>, transform_indices = @transform_41, window_bounds = array<i64: 1, 5>}, {transform_indices = @transform_42, window_bounds = array<i64: 1, 4, 5>}]} {
    %c0 = arith.constant 0 : index
    %c0_0 = arith.constant 0 : index
    %c0_1 = arith.constant 0 : index
    %0 = vector.load %arg1[%c0, %c0_0, %c0_1] : memref<1x4x30xf32, #tpu.memory_space<vmem>>, vector<1x4x30xf32>
    %1 = vector.shape_cast %0 : vector<1x4x30xf32> to vector<4x30xf32>
    %c0_2 = arith.constant 0 : index
    %c0_3 = arith.constant 0 : index
    %2 = vector.load %arg3[%c0_2, %c0_3] : memref<30x32xf32, #tpu.memory_space<vmem>>, vector<30x32xf32>
    %cst = arith.constant dense<0.000000e+00> : vector<4x32xf32>
    %3 = tpu.matmul %1, %2, %cst {dimension_numbers = #tpu.dot_dimension_numbers<[1], [0], [0], [1], [0, 0, 1, 1], [], []>} : vector<4x30xf32>, vector<30x32xf32>, vector<4x32xf32> -> vector<4x32xf32>
    %c0_4 = arith.constant 0 : index
    %c0_5 = arith.constant 0 : index
    %4 = vector.load %arg4[%c0_4, %c0_5] : memref<1x32xf32, #tpu.memory_space<vmem>>, vector<1x32xf32>
    %5 = vector.broadcast %4 : vector<1x32xf32> to vector<4x32xf32>
    %6 = arith.addf %3, %5 : vector<4x32xf32>
    %c0_6 = arith.constant 0 : index
    %c0_7 = arith.constant 0 : index
    %c0_8 = arith.constant 0 : index
    %7 = vector.load %arg5[%c0_6, %c0_7, %c0_8] : memref<2x32x96xf32, #tpu.memory_space<vmem>>, vector<1x32x96xf32>
    %8 = vector.shape_cast %7 : vector<1x32x96xf32> to vector<32x96xf32>
    %c0_9 = arith.constant 0 : index
    %c0_10 = arith.constant 0 : index
    %c0_11 = arith.constant 0 : index
    %9 = vector.load %arg6[%c0_9, %c0_10, %c0_11] : memref<2x1x96xf32, #tpu.memory_space<vmem>>, vector<1x1x96xf32>
    %10 = vector.shape_cast %9 : vector<1x1x96xf32> to vector<1x96xf32>
    %c0_12 = arith.constant 0 : index
    %c0_13 = arith.constant 0 : index
    %c0_14 = arith.constant 0 : index
    %11 = vector.load %arg7[%c0_12, %c0_13, %c0_14] : memref<2x32x32xf32, #tpu.memory_space<vmem>>, vector<1x32x32xf32>
    %12 = vector.shape_cast %11 : vector<1x32x32xf32> to vector<32x32xf32>
    %c0_15 = arith.constant 0 : index
    %c0_16 = arith.constant 0 : index
    %c0_17 = arith.constant 0 : index
    %13 = vector.load %arg8[%c0_15, %c0_16, %c0_17] : memref<2x1x32xf32, #tpu.memory_space<vmem>>, vector<1x1x32xf32>
    %14 = vector.shape_cast %13 : vector<1x1x32xf32> to vector<1x32xf32>
    %c0_18 = arith.constant 0 : index
    %c0_19 = arith.constant 0 : index
    %c0_20 = arith.constant 0 : index
    %15 = vector.load %arg9[%c0_18, %c0_19, %c0_20] : memref<2x1x32xf32, #tpu.memory_space<vmem>>, vector<1x1x32xf32>
    %16 = vector.shape_cast %15 : vector<1x1x32xf32> to vector<1x32xf32>
    %c0_21 = arith.constant 0 : index
    %c0_22 = arith.constant 0 : index
    %c0_23 = arith.constant 0 : index
    %17 = vector.load %arg10[%c0_21, %c0_22, %c0_23] : memref<2x1x32xf32, #tpu.memory_space<vmem>>, vector<1x1x32xf32>
    %18 = vector.shape_cast %17 : vector<1x1x32xf32> to vector<1x32xf32>
    %c0_24 = arith.constant 0 : index
    %c0_25 = arith.constant 0 : index
    %c0_26 = arith.constant 0 : index
    %19 = vector.load %arg11[%c0_24, %c0_25, %c0_26] : memref<2x32x64xf32, #tpu.memory_space<vmem>>, vector<1x32x64xf32>
    %20 = vector.shape_cast %19 : vector<1x32x64xf32> to vector<32x64xf32>
    %c0_27 = arith.constant 0 : index
    %c0_28 = arith.constant 0 : index
    %c0_29 = arith.constant 0 : index
    %21 = vector.load %arg12[%c0_27, %c0_28, %c0_29] : memref<2x1x64xf32, #tpu.memory_space<vmem>>, vector<1x1x64xf32>
    %22 = vector.shape_cast %21 : vector<1x1x64xf32> to vector<1x64xf32>
    %c0_30 = arith.constant 0 : index
    %c0_31 = arith.constant 0 : index
    %c0_32 = arith.constant 0 : index
    %23 = vector.load %arg13[%c0_30, %c0_31, %c0_32] : memref<2x64x32xf32, #tpu.memory_space<vmem>>, vector<1x64x32xf32>
    %24 = vector.shape_cast %23 : vector<1x64x32xf32> to vector<64x32xf32>
    %c0_33 = arith.constant 0 : index
    %c0_34 = arith.constant 0 : index
    %c0_35 = arith.constant 0 : index
    %25 = vector.load %arg14[%c0_33, %c0_34, %c0_35] : memref<2x1x32xf32, #tpu.memory_space<vmem>>, vector<1x1x32xf32>
    %26 = vector.shape_cast %25 : vector<1x1x32xf32> to vector<1x32xf32>
    %c0_36 = arith.constant 0 : index
    %c0_37 = arith.constant 0 : index
    %c0_38 = arith.constant 0 : index
    %27 = vector.load %arg15[%c0_36, %c0_37, %c0_38] : memref<2x1x32xf32, #tpu.memory_space<vmem>>, vector<1x1x32xf32>
    %28 = vector.shape_cast %27 : vector<1x1x32xf32> to vector<1x32xf32>
    %c0_39 = arith.constant 0 : index
    %c0_40 = arith.constant 0 : index
    %c0_41 = arith.constant 0 : index
    %29 = vector.load %arg16[%c0_39, %c0_40, %c0_41] : memref<2x1x32xf32, #tpu.memory_space<vmem>>, vector<1x1x32xf32>
    %30 = vector.shape_cast %29 : vector<1x1x32xf32> to vector<1x32xf32>
    %cst_42 = arith.constant dense<0.000000e+00> : vector<4x96xf32>
    %31 = tpu.matmul %6, %8, %cst_42 {dimension_numbers = #tpu.dot_dimension_numbers<[1], [0], [0], [1], [0, 0, 1, 1], [], []>} : vector<4x32xf32>, vector<32x96xf32>, vector<4x96xf32> -> vector<4x96xf32>
    %32 = vector.broadcast %10 : vector<1x96xf32> to vector<4x96xf32>
    %33 = arith.addf %31, %32 : vector<4x96xf32>
    %34 = vector.extract_strided_slice %33 {offsets = [0, 0], sizes = [4, 32], strides = [1, 1]} : vector<4x96xf32> to vector<4x32xf32>
    %35 = vector.extract_strided_slice %33 {offsets = [0, 32], sizes = [4, 32], strides = [1, 1]} : vector<4x96xf32> to vector<4x32xf32>
    %36 = vector.extract_strided_slice %33 {offsets = [0, 64], sizes = [4, 32], strides = [1, 1]} : vector<4x96xf32> to vector<4x32xf32>
    %37 = vector.extract_strided_slice %34 {offsets = [0, 0], sizes = [4, 8], strides = [1, 1]} : vector<4x32xf32> to vector<4x8xf32>
    %38 = vector.extract_strided_slice %35 {offsets = [0, 0], sizes = [4, 8], strides = [1, 1]} : vector<4x32xf32> to vector<4x8xf32>
    %39 = vector.extract_strided_slice %36 {offsets = [0, 0], sizes = [4, 8], strides = [1, 1]} : vector<4x32xf32> to vector<4x8xf32>
    %cst_43 = arith.constant dense<0.000000e+00> : vector<4x4xf32>
    %40 = tpu.matmul %37, %38, %cst_43 {dimension_numbers = #tpu.dot_dimension_numbers<[1], [1], [0], [0], [0, 0, 1, 0], [], []>} : vector<4x8xf32>, vector<4x8xf32>, vector<4x4xf32> -> vector<4x4xf32>
    %cst_44 = arith.constant 0.353553385 : f32
    %41 = vector.broadcast %cst_44 : f32 to vector<4x4xf32>
    %42 = arith.mulf %40, %41 : vector<4x4xf32>
    %cst_45 = arith.constant dense<0xFF800000> : vector<4xf32>
    %43 = vector.multi_reduction <maximumf>, %42, %cst_45 [1] : vector<4x4xf32> to vector<4xf32>
    %44 = vector.shape_cast %43 : vector<4xf32> to vector<4x1xf32>
    %45 = vector.broadcast %44 : vector<4x1xf32> to vector<4x4xf32>
    %46 = arith.subf %42, %45 : vector<4x4xf32>
    %47 = math.exp %46 : vector<4x4xf32>
    %cst_46 = arith.constant dense<0.000000e+00> : vector<4xf32>
    %48 = vector.multi_reduction <add>, %47, %cst_46 [1] : vector<4x4xf32> to vector<4xf32>
    %49 = vector.shape_cast %48 : vector<4xf32> to vector<4x1xf32>
    %50 = tpu.reciprocal %49 {approx = true} : vector<4x1xf32> -> vector<4x1xf32>
    %51 = vector.broadcast %50 : vector<4x1xf32> to vector<4x4xf32>
    %52 = arith.mulf %47, %51 : vector<4x4xf32>
    %cst_47 = arith.constant dense<0.000000e+00> : vector<4x8xf32>
    %53 = tpu.matmul %52, %39, %cst_47 {dimension_numbers = #tpu.dot_dimension_numbers<[1], [0], [0], [1], [0, 0, 1, 1], [], []>} : vector<4x4xf32>, vector<4x8xf32>, vector<4x8xf32> -> vector<4x8xf32>
    %c0_48 = arith.constant 0 : index
    %c0_49 = arith.constant 0 : index
    %54 = vector.load %arg44[%c0_48, %c0_49] : memref<4x32xf32, #tpu.memory_space<vmem>>, vector<4x8xf32>
    tpu.vector_store %arg44[%c0_48, %c0_49], %53 {strides = array<i32>} : memref<4x32xf32, #tpu.memory_space<vmem>>, vector<4x8xf32>,
    %55 = vector.extract_strided_slice %34 {offsets = [0, 8], sizes = [4, 8], strides = [1, 1]} : vector<4x32xf32> to vector<4x8xf32>
    %56 = vector.extract_strided_slice %35 {offsets = [0, 8], sizes = [4, 8], strides = [1, 1]} : vector<4x32xf32> to vector<4x8xf32>
    %57 = vector.extract_strided_slice %36 {offsets = [0, 8], sizes = [4, 8], strides = [1, 1]} : vector<4x32xf32> to vector<4x8xf32>
    %cst_50 = arith.constant dense<0.000000e+00> : vector<4x4xf32>
    %58 = tpu.matmul %55, %56, %cst_50 {dimension_numbers = #tpu.dot_dimension_numbers<[1], [1], [0], [0], [0, 0, 1, 0], [], []>} : vector<4x8xf32>, vector<4x8xf32>, vector<4x4xf32> -> vector<4x4xf32>
    %cst_51 = arith.constant 0.353553385 : f32
    %59 = vector.broadcast %cst_51 : f32 to vector<4x4xf32>
    %60 = arith.mulf %58, %59 : vector<4x4xf32>
    %cst_52 = arith.constant dense<0xFF800000> : vector<4xf32>
    %61 = vector.multi_reduction <maximumf>, %60, %cst_52 [1] : vector<4x4xf32> to vector<4xf32>
    %62 = vector.shape_cast %61 : vector<4xf32> to vector<4x1xf32>
    %63 = vector.broadcast %62 : vector<4x1xf32> to vector<4x4xf32>
    %64 = arith.subf %60, %63 : vector<4x4xf32>
    %65 = math.exp %64 : vector<4x4xf32>
    %cst_53 = arith.constant dense<0.000000e+00> : vector<4xf32>
    %66 = vector.multi_reduction <add>, %65, %cst_53 [1] : vector<4x4xf32> to vector<4xf32>
    %67 = vector.shape_cast %66 : vector<4xf32> to vector<4x1xf32>
    %68 = tpu.reciprocal %67 {approx = true} : vector<4x1xf32> -> vector<4x1xf32>
    %69 = vector.broadcast %68 : vector<4x1xf32> to vector<4x4xf32>
    %70 = arith.mulf %65, %69 : vector<4x4xf32>
    %cst_54 = arith.constant dense<0.000000e+00> : vector<4x8xf32>
    %71 = tpu.matmul %70, %57, %cst_54 {dimension_numbers = #tpu.dot_dimension_numbers<[1], [0], [0], [1], [0, 0, 1, 1], [], []>} : vector<4x4xf32>, vector<4x8xf32>, vector<4x8xf32> -> vector<4x8xf32>
    %c0_55 = arith.constant 0 : index
    %c8 = arith.constant 8 : index
    %72 = vector.load %arg44[%c0_55, %c8] : memref<4x32xf32, #tpu.memory_space<vmem>>, vector<4x8xf32>
    tpu.vector_store %arg44[%c0_55, %c8], %71 {strides = array<i32>} : memref<4x32xf32, #tpu.memory_space<vmem>>, vector<4x8xf32>,
    %73 = vector.extract_strided_slice %34 {offsets = [0, 16], sizes = [4, 8], strides = [1, 1]} : vector<4x32xf32> to vector<4x8xf32>
    %74 = vector.extract_strided_slice %35 {offsets = [0, 16], sizes = [4, 8], strides = [1, 1]} : vector<4x32xf32> to vector<4x8xf32>
    %75 = vector.extract_strided_slice %36 {offsets = [0, 16], sizes = [4, 8], strides = [1, 1]} : vector<4x32xf32> to vector<4x8xf32>
    %cst_56 = arith.constant dense<0.000000e+00> : vector<4x4xf32>
    %76 = tpu.matmul %73, %74, %cst_56 {dimension_numbers = #tpu.dot_dimension_numbers<[1], [1], [0], [0], [0, 0, 1, 0], [], []>} : vector<4x8xf32>, vector<4x8xf32>, vector<4x4xf32> -> vector<4x4xf32>
    %cst_57 = arith.constant 0.353553385 : f32
    %77 = vector.broadcast %cst_57 : f32 to vector<4x4xf32>
    %78 = arith.mulf %76, %77 : vector<4x4xf32>
    %cst_58 = arith.constant dense<0xFF800000> : vector<4xf32>
    %79 = vector.multi_reduction <maximumf>, %78, %cst_58 [1] : vector<4x4xf32> to vector<4xf32>
    %80 = vector.shape_cast %79 : vector<4xf32> to vector<4x1xf32>
    %81 = vector.broadcast %80 : vector<4x1xf32> to vector<4x4xf32>
    %82 = arith.subf %78, %81 : vector<4x4xf32>
    %83 = math.exp %82 : vector<4x4xf32>
    %cst_59 = arith.constant dense<0.000000e+00> : vector<4xf32>
    %84 = vector.multi_reduction <add>, %83, %cst_59 [1] : vector<4x4xf32> to vector<4xf32>
    %85 = vector.shape_cast %84 : vector<4xf32> to vector<4x1xf32>
    %86 = tpu.reciprocal %85 {approx = true} : vector<4x1xf32> -> vector<4x1xf32>
    %87 = vector.broadcast %86 : vector<4x1xf32> to vector<4x4xf32>
    %88 = arith.mulf %83, %87 : vector<4x4xf32>
    %cst_60 = arith.constant dense<0.000000e+00> : vector<4x8xf32>
    %89 = tpu.matmul %88, %75, %cst_60 {dimension_numbers = #tpu.dot_dimension_numbers<[1], [0], [0], [1], [0, 0, 1, 1], [], []>} : vector<4x4xf32>, vector<4x8xf32>, vector<4x8xf32> -> vector<4x8xf32>
    %c0_61 = arith.constant 0 : index
    %c16 = arith.constant 16 : index
    %90 = vector.load %arg44[%c0_61, %c16] : memref<4x32xf32, #tpu.memory_space<vmem>>, vector<4x8xf32>
    tpu.vector_store %arg44[%c0_61, %c16], %89 {strides = array<i32>} : memref<4x32xf32, #tpu.memory_space<vmem>>, vector<4x8xf32>,
    %91 = vector.extract_strided_slice %34 {offsets = [0, 24], sizes = [4, 8], strides = [1, 1]} : vector<4x32xf32> to vector<4x8xf32>
    %92 = vector.extract_strided_slice %35 {offsets = [0, 24], sizes = [4, 8], strides = [1, 1]} : vector<4x32xf32> to vector<4x8xf32>
    %93 = vector.extract_strided_slice %36 {offsets = [0, 24], sizes = [4, 8], strides = [1, 1]} : vector<4x32xf32> to vector<4x8xf32>
    %cst_62 = arith.constant dense<0.000000e+00> : vector<4x4xf32>
    %94 = tpu.matmul %91, %92, %cst_62 {dimension_numbers = #tpu.dot_dimension_numbers<[1], [1], [0], [0], [0, 0, 1, 0], [], []>} : vector<4x8xf32>, vector<4x8xf32>, vector<4x4xf32> -> vector<4x4xf32>
    %cst_63 = arith.constant 0.353553385 : f32
    %95 = vector.broadcast %cst_63 : f32 to vector<4x4xf32>
    %96 = arith.mulf %94, %95 : vector<4x4xf32>
    %cst_64 = arith.constant dense<0xFF800000> : vector<4xf32>
    %97 = vector.multi_reduction <maximumf>, %96, %cst_64 [1] : vector<4x4xf32> to vector<4xf32>
    %98 = vector.shape_cast %97 : vector<4xf32> to vector<4x1xf32>
    %99 = vector.broadcast %98 : vector<4x1xf32> to vector<4x4xf32>
    %100 = arith.subf %96, %99 : vector<4x4xf32>
    %101 = math.exp %100 : vector<4x4xf32>
    %cst_65 = arith.constant dense<0.000000e+00> : vector<4xf32>
    %102 = vector.multi_reduction <add>, %101, %cst_65 [1] : vector<4x4xf32> to vector<4xf32>
    %103 = vector.shape_cast %102 : vector<4xf32> to vector<4x1xf32>
    %104 = tpu.reciprocal %103 {approx = true} : vector<4x1xf32> -> vector<4x1xf32>
    %105 = vector.broadcast %104 : vector<4x1xf32> to vector<4x4xf32>
    %106 = arith.mulf %101, %105 : vector<4x4xf32>
    %cst_66 = arith.constant dense<0.000000e+00> : vector<4x8xf32>
    %107 = tpu.matmul %106, %93, %cst_66 {dimension_numbers = #tpu.dot_dimension_numbers<[1], [0], [0], [1], [0, 0, 1, 1], [], []>} : vector<4x4xf32>, vector<4x8xf32>, vector<4x8xf32> -> vector<4x8xf32>
    %c0_67 = arith.constant 0 : index
    %c24 = arith.constant 24 : index
    %108 = vector.load %arg44[%c0_67, %c24] : memref<4x32xf32, #tpu.memory_space<vmem>>, vector<4x8xf32>
    tpu.vector_store %arg44[%c0_67, %c24], %107 {strides = array<i32>} : memref<4x32xf32, #tpu.memory_space<vmem>>, vector<4x8xf32>,
    %c0_68 = arith.constant 0 : index
    %c0_69 = arith.constant 0 : index
    %109 = vector.load %arg44[%c0_68, %c0_69] : memref<4x32xf32, #tpu.memory_space<vmem>>, vector<4x32xf32>
    %cst_70 = arith.constant dense<0.000000e+00> : vector<4x32xf32>
    %110 = tpu.matmul %109, %12, %cst_70 {dimension_numbers = #tpu.dot_dimension_numbers<[1], [0], [0], [1], [0, 0, 1, 1], [], []>} : vector<4x32xf32>, vector<32x32xf32>, vector<4x32xf32> -> vector<4x32xf32>
    %111 = vector.broadcast %14 : vector<1x32xf32> to vector<4x32xf32>
    %112 = arith.addf %110, %111 : vector<4x32xf32>
    %113 = arith.addf %6, %112 : vector<4x32xf32>
    %cst_71 = arith.constant dense<0.000000e+00> : vector<4xf32>
    %114 = vector.multi_reduction <add>, %113, %cst_71 [1] : vector<4x32xf32> to vector<4xf32>
    %115 = vector.shape_cast %114 : vector<4xf32> to vector<4x1xf32>
    %cst_72 = arith.constant 3.200000e+01 : f32
    %116 = vector.broadcast %cst_72 : f32 to vector<4x1xf32>
    %117 = arith.divf %115, %116 : vector<4x1xf32>
    %118 = vector.broadcast %117 : vector<4x1xf32> to vector<4x32xf32>
    %119 = arith.subf %113, %118 : vector<4x32xf32>
    %120 = arith.mulf %119, %119 : vector<4x32xf32>
    %cst_73 = arith.constant dense<0.000000e+00> : vector<4xf32>
    %121 = vector.multi_reduction <add>, %120, %cst_73 [1] : vector<4x32xf32> to vector<4xf32>
    %122 = vector.shape_cast %121 : vector<4xf32> to vector<4x1xf32>
    %cst_74 = arith.constant 3.200000e+01 : f32
    %123 = vector.broadcast %cst_74 : f32 to vector<4x1xf32>
    %124 = arith.divf %122, %123 : vector<4x1xf32>
    %125 = vector.broadcast %117 : vector<4x1xf32> to vector<4x32xf32>
    %126 = arith.subf %113, %125 : vector<4x32xf32>
    %cst_75 = arith.constant 9.99999974E-6 : f32
    %127 = vector.broadcast %cst_75 : f32 to vector<4x1xf32>
    %128 = arith.addf %124, %127 : vector<4x1xf32>
    %129 = math.rsqrt %128 : vector<4x1xf32>
    %130 = vector.broadcast %129 : vector<4x1xf32> to vector<4x32xf32>
    %131 = arith.mulf %126, %130 : vector<4x32xf32>
    %132 = vector.broadcast %16 : vector<1x32xf32> to vector<4x32xf32>
    %133 = arith.mulf %131, %132 : vector<4x32xf32>
    %134 = vector.broadcast %18 : vector<1x32xf32> to vector<4x32xf32>
    %135 = arith.addf %133, %134 : vector<4x32xf32>
    %cst_76 = arith.constant dense<0.000000e+00> : vector<4x64xf32>
    %136 = tpu.matmul %135, %20, %cst_76 {dimension_numbers = #tpu.dot_dimension_numbers<[1], [0], [0], [1], [0, 0, 1, 1], [], []>} : vector<4x32xf32>, vector<32x64xf32>, vector<4x64xf32> -> vector<4x64xf32>
    %137 = vector.broadcast %22 : vector<1x64xf32> to vector<4x64xf32>
    %138 = arith.addf %136, %137 : vector<4x64xf32>
    %cst_77 = arith.constant 0.000000e+00 : f32
    %139 = vector.broadcast %cst_77 : f32 to vector<4x64xf32>
    %140 = arith.maximumf %138, %139 : vector<4x64xf32>
    %cst_78 = arith.constant dense<0.000000e+00> : vector<4x32xf32>
    %141 = tpu.matmul %140, %24, %cst_78 {dimension_numbers = #tpu.dot_dimension_numbers<[1], [0], [0], [1], [0, 0, 1, 1], [], []>} : vector<4x64xf32>, vector<64x32xf32>, vector<4x32xf32> -> vector<4x32xf32>
    %142 = vector.broadcast %26 : vector<1x32xf32> to vector<4x32xf32>
    %143 = arith.addf %141, %142 : vector<4x32xf32>
    %144 = arith.addf %135, %143 : vector<4x32xf32>
    %cst_79 = arith.constant dense<0.000000e+00> : vector<4xf32>
    %145 = vector.multi_reduction <add>, %144, %cst_79 [1] : vector<4x32xf32> to vector<4xf32>
    %146 = vector.shape_cast %145 : vector<4xf32> to vector<4x1xf32>
    %cst_80 = arith.constant 3.200000e+01 : f32
    %147 = vector.broadcast %cst_80 : f32 to vector<4x1xf32>
    %148 = arith.divf %146, %147 : vector<4x1xf32>
    %149 = vector.broadcast %148 : vector<4x1xf32> to vector<4x32xf32>
    %150 = arith.subf %144, %149 : vector<4x32xf32>
    %151 = arith.mulf %150, %150 : vector<4x32xf32>
    %cst_81 = arith.constant dense<0.000000e+00> : vector<4xf32>
    %152 = vector.multi_reduction <add>, %151, %cst_81 [1] : vector<4x32xf32> to vector<4xf32>
    %153 = vector.shape_cast %152 : vector<4xf32> to vector<4x1xf32>
    %cst_82 = arith.constant 3.200000e+01 : f32
    %154 = vector.broadcast %cst_82 : f32 to vector<4x1xf32>
    %155 = arith.divf %153, %154 : vector<4x1xf32>
    %156 = vector.broadcast %148 : vector<4x1xf32> to vector<4x32xf32>
    %157 = arith.subf %144, %156 : vector<4x32xf32>
    %cst_83 = arith.constant 9.99999974E-6 : f32
    %158 = vector.broadcast %cst_83 : f32 to vector<4x1xf32>
    %159 = arith.addf %155, %158 : vector<4x1xf32>
    %160 = math.rsqrt %159 : vector<4x1xf32>
    %161 = vector.broadcast %160 : vector<4x1xf32> to vector<4x32xf32>
    %162 = arith.mulf %157, %161 : vector<4x32xf32>
    %163 = vector.broadcast %28 : vector<1x32xf32> to vector<4x32xf32>
    %164 = arith.mulf %162, %163 : vector<4x32xf32>
    %165 = vector.broadcast %30 : vector<1x32xf32> to vector<4x32xf32>
    %166 = arith.addf %164, %165 : vector<4x32xf32>
    %c1 = arith.constant 1 : index
    %c0_84 = arith.constant 0 : index
    %c0_85 = arith.constant 0 : index
    %167 = vector.load %arg5[%c1, %c0_84, %c0_85] : memref<2x32x96xf32, #tpu.memory_space<vmem>>, vector<1x32x96xf32>
    %168 = vector.shape_cast %167 : vector<1x32x96xf32> to vector<32x96xf32>
    %c1_86 = arith.constant 1 : index
    %c0_87 = arith.constant 0 : index
    %c0_88 = arith.constant 0 : index
    %169 = vector.load %arg6[%c1_86, %c0_87, %c0_88] : memref<2x1x96xf32, #tpu.memory_space<vmem>>, vector<1x1x96xf32>
    %170 = vector.shape_cast %169 : vector<1x1x96xf32> to vector<1x96xf32>
    %c1_89 = arith.constant 1 : index
    %c0_90 = arith.constant 0 : index
    %c0_91 = arith.constant 0 : index
    %171 = vector.load %arg7[%c1_89, %c0_90, %c0_91] : memref<2x32x32xf32, #tpu.memory_space<vmem>>, vector<1x32x32xf32>
    %172 = vector.shape_cast %171 : vector<1x32x32xf32> to vector<32x32xf32>
    %c1_92 = arith.constant 1 : index
    %c0_93 = arith.constant 0 : index
    %c0_94 = arith.constant 0 : index
    %173 = vector.load %arg8[%c1_92, %c0_93, %c0_94] : memref<2x1x32xf32, #tpu.memory_space<vmem>>, vector<1x1x32xf32>
    %174 = vector.shape_cast %173 : vector<1x1x32xf32> to vector<1x32xf32>
    %c1_95 = arith.constant 1 : index
    %c0_96 = arith.constant 0 : index
    %c0_97 = arith.constant 0 : index
    %175 = vector.load %arg9[%c1_95, %c0_96, %c0_97] : memref<2x1x32xf32, #tpu.memory_space<vmem>>, vector<1x1x32xf32>
    %176 = vector.shape_cast %175 : vector<1x1x32xf32> to vector<1x32xf32>
    %c1_98 = arith.constant 1 : index
    %c0_99 = arith.constant 0 : index
    %c0_100 = arith.constant 0 : index
    %177 = vector.load %arg10[%c1_98, %c0_99, %c0_100] : memref<2x1x32xf32, #tpu.memory_space<vmem>>, vector<1x1x32xf32>
    %178 = vector.shape_cast %177 : vector<1x1x32xf32> to vector<1x32xf32>
    %c1_101 = arith.constant 1 : index
    %c0_102 = arith.constant 0 : index
    %c0_103 = arith.constant 0 : index
    %179 = vector.load %arg11[%c1_101, %c0_102, %c0_103] : memref<2x32x64xf32, #tpu.memory_space<vmem>>, vector<1x32x64xf32>
    %180 = vector.shape_cast %179 : vector<1x32x64xf32> to vector<32x64xf32>
    %c1_104 = arith.constant 1 : index
    %c0_105 = arith.constant 0 : index
    %c0_106 = arith.constant 0 : index
    %181 = vector.load %arg12[%c1_104, %c0_105, %c0_106] : memref<2x1x64xf32, #tpu.memory_space<vmem>>, vector<1x1x64xf32>
    %182 = vector.shape_cast %181 : vector<1x1x64xf32> to vector<1x64xf32>
    %c1_107 = arith.constant 1 : index
    %c0_108 = arith.constant 0 : index
    %c0_109 = arith.constant 0 : index
    %183 = vector.load %arg13[%c1_107, %c0_108, %c0_109] : memref<2x64x32xf32, #tpu.memory_space<vmem>>, vector<1x64x32xf32>
    %184 = vector.shape_cast %183 : vector<1x64x32xf32> to vector<64x32xf32>
    %c1_110 = arith.constant 1 : index
    %c0_111 = arith.constant 0 : index
    %c0_112 = arith.constant 0 : index
    %185 = vector.load %arg14[%c1_110, %c0_111, %c0_112] : memref<2x1x32xf32, #tpu.memory_space<vmem>>, vector<1x1x32xf32>
    %186 = vector.shape_cast %185 : vector<1x1x32xf32> to vector<1x32xf32>
    %c1_113 = arith.constant 1 : index
    %c0_114 = arith.constant 0 : index
    %c0_115 = arith.constant 0 : index
    %187 = vector.load %arg15[%c1_113, %c0_114, %c0_115] : memref<2x1x32xf32, #tpu.memory_space<vmem>>, vector<1x1x32xf32>
    %188 = vector.shape_cast %187 : vector<1x1x32xf32> to vector<1x32xf32>
    %c1_116 = arith.constant 1 : index
    %c0_117 = arith.constant 0 : index
    %c0_118 = arith.constant 0 : index
    %189 = vector.load %arg16[%c1_116, %c0_117, %c0_118] : memref<2x1x32xf32, #tpu.memory_space<vmem>>, vector<1x1x32xf32>
    %190 = vector.shape_cast %189 : vector<1x1x32xf32> to vector<1x32xf32>
    %cst_119 = arith.constant dense<0.000000e+00> : vector<4x96xf32>
    %191 = tpu.matmul %166, %168, %cst_119 {dimension_numbers = #tpu.dot_dimension_numbers<[1], [0], [0], [1], [0, 0, 1, 1], [], []>} : vector<4x32xf32>, vector<32x96xf32>, vector<4x96xf32> -> vector<4x96xf32>
    %192 = vector.broadcast %170 : vector<1x96xf32> to vector<4x96xf32>
    %193 = arith.addf %191, %192 : vector<4x96xf32>
    %194 = vector.extract_strided_slice %193 {offsets = [0, 0], sizes = [4, 32], strides = [1, 1]} : vector<4x96xf32> to vector<4x32xf32>
    %195 = vector.extract_strided_slice %193 {offsets = [0, 32], sizes = [4, 32], strides = [1, 1]} : vector<4x96xf32> to vector<4x32xf32>
    %196 = vector.extract_strided_slice %193 {offsets = [0, 64], sizes = [4, 32], strides = [1, 1]} : vector<4x96xf32> to vector<4x32xf32>
    %197 = vector.extract_strided_slice %194 {offsets = [0, 0], sizes = [4, 8], strides = [1, 1]} : vector<4x32xf32> to vector<4x8xf32>
    %198 = vector.extract_strided_slice %195 {offsets = [0, 0], sizes = [4, 8], strides = [1, 1]} : vector<4x32xf32> to vector<4x8xf32>
    %199 = vector.extract_strided_slice %196 {offsets = [0, 0], sizes = [4, 8], strides = [1, 1]} : vector<4x32xf32> to vector<4x8xf32>
    %cst_120 = arith.constant dense<0.000000e+00> : vector<4x4xf32>
    %200 = tpu.matmul %197, %198, %cst_120 {dimension_numbers = #tpu.dot_dimension_numbers<[1], [1], [0], [0], [0, 0, 1, 0], [], []>} : vector<4x8xf32>, vector<4x8xf32>, vector<4x4xf32> -> vector<4x4xf32>
    %cst_121 = arith.constant 0.353553385 : f32
    %201 = vector.broadcast %cst_121 : f32 to vector<4x4xf32>
    %202 = arith.mulf %200, %201 : vector<4x4xf32>
    %cst_122 = arith.constant dense<0xFF800000> : vector<4xf32>
    %203 = vector.multi_reduction <maximumf>, %202, %cst_122 [1] : vector<4x4xf32> to vector<4xf32>
    %204 = vector.shape_cast %203 : vector<4xf32> to vector<4x1xf32>
    %205 = vector.broadcast %204 : vector<4x1xf32> to vector<4x4xf32>
    %206 = arith.subf %202, %205 : vector<4x4xf32>
    %207 = math.exp %206 : vector<4x4xf32>
    %cst_123 = arith.constant dense<0.000000e+00> : vector<4xf32>
    %208 = vector.multi_reduction <add>, %207, %cst_123 [1] : vector<4x4xf32> to vector<4xf32>
    %209 = vector.shape_cast %208 : vector<4xf32> to vector<4x1xf32>
    %210 = tpu.reciprocal %209 {approx = true} : vector<4x1xf32> -> vector<4x1xf32>
    %211 = vector.broadcast %210 : vector<4x1xf32> to vector<4x4xf32>
    %212 = arith.mulf %207, %211 : vector<4x4xf32>
    %cst_124 = arith.constant dense<0.000000e+00> : vector<4x8xf32>
    %213 = tpu.matmul %212, %199, %cst_124 {dimension_numbers = #tpu.dot_dimension_numbers<[1], [0], [0], [1], [0, 0, 1, 1], [], []>} : vector<4x4xf32>, vector<4x8xf32>, vector<4x8xf32> -> vector<4x8xf32>
    %c0_125 = arith.constant 0 : index
    %c0_126 = arith.constant 0 : index
    %214 = vector.load %arg44[%c0_125, %c0_126] : memref<4x32xf32, #tpu.memory_space<vmem>>, vector<4x8xf32>
    tpu.vector_store %arg44[%c0_125, %c0_126], %213 {strides = array<i32>} : memref<4x32xf32, #tpu.memory_space<vmem>>, vector<4x8xf32>,
    %215 = vector.extract_strided_slice %194 {offsets = [0, 8], sizes = [4, 8], strides = [1, 1]} : vector<4x32xf32> to vector<4x8xf32>
    %216 = vector.extract_strided_slice %195 {offsets = [0, 8], sizes = [4, 8], strides = [1, 1]} : vector<4x32xf32> to vector<4x8xf32>
    %217 = vector.extract_strided_slice %196 {offsets = [0, 8], sizes = [4, 8], strides = [1, 1]} : vector<4x32xf32> to vector<4x8xf32>
    %cst_127 = arith.constant dense<0.000000e+00> : vector<4x4xf32>
    %218 = tpu.matmul %215, %216, %cst_127 {dimension_numbers = #tpu.dot_dimension_numbers<[1], [1], [0], [0], [0, 0, 1, 0], [], []>} : vector<4x8xf32>, vector<4x8xf32>, vector<4x4xf32> -> vector<4x4xf32>
    %cst_128 = arith.constant 0.353553385 : f32
    %219 = vector.broadcast %cst_128 : f32 to vector<4x4xf32>
    %220 = arith.mulf %218, %219 : vector<4x4xf32>
    %cst_129 = arith.constant dense<0xFF800000> : vector<4xf32>
    %221 = vector.multi_reduction <maximumf>, %220, %cst_129 [1] : vector<4x4xf32> to vector<4xf32>
    %222 = vector.shape_cast %221 : vector<4xf32> to vector<4x1xf32>
    %223 = vector.broadcast %222 : vector<4x1xf32> to vector<4x4xf32>
    %224 = arith.subf %220, %223 : vector<4x4xf32>
    %225 = math.exp %224 : vector<4x4xf32>
    %cst_130 = arith.constant dense<0.000000e+00> : vector<4xf32>
    %226 = vector.multi_reduction <add>, %225, %cst_130 [1] : vector<4x4xf32> to vector<4xf32>
    %227 = vector.shape_cast %226 : vector<4xf32> to vector<4x1xf32>
    %228 = tpu.reciprocal %227 {approx = true} : vector<4x1xf32> -> vector<4x1xf32>
    %229 = vector.broadcast %228 : vector<4x1xf32> to vector<4x4xf32>
    %230 = arith.mulf %225, %229 : vector<4x4xf32>
    %cst_131 = arith.constant dense<0.000000e+00> : vector<4x8xf32>
    %231 = tpu.matmul %230, %217, %cst_131 {dimension_numbers = #tpu.dot_dimension_numbers<[1], [0], [0], [1], [0, 0, 1, 1], [], []>} : vector<4x4xf32>, vector<4x8xf32>, vector<4x8xf32> -> vector<4x8xf32>
    %c0_132 = arith.constant 0 : index
    %c8_133 = arith.constant 8 : index
    %232 = vector.load %arg44[%c0_132, %c8_133] : memref<4x32xf32, #tpu.memory_space<vmem>>, vector<4x8xf32>
    tpu.vector_store %arg44[%c0_132, %c8_133], %231 {strides = array<i32>} : memref<4x32xf32, #tpu.memory_space<vmem>>, vector<4x8xf32>,
    %233 = vector.extract_strided_slice %194 {offsets = [0, 16], sizes = [4, 8], strides = [1, 1]} : vector<4x32xf32> to vector<4x8xf32>
    %234 = vector.extract_strided_slice %195 {offsets = [0, 16], sizes = [4, 8], strides = [1, 1]} : vector<4x32xf32> to vector<4x8xf32>
    %235 = vector.extract_strided_slice %196 {offsets = [0, 16], sizes = [4, 8], strides = [1, 1]} : vector<4x32xf32> to vector<4x8xf32>
    %cst_134 = arith.constant dense<0.000000e+00> : vector<4x4xf32>
    %236 = tpu.matmul %233, %234, %cst_134 {dimension_numbers = #tpu.dot_dimension_numbers<[1], [1], [0], [0], [0, 0, 1, 0], [], []>} : vector<4x8xf32>, vector<4x8xf32>, vector<4x4xf32> -> vector<4x4xf32>
    %cst_135 = arith.constant 0.353553385 : f32
    %237 = vector.broadcast %cst_135 : f32 to vector<4x4xf32>
    %238 = arith.mulf %236, %237 : vector<4x4xf32>
    %cst_136 = arith.constant dense<0xFF800000> : vector<4xf32>
    %239 = vector.multi_reduction <maximumf>, %238, %cst_136 [1] : vector<4x4xf32> to vector<4xf32>
    %240 = vector.shape_cast %239 : vector<4xf32> to vector<4x1xf32>
    %241 = vector.broadcast %240 : vector<4x1xf32> to vector<4x4xf32>
    %242 = arith.subf %238, %241 : vector<4x4xf32>
    %243 = math.exp %242 : vector<4x4xf32>
    %cst_137 = arith.constant dense<0.000000e+00> : vector<4xf32>
    %244 = vector.multi_reduction <add>, %243, %cst_137 [1] : vector<4x4xf32> to vector<4xf32>
    %245 = vector.shape_cast %244 : vector<4xf32> to vector<4x1xf32>
    %246 = tpu.reciprocal %245 {approx = true} : vector<4x1xf32> -> vector<4x1xf32>
    %247 = vector.broadcast %246 : vector<4x1xf32> to vector<4x4xf32>
    %248 = arith.mulf %243, %247 : vector<4x4xf32>
    %cst_138 = arith.constant dense<0.000000e+00> : vector<4x8xf32>
    %249 = tpu.matmul %248, %235, %cst_138 {dimension_numbers = #tpu.dot_dimension_numbers<[1], [0], [0], [1], [0, 0, 1, 1], [], []>} : vector<4x4xf32>, vector<4x8xf32>, vector<4x8xf32> -> vector<4x8xf32>
    %c0_139 = arith.constant 0 : index
    %c16_140 = arith.constant 16 : index
    %250 = vector.load %arg44[%c0_139, %c16_140] : memref<4x32xf32, #tpu.memory_space<vmem>>, vector<4x8xf32>
    tpu.vector_store %arg44[%c0_139, %c16_140], %249 {strides = array<i32>} : memref<4x32xf32, #tpu.memory_space<vmem>>, vector<4x8xf32>,
    %251 = vector.extract_strided_slice %194 {offsets = [0, 24], sizes = [4, 8], strides = [1, 1]} : vector<4x32xf32> to vector<4x8xf32>
    %252 = vector.extract_strided_slice %195 {offsets = [0, 24], sizes = [4, 8], strides = [1, 1]} : vector<4x32xf32> to vector<4x8xf32>
    %253 = vector.extract_strided_slice %196 {offsets = [0, 24], sizes = [4, 8], strides = [1, 1]} : vector<4x32xf32> to vector<4x8xf32>
    %cst_141 = arith.constant dense<0.000000e+00> : vector<4x4xf32>
    %254 = tpu.matmul %251, %252, %cst_141 {dimension_numbers = #tpu.dot_dimension_numbers<[1], [1], [0], [0], [0, 0, 1, 0], [], []>} : vector<4x8xf32>, vector<4x8xf32>, vector<4x4xf32> -> vector<4x4xf32>
    %cst_142 = arith.constant 0.353553385 : f32
    %255 = vector.broadcast %cst_142 : f32 to vector<4x4xf32>
    %256 = arith.mulf %254, %255 : vector<4x4xf32>
    %cst_143 = arith.constant dense<0xFF800000> : vector<4xf32>
    %257 = vector.multi_reduction <maximumf>, %256, %cst_143 [1] : vector<4x4xf32> to vector<4xf32>
    %258 = vector.shape_cast %257 : vector<4xf32> to vector<4x1xf32>
    %259 = vector.broadcast %258 : vector<4x1xf32> to vector<4x4xf32>
    %260 = arith.subf %256, %259 : vector<4x4xf32>
    %261 = math.exp %260 : vector<4x4xf32>
    %cst_144 = arith.constant dense<0.000000e+00> : vector<4xf32>
    %262 = vector.multi_reduction <add>, %261, %cst_144 [1] : vector<4x4xf32> to vector<4xf32>
    %263 = vector.shape_cast %262 : vector<4xf32> to vector<4x1xf32>
    %264 = tpu.reciprocal %263 {approx = true} : vector<4x1xf32> -> vector<4x1xf32>
    %265 = vector.broadcast %264 : vector<4x1xf32> to vector<4x4xf32>
    %266 = arith.mulf %261, %265 : vector<4x4xf32>
    %cst_145 = arith.constant dense<0.000000e+00> : vector<4x8xf32>
    %267 = tpu.matmul %266, %253, %cst_145 {dimension_numbers = #tpu.dot_dimension_numbers<[1], [0], [0], [1], [0, 0, 1, 1], [], []>} : vector<4x4xf32>, vector<4x8xf32>, vector<4x8xf32> -> vector<4x8xf32>
    %c0_146 = arith.constant 0 : index
    %c24_147 = arith.constant 24 : index
    %268 = vector.load %arg44[%c0_146, %c24_147] : memref<4x32xf32, #tpu.memory_space<vmem>>, vector<4x8xf32>
    tpu.vector_store %arg44[%c0_146, %c24_147], %267 {strides = array<i32>} : memref<4x32xf32, #tpu.memory_space<vmem>>, vector<4x8xf32>,
    %c0_148 = arith.constant 0 : index
    %c0_149 = arith.constant 0 : index
    %269 = vector.load %arg44[%c0_148, %c0_149] : memref<4x32xf32, #tpu.memory_space<vmem>>, vector<4x32xf32>
    %cst_150 = arith.constant dense<0.000000e+00> : vector<4x32xf32>
    %270 = tpu.matmul %269, %172, %cst_150 {dimension_numbers = #tpu.dot_dimension_numbers<[1], [0], [0], [1], [0, 0, 1, 1], [], []>} : vector<4x32xf32>, vector<32x32xf32>, vector<4x32xf32> -> vector<4x32xf32>
    %271 = vector.broadcast %174 : vector<1x32xf32> to vector<4x32xf32>
    %272 = arith.addf %270, %271 : vector<4x32xf32>
    %273 = arith.addf %166, %272 : vector<4x32xf32>
    %cst_151 = arith.constant dense<0.000000e+00> : vector<4xf32>
    %274 = vector.multi_reduction <add>, %273, %cst_151 [1] : vector<4x32xf32> to vector<4xf32>
    %275 = vector.shape_cast %274 : vector<4xf32> to vector<4x1xf32>
    %cst_152 = arith.constant 3.200000e+01 : f32
    %276 = vector.broadcast %cst_152 : f32 to vector<4x1xf32>
    %277 = arith.divf %275, %276 : vector<4x1xf32>
    %278 = vector.broadcast %277 : vector<4x1xf32> to vector<4x32xf32>
    %279 = arith.subf %273, %278 : vector<4x32xf32>
    %280 = arith.mulf %279, %279 : vector<4x32xf32>
    %cst_153 = arith.constant dense<0.000000e+00> : vector<4xf32>
    %281 = vector.multi_reduction <add>, %280, %cst_153 [1] : vector<4x32xf32> to vector<4xf32>
    %282 = vector.shape_cast %281 : vector<4xf32> to vector<4x1xf32>
    %cst_154 = arith.constant 3.200000e+01 : f32
    %283 = vector.broadcast %cst_154 : f32 to vector<4x1xf32>
    %284 = arith.divf %282, %283 : vector<4x1xf32>
    %285 = vector.broadcast %277 : vector<4x1xf32> to vector<4x32xf32>
    %286 = arith.subf %273, %285 : vector<4x32xf32>
    %cst_155 = arith.constant 9.99999974E-6 : f32
    %287 = vector.broadcast %cst_155 : f32 to vector<4x1xf32>
    %288 = arith.addf %284, %287 : vector<4x1xf32>
    %289 = math.rsqrt %288 : vector<4x1xf32>
    %290 = vector.broadcast %289 : vector<4x1xf32> to vector<4x32xf32>
    %291 = arith.mulf %286, %290 : vector<4x32xf32>
    %292 = vector.broadcast %176 : vector<1x32xf32> to vector<4x32xf32>
    %293 = arith.mulf %291, %292 : vector<4x32xf32>
    %294 = vector.broadcast %178 : vector<1x32xf32> to vector<4x32xf32>
    %295 = arith.addf %293, %294 : vector<4x32xf32>
    %cst_156 = arith.constant dense<0.000000e+00> : vector<4x64xf32>
    %296 = tpu.matmul %295, %180, %cst_156 {dimension_numbers = #tpu.dot_dimension_numbers<[1], [0], [0], [1], [0, 0, 1, 1], [], []>} : vector<4x32xf32>, vector<32x64xf32>, vector<4x64xf32> -> vector<4x64xf32>
    %297 = vector.broadcast %182 : vector<1x64xf32> to vector<4x64xf32>
    %298 = arith.addf %296, %297 : vector<4x64xf32>
    %cst_157 = arith.constant 0.000000e+00 : f32
    %299 = vector.broadcast %cst_157 : f32 to vector<4x64xf32>
    %300 = arith.maximumf %298, %299 : vector<4x64xf32>
    %cst_158 = arith.constant dense<0.000000e+00> : vector<4x32xf32>
    %301 = tpu.matmul %300, %184, %cst_158 {dimension_numbers = #tpu.dot_dimension_numbers<[1], [0], [0], [1], [0, 0, 1, 1], [], []>} : vector<4x64xf32>, vector<64x32xf32>, vector<4x32xf32> -> vector<4x32xf32>
    %302 = vector.broadcast %186 : vector<1x32xf32> to vector<4x32xf32>
    %303 = arith.addf %301, %302 : vector<4x32xf32>
    %304 = arith.addf %295, %303 : vector<4x32xf32>
    %cst_159 = arith.constant dense<0.000000e+00> : vector<4xf32>
    %305 = vector.multi_reduction <add>, %304, %cst_159 [1] : vector<4x32xf32> to vector<4xf32>
    %306 = vector.shape_cast %305 : vector<4xf32> to vector<4x1xf32>
    %cst_160 = arith.constant 3.200000e+01 : f32
    %307 = vector.broadcast %cst_160 : f32 to vector<4x1xf32>
    %308 = arith.divf %306, %307 : vector<4x1xf32>
    %309 = vector.broadcast %308 : vector<4x1xf32> to vector<4x32xf32>
    %310 = arith.subf %304, %309 : vector<4x32xf32>
    %311 = arith.mulf %310, %310 : vector<4x32xf32>
    %cst_161 = arith.constant dense<0.000000e+00> : vector<4xf32>
    %312 = vector.multi_reduction <add>, %311, %cst_161 [1] : vector<4x32xf32> to vector<4xf32>
    %313 = vector.shape_cast %312 : vector<4xf32> to vector<4x1xf32>
    %cst_162 = arith.constant 3.200000e+01 : f32
    %314 = vector.broadcast %cst_162 : f32 to vector<4x1xf32>
    %315 = arith.divf %313, %314 : vector<4x1xf32>
    %316 = vector.broadcast %308 : vector<4x1xf32> to vector<4x32xf32>
    %317 = arith.subf %304, %316 : vector<4x32xf32>
    %cst_163 = arith.constant 9.99999974E-6 : f32
    %318 = vector.broadcast %cst_163 : f32 to vector<4x1xf32>
    %319 = arith.addf %315, %318 : vector<4x1xf32>
    %320 = math.rsqrt %319 : vector<4x1xf32>
    %321 = vector.broadcast %320 : vector<4x1xf32> to vector<4x32xf32>
    %322 = arith.mulf %317, %321 : vector<4x32xf32>
    %323 = vector.broadcast %188 : vector<1x32xf32> to vector<4x32xf32>
    %324 = arith.mulf %322, %323 : vector<4x32xf32>
    %325 = vector.broadcast %190 : vector<1x32xf32> to vector<4x32xf32>
    %326 = arith.addf %324, %325 : vector<4x32xf32>
    %c0_164 = arith.constant 0 : index
    %c0_165 = arith.constant 0 : index
    %327 = vector.load %arg17[%c0_164, %c0_165] : memref<1x32xf32, #tpu.memory_space<vmem>>, vector<1x32xf32>
    %c0_166 = arith.constant 0 : index
    %c0_167 = arith.constant 0 : index
    %328 = vector.load %arg18[%c0_166, %c0_167] : memref<1x32xf32, #tpu.memory_space<vmem>>, vector<1x32xf32>
    %cst_168 = arith.constant dense<0.000000e+00> : vector<4xf32>
    %329 = vector.multi_reduction <add>, %326, %cst_168 [1] : vector<4x32xf32> to vector<4xf32>
    %330 = vector.shape_cast %329 : vector<4xf32> to vector<4x1xf32>
    %cst_169 = arith.constant 3.200000e+01 : f32
    %331 = vector.broadcast %cst_169 : f32 to vector<4x1xf32>
    %332 = arith.divf %330, %331 : vector<4x1xf32>
    %333 = vector.broadcast %332 : vector<4x1xf32> to vector<4x32xf32>
    %334 = arith.subf %326, %333 : vector<4x32xf32>
    %335 = arith.mulf %334, %334 : vector<4x32xf32>
    %cst_170 = arith.constant dense<0.000000e+00> : vector<4xf32>
    %336 = vector.multi_reduction <add>, %335, %cst_170 [1] : vector<4x32xf32> to vector<4xf32>
    %337 = vector.shape_cast %336 : vector<4xf32> to vector<4x1xf32>
    %cst_171 = arith.constant 3.200000e+01 : f32
    %338 = vector.broadcast %cst_171 : f32 to vector<4x1xf32>
    %339 = arith.divf %337, %338 : vector<4x1xf32>
    %340 = vector.broadcast %332 : vector<4x1xf32> to vector<4x32xf32>
    %341 = arith.subf %326, %340 : vector<4x32xf32>
    %cst_172 = arith.constant 9.99999974E-6 : f32
    %342 = vector.broadcast %cst_172 : f32 to vector<4x1xf32>
    %343 = arith.addf %339, %342 : vector<4x1xf32>
    %344 = math.rsqrt %343 : vector<4x1xf32>
    %345 = vector.broadcast %344 : vector<4x1xf32> to vector<4x32xf32>
    %346 = arith.mulf %341, %345 : vector<4x32xf32>
    %347 = vector.broadcast %327 : vector<1x32xf32> to vector<4x32xf32>
    %348 = arith.mulf %346, %347 : vector<4x32xf32>
    %349 = vector.broadcast %328 : vector<1x32xf32> to vector<4x32xf32>
    %350 = arith.addf %348, %349 : vector<4x32xf32>
    %c0_173 = arith.constant 0 : index
    %c0_174 = arith.constant 0 : index
    %c0_175 = arith.constant 0 : index
    %351 = vector.load %arg2[%c0_173, %c0_174, %c0_175] : memref<1x4x32xf32, #tpu.memory_space<vmem>>, vector<1x4x32xf32>
    %352 = vector.shape_cast %351 : vector<1x4x32xf32> to vector<4x32xf32>
    %c0_176 = arith.constant 0 : index
    %c0_177 = arith.constant 0 : index
    %c0_178 = arith.constant 0 : index
    %353 = vector.load %arg19[%c0_176, %c0_177, %c0_178] : memref<2x32x96xf32, #tpu.memory_space<vmem>>, vector<1x32x96xf32>
    %354 = vector.shape_cast %353 : vector<1x32x96xf32> to vector<32x96xf32>
    %c0_179 = arith.constant 0 : index
    %c0_180 = arith.constant 0 : index
    %c0_181 = arith.constant 0 : index
    %355 = vector.load %arg20[%c0_179, %c0_180, %c0_181] : memref<2x1x96xf32, #tpu.memory_space<vmem>>, vector<1x1x96xf32>
    %356 = vector.shape_cast %355 : vector<1x1x96xf32> to vector<1x96xf32>
    %c0_182 = arith.constant 0 : index
    %c0_183 = arith.constant 0 : index
    %c0_184 = arith.constant 0 : index
    %357 = vector.load %arg21[%c0_182, %c0_183, %c0_184] : memref<2x32x32xf32, #tpu.memory_space<vmem>>, vector<1x32x32xf32>
    %358 = vector.shape_cast %357 : vector<1x32x32xf32> to vector<32x32xf32>
    %c0_185 = arith.constant 0 : index
    %c0_186 = arith.constant 0 : index
    %c0_187 = arith.constant 0 : index
    %359 = vector.load %arg22[%c0_185, %c0_186, %c0_187] : memref<2x1x32xf32, #tpu.memory_space<vmem>>, vector<1x1x32xf32>
    %360 = vector.shape_cast %359 : vector<1x1x32xf32> to vector<1x32xf32>
    %c0_188 = arith.constant 0 : index
    %c0_189 = arith.constant 0 : index
    %c0_190 = arith.constant 0 : index
    %361 = vector.load %arg23[%c0_188, %c0_189, %c0_190] : memref<2x1x32xf32, #tpu.memory_space<vmem>>, vector<1x1x32xf32>
    %362 = vector.shape_cast %361 : vector<1x1x32xf32> to vector<1x32xf32>
    %c0_191 = arith.constant 0 : index
    %c0_192 = arith.constant 0 : index
    %c0_193 = arith.constant 0 : index
    %363 = vector.load %arg24[%c0_191, %c0_192, %c0_193] : memref<2x1x32xf32, #tpu.memory_space<vmem>>, vector<1x1x32xf32>
    %364 = vector.shape_cast %363 : vector<1x1x32xf32> to vector<1x32xf32>
    %c0_194 = arith.constant 0 : index
    %c0_195 = arith.constant 0 : index
    %c0_196 = arith.constant 0 : index
    %365 = vector.load %arg25[%c0_194, %c0_195, %c0_196] : memref<2x32x32xf32, #tpu.memory_space<vmem>>, vector<1x32x32xf32>
    %366 = vector.shape_cast %365 : vector<1x32x32xf32> to vector<32x32xf32>
    %c0_197 = arith.constant 0 : index
    %c0_198 = arith.constant 0 : index
    %c0_199 = arith.constant 0 : index
    %367 = vector.load %arg26[%c0_197, %c0_198, %c0_199] : memref<2x1x32xf32, #tpu.memory_space<vmem>>, vector<1x1x32xf32>
    %368 = vector.shape_cast %367 : vector<1x1x32xf32> to vector<1x32xf32>
    %c0_200 = arith.constant 0 : index
    %c0_201 = arith.constant 0 : index
    %c0_202 = arith.constant 0 : index
    %369 = vector.load %arg27[%c0_200, %c0_201, %c0_202] : memref<2x32x64xf32, #tpu.memory_space<vmem>>, vector<1x32x64xf32>
    %370 = vector.shape_cast %369 : vector<1x32x64xf32> to vector<32x64xf32>
    %c0_203 = arith.constant 0 : index
    %c0_204 = arith.constant 0 : index
    %c0_205 = arith.constant 0 : index
    %371 = vector.load %arg28[%c0_203, %c0_204, %c0_205] : memref<2x1x64xf32, #tpu.memory_space<vmem>>, vector<1x1x64xf32>
    %372 = vector.shape_cast %371 : vector<1x1x64xf32> to vector<1x64xf32>
    %c0_206 = arith.constant 0 : index
    %c0_207 = arith.constant 0 : index
    %c0_208 = arith.constant 0 : index
    %373 = vector.load %arg29[%c0_206, %c0_207, %c0_208] : memref<2x32x32xf32, #tpu.memory_space<vmem>>, vector<1x32x32xf32>
    %374 = vector.shape_cast %373 : vector<1x32x32xf32> to vector<32x32xf32>
    %c0_209 = arith.constant 0 : index
    %c0_210 = arith.constant 0 : index
    %c0_211 = arith.constant 0 : index
    %375 = vector.load %arg30[%c0_209, %c0_210, %c0_211] : memref<2x1x32xf32, #tpu.memory_space<vmem>>, vector<1x1x32xf32>
    %376 = vector.shape_cast %375 : vector<1x1x32xf32> to vector<1x32xf32>
    %c0_212 = arith.constant 0 : index
    %c0_213 = arith.constant 0 : index
    %c0_214 = arith.constant 0 : index
    %377 = vector.load %arg31[%c0_212, %c0_213, %c0_214] : memref<2x1x32xf32, #tpu.memory_space<vmem>>, vector<1x1x32xf32>
    %378 = vector.shape_cast %377 : vector<1x1x32xf32> to vector<1x32xf32>
    %c0_215 = arith.constant 0 : index
    %c0_216 = arith.constant 0 : index
    %c0_217 = arith.constant 0 : index
    %379 = vector.load %arg32[%c0_215, %c0_216, %c0_217] : memref<2x1x32xf32, #tpu.memory_space<vmem>>, vector<1x1x32xf32>
    %380 = vector.shape_cast %379 : vector<1x1x32xf32> to vector<1x32xf32>
    %c0_218 = arith.constant 0 : index
    %c0_219 = arith.constant 0 : index
    %c0_220 = arith.constant 0 : index
    %381 = vector.load %arg33[%c0_218, %c0_219, %c0_220] : memref<2x32x64xf32, #tpu.memory_space<vmem>>, vector<1x32x64xf32>
    %382 = vector.shape_cast %381 : vector<1x32x64xf32> to vector<32x64xf32>
    %c0_221 = arith.constant 0 : index
    %c0_222 = arith.constant 0 : index
    %c0_223 = arith.constant 0 : index
    %383 = vector.load %arg34[%c0_221, %c0_222, %c0_223] : memref<2x1x64xf32, #tpu.memory_space<vmem>>, vector<1x1x64xf32>
    %384 = vector.shape_cast %383 : vector<1x1x64xf32> to vector<1x64xf32>
    %c0_224 = arith.constant 0 : index
    %c0_225 = arith.constant 0 : index
    %c0_226 = arith.constant 0 : index
    %385 = vector.load %arg35[%c0_224, %c0_225, %c0_226] : memref<2x64x32xf32, #tpu.memory_space<vmem>>, vector<1x64x32xf32>
    %386 = vector.shape_cast %385 : vector<1x64x32xf32> to vector<64x32xf32>
    %c0_227 = arith.constant 0 : index
    %c0_228 = arith.constant 0 : index
    %c0_229 = arith.constant 0 : index
    %387 = vector.load %arg36[%c0_227, %c0_228, %c0_229] : memref<2x1x32xf32, #tpu.memory_space<vmem>>, vector<1x1x32xf32>
    %388 = vector.shape_cast %387 : vector<1x1x32xf32> to vector<1x32xf32>
    %c0_230 = arith.constant 0 : index
    %c0_231 = arith.constant 0 : index
    %c0_232 = arith.constant 0 : index
    %389 = vector.load %arg37[%c0_230, %c0_231, %c0_232] : memref<2x1x32xf32, #tpu.memory_space<vmem>>, vector<1x1x32xf32>
    %390 = vector.shape_cast %389 : vector<1x1x32xf32> to vector<1x32xf32>
    %c0_233 = arith.constant 0 : index
    %c0_234 = arith.constant 0 : index
    %c0_235 = arith.constant 0 : index
    %391 = vector.load %arg38[%c0_233, %c0_234, %c0_235] : memref<2x1x32xf32, #tpu.memory_space<vmem>>, vector<1x1x32xf32>
    %392 = vector.shape_cast %391 : vector<1x1x32xf32> to vector<1x32xf32>
    %cst_236 = arith.constant dense<0.000000e+00> : vector<4x96xf32>
    %393 = tpu.matmul %352, %354, %cst_236 {dimension_numbers = #tpu.dot_dimension_numbers<[1], [0], [0], [1], [0, 0, 1, 1], [], []>} : vector<4x32xf32>, vector<32x96xf32>, vector<4x96xf32> -> vector<4x96xf32>
    %394 = vector.broadcast %356 : vector<1x96xf32> to vector<4x96xf32>
    %395 = arith.addf %393, %394 : vector<4x96xf32>
    %396 = vector.extract_strided_slice %395 {offsets = [0, 0], sizes = [4, 32], strides = [1, 1]} : vector<4x96xf32> to vector<4x32xf32>
    %397 = vector.extract_strided_slice %395 {offsets = [0, 32], sizes = [4, 32], strides = [1, 1]} : vector<4x96xf32> to vector<4x32xf32>
    %398 = vector.extract_strided_slice %395 {offsets = [0, 64], sizes = [4, 32], strides = [1, 1]} : vector<4x96xf32> to vector<4x32xf32>
    %399 = vector.extract_strided_slice %396 {offsets = [0, 0], sizes = [4, 8], strides = [1, 1]} : vector<4x32xf32> to vector<4x8xf32>
    %400 = vector.extract_strided_slice %397 {offsets = [0, 0], sizes = [4, 8], strides = [1, 1]} : vector<4x32xf32> to vector<4x8xf32>
    %401 = vector.extract_strided_slice %398 {offsets = [0, 0], sizes = [4, 8], strides = [1, 1]} : vector<4x32xf32> to vector<4x8xf32>
    %cst_237 = arith.constant dense<0.000000e+00> : vector<4x4xf32>
    %402 = tpu.matmul %399, %400, %cst_237 {dimension_numbers = #tpu.dot_dimension_numbers<[1], [1], [0], [0], [0, 0, 1, 0], [], []>} : vector<4x8xf32>, vector<4x8xf32>, vector<4x4xf32> -> vector<4x4xf32>
    %cst_238 = arith.constant 0.353553385 : f32
    %403 = vector.broadcast %cst_238 : f32 to vector<4x4xf32>
    %404 = arith.mulf %402, %403 : vector<4x4xf32>
    %cst_239 = arith.constant dense<0xFF800000> : vector<4xf32>
    %405 = vector.multi_reduction <maximumf>, %404, %cst_239 [1] : vector<4x4xf32> to vector<4xf32>
    %406 = vector.shape_cast %405 : vector<4xf32> to vector<4x1xf32>
    %407 = vector.broadcast %406 : vector<4x1xf32> to vector<4x4xf32>
    %408 = arith.subf %404, %407 : vector<4x4xf32>
    %409 = math.exp %408 : vector<4x4xf32>
    %cst_240 = arith.constant dense<0.000000e+00> : vector<4xf32>
    %410 = vector.multi_reduction <add>, %409, %cst_240 [1] : vector<4x4xf32> to vector<4xf32>
    %411 = vector.shape_cast %410 : vector<4xf32> to vector<4x1xf32>
    %412 = tpu.reciprocal %411 {approx = true} : vector<4x1xf32> -> vector<4x1xf32>
    %413 = vector.broadcast %412 : vector<4x1xf32> to vector<4x4xf32>
    %414 = arith.mulf %409, %413 : vector<4x4xf32>
    %cst_241 = arith.constant dense<0.000000e+00> : vector<4x8xf32>
    %415 = tpu.matmul %414, %401, %cst_241 {dimension_numbers = #tpu.dot_dimension_numbers<[1], [0], [0], [1], [0, 0, 1, 1], [], []>} : vector<4x4xf32>, vector<4x8xf32>, vector<4x8xf32> -> vector<4x8xf32>
    %c0_242 = arith.constant 0 : index
    %c0_243 = arith.constant 0 : index
    %416 = vector.load %arg44[%c0_242, %c0_243] : memref<4x32xf32, #tpu.memory_space<vmem>>, vector<4x8xf32>
    tpu.vector_store %arg44[%c0_242, %c0_243], %415 {strides = array<i32>} : memref<4x32xf32, #tpu.memory_space<vmem>>, vector<4x8xf32>,
    %417 = vector.extract_strided_slice %396 {offsets = [0, 8], sizes = [4, 8], strides = [1, 1]} : vector<4x32xf32> to vector<4x8xf32>
    %418 = vector.extract_strided_slice %397 {offsets = [0, 8], sizes = [4, 8], strides = [1, 1]} : vector<4x32xf32> to vector<4x8xf32>
    %419 = vector.extract_strided_slice %398 {offsets = [0, 8], sizes = [4, 8], strides = [1, 1]} : vector<4x32xf32> to vector<4x8xf32>
    %cst_244 = arith.constant dense<0.000000e+00> : vector<4x4xf32>
    %420 = tpu.matmul %417, %418, %cst_244 {dimension_numbers = #tpu.dot_dimension_numbers<[1], [1], [0], [0], [0, 0, 1, 0], [], []>} : vector<4x8xf32>, vector<4x8xf32>, vector<4x4xf32> -> vector<4x4xf32>
    %cst_245 = arith.constant 0.353553385 : f32
    %421 = vector.broadcast %cst_245 : f32 to vector<4x4xf32>
    %422 = arith.mulf %420, %421 : vector<4x4xf32>
    %cst_246 = arith.constant dense<0xFF800000> : vector<4xf32>
    %423 = vector.multi_reduction <maximumf>, %422, %cst_246 [1] : vector<4x4xf32> to vector<4xf32>
    %424 = vector.shape_cast %423 : vector<4xf32> to vector<4x1xf32>
    %425 = vector.broadcast %424 : vector<4x1xf32> to vector<4x4xf32>
    %426 = arith.subf %422, %425 : vector<4x4xf32>
    %427 = math.exp %426 : vector<4x4xf32>
    %cst_247 = arith.constant dense<0.000000e+00> : vector<4xf32>
    %428 = vector.multi_reduction <add>, %427, %cst_247 [1] : vector<4x4xf32> to vector<4xf32>
    %429 = vector.shape_cast %428 : vector<4xf32> to vector<4x1xf32>
    %430 = tpu.reciprocal %429 {approx = true} : vector<4x1xf32> -> vector<4x1xf32>
    %431 = vector.broadcast %430 : vector<4x1xf32> to vector<4x4xf32>
    %432 = arith.mulf %427, %431 : vector<4x4xf32>
    %cst_248 = arith.constant dense<0.000000e+00> : vector<4x8xf32>
    %433 = tpu.matmul %432, %419, %cst_248 {dimension_numbers = #tpu.dot_dimension_numbers<[1], [0], [0], [1], [0, 0, 1, 1], [], []>} : vector<4x4xf32>, vector<4x8xf32>, vector<4x8xf32> -> vector<4x8xf32>
    %c0_249 = arith.constant 0 : index
    %c8_250 = arith.constant 8 : index
    %434 = vector.load %arg44[%c0_249, %c8_250] : memref<4x32xf32, #tpu.memory_space<vmem>>, vector<4x8xf32>
    tpu.vector_store %arg44[%c0_249, %c8_250], %433 {strides = array<i32>} : memref<4x32xf32, #tpu.memory_space<vmem>>, vector<4x8xf32>,
    %435 = vector.extract_strided_slice %396 {offsets = [0, 16], sizes = [4, 8], strides = [1, 1]} : vector<4x32xf32> to vector<4x8xf32>
    %436 = vector.extract_strided_slice %397 {offsets = [0, 16], sizes = [4, 8], strides = [1, 1]} : vector<4x32xf32> to vector<4x8xf32>
    %437 = vector.extract_strided_slice %398 {offsets = [0, 16], sizes = [4, 8], strides = [1, 1]} : vector<4x32xf32> to vector<4x8xf32>
    %cst_251 = arith.constant dense<0.000000e+00> : vector<4x4xf32>
    %438 = tpu.matmul %435, %436, %cst_251 {dimension_numbers = #tpu.dot_dimension_numbers<[1], [1], [0], [0], [0, 0, 1, 0], [], []>} : vector<4x8xf32>, vector<4x8xf32>, vector<4x4xf32> -> vector<4x4xf32>
    %cst_252 = arith.constant 0.353553385 : f32
    %439 = vector.broadcast %cst_252 : f32 to vector<4x4xf32>
    %440 = arith.mulf %438, %439 : vector<4x4xf32>
    %cst_253 = arith.constant dense<0xFF800000> : vector<4xf32>
    %441 = vector.multi_reduction <maximumf>, %440, %cst_253 [1] : vector<4x4xf32> to vector<4xf32>
    %442 = vector.shape_cast %441 : vector<4xf32> to vector<4x1xf32>
    %443 = vector.broadcast %442 : vector<4x1xf32> to vector<4x4xf32>
    %444 = arith.subf %440, %443 : vector<4x4xf32>
    %445 = math.exp %444 : vector<4x4xf32>
    %cst_254 = arith.constant dense<0.000000e+00> : vector<4xf32>
    %446 = vector.multi_reduction <add>, %445, %cst_254 [1] : vector<4x4xf32> to vector<4xf32>
    %447 = vector.shape_cast %446 : vector<4xf32> to vector<4x1xf32>
    %448 = tpu.reciprocal %447 {approx = true} : vector<4x1xf32> -> vector<4x1xf32>
    %449 = vector.broadcast %448 : vector<4x1xf32> to vector<4x4xf32>
    %450 = arith.mulf %445, %449 : vector<4x4xf32>
    %cst_255 = arith.constant dense<0.000000e+00> : vector<4x8xf32>
    %451 = tpu.matmul %450, %437, %cst_255 {dimension_numbers = #tpu.dot_dimension_numbers<[1], [0], [0], [1], [0, 0, 1, 1], [], []>} : vector<4x4xf32>, vector<4x8xf32>, vector<4x8xf32> -> vector<4x8xf32>
    %c0_256 = arith.constant 0 : index
    %c16_257 = arith.constant 16 : index
    %452 = vector.load %arg44[%c0_256, %c16_257] : memref<4x32xf32, #tpu.memory_space<vmem>>, vector<4x8xf32>
    tpu.vector_store %arg44[%c0_256, %c16_257], %451 {strides = array<i32>} : memref<4x32xf32, #tpu.memory_space<vmem>>, vector<4x8xf32>,
    %453 = vector.extract_strided_slice %396 {offsets = [0, 24], sizes = [4, 8], strides = [1, 1]} : vector<4x32xf32> to vector<4x8xf32>
    %454 = vector.extract_strided_slice %397 {offsets = [0, 24], sizes = [4, 8], strides = [1, 1]} : vector<4x32xf32> to vector<4x8xf32>
    %455 = vector.extract_strided_slice %398 {offsets = [0, 24], sizes = [4, 8], strides = [1, 1]} : vector<4x32xf32> to vector<4x8xf32>
    %cst_258 = arith.constant dense<0.000000e+00> : vector<4x4xf32>
    %456 = tpu.matmul %453, %454, %cst_258 {dimension_numbers = #tpu.dot_dimension_numbers<[1], [1], [0], [0], [0, 0, 1, 0], [], []>} : vector<4x8xf32>, vector<4x8xf32>, vector<4x4xf32> -> vector<4x4xf32>
    %cst_259 = arith.constant 0.353553385 : f32
    %457 = vector.broadcast %cst_259 : f32 to vector<4x4xf32>
    %458 = arith.mulf %456, %457 : vector<4x4xf32>
    %cst_260 = arith.constant dense<0xFF800000> : vector<4xf32>
    %459 = vector.multi_reduction <maximumf>, %458, %cst_260 [1] : vector<4x4xf32> to vector<4xf32>
    %460 = vector.shape_cast %459 : vector<4xf32> to vector<4x1xf32>
    %461 = vector.broadcast %460 : vector<4x1xf32> to vector<4x4xf32>
    %462 = arith.subf %458, %461 : vector<4x4xf32>
    %463 = math.exp %462 : vector<4x4xf32>
    %cst_261 = arith.constant dense<0.000000e+00> : vector<4xf32>
    %464 = vector.multi_reduction <add>, %463, %cst_261 [1] : vector<4x4xf32> to vector<4xf32>
    %465 = vector.shape_cast %464 : vector<4xf32> to vector<4x1xf32>
    %466 = tpu.reciprocal %465 {approx = true} : vector<4x1xf32> -> vector<4x1xf32>
    %467 = vector.broadcast %466 : vector<4x1xf32> to vector<4x4xf32>
    %468 = arith.mulf %463, %467 : vector<4x4xf32>
    %cst_262 = arith.constant dense<0.000000e+00> : vector<4x8xf32>
    %469 = tpu.matmul %468, %455, %cst_262 {dimension_numbers = #tpu.dot_dimension_numbers<[1], [0], [0], [1], [0, 0, 1, 1], [], []>} : vector<4x4xf32>, vector<4x8xf32>, vector<4x8xf32> -> vector<4x8xf32>
    %c0_263 = arith.constant 0 : index
    %c24_264 = arith.constant 24 : index
    %470 = vector.load %arg44[%c0_263, %c24_264] : memref<4x32xf32, #tpu.memory_space<vmem>>, vector<4x8xf32>
    tpu.vector_store %arg44[%c0_263, %c24_264], %469 {strides = array<i32>} : memref<4x32xf32, #tpu.memory_space<vmem>>, vector<4x8xf32>,
    %c0_265 = arith.constant 0 : index
    %c0_266 = arith.constant 0 : index
    %471 = vector.load %arg44[%c0_265, %c0_266] : memref<4x32xf32, #tpu.memory_space<vmem>>, vector<4x32xf32>
    %cst_267 = arith.constant dense<0.000000e+00> : vector<4x32xf32>
    %472 = tpu.matmul %471, %358, %cst_267 {dimension_numbers = #tpu.dot_dimension_numbers<[1], [0], [0], [1], [0, 0, 1, 1], [], []>} : vector<4x32xf32>, vector<32x32xf32>, vector<4x32xf32> -> vector<4x32xf32>
    %473 = vector.broadcast %360 : vector<1x32xf32> to vector<4x32xf32>
    %474 = arith.addf %472, %473 : vector<4x32xf32>
    %475 = arith.addf %352, %474 : vector<4x32xf32>
    %cst_268 = arith.constant dense<0.000000e+00> : vector<4xf32>
    %476 = vector.multi_reduction <add>, %475, %cst_268 [1] : vector<4x32xf32> to vector<4xf32>
    %477 = vector.shape_cast %476 : vector<4xf32> to vector<4x1xf32>
    %cst_269 = arith.constant 3.200000e+01 : f32
    %478 = vector.broadcast %cst_269 : f32 to vector<4x1xf32>
    %479 = arith.divf %477, %478 : vector<4x1xf32>
    %480 = vector.broadcast %479 : vector<4x1xf32> to vector<4x32xf32>
    %481 = arith.subf %475, %480 : vector<4x32xf32>
    %482 = arith.mulf %481, %481 : vector<4x32xf32>
    %cst_270 = arith.constant dense<0.000000e+00> : vector<4xf32>
    %483 = vector.multi_reduction <add>, %482, %cst_270 [1] : vector<4x32xf32> to vector<4xf32>
    %484 = vector.shape_cast %483 : vector<4xf32> to vector<4x1xf32>
    %cst_271 = arith.constant 3.200000e+01 : f32
    %485 = vector.broadcast %cst_271 : f32 to vector<4x1xf32>
    %486 = arith.divf %484, %485 : vector<4x1xf32>
    %487 = vector.broadcast %479 : vector<4x1xf32> to vector<4x32xf32>
    %488 = arith.subf %475, %487 : vector<4x32xf32>
    %cst_272 = arith.constant 9.99999974E-6 : f32
    %489 = vector.broadcast %cst_272 : f32 to vector<4x1xf32>
    %490 = arith.addf %486, %489 : vector<4x1xf32>
    %491 = math.rsqrt %490 : vector<4x1xf32>
    %492 = vector.broadcast %491 : vector<4x1xf32> to vector<4x32xf32>
    %493 = arith.mulf %488, %492 : vector<4x32xf32>
    %494 = vector.broadcast %362 : vector<1x32xf32> to vector<4x32xf32>
    %495 = arith.mulf %493, %494 : vector<4x32xf32>
    %496 = vector.broadcast %364 : vector<1x32xf32> to vector<4x32xf32>
    %497 = arith.addf %495, %496 : vector<4x32xf32>
    %cst_273 = arith.constant dense<0.000000e+00> : vector<4x32xf32>
    %498 = tpu.matmul %497, %366, %cst_273 {dimension_numbers = #tpu.dot_dimension_numbers<[1], [0], [0], [1], [0, 0, 1, 1], [], []>} : vector<4x32xf32>, vector<32x32xf32>, vector<4x32xf32> -> vector<4x32xf32>
    %499 = vector.broadcast %368 : vector<1x32xf32> to vector<4x32xf32>
    %500 = arith.addf %498, %499 : vector<4x32xf32>
    %cst_274 = arith.constant dense<0.000000e+00> : vector<4x64xf32>
    %501 = tpu.matmul %350, %370, %cst_274 {dimension_numbers = #tpu.dot_dimension_numbers<[1], [0], [0], [1], [0, 0, 1, 1], [], []>} : vector<4x32xf32>, vector<32x64xf32>, vector<4x64xf32> -> vector<4x64xf32>
    %502 = vector.broadcast %372 : vector<1x64xf32> to vector<4x64xf32>
    %503 = arith.addf %501, %502 : vector<4x64xf32>
    %504 = vector.extract_strided_slice %503 {offsets = [0, 0], sizes = [4, 32], strides = [1, 1]} : vector<4x64xf32> to vector<4x32xf32>
    %505 = vector.extract_strided_slice %503 {offsets = [0, 32], sizes = [4, 32], strides = [1, 1]} : vector<4x64xf32> to vector<4x32xf32>
    %506 = vector.extract_strided_slice %500 {offsets = [0, 0], sizes = [4, 8], strides = [1, 1]} : vector<4x32xf32> to vector<4x8xf32>
    %507 = vector.extract_strided_slice %504 {offsets = [0, 0], sizes = [4, 8], strides = [1, 1]} : vector<4x32xf32> to vector<4x8xf32>
    %508 = vector.extract_strided_slice %505 {offsets = [0, 0], sizes = [4, 8], strides = [1, 1]} : vector<4x32xf32> to vector<4x8xf32>
    %cst_275 = arith.constant dense<0.000000e+00> : vector<4x4xf32>
    %509 = tpu.matmul %506, %507, %cst_275 {dimension_numbers = #tpu.dot_dimension_numbers<[1], [1], [0], [0], [0, 0, 1, 0], [], []>} : vector<4x8xf32>, vector<4x8xf32>, vector<4x4xf32> -> vector<4x4xf32>
    %cst_276 = arith.constant 0.353553385 : f32
    %510 = vector.broadcast %cst_276 : f32 to vector<4x4xf32>
    %511 = arith.mulf %509, %510 : vector<4x4xf32>
    %cst_277 = arith.constant dense<0xFF800000> : vector<4xf32>
    %512 = vector.multi_reduction <maximumf>, %511, %cst_277 [1] : vector<4x4xf32> to vector<4xf32>
    %513 = vector.shape_cast %512 : vector<4xf32> to vector<4x1xf32>
    %514 = vector.broadcast %513 : vector<4x1xf32> to vector<4x4xf32>
    %515 = arith.subf %511, %514 : vector<4x4xf32>
    %516 = math.exp %515 : vector<4x4xf32>
    %cst_278 = arith.constant dense<0.000000e+00> : vector<4xf32>
    %517 = vector.multi_reduction <add>, %516, %cst_278 [1] : vector<4x4xf32> to vector<4xf32>
    %518 = vector.shape_cast %517 : vector<4xf32> to vector<4x1xf32>
    %519 = tpu.reciprocal %518 {approx = true} : vector<4x1xf32> -> vector<4x1xf32>
    %520 = vector.broadcast %519 : vector<4x1xf32> to vector<4x4xf32>
    %521 = arith.mulf %516, %520 : vector<4x4xf32>
    %cst_279 = arith.constant dense<0.000000e+00> : vector<4x8xf32>
    %522 = tpu.matmul %521, %508, %cst_279 {dimension_numbers = #tpu.dot_dimension_numbers<[1], [0], [0], [1], [0, 0, 1, 1], [], []>} : vector<4x4xf32>, vector<4x8xf32>, vector<4x8xf32> -> vector<4x8xf32>
    %c0_280 = arith.constant 0 : index
    %c0_281 = arith.constant 0 : index
    %523 = vector.load %arg44[%c0_280, %c0_281] : memref<4x32xf32, #tpu.memory_space<vmem>>, vector<4x8xf32>
    tpu.vector_store %arg44[%c0_280, %c0_281], %522 {strides = array<i32>} : memref<4x32xf32, #tpu.memory_space<vmem>>, vector<4x8xf32>,
    %524 = vector.extract_strided_slice %500 {offsets = [0, 8], sizes = [4, 8], strides = [1, 1]} : vector<4x32xf32> to vector<4x8xf32>
    %525 = vector.extract_strided_slice %504 {offsets = [0, 8], sizes = [4, 8], strides = [1, 1]} : vector<4x32xf32> to vector<4x8xf32>
    %526 = vector.extract_strided_slice %505 {offsets = [0, 8], sizes = [4, 8], strides = [1, 1]} : vector<4x32xf32> to vector<4x8xf32>
    %cst_282 = arith.constant dense<0.000000e+00> : vector<4x4xf32>
    %527 = tpu.matmul %524, %525, %cst_282 {dimension_numbers = #tpu.dot_dimension_numbers<[1], [1], [0], [0], [0, 0, 1, 0], [], []>} : vector<4x8xf32>, vector<4x8xf32>, vector<4x4xf32> -> vector<4x4xf32>
    %cst_283 = arith.constant 0.353553385 : f32
    %528 = vector.broadcast %cst_283 : f32 to vector<4x4xf32>
    %529 = arith.mulf %527, %528 : vector<4x4xf32>
    %cst_284 = arith.constant dense<0xFF800000> : vector<4xf32>
    %530 = vector.multi_reduction <maximumf>, %529, %cst_284 [1] : vector<4x4xf32> to vector<4xf32>
    %531 = vector.shape_cast %530 : vector<4xf32> to vector<4x1xf32>
    %532 = vector.broadcast %531 : vector<4x1xf32> to vector<4x4xf32>
    %533 = arith.subf %529, %532 : vector<4x4xf32>
    %534 = math.exp %533 : vector<4x4xf32>
    %cst_285 = arith.constant dense<0.000000e+00> : vector<4xf32>
    %535 = vector.multi_reduction <add>, %534, %cst_285 [1] : vector<4x4xf32> to vector<4xf32>
    %536 = vector.shape_cast %535 : vector<4xf32> to vector<4x1xf32>
    %537 = tpu.reciprocal %536 {approx = true} : vector<4x1xf32> -> vector<4x1xf32>
    %538 = vector.broadcast %537 : vector<4x1xf32> to vector<4x4xf32>
    %539 = arith.mulf %534, %538 : vector<4x4xf32>
    %cst_286 = arith.constant dense<0.000000e+00> : vector<4x8xf32>
    %540 = tpu.matmul %539, %526, %cst_286 {dimension_numbers = #tpu.dot_dimension_numbers<[1], [0], [0], [1], [0, 0, 1, 1], [], []>} : vector<4x4xf32>, vector<4x8xf32>, vector<4x8xf32> -> vector<4x8xf32>
    %c0_287 = arith.constant 0 : index
    %c8_288 = arith.constant 8 : index
    %541 = vector.load %arg44[%c0_287, %c8_288] : memref<4x32xf32, #tpu.memory_space<vmem>>, vector<4x8xf32>
    tpu.vector_store %arg44[%c0_287, %c8_288], %540 {strides = array<i32>} : memref<4x32xf32, #tpu.memory_space<vmem>>, vector<4x8xf32>,
    %542 = vector.extract_strided_slice %500 {offsets = [0, 16], sizes = [4, 8], strides = [1, 1]} : vector<4x32xf32> to vector<4x8xf32>
    %543 = vector.extract_strided_slice %504 {offsets = [0, 16], sizes = [4, 8], strides = [1, 1]} : vector<4x32xf32> to vector<4x8xf32>
    %544 = vector.extract_strided_slice %505 {offsets = [0, 16], sizes = [4, 8], strides = [1, 1]} : vector<4x32xf32> to vector<4x8xf32>
    %cst_289 = arith.constant dense<0.000000e+00> : vector<4x4xf32>
    %545 = tpu.matmul %542, %543, %cst_289 {dimension_numbers = #tpu.dot_dimension_numbers<[1], [1], [0], [0], [0, 0, 1, 0], [], []>} : vector<4x8xf32>, vector<4x8xf32>, vector<4x4xf32> -> vector<4x4xf32>
    %cst_290 = arith.constant 0.353553385 : f32
    %546 = vector.broadcast %cst_290 : f32 to vector<4x4xf32>
    %547 = arith.mulf %545, %546 : vector<4x4xf32>
    %cst_291 = arith.constant dense<0xFF800000> : vector<4xf32>
    %548 = vector.multi_reduction <maximumf>, %547, %cst_291 [1] : vector<4x4xf32> to vector<4xf32>
    %549 = vector.shape_cast %548 : vector<4xf32> to vector<4x1xf32>
    %550 = vector.broadcast %549 : vector<4x1xf32> to vector<4x4xf32>
    %551 = arith.subf %547, %550 : vector<4x4xf32>
    %552 = math.exp %551 : vector<4x4xf32>
    %cst_292 = arith.constant dense<0.000000e+00> : vector<4xf32>
    %553 = vector.multi_reduction <add>, %552, %cst_292 [1] : vector<4x4xf32> to vector<4xf32>
    %554 = vector.shape_cast %553 : vector<4xf32> to vector<4x1xf32>
    %555 = tpu.reciprocal %554 {approx = true} : vector<4x1xf32> -> vector<4x1xf32>
    %556 = vector.broadcast %555 : vector<4x1xf32> to vector<4x4xf32>
    %557 = arith.mulf %552, %556 : vector<4x4xf32>
    %cst_293 = arith.constant dense<0.000000e+00> : vector<4x8xf32>
    %558 = tpu.matmul %557, %544, %cst_293 {dimension_numbers = #tpu.dot_dimension_numbers<[1], [0], [0], [1], [0, 0, 1, 1], [], []>} : vector<4x4xf32>, vector<4x8xf32>, vector<4x8xf32> -> vector<4x8xf32>
    %c0_294 = arith.constant 0 : index
    %c16_295 = arith.constant 16 : index
    %559 = vector.load %arg44[%c0_294, %c16_295] : memref<4x32xf32, #tpu.memory_space<vmem>>, vector<4x8xf32>
    tpu.vector_store %arg44[%c0_294, %c16_295], %558 {strides = array<i32>} : memref<4x32xf32, #tpu.memory_space<vmem>>, vector<4x8xf32>,
    %560 = vector.extract_strided_slice %500 {offsets = [0, 24], sizes = [4, 8], strides = [1, 1]} : vector<4x32xf32> to vector<4x8xf32>
    %561 = vector.extract_strided_slice %504 {offsets = [0, 24], sizes = [4, 8], strides = [1, 1]} : vector<4x32xf32> to vector<4x8xf32>
    %562 = vector.extract_strided_slice %505 {offsets = [0, 24], sizes = [4, 8], strides = [1, 1]} : vector<4x32xf32> to vector<4x8xf32>
    %cst_296 = arith.constant dense<0.000000e+00> : vector<4x4xf32>
    %563 = tpu.matmul %560, %561, %cst_296 {dimension_numbers = #tpu.dot_dimension_numbers<[1], [1], [0], [0], [0, 0, 1, 0], [], []>} : vector<4x8xf32>, vector<4x8xf32>, vector<4x4xf32> -> vector<4x4xf32>
    %cst_297 = arith.constant 0.353553385 : f32
    %564 = vector.broadcast %cst_297 : f32 to vector<4x4xf32>
    %565 = arith.mulf %563, %564 : vector<4x4xf32>
    %cst_298 = arith.constant dense<0xFF800000> : vector<4xf32>
    %566 = vector.multi_reduction <maximumf>, %565, %cst_298 [1] : vector<4x4xf32> to vector<4xf32>
    %567 = vector.shape_cast %566 : vector<4xf32> to vector<4x1xf32>
    %568 = vector.broadcast %567 : vector<4x1xf32> to vector<4x4xf32>
    %569 = arith.subf %565, %568 : vector<4x4xf32>
    %570 = math.exp %569 : vector<4x4xf32>
    %cst_299 = arith.constant dense<0.000000e+00> : vector<4xf32>
    %571 = vector.multi_reduction <add>, %570, %cst_299 [1] : vector<4x4xf32> to vector<4xf32>
    %572 = vector.shape_cast %571 : vector<4xf32> to vector<4x1xf32>
    %573 = tpu.reciprocal %572 {approx = true} : vector<4x1xf32> -> vector<4x1xf32>
    %574 = vector.broadcast %573 : vector<4x1xf32> to vector<4x4xf32>
    %575 = arith.mulf %570, %574 : vector<4x4xf32>
    %cst_300 = arith.constant dense<0.000000e+00> : vector<4x8xf32>
    %576 = tpu.matmul %575, %562, %cst_300 {dimension_numbers = #tpu.dot_dimension_numbers<[1], [0], [0], [1], [0, 0, 1, 1], [], []>} : vector<4x4xf32>, vector<4x8xf32>, vector<4x8xf32> -> vector<4x8xf32>
    %c0_301 = arith.constant 0 : index
    %c24_302 = arith.constant 24 : index
    %577 = vector.load %arg44[%c0_301, %c24_302] : memref<4x32xf32, #tpu.memory_space<vmem>>, vector<4x8xf32>
    tpu.vector_store %arg44[%c0_301, %c24_302], %576 {strides = array<i32>} : memref<4x32xf32, #tpu.memory_space<vmem>>, vector<4x8xf32>,
    %c0_303 = arith.constant 0 : index
    %c0_304 = arith.constant 0 : index
    %578 = vector.load %arg44[%c0_303, %c0_304] : memref<4x32xf32, #tpu.memory_space<vmem>>, vector<4x32xf32>
    %cst_305 = arith.constant dense<0.000000e+00> : vector<4x32xf32>
    %579 = tpu.matmul %578, %374, %cst_305 {dimension_numbers = #tpu.dot_dimension_numbers<[1], [0], [0], [1], [0, 0, 1, 1], [], []>} : vector<4x32xf32>, vector<32x32xf32>, vector<4x32xf32> -> vector<4x32xf32>
    %580 = vector.broadcast %376 : vector<1x32xf32> to vector<4x32xf32>
    %581 = arith.addf %579, %580 : vector<4x32xf32>
    %582 = arith.addf %497, %581 : vector<4x32xf32>
    %cst_306 = arith.constant dense<0.000000e+00> : vector<4xf32>
    %583 = vector.multi_reduction <add>, %582, %cst_306 [1] : vector<4x32xf32> to vector<4xf32>
    %584 = vector.shape_cast %583 : vector<4xf32> to vector<4x1xf32>
    %cst_307 = arith.constant 3.200000e+01 : f32
    %585 = vector.broadcast %cst_307 : f32 to vector<4x1xf32>
    %586 = arith.divf %584, %585 : vector<4x1xf32>
    %587 = vector.broadcast %586 : vector<4x1xf32> to vector<4x32xf32>
    %588 = arith.subf %582, %587 : vector<4x32xf32>
    %589 = arith.mulf %588, %588 : vector<4x32xf32>
    %cst_308 = arith.constant dense<0.000000e+00> : vector<4xf32>
    %590 = vector.multi_reduction <add>, %589, %cst_308 [1] : vector<4x32xf32> to vector<4xf32>
    %591 = vector.shape_cast %590 : vector<4xf32> to vector<4x1xf32>
    %cst_309 = arith.constant 3.200000e+01 : f32
    %592 = vector.broadcast %cst_309 : f32 to vector<4x1xf32>
    %593 = arith.divf %591, %592 : vector<4x1xf32>
    %594 = vector.broadcast %586 : vector<4x1xf32> to vector<4x32xf32>
    %595 = arith.subf %582, %594 : vector<4x32xf32>
    %cst_310 = arith.constant 9.99999974E-6 : f32
    %596 = vector.broadcast %cst_310 : f32 to vector<4x1xf32>
    %597 = arith.addf %593, %596 : vector<4x1xf32>
    %598 = math.rsqrt %597 : vector<4x1xf32>
    %599 = vector.broadcast %598 : vector<4x1xf32> to vector<4x32xf32>
    %600 = arith.mulf %595, %599 : vector<4x32xf32>
    %601 = vector.broadcast %378 : vector<1x32xf32> to vector<4x32xf32>
    %602 = arith.mulf %600, %601 : vector<4x32xf32>
    %603 = vector.broadcast %380 : vector<1x32xf32> to vector<4x32xf32>
    %604 = arith.addf %602, %603 : vector<4x32xf32>
    %cst_311 = arith.constant dense<0.000000e+00> : vector<4x64xf32>
    %605 = tpu.matmul %604, %382, %cst_311 {dimension_numbers = #tpu.dot_dimension_numbers<[1], [0], [0], [1], [0, 0, 1, 1], [], []>} : vector<4x32xf32>, vector<32x64xf32>, vector<4x64xf32> -> vector<4x64xf32>
    %606 = vector.broadcast %384 : vector<1x64xf32> to vector<4x64xf32>
    %607 = arith.addf %605, %606 : vector<4x64xf32>
    %cst_312 = arith.constant 0.000000e+00 : f32
    %608 = vector.broadcast %cst_312 : f32 to vector<4x64xf32>
    %609 = arith.maximumf %607, %608 : vector<4x64xf32>
    %cst_313 = arith.constant dense<0.000000e+00> : vector<4x32xf32>
    %610 = tpu.matmul %609, %386, %cst_313 {dimension_numbers = #tpu.dot_dimension_numbers<[1], [0], [0], [1], [0, 0, 1, 1], [], []>} : vector<4x64xf32>, vector<64x32xf32>, vector<4x32xf32> -> vector<4x32xf32>
    %611 = vector.broadcast %388 : vector<1x32xf32> to vector<4x32xf32>
    %612 = arith.addf %610, %611 : vector<4x32xf32>
    %613 = arith.addf %604, %612 : vector<4x32xf32>
    %cst_314 = arith.constant dense<0.000000e+00> : vector<4xf32>
    %614 = vector.multi_reduction <add>, %613, %cst_314 [1] : vector<4x32xf32> to vector<4xf32>
    %615 = vector.shape_cast %614 : vector<4xf32> to vector<4x1xf32>
    %cst_315 = arith.constant 3.200000e+01 : f32
    %616 = vector.broadcast %cst_315 : f32 to vector<4x1xf32>
    %617 = arith.divf %615, %616 : vector<4x1xf32>
    %618 = vector.broadcast %617 : vector<4x1xf32> to vector<4x32xf32>
    %619 = arith.subf %613, %618 : vector<4x32xf32>
    %620 = arith.mulf %619, %619 : vector<4x32xf32>
    %cst_316 = arith.constant dense<0.000000e+00> : vector<4xf32>
    %621 = vector.multi_reduction <add>, %620, %cst_316 [1] : vector<4x32xf32> to vector<4xf32>
    %622 = vector.shape_cast %621 : vector<4xf32> to vector<4x1xf32>
    %cst_317 = arith.constant 3.200000e+01 : f32
    %623 = vector.broadcast %cst_317 : f32 to vector<4x1xf32>
    %624 = arith.divf %622, %623 : vector<4x1xf32>
    %625 = vector.broadcast %617 : vector<4x1xf32> to vector<4x32xf32>
    %626 = arith.subf %613, %625 : vector<4x32xf32>
    %cst_318 = arith.constant 9.99999974E-6 : f32
    %627 = vector.broadcast %cst_318 : f32 to vector<4x1xf32>
    %628 = arith.addf %624, %627 : vector<4x1xf32>
    %629 = math.rsqrt %628 : vector<4x1xf32>
    %630 = vector.broadcast %629 : vector<4x1xf32> to vector<4x32xf32>
    %631 = arith.mulf %626, %630 : vector<4x32xf32>
    %632 = vector.broadcast %390 : vector<1x32xf32> to vector<4x32xf32>
    %633 = arith.mulf %631, %632 : vector<4x32xf32>
    %634 = vector.broadcast %392 : vector<1x32xf32> to vector<4x32xf32>
    %635 = arith.addf %633, %634 : vector<4x32xf32>
    %c1_319 = arith.constant 1 : index
    %c0_320 = arith.constant 0 : index
    %c0_321 = arith.constant 0 : index
    %636 = vector.load %arg19[%c1_319, %c0_320, %c0_321] : memref<2x32x96xf32, #tpu.memory_space<vmem>>, vector<1x32x96xf32>
    %637 = vector.shape_cast %636 : vector<1x32x96xf32> to vector<32x96xf32>
    %c1_322 = arith.constant 1 : index
    %c0_323 = arith.constant 0 : index
    %c0_324 = arith.constant 0 : index
    %638 = vector.load %arg20[%c1_322, %c0_323, %c0_324] : memref<2x1x96xf32, #tpu.memory_space<vmem>>, vector<1x1x96xf32>
    %639 = vector.shape_cast %638 : vector<1x1x96xf32> to vector<1x96xf32>
    %c1_325 = arith.constant 1 : index
    %c0_326 = arith.constant 0 : index
    %c0_327 = arith.constant 0 : index
    %640 = vector.load %arg21[%c1_325, %c0_326, %c0_327] : memref<2x32x32xf32, #tpu.memory_space<vmem>>, vector<1x32x32xf32>
    %641 = vector.shape_cast %640 : vector<1x32x32xf32> to vector<32x32xf32>
    %c1_328 = arith.constant 1 : index
    %c0_329 = arith.constant 0 : index
    %c0_330 = arith.constant 0 : index
    %642 = vector.load %arg22[%c1_328, %c0_329, %c0_330] : memref<2x1x32xf32, #tpu.memory_space<vmem>>, vector<1x1x32xf32>
    %643 = vector.shape_cast %642 : vector<1x1x32xf32> to vector<1x32xf32>
    %c1_331 = arith.constant 1 : index
    %c0_332 = arith.constant 0 : index
    %c0_333 = arith.constant 0 : index
    %644 = vector.load %arg23[%c1_331, %c0_332, %c0_333] : memref<2x1x32xf32, #tpu.memory_space<vmem>>, vector<1x1x32xf32>
    %645 = vector.shape_cast %644 : vector<1x1x32xf32> to vector<1x32xf32>
    %c1_334 = arith.constant 1 : index
    %c0_335 = arith.constant 0 : index
    %c0_336 = arith.constant 0 : index
    %646 = vector.load %arg24[%c1_334, %c0_335, %c0_336] : memref<2x1x32xf32, #tpu.memory_space<vmem>>, vector<1x1x32xf32>
    %647 = vector.shape_cast %646 : vector<1x1x32xf32> to vector<1x32xf32>
    %c1_337 = arith.constant 1 : index
    %c0_338 = arith.constant 0 : index
    %c0_339 = arith.constant 0 : index
    %648 = vector.load %arg25[%c1_337, %c0_338, %c0_339] : memref<2x32x32xf32, #tpu.memory_space<vmem>>, vector<1x32x32xf32>
    %649 = vector.shape_cast %648 : vector<1x32x32xf32> to vector<32x32xf32>
    %c1_340 = arith.constant 1 : index
    %c0_341 = arith.constant 0 : index
    %c0_342 = arith.constant 0 : index
    %650 = vector.load %arg26[%c1_340, %c0_341, %c0_342] : memref<2x1x32xf32, #tpu.memory_space<vmem>>, vector<1x1x32xf32>
    %651 = vector.shape_cast %650 : vector<1x1x32xf32> to vector<1x32xf32>
    %c1_343 = arith.constant 1 : index
    %c0_344 = arith.constant 0 : index
    %c0_345 = arith.constant 0 : index
    %652 = vector.load %arg27[%c1_343, %c0_344, %c0_345] : memref<2x32x64xf32, #tpu.memory_space<vmem>>, vector<1x32x64xf32>
    %653 = vector.shape_cast %652 : vector<1x32x64xf32> to vector<32x64xf32>
    %c1_346 = arith.constant 1 : index
    %c0_347 = arith.constant 0 : index
    %c0_348 = arith.constant 0 : index
    %654 = vector.load %arg28[%c1_346, %c0_347, %c0_348] : memref<2x1x64xf32, #tpu.memory_space<vmem>>, vector<1x1x64xf32>
    %655 = vector.shape_cast %654 : vector<1x1x64xf32> to vector<1x64xf32>
    %c1_349 = arith.constant 1 : index
    %c0_350 = arith.constant 0 : index
    %c0_351 = arith.constant 0 : index
    %656 = vector.load %arg29[%c1_349, %c0_350, %c0_351] : memref<2x32x32xf32, #tpu.memory_space<vmem>>, vector<1x32x32xf32>
    %657 = vector.shape_cast %656 : vector<1x32x32xf32> to vector<32x32xf32>
    %c1_352 = arith.constant 1 : index
    %c0_353 = arith.constant 0 : index
    %c0_354 = arith.constant 0 : index
    %658 = vector.load %arg30[%c1_352, %c0_353, %c0_354] : memref<2x1x32xf32, #tpu.memory_space<vmem>>, vector<1x1x32xf32>
    %659 = vector.shape_cast %658 : vector<1x1x32xf32> to vector<1x32xf32>
    %c1_355 = arith.constant 1 : index
    %c0_356 = arith.constant 0 : index
    %c0_357 = arith.constant 0 : index
    %660 = vector.load %arg31[%c1_355, %c0_356, %c0_357] : memref<2x1x32xf32, #tpu.memory_space<vmem>>, vector<1x1x32xf32>
    %661 = vector.shape_cast %660 : vector<1x1x32xf32> to vector<1x32xf32>
    %c1_358 = arith.constant 1 : index
    %c0_359 = arith.constant 0 : index
    %c0_360 = arith.constant 0 : index
    %662 = vector.load %arg32[%c1_358, %c0_359, %c0_360] : memref<2x1x32xf32, #tpu.memory_space<vmem>>, vector<1x1x32xf32>
    %663 = vector.shape_cast %662 : vector<1x1x32xf32> to vector<1x32xf32>
    %c1_361 = arith.constant 1 : index
    %c0_362 = arith.constant 0 : index
    %c0_363 = arith.constant 0 : index
    %664 = vector.load %arg33[%c1_361, %c0_362, %c0_363] : memref<2x32x64xf32, #tpu.memory_space<vmem>>, vector<1x32x64xf32>
    %665 = vector.shape_cast %664 : vector<1x32x64xf32> to vector<32x64xf32>
    %c1_364 = arith.constant 1 : index
    %c0_365 = arith.constant 0 : index
    %c0_366 = arith.constant 0 : index
    %666 = vector.load %arg34[%c1_364, %c0_365, %c0_366] : memref<2x1x64xf32, #tpu.memory_space<vmem>>, vector<1x1x64xf32>
    %667 = vector.shape_cast %666 : vector<1x1x64xf32> to vector<1x64xf32>
    %c1_367 = arith.constant 1 : index
    %c0_368 = arith.constant 0 : index
    %c0_369 = arith.constant 0 : index
    %668 = vector.load %arg35[%c1_367, %c0_368, %c0_369] : memref<2x64x32xf32, #tpu.memory_space<vmem>>, vector<1x64x32xf32>
    %669 = vector.shape_cast %668 : vector<1x64x32xf32> to vector<64x32xf32>
    %c1_370 = arith.constant 1 : index
    %c0_371 = arith.constant 0 : index
    %c0_372 = arith.constant 0 : index
    %670 = vector.load %arg36[%c1_370, %c0_371, %c0_372] : memref<2x1x32xf32, #tpu.memory_space<vmem>>, vector<1x1x32xf32>
    %671 = vector.shape_cast %670 : vector<1x1x32xf32> to vector<1x32xf32>
    %c1_373 = arith.constant 1 : index
    %c0_374 = arith.constant 0 : index
    %c0_375 = arith.constant 0 : index
    %672 = vector.load %arg37[%c1_373, %c0_374, %c0_375] : memref<2x1x32xf32, #tpu.memory_space<vmem>>, vector<1x1x32xf32>
    %673 = vector.shape_cast %672 : vector<1x1x32xf32> to vector<1x32xf32>
    %c1_376 = arith.constant 1 : index
    %c0_377 = arith.constant 0 : index
    %c0_378 = arith.constant 0 : index
    %674 = vector.load %arg38[%c1_376, %c0_377, %c0_378] : memref<2x1x32xf32, #tpu.memory_space<vmem>>, vector<1x1x32xf32>
    %675 = vector.shape_cast %674 : vector<1x1x32xf32> to vector<1x32xf32>
    %cst_379 = arith.constant dense<0.000000e+00> : vector<4x96xf32>
    %676 = tpu.matmul %635, %637, %cst_379 {dimension_numbers = #tpu.dot_dimension_numbers<[1], [0], [0], [1], [0, 0, 1, 1], [], []>} : vector<4x32xf32>, vector<32x96xf32>, vector<4x96xf32> -> vector<4x96xf32>
    %677 = vector.broadcast %639 : vector<1x96xf32> to vector<4x96xf32>
    %678 = arith.addf %676, %677 : vector<4x96xf32>
    %679 = vector.extract_strided_slice %678 {offsets = [0, 0], sizes = [4, 32], strides = [1, 1]} : vector<4x96xf32> to vector<4x32xf32>
    %680 = vector.extract_strided_slice %678 {offsets = [0, 32], sizes = [4, 32], strides = [1, 1]} : vector<4x96xf32> to vector<4x32xf32>
    %681 = vector.extract_strided_slice %678 {offsets = [0, 64], sizes = [4, 32], strides = [1, 1]} : vector<4x96xf32> to vector<4x32xf32>
    %682 = vector.extract_strided_slice %679 {offsets = [0, 0], sizes = [4, 8], strides = [1, 1]} : vector<4x32xf32> to vector<4x8xf32>
    %683 = vector.extract_strided_slice %680 {offsets = [0, 0], sizes = [4, 8], strides = [1, 1]} : vector<4x32xf32> to vector<4x8xf32>
    %684 = vector.extract_strided_slice %681 {offsets = [0, 0], sizes = [4, 8], strides = [1, 1]} : vector<4x32xf32> to vector<4x8xf32>
    %cst_380 = arith.constant dense<0.000000e+00> : vector<4x4xf32>
    %685 = tpu.matmul %682, %683, %cst_380 {dimension_numbers = #tpu.dot_dimension_numbers<[1], [1], [0], [0], [0, 0, 1, 0], [], []>} : vector<4x8xf32>, vector<4x8xf32>, vector<4x4xf32> -> vector<4x4xf32>
    %cst_381 = arith.constant 0.353553385 : f32
    %686 = vector.broadcast %cst_381 : f32 to vector<4x4xf32>
    %687 = arith.mulf %685, %686 : vector<4x4xf32>
    %cst_382 = arith.constant dense<0xFF800000> : vector<4xf32>
    %688 = vector.multi_reduction <maximumf>, %687, %cst_382 [1] : vector<4x4xf32> to vector<4xf32>
    %689 = vector.shape_cast %688 : vector<4xf32> to vector<4x1xf32>
    %690 = vector.broadcast %689 : vector<4x1xf32> to vector<4x4xf32>
    %691 = arith.subf %687, %690 : vector<4x4xf32>
    %692 = math.exp %691 : vector<4x4xf32>
    %cst_383 = arith.constant dense<0.000000e+00> : vector<4xf32>
    %693 = vector.multi_reduction <add>, %692, %cst_383 [1] : vector<4x4xf32> to vector<4xf32>
    %694 = vector.shape_cast %693 : vector<4xf32> to vector<4x1xf32>
    %695 = tpu.reciprocal %694 {approx = true} : vector<4x1xf32> -> vector<4x1xf32>
    %696 = vector.broadcast %695 : vector<4x1xf32> to vector<4x4xf32>
    %697 = arith.mulf %692, %696 : vector<4x4xf32>
    %cst_384 = arith.constant dense<0.000000e+00> : vector<4x8xf32>
    %698 = tpu.matmul %697, %684, %cst_384 {dimension_numbers = #tpu.dot_dimension_numbers<[1], [0], [0], [1], [0, 0, 1, 1], [], []>} : vector<4x4xf32>, vector<4x8xf32>, vector<4x8xf32> -> vector<4x8xf32>
    %c0_385 = arith.constant 0 : index
    %c0_386 = arith.constant 0 : index
    %699 = vector.load %arg44[%c0_385, %c0_386] : memref<4x32xf32, #tpu.memory_space<vmem>>, vector<4x8xf32>
    tpu.vector_store %arg44[%c0_385, %c0_386], %698 {strides = array<i32>} : memref<4x32xf32, #tpu.memory_space<vmem>>, vector<4x8xf32>,
    %700 = vector.extract_strided_slice %679 {offsets = [0, 8], sizes = [4, 8], strides = [1, 1]} : vector<4x32xf32> to vector<4x8xf32>
    %701 = vector.extract_strided_slice %680 {offsets = [0, 8], sizes = [4, 8], strides = [1, 1]} : vector<4x32xf32> to vector<4x8xf32>
    %702 = vector.extract_strided_slice %681 {offsets = [0, 8], sizes = [4, 8], strides = [1, 1]} : vector<4x32xf32> to vector<4x8xf32>
    %cst_387 = arith.constant dense<0.000000e+00> : vector<4x4xf32>
    %703 = tpu.matmul %700, %701, %cst_387 {dimension_numbers = #tpu.dot_dimension_numbers<[1], [1], [0], [0], [0, 0, 1, 0], [], []>} : vector<4x8xf32>, vector<4x8xf32>, vector<4x4xf32> -> vector<4x4xf32>
    %cst_388 = arith.constant 0.353553385 : f32
    %704 = vector.broadcast %cst_388 : f32 to vector<4x4xf32>
    %705 = arith.mulf %703, %704 : vector<4x4xf32>
    %cst_389 = arith.constant dense<0xFF800000> : vector<4xf32>
    %706 = vector.multi_reduction <maximumf>, %705, %cst_389 [1] : vector<4x4xf32> to vector<4xf32>
    %707 = vector.shape_cast %706 : vector<4xf32> to vector<4x1xf32>
    %708 = vector.broadcast %707 : vector<4x1xf32> to vector<4x4xf32>
    %709 = arith.subf %705, %708 : vector<4x4xf32>
    %710 = math.exp %709 : vector<4x4xf32>
    %cst_390 = arith.constant dense<0.000000e+00> : vector<4xf32>
    %711 = vector.multi_reduction <add>, %710, %cst_390 [1] : vector<4x4xf32> to vector<4xf32>
    %712 = vector.shape_cast %711 : vector<4xf32> to vector<4x1xf32>
    %713 = tpu.reciprocal %712 {approx = true} : vector<4x1xf32> -> vector<4x1xf32>
    %714 = vector.broadcast %713 : vector<4x1xf32> to vector<4x4xf32>
    %715 = arith.mulf %710, %714 : vector<4x4xf32>
    %cst_391 = arith.constant dense<0.000000e+00> : vector<4x8xf32>
    %716 = tpu.matmul %715, %702, %cst_391 {dimension_numbers = #tpu.dot_dimension_numbers<[1], [0], [0], [1], [0, 0, 1, 1], [], []>} : vector<4x4xf32>, vector<4x8xf32>, vector<4x8xf32> -> vector<4x8xf32>
    %c0_392 = arith.constant 0 : index
    %c8_393 = arith.constant 8 : index
    %717 = vector.load %arg44[%c0_392, %c8_393] : memref<4x32xf32, #tpu.memory_space<vmem>>, vector<4x8xf32>
    tpu.vector_store %arg44[%c0_392, %c8_393], %716 {strides = array<i32>} : memref<4x32xf32, #tpu.memory_space<vmem>>, vector<4x8xf32>,
    %718 = vector.extract_strided_slice %679 {offsets = [0, 16], sizes = [4, 8], strides = [1, 1]} : vector<4x32xf32> to vector<4x8xf32>
    %719 = vector.extract_strided_slice %680 {offsets = [0, 16], sizes = [4, 8], strides = [1, 1]} : vector<4x32xf32> to vector<4x8xf32>
    %720 = vector.extract_strided_slice %681 {offsets = [0, 16], sizes = [4, 8], strides = [1, 1]} : vector<4x32xf32> to vector<4x8xf32>
    %cst_394 = arith.constant dense<0.000000e+00> : vector<4x4xf32>
    %721 = tpu.matmul %718, %719, %cst_394 {dimension_numbers = #tpu.dot_dimension_numbers<[1], [1], [0], [0], [0, 0, 1, 0], [], []>} : vector<4x8xf32>, vector<4x8xf32>, vector<4x4xf32> -> vector<4x4xf32>
    %cst_395 = arith.constant 0.353553385 : f32
    %722 = vector.broadcast %cst_395 : f32 to vector<4x4xf32>
    %723 = arith.mulf %721, %722 : vector<4x4xf32>
    %cst_396 = arith.constant dense<0xFF800000> : vector<4xf32>
    %724 = vector.multi_reduction <maximumf>, %723, %cst_396 [1] : vector<4x4xf32> to vector<4xf32>
    %725 = vector.shape_cast %724 : vector<4xf32> to vector<4x1xf32>
    %726 = vector.broadcast %725 : vector<4x1xf32> to vector<4x4xf32>
    %727 = arith.subf %723, %726 : vector<4x4xf32>
    %728 = math.exp %727 : vector<4x4xf32>
    %cst_397 = arith.constant dense<0.000000e+00> : vector<4xf32>
    %729 = vector.multi_reduction <add>, %728, %cst_397 [1] : vector<4x4xf32> to vector<4xf32>
    %730 = vector.shape_cast %729 : vector<4xf32> to vector<4x1xf32>
    %731 = tpu.reciprocal %730 {approx = true} : vector<4x1xf32> -> vector<4x1xf32>
    %732 = vector.broadcast %731 : vector<4x1xf32> to vector<4x4xf32>
    %733 = arith.mulf %728, %732 : vector<4x4xf32>
    %cst_398 = arith.constant dense<0.000000e+00> : vector<4x8xf32>
    %734 = tpu.matmul %733, %720, %cst_398 {dimension_numbers = #tpu.dot_dimension_numbers<[1], [0], [0], [1], [0, 0, 1, 1], [], []>} : vector<4x4xf32>, vector<4x8xf32>, vector<4x8xf32> -> vector<4x8xf32>
    %c0_399 = arith.constant 0 : index
    %c16_400 = arith.constant 16 : index
    %735 = vector.load %arg44[%c0_399, %c16_400] : memref<4x32xf32, #tpu.memory_space<vmem>>, vector<4x8xf32>
    tpu.vector_store %arg44[%c0_399, %c16_400], %734 {strides = array<i32>} : memref<4x32xf32, #tpu.memory_space<vmem>>, vector<4x8xf32>,
    %736 = vector.extract_strided_slice %679 {offsets = [0, 24], sizes = [4, 8], strides = [1, 1]} : vector<4x32xf32> to vector<4x8xf32>
    %737 = vector.extract_strided_slice %680 {offsets = [0, 24], sizes = [4, 8], strides = [1, 1]} : vector<4x32xf32> to vector<4x8xf32>
    %738 = vector.extract_strided_slice %681 {offsets = [0, 24], sizes = [4, 8], strides = [1, 1]} : vector<4x32xf32> to vector<4x8xf32>
    %cst_401 = arith.constant dense<0.000000e+00> : vector<4x4xf32>
    %739 = tpu.matmul %736, %737, %cst_401 {dimension_numbers = #tpu.dot_dimension_numbers<[1], [1], [0], [0], [0, 0, 1, 0], [], []>} : vector<4x8xf32>, vector<4x8xf32>, vector<4x4xf32> -> vector<4x4xf32>
    %cst_402 = arith.constant 0.353553385 : f32
    %740 = vector.broadcast %cst_402 : f32 to vector<4x4xf32>
    %741 = arith.mulf %739, %740 : vector<4x4xf32>
    %cst_403 = arith.constant dense<0xFF800000> : vector<4xf32>
    %742 = vector.multi_reduction <maximumf>, %741, %cst_403 [1] : vector<4x4xf32> to vector<4xf32>
    %743 = vector.shape_cast %742 : vector<4xf32> to vector<4x1xf32>
    %744 = vector.broadcast %743 : vector<4x1xf32> to vector<4x4xf32>
    %745 = arith.subf %741, %744 : vector<4x4xf32>
    %746 = math.exp %745 : vector<4x4xf32>
    %cst_404 = arith.constant dense<0.000000e+00> : vector<4xf32>
    %747 = vector.multi_reduction <add>, %746, %cst_404 [1] : vector<4x4xf32> to vector<4xf32>
    %748 = vector.shape_cast %747 : vector<4xf32> to vector<4x1xf32>
    %749 = tpu.reciprocal %748 {approx = true} : vector<4x1xf32> -> vector<4x1xf32>
    %750 = vector.broadcast %749 : vector<4x1xf32> to vector<4x4xf32>
    %751 = arith.mulf %746, %750 : vector<4x4xf32>
    %cst_405 = arith.constant dense<0.000000e+00> : vector<4x8xf32>
    %752 = tpu.matmul %751, %738, %cst_405 {dimension_numbers = #tpu.dot_dimension_numbers<[1], [0], [0], [1], [0, 0, 1, 1], [], []>} : vector<4x4xf32>, vector<4x8xf32>, vector<4x8xf32> -> vector<4x8xf32>
    %c0_406 = arith.constant 0 : index
    %c24_407 = arith.constant 24 : index
    %753 = vector.load %arg44[%c0_406, %c24_407] : memref<4x32xf32, #tpu.memory_space<vmem>>, vector<4x8xf32>
    tpu.vector_store %arg44[%c0_406, %c24_407], %752 {strides = array<i32>} : memref<4x32xf32, #tpu.memory_space<vmem>>, vector<4x8xf32>,
    %c0_408 = arith.constant 0 : index
    %c0_409 = arith.constant 0 : index
    %754 = vector.load %arg44[%c0_408, %c0_409] : memref<4x32xf32, #tpu.memory_space<vmem>>, vector<4x32xf32>
    %cst_410 = arith.constant dense<0.000000e+00> : vector<4x32xf32>
    %755 = tpu.matmul %754, %641, %cst_410 {dimension_numbers = #tpu.dot_dimension_numbers<[1], [0], [0], [1], [0, 0, 1, 1], [], []>} : vector<4x32xf32>, vector<32x32xf32>, vector<4x32xf32> -> vector<4x32xf32>
    %756 = vector.broadcast %643 : vector<1x32xf32> to vector<4x32xf32>
    %757 = arith.addf %755, %756 : vector<4x32xf32>
    %758 = arith.addf %635, %757 : vector<4x32xf32>
    %cst_411 = arith.constant dense<0.000000e+00> : vector<4xf32>
    %759 = vector.multi_reduction <add>, %758, %cst_411 [1] : vector<4x32xf32> to vector<4xf32>
    %760 = vector.shape_cast %759 : vector<4xf32> to vector<4x1xf32>
    %cst_412 = arith.constant 3.200000e+01 : f32
    %761 = vector.broadcast %cst_412 : f32 to vector<4x1xf32>
    %762 = arith.divf %760, %761 : vector<4x1xf32>
    %763 = vector.broadcast %762 : vector<4x1xf32> to vector<4x32xf32>
    %764 = arith.subf %758, %763 : vector<4x32xf32>
    %765 = arith.mulf %764, %764 : vector<4x32xf32>
    %cst_413 = arith.constant dense<0.000000e+00> : vector<4xf32>
    %766 = vector.multi_reduction <add>, %765, %cst_413 [1] : vector<4x32xf32> to vector<4xf32>
    %767 = vector.shape_cast %766 : vector<4xf32> to vector<4x1xf32>
    %cst_414 = arith.constant 3.200000e+01 : f32
    %768 = vector.broadcast %cst_414 : f32 to vector<4x1xf32>
    %769 = arith.divf %767, %768 : vector<4x1xf32>
    %770 = vector.broadcast %762 : vector<4x1xf32> to vector<4x32xf32>
    %771 = arith.subf %758, %770 : vector<4x32xf32>
    %cst_415 = arith.constant 9.99999974E-6 : f32
    %772 = vector.broadcast %cst_415 : f32 to vector<4x1xf32>
    %773 = arith.addf %769, %772 : vector<4x1xf32>
    %774 = math.rsqrt %773 : vector<4x1xf32>
    %775 = vector.broadcast %774 : vector<4x1xf32> to vector<4x32xf32>
    %776 = arith.mulf %771, %775 : vector<4x32xf32>
    %777 = vector.broadcast %645 : vector<1x32xf32> to vector<4x32xf32>
    %778 = arith.mulf %776, %777 : vector<4x32xf32>
    %779 = vector.broadcast %647 : vector<1x32xf32> to vector<4x32xf32>
    %780 = arith.addf %778, %779 : vector<4x32xf32>
    %cst_416 = arith.constant dense<0.000000e+00> : vector<4x32xf32>
    %781 = tpu.matmul %780, %649, %cst_416 {dimension_numbers = #tpu.dot_dimension_numbers<[1], [0], [0], [1], [0, 0, 1, 1], [], []>} : vector<4x32xf32>, vector<32x32xf32>, vector<4x32xf32> -> vector<4x32xf32>
    %782 = vector.broadcast %651 : vector<1x32xf32> to vector<4x32xf32>
    %783 = arith.addf %781, %782 : vector<4x32xf32>
    %cst_417 = arith.constant dense<0.000000e+00> : vector<4x64xf32>
    %784 = tpu.matmul %350, %653, %cst_417 {dimension_numbers = #tpu.dot_dimension_numbers<[1], [0], [0], [1], [0, 0, 1, 1], [], []>} : vector<4x32xf32>, vector<32x64xf32>, vector<4x64xf32> -> vector<4x64xf32>
    %785 = vector.broadcast %655 : vector<1x64xf32> to vector<4x64xf32>
    %786 = arith.addf %784, %785 : vector<4x64xf32>
    %787 = vector.extract_strided_slice %786 {offsets = [0, 0], sizes = [4, 32], strides = [1, 1]} : vector<4x64xf32> to vector<4x32xf32>
    %788 = vector.extract_strided_slice %786 {offsets = [0, 32], sizes = [4, 32], strides = [1, 1]} : vector<4x64xf32> to vector<4x32xf32>
    %789 = vector.extract_strided_slice %783 {offsets = [0, 0], sizes = [4, 8], strides = [1, 1]} : vector<4x32xf32> to vector<4x8xf32>
    %790 = vector.extract_strided_slice %787 {offsets = [0, 0], sizes = [4, 8], strides = [1, 1]} : vector<4x32xf32> to vector<4x8xf32>
    %791 = vector.extract_strided_slice %788 {offsets = [0, 0], sizes = [4, 8], strides = [1, 1]} : vector<4x32xf32> to vector<4x8xf32>
    %cst_418 = arith.constant dense<0.000000e+00> : vector<4x4xf32>
    %792 = tpu.matmul %789, %790, %cst_418 {dimension_numbers = #tpu.dot_dimension_numbers<[1], [1], [0], [0], [0, 0, 1, 0], [], []>} : vector<4x8xf32>, vector<4x8xf32>, vector<4x4xf32> -> vector<4x4xf32>
    %cst_419 = arith.constant 0.353553385 : f32
    %793 = vector.broadcast %cst_419 : f32 to vector<4x4xf32>
    %794 = arith.mulf %792, %793 : vector<4x4xf32>
    %cst_420 = arith.constant dense<0xFF800000> : vector<4xf32>
    %795 = vector.multi_reduction <maximumf>, %794, %cst_420 [1] : vector<4x4xf32> to vector<4xf32>
    %796 = vector.shape_cast %795 : vector<4xf32> to vector<4x1xf32>
    %797 = vector.broadcast %796 : vector<4x1xf32> to vector<4x4xf32>
    %798 = arith.subf %794, %797 : vector<4x4xf32>
    %799 = math.exp %798 : vector<4x4xf32>
    %cst_421 = arith.constant dense<0.000000e+00> : vector<4xf32>
    %800 = vector.multi_reduction <add>, %799, %cst_421 [1] : vector<4x4xf32> to vector<4xf32>
    %801 = vector.shape_cast %800 : vector<4xf32> to vector<4x1xf32>
    %802 = tpu.reciprocal %801 {approx = true} : vector<4x1xf32> -> vector<4x1xf32>
    %803 = vector.broadcast %802 : vector<4x1xf32> to vector<4x4xf32>
    %804 = arith.mulf %799, %803 : vector<4x4xf32>
    %cst_422 = arith.constant dense<0.000000e+00> : vector<4x8xf32>
    %805 = tpu.matmul %804, %791, %cst_422 {dimension_numbers = #tpu.dot_dimension_numbers<[1], [0], [0], [1], [0, 0, 1, 1], [], []>} : vector<4x4xf32>, vector<4x8xf32>, vector<4x8xf32> -> vector<4x8xf32>
    %c0_423 = arith.constant 0 : index
    %c0_424 = arith.constant 0 : index
    %806 = vector.load %arg44[%c0_423, %c0_424] : memref<4x32xf32, #tpu.memory_space<vmem>>, vector<4x8xf32>
    tpu.vector_store %arg44[%c0_423, %c0_424], %805 {strides = array<i32>} : memref<4x32xf32, #tpu.memory_space<vmem>>, vector<4x8xf32>,
    %807 = vector.extract_strided_slice %783 {offsets = [0, 8], sizes = [4, 8], strides = [1, 1]} : vector<4x32xf32> to vector<4x8xf32>
    %808 = vector.extract_strided_slice %787 {offsets = [0, 8], sizes = [4, 8], strides = [1, 1]} : vector<4x32xf32> to vector<4x8xf32>
    %809 = vector.extract_strided_slice %788 {offsets = [0, 8], sizes = [4, 8], strides = [1, 1]} : vector<4x32xf32> to vector<4x8xf32>
    %cst_425 = arith.constant dense<0.000000e+00> : vector<4x4xf32>
    %810 = tpu.matmul %807, %808, %cst_425 {dimension_numbers = #tpu.dot_dimension_numbers<[1], [1], [0], [0], [0, 0, 1, 0], [], []>} : vector<4x8xf32>, vector<4x8xf32>, vector<4x4xf32> -> vector<4x4xf32>
    %cst_426 = arith.constant 0.353553385 : f32
    %811 = vector.broadcast %cst_426 : f32 to vector<4x4xf32>
    %812 = arith.mulf %810, %811 : vector<4x4xf32>
    %cst_427 = arith.constant dense<0xFF800000> : vector<4xf32>
    %813 = vector.multi_reduction <maximumf>, %812, %cst_427 [1] : vector<4x4xf32> to vector<4xf32>
    %814 = vector.shape_cast %813 : vector<4xf32> to vector<4x1xf32>
    %815 = vector.broadcast %814 : vector<4x1xf32> to vector<4x4xf32>
    %816 = arith.subf %812, %815 : vector<4x4xf32>
    %817 = math.exp %816 : vector<4x4xf32>
    %cst_428 = arith.constant dense<0.000000e+00> : vector<4xf32>
    %818 = vector.multi_reduction <add>, %817, %cst_428 [1] : vector<4x4xf32> to vector<4xf32>
    %819 = vector.shape_cast %818 : vector<4xf32> to vector<4x1xf32>
    %820 = tpu.reciprocal %819 {approx = true} : vector<4x1xf32> -> vector<4x1xf32>
    %821 = vector.broadcast %820 : vector<4x1xf32> to vector<4x4xf32>
    %822 = arith.mulf %817, %821 : vector<4x4xf32>
    %cst_429 = arith.constant dense<0.000000e+00> : vector<4x8xf32>
    %823 = tpu.matmul %822, %809, %cst_429 {dimension_numbers = #tpu.dot_dimension_numbers<[1], [0], [0], [1], [0, 0, 1, 1], [], []>} : vector<4x4xf32>, vector<4x8xf32>, vector<4x8xf32> -> vector<4x8xf32>
    %c0_430 = arith.constant 0 : index
    %c8_431 = arith.constant 8 : index
    %824 = vector.load %arg44[%c0_430, %c8_431] : memref<4x32xf32, #tpu.memory_space<vmem>>, vector<4x8xf32>
    tpu.vector_store %arg44[%c0_430, %c8_431], %823 {strides = array<i32>} : memref<4x32xf32, #tpu.memory_space<vmem>>, vector<4x8xf32>,
    %825 = vector.extract_strided_slice %783 {offsets = [0, 16], sizes = [4, 8], strides = [1, 1]} : vector<4x32xf32> to vector<4x8xf32>
    %826 = vector.extract_strided_slice %787 {offsets = [0, 16], sizes = [4, 8], strides = [1, 1]} : vector<4x32xf32> to vector<4x8xf32>
    %827 = vector.extract_strided_slice %788 {offsets = [0, 16], sizes = [4, 8], strides = [1, 1]} : vector<4x32xf32> to vector<4x8xf32>
    %cst_432 = arith.constant dense<0.000000e+00> : vector<4x4xf32>
    %828 = tpu.matmul %825, %826, %cst_432 {dimension_numbers = #tpu.dot_dimension_numbers<[1], [1], [0], [0], [0, 0, 1, 0], [], []>} : vector<4x8xf32>, vector<4x8xf32>, vector<4x4xf32> -> vector<4x4xf32>
    %cst_433 = arith.constant 0.353553385 : f32
    %829 = vector.broadcast %cst_433 : f32 to vector<4x4xf32>
    %830 = arith.mulf %828, %829 : vector<4x4xf32>
    %cst_434 = arith.constant dense<0xFF800000> : vector<4xf32>
    %831 = vector.multi_reduction <maximumf>, %830, %cst_434 [1] : vector<4x4xf32> to vector<4xf32>
    %832 = vector.shape_cast %831 : vector<4xf32> to vector<4x1xf32>
    %833 = vector.broadcast %832 : vector<4x1xf32> to vector<4x4xf32>
    %834 = arith.subf %830, %833 : vector<4x4xf32>
    %835 = math.exp %834 : vector<4x4xf32>
    %cst_435 = arith.constant dense<0.000000e+00> : vector<4xf32>
    %836 = vector.multi_reduction <add>, %835, %cst_435 [1] : vector<4x4xf32> to vector<4xf32>
    %837 = vector.shape_cast %836 : vector<4xf32> to vector<4x1xf32>
    %838 = tpu.reciprocal %837 {approx = true} : vector<4x1xf32> -> vector<4x1xf32>
    %839 = vector.broadcast %838 : vector<4x1xf32> to vector<4x4xf32>
    %840 = arith.mulf %835, %839 : vector<4x4xf32>
    %cst_436 = arith.constant dense<0.000000e+00> : vector<4x8xf32>
    %841 = tpu.matmul %840, %827, %cst_436 {dimension_numbers = #tpu.dot_dimension_numbers<[1], [0], [0], [1], [0, 0, 1, 1], [], []>} : vector<4x4xf32>, vector<4x8xf32>, vector<4x8xf32> -> vector<4x8xf32>
    %c0_437 = arith.constant 0 : index
    %c16_438 = arith.constant 16 : index
    %842 = vector.load %arg44[%c0_437, %c16_438] : memref<4x32xf32, #tpu.memory_space<vmem>>, vector<4x8xf32>
    tpu.vector_store %arg44[%c0_437, %c16_438], %841 {strides = array<i32>} : memref<4x32xf32, #tpu.memory_space<vmem>>, vector<4x8xf32>,
    %843 = vector.extract_strided_slice %783 {offsets = [0, 24], sizes = [4, 8], strides = [1, 1]} : vector<4x32xf32> to vector<4x8xf32>
    %844 = vector.extract_strided_slice %787 {offsets = [0, 24], sizes = [4, 8], strides = [1, 1]} : vector<4x32xf32> to vector<4x8xf32>
    %845 = vector.extract_strided_slice %788 {offsets = [0, 24], sizes = [4, 8], strides = [1, 1]} : vector<4x32xf32> to vector<4x8xf32>
    %cst_439 = arith.constant dense<0.000000e+00> : vector<4x4xf32>
    %846 = tpu.matmul %843, %844, %cst_439 {dimension_numbers = #tpu.dot_dimension_numbers<[1], [1], [0], [0], [0, 0, 1, 0], [], []>} : vector<4x8xf32>, vector<4x8xf32>, vector<4x4xf32> -> vector<4x4xf32>
    %cst_440 = arith.constant 0.353553385 : f32
    %847 = vector.broadcast %cst_440 : f32 to vector<4x4xf32>
    %848 = arith.mulf %846, %847 : vector<4x4xf32>
    %cst_441 = arith.constant dense<0xFF800000> : vector<4xf32>
    %849 = vector.multi_reduction <maximumf>, %848, %cst_441 [1] : vector<4x4xf32> to vector<4xf32>
    %850 = vector.shape_cast %849 : vector<4xf32> to vector<4x1xf32>
    %851 = vector.broadcast %850 : vector<4x1xf32> to vector<4x4xf32>
    %852 = arith.subf %848, %851 : vector<4x4xf32>
    %853 = math.exp %852 : vector<4x4xf32>
    %cst_442 = arith.constant dense<0.000000e+00> : vector<4xf32>
    %854 = vector.multi_reduction <add>, %853, %cst_442 [1] : vector<4x4xf32> to vector<4xf32>
    %855 = vector.shape_cast %854 : vector<4xf32> to vector<4x1xf32>
    %856 = tpu.reciprocal %855 {approx = true} : vector<4x1xf32> -> vector<4x1xf32>
    %857 = vector.broadcast %856 : vector<4x1xf32> to vector<4x4xf32>
    %858 = arith.mulf %853, %857 : vector<4x4xf32>
    %cst_443 = arith.constant dense<0.000000e+00> : vector<4x8xf32>
    %859 = tpu.matmul %858, %845, %cst_443 {dimension_numbers = #tpu.dot_dimension_numbers<[1], [0], [0], [1], [0, 0, 1, 1], [], []>} : vector<4x4xf32>, vector<4x8xf32>, vector<4x8xf32> -> vector<4x8xf32>
    %c0_444 = arith.constant 0 : index
    %c24_445 = arith.constant 24 : index
    %860 = vector.load %arg44[%c0_444, %c24_445] : memref<4x32xf32, #tpu.memory_space<vmem>>, vector<4x8xf32>
    tpu.vector_store %arg44[%c0_444, %c24_445], %859 {strides = array<i32>} : memref<4x32xf32, #tpu.memory_space<vmem>>, vector<4x8xf32>,
    %c0_446 = arith.constant 0 : index
    %c0_447 = arith.constant 0 : index
    %861 = vector.load %arg44[%c0_446, %c0_447] : memref<4x32xf32, #tpu.memory_space<vmem>>, vector<4x32xf32>
    %cst_448 = arith.constant dense<0.000000e+00> : vector<4x32xf32>
    %862 = tpu.matmul %861, %657, %cst_448 {dimension_numbers = #tpu.dot_dimension_numbers<[1], [0], [0], [1], [0, 0, 1, 1], [], []>} : vector<4x32xf32>, vector<32x32xf32>, vector<4x32xf32> -> vector<4x32xf32>
    %863 = vector.broadcast %659 : vector<1x32xf32> to vector<4x32xf32>
    %864 = arith.addf %862, %863 : vector<4x32xf32>
    %865 = arith.addf %780, %864 : vector<4x32xf32>
    %cst_449 = arith.constant dense<0.000000e+00> : vector<4xf32>
    %866 = vector.multi_reduction <add>, %865, %cst_449 [1] : vector<4x32xf32> to vector<4xf32>
    %867 = vector.shape_cast %866 : vector<4xf32> to vector<4x1xf32>
    %cst_450 = arith.constant 3.200000e+01 : f32
    %868 = vector.broadcast %cst_450 : f32 to vector<4x1xf32>
    %869 = arith.divf %867, %868 : vector<4x1xf32>
    %870 = vector.broadcast %869 : vector<4x1xf32> to vector<4x32xf32>
    %871 = arith.subf %865, %870 : vector<4x32xf32>
    %872 = arith.mulf %871, %871 : vector<4x32xf32>
    %cst_451 = arith.constant dense<0.000000e+00> : vector<4xf32>
    %873 = vector.multi_reduction <add>, %872, %cst_451 [1] : vector<4x32xf32> to vector<4xf32>
    %874 = vector.shape_cast %873 : vector<4xf32> to vector<4x1xf32>
    %cst_452 = arith.constant 3.200000e+01 : f32
    %875 = vector.broadcast %cst_452 : f32 to vector<4x1xf32>
    %876 = arith.divf %874, %875 : vector<4x1xf32>
    %877 = vector.broadcast %869 : vector<4x1xf32> to vector<4x32xf32>
    %878 = arith.subf %865, %877 : vector<4x32xf32>
    %cst_453 = arith.constant 9.99999974E-6 : f32
    %879 = vector.broadcast %cst_453 : f32 to vector<4x1xf32>
    %880 = arith.addf %876, %879 : vector<4x1xf32>
    %881 = math.rsqrt %880 : vector<4x1xf32>
    %882 = vector.broadcast %881 : vector<4x1xf32> to vector<4x32xf32>
    %883 = arith.mulf %878, %882 : vector<4x32xf32>
    %884 = vector.broadcast %661 : vector<1x32xf32> to vector<4x32xf32>
    %885 = arith.mulf %883, %884 : vector<4x32xf32>
    %886 = vector.broadcast %663 : vector<1x32xf32> to vector<4x32xf32>
    %887 = arith.addf %885, %886 : vector<4x32xf32>
    %cst_454 = arith.constant dense<0.000000e+00> : vector<4x64xf32>
    %888 = tpu.matmul %887, %665, %cst_454 {dimension_numbers = #tpu.dot_dimension_numbers<[1], [0], [0], [1], [0, 0, 1, 1], [], []>} : vector<4x32xf32>, vector<32x64xf32>, vector<4x64xf32> -> vector<4x64xf32>
    %889 = vector.broadcast %667 : vector<1x64xf32> to vector<4x64xf32>
    %890 = arith.addf %888, %889 : vector<4x64xf32>
    %cst_455 = arith.constant 0.000000e+00 : f32
    %891 = vector.broadcast %cst_455 : f32 to vector<4x64xf32>
    %892 = arith.maximumf %890, %891 : vector<4x64xf32>
    %cst_456 = arith.constant dense<0.000000e+00> : vector<4x32xf32>
    %893 = tpu.matmul %892, %669, %cst_456 {dimension_numbers = #tpu.dot_dimension_numbers<[1], [0], [0], [1], [0, 0, 1, 1], [], []>} : vector<4x64xf32>, vector<64x32xf32>, vector<4x32xf32> -> vector<4x32xf32>
    %894 = vector.broadcast %671 : vector<1x32xf32> to vector<4x32xf32>
    %895 = arith.addf %893, %894 : vector<4x32xf32>
    %896 = arith.addf %887, %895 : vector<4x32xf32>
    %cst_457 = arith.constant dense<0.000000e+00> : vector<4xf32>
    %897 = vector.multi_reduction <add>, %896, %cst_457 [1] : vector<4x32xf32> to vector<4xf32>
    %898 = vector.shape_cast %897 : vector<4xf32> to vector<4x1xf32>
    %cst_458 = arith.constant 3.200000e+01 : f32
    %899 = vector.broadcast %cst_458 : f32 to vector<4x1xf32>
    %900 = arith.divf %898, %899 : vector<4x1xf32>
    %901 = vector.broadcast %900 : vector<4x1xf32> to vector<4x32xf32>
    %902 = arith.subf %896, %901 : vector<4x32xf32>
    %903 = arith.mulf %902, %902 : vector<4x32xf32>
    %cst_459 = arith.constant dense<0.000000e+00> : vector<4xf32>
    %904 = vector.multi_reduction <add>, %903, %cst_459 [1] : vector<4x32xf32> to vector<4xf32>
    %905 = vector.shape_cast %904 : vector<4xf32> to vector<4x1xf32>
    %cst_460 = arith.constant 3.200000e+01 : f32
    %906 = vector.broadcast %cst_460 : f32 to vector<4x1xf32>
    %907 = arith.divf %905, %906 : vector<4x1xf32>
    %908 = vector.broadcast %900 : vector<4x1xf32> to vector<4x32xf32>
    %909 = arith.subf %896, %908 : vector<4x32xf32>
    %cst_461 = arith.constant 9.99999974E-6 : f32
    %910 = vector.broadcast %cst_461 : f32 to vector<4x1xf32>
    %911 = arith.addf %907, %910 : vector<4x1xf32>
    %912 = math.rsqrt %911 : vector<4x1xf32>
    %913 = vector.broadcast %912 : vector<4x1xf32> to vector<4x32xf32>
    %914 = arith.mulf %909, %913 : vector<4x32xf32>
    %915 = vector.broadcast %673 : vector<1x32xf32> to vector<4x32xf32>
    %916 = arith.mulf %914, %915 : vector<4x32xf32>
    %917 = vector.broadcast %675 : vector<1x32xf32> to vector<4x32xf32>
    %918 = arith.addf %916, %917 : vector<4x32xf32>
    %c0_462 = arith.constant 0 : index
    %c0_463 = arith.constant 0 : index
    %919 = vector.load %arg39[%c0_462, %c0_463] : memref<1x32xf32, #tpu.memory_space<vmem>>, vector<1x32xf32>
    %c0_464 = arith.constant 0 : index
    %c0_465 = arith.constant 0 : index
    %920 = vector.load %arg40[%c0_464, %c0_465] : memref<1x32xf32, #tpu.memory_space<vmem>>, vector<1x32xf32>
    %cst_466 = arith.constant dense<0.000000e+00> : vector<4xf32>
    %921 = vector.multi_reduction <add>, %918, %cst_466 [1] : vector<4x32xf32> to vector<4xf32>
    %922 = vector.shape_cast %921 : vector<4xf32> to vector<4x1xf32>
    %cst_467 = arith.constant 3.200000e+01 : f32
    %923 = vector.broadcast %cst_467 : f32 to vector<4x1xf32>
    %924 = arith.divf %922, %923 : vector<4x1xf32>
    %925 = vector.broadcast %924 : vector<4x1xf32> to vector<4x32xf32>
    %926 = arith.subf %918, %925 : vector<4x32xf32>
    %927 = arith.mulf %926, %926 : vector<4x32xf32>
    %cst_468 = arith.constant dense<0.000000e+00> : vector<4xf32>
    %928 = vector.multi_reduction <add>, %927, %cst_468 [1] : vector<4x32xf32> to vector<4xf32>
    %929 = vector.shape_cast %928 : vector<4xf32> to vector<4x1xf32>
    %cst_469 = arith.constant 3.200000e+01 : f32
    %930 = vector.broadcast %cst_469 : f32 to vector<4x1xf32>
    %931 = arith.divf %929, %930 : vector<4x1xf32>
    %932 = vector.broadcast %924 : vector<4x1xf32> to vector<4x32xf32>
    %933 = arith.subf %918, %932 : vector<4x32xf32>
    %cst_470 = arith.constant 9.99999974E-6 : f32
    %934 = vector.broadcast %cst_470 : f32 to vector<4x1xf32>
    %935 = arith.addf %931, %934 : vector<4x1xf32>
    %936 = math.rsqrt %935 : vector<4x1xf32>
    %937 = vector.broadcast %936 : vector<4x1xf32> to vector<4x32xf32>
    %938 = arith.mulf %933, %937 : vector<4x32xf32>
    %939 = vector.broadcast %919 : vector<1x32xf32> to vector<4x32xf32>
    %940 = arith.mulf %938, %939 : vector<4x32xf32>
    %941 = vector.broadcast %920 : vector<1x32xf32> to vector<4x32xf32>
    %942 = arith.addf %940, %941 : vector<4x32xf32>
    %c0_471 = arith.constant 0 : index
    %c0_472 = arith.constant 0 : index
    %943 = vector.load %arg41[%c0_471, %c0_472] : memref<32x5xf32, #tpu.memory_space<vmem>>, vector<32x5xf32>
    %cst_473 = arith.constant dense<0.000000e+00> : vector<4x5xf32>
    %944 = tpu.matmul %942, %943, %cst_473 {dimension_numbers = #tpu.dot_dimension_numbers<[1], [0], [0], [1], [0, 0, 1, 1], [], []>} : vector<4x32xf32>, vector<32x5xf32>, vector<4x5xf32> -> vector<4x5xf32>
    %c0_474 = arith.constant 0 : index
    %c0_475 = arith.constant 0 : index
    %945 = vector.load %arg42[%c0_474, %c0_475] : memref<1x5xf32, #tpu.memory_space<vmem>>, vector<1x5xf32>
    %946 = vector.broadcast %945 : vector<1x5xf32> to vector<4x5xf32>
    %947 = arith.addf %944, %946 : vector<4x5xf32>
    %cst_476 = arith.constant dense<0xFF800000> : vector<4xf32>
    %948 = vector.multi_reduction <maximumf>, %947, %cst_476 [1] : vector<4x5xf32> to vector<4xf32>
    %949 = vector.shape_cast %948 : vector<4xf32> to vector<4x1xf32>
    %950 = vector.broadcast %949 : vector<4x1xf32> to vector<4x5xf32>
    %951 = arith.subf %947, %950 : vector<4x5xf32>
    %952 = math.exp %951 : vector<4x5xf32>
    %cst_477 = arith.constant dense<0.000000e+00> : vector<4xf32>
    %953 = vector.multi_reduction <add>, %952, %cst_477 [1] : vector<4x5xf32> to vector<4xf32>
    %954 = vector.shape_cast %953 : vector<4xf32> to vector<4x1xf32>
    %955 = math.log %954 : vector<4x1xf32>
    %956 = vector.broadcast %955 : vector<4x1xf32> to vector<4x5xf32>
    %957 = arith.subf %951, %956 : vector<4x5xf32>
    %c0_478 = arith.constant 0 : index
    %c0_479 = arith.constant 0 : index
    %c0_480 = arith.constant 0 : index
    %958 = vector.load %arg43[%c0_478, %c0_479, %c0_480] : memref<1x4x5xf32, #tpu.memory_space<vmem>>, vector<1x4x5xf32>
    %959 = vector.shape_cast %958 : vector<1x4x5xf32> to vector<4x5xf32>
    %960 = vector.shape_cast %957 : vector<4x5xf32> to vector<1x4x5xf32>
    tpu.vector_store %arg43[%c0_478, %c0_479, %c0_480], %960 {strides = array<i32>} : memref<1x4x5xf32, #tpu.memory_space<vmem>>, vector<1x4x5xf32>,
    return
  }
  func.func @transform_0(%arg0: i32) -> (i32, i32, i32) {
    %c0_i32 = arith.constant 0 : i32
    %c0_i32_0 = arith.constant 0 : i32
    %c0_i32_1 = arith.constant 0 : i32
    return %arg0, %c0_i32, %c0_i32_0 : i32, i32, i32
  }
  func.func @transform_1(%arg0: i32) -> (i32, i32, i32) {
    %c0_i32 = arith.constant 0 : i32
    %c0_i32_0 = arith.constant 0 : i32
    %c0_i32_1 = arith.constant 0 : i32
    return %arg0, %c0_i32, %c0_i32_0 : i32, i32, i32
  }
  func.func @transform_2(%arg0: i32) -> (i32, i32) {
    %c0_i32 = arith.constant 0 : i32
    %c0_i32_0 = arith.constant 0 : i32
    %c0_i32_1 = arith.constant 0 : i32
    return %c0_i32, %c0_i32_0 : i32, i32
  }
  func.func @transform_3(%arg0: i32) -> (i32, i32) {
    %c0_i32 = arith.constant 0 : i32
    %c0_i32_0 = arith.constant 0 : i32
    %c0_i32_1 = arith.constant 0 : i32
    return %c0_i32, %c0_i32_0 : i32, i32
  }
  func.func @transform_4(%arg0: i32) -> (i32, i32, i32) {
    %c0_i32 = arith.constant 0 : i32
    %c0_i32_0 = arith.constant 0 : i32
    %c0_i32_1 = arith.constant 0 : i32
    %c0_i32_2 = arith.constant 0 : i32
    return %c0_i32, %c0_i32_0, %c0_i32_1 : i32, i32, i32
  }
  func.func @transform_5(%arg0: i32) -> (i32, i32, i32) {
    %c0_i32 = arith.constant 0 : i32
    %c0_i32_0 = arith.constant 0 : i32
    %c0_i32_1 = arith.constant 0 : i32
    %c0_i32_2 = arith.constant 0 : i32
    return %c0_i32, %c0_i32_0, %c0_i32_1 : i32, i32, i32
  }
  func.func @transform_6(%arg0: i32) -> (i32, i32, i32) {
    %c0_i32 = arith.constant 0 : i32
    %c0_i32_0 = arith.constant 0 : i32
    %c0_i32_1 = arith.constant 0 : i32
    %c0_i32_2 = arith.constant 0 : i32
    return %c0_i32, %c0_i32_0, %c0_i32_1 : i32, i32, i32
  }
  func.func @transform_7(%arg0: i32) -> (i32, i32, i32) {
    %c0_i32 = arith.constant 0 : i32
    %c0_i32_0 = arith.constant 0 : i32
    %c0_i32_1 = arith.constant 0 : i32
    %c0_i32_2 = arith.constant 0 : i32
    return %c0_i32, %c0_i32_0, %c0_i32_1 : i32, i32, i32
  }
  func.func @transform_8(%arg0: i32) -> (i32, i32, i32) {
    %c0_i32 = arith.constant 0 : i32
    %c0_i32_0 = arith.constant 0 : i32
    %c0_i32_1 = arith.constant 0 : i32
    %c0_i32_2 = arith.constant 0 : i32
    return %c0_i32, %c0_i32_0, %c0_i32_1 : i32, i32, i32
  }
  func.func @transform_9(%arg0: i32) -> (i32, i32, i32) {
    %c0_i32 = arith.constant 0 : i32
    %c0_i32_0 = arith.constant 0 : i32
    %c0_i32_1 = arith.constant 0 : i32
    %c0_i32_2 = arith.constant 0 : i32
    return %c0_i32, %c0_i32_0, %c0_i32_1 : i32, i32, i32
  }
  func.func @transform_10(%arg0: i32) -> (i32, i32, i32) {
    %c0_i32 = arith.constant 0 : i32
    %c0_i32_0 = arith.constant 0 : i32
    %c0_i32_1 = arith.constant 0 : i32
    %c0_i32_2 = arith.constant 0 : i32
    return %c0_i32, %c0_i32_0, %c0_i32_1 : i32, i32, i32
  }
  func.func @transform_11(%arg0: i32) -> (i32, i32, i32) {
    %c0_i32 = arith.constant 0 : i32
    %c0_i32_0 = arith.constant 0 : i32
    %c0_i32_1 = arith.constant 0 : i32
    %c0_i32_2 = arith.constant 0 : i32
    return %c0_i32, %c0_i32_0, %c0_i32_1 : i32, i32, i32
  }
  func.func @transform_12(%arg0: i32) -> (i32, i32, i32) {
    %c0_i32 = arith.constant 0 : i32
    %c0_i32_0 = arith.constant 0 : i32
    %c0_i32_1 = arith.constant 0 : i32
    %c0_i32_2 = arith.constant 0 : i32
    return %c0_i32, %c0_i32_0, %c0_i32_1 : i32, i32, i32
  }
  func.func @transform_13(%arg0: i32) -> (i32, i32, i32) {
    %c0_i32 = arith.constant 0 : i32
    %c0_i32_0 = arith.constant 0 : i32
    %c0_i32_1 = arith.constant 0 : i32
    %c0_i32_2 = arith.constant 0 : i32
    return %c0_i32, %c0_i32_0, %c0_i32_1 : i32, i32, i32
  }
  func.func @transform_14(%arg0: i32) -> (i32, i32, i32) {
    %c0_i32 = arith.constant 0 : i32
    %c0_i32_0 = arith.constant 0 : i32
    %c0_i32_1 = arith.constant 0 : i32
    %c0_i32_2 = arith.constant 0 : i32
    return %c0_i32, %c0_i32_0, %c0_i32_1 : i32, i32, i32
  }
  func.func @transform_15(%arg0: i32) -> (i32, i32, i32) {
    %c0_i32 = arith.constant 0 : i32
    %c0_i32_0 = arith.constant 0 : i32
    %c0_i32_1 = arith.constant 0 : i32
    %c0_i32_2 = arith.constant 0 : i32
    return %c0_i32, %c0_i32_0, %c0_i32_1 : i32, i32, i32
  }
  func.func @transform_16(%arg0: i32) -> (i32, i32) {
    %c0_i32 = arith.constant 0 : i32
    %c0_i32_0 = arith.constant 0 : i32
    %c0_i32_1 = arith.constant 0 : i32
    return %c0_i32, %c0_i32_0 : i32, i32
  }
  func.func @transform_17(%arg0: i32) -> (i32, i32) {
    %c0_i32 = arith.constant 0 : i32
    %c0_i32_0 = arith.constant 0 : i32
    %c0_i32_1 = arith.constant 0 : i32
    return %c0_i32, %c0_i32_0 : i32, i32
  }
  func.func @transform_18(%arg0: i32) -> (i32, i32, i32) {
    %c0_i32 = arith.constant 0 : i32
    %c0_i32_0 = arith.constant 0 : i32
    %c0_i32_1 = arith.constant 0 : i32
    %c0_i32_2 = arith.constant 0 : i32
    return %c0_i32, %c0_i32_0, %c0_i32_1 : i32, i32, i32
  }
  func.func @transform_19(%arg0: i32) -> (i32, i32, i32) {
    %c0_i32 = arith.constant 0 : i32
    %c0_i32_0 = arith.constant 0 : i32
    %c0_i32_1 = arith.constant 0 : i32
    %c0_i32_2 = arith.constant 0 : i32
    return %c0_i32, %c0_i32_0, %c0_i32_1 : i32, i32, i32
  }
  func.func @transform_20(%arg0: i32) -> (i32, i32, i32) {
    %c0_i32 = arith.constant 0 : i32
    %c0_i32_0 = arith.constant 0 : i32
    %c0_i32_1 = arith.constant 0 : i32
    %c0_i32_2 = arith.constant 0 : i32
    return %c0_i32, %c0_i32_0, %c0_i32_1 : i32, i32, i32
  }
  func.func @transform_21(%arg0: i32) -> (i32, i32, i32) {
    %c0_i32 = arith.constant 0 : i32
    %c0_i32_0 = arith.constant 0 : i32
    %c0_i32_1 = arith.constant 0 : i32
    %c0_i32_2 = arith.constant 0 : i32
    return %c0_i32, %c0_i32_0, %c0_i32_1 : i32, i32, i32
  }
  func.func @transform_22(%arg0: i32) -> (i32, i32, i32) {
    %c0_i32 = arith.constant 0 : i32
    %c0_i32_0 = arith.constant 0 : i32
    %c0_i32_1 = arith.constant 0 : i32
    %c0_i32_2 = arith.constant 0 : i32
    return %c0_i32, %c0_i32_0, %c0_i32_1 : i32, i32, i32
  }
  func.func @transform_23(%arg0: i32) -> (i32, i32, i32) {
    %c0_i32 = arith.constant 0 : i32
    %c0_i32_0 = arith.constant 0 : i32
    %c0_i32_1 = arith.constant 0 : i32
    %c0_i32_2 = arith.constant 0 : i32
    return %c0_i32, %c0_i32_0, %c0_i32_1 : i32, i32, i32
  }
  func.func @transform_24(%arg0: i32) -> (i32, i32, i32) {
    %c0_i32 = arith.constant 0 : i32
    %c0_i32_0 = arith.constant 0 : i32
    %c0_i32_1 = arith.constant 0 : i32
    %c0_i32_2 = arith.constant 0 : i32
    return %c0_i32, %c0_i32_0, %c0_i32_1 : i32, i32, i32
  }
  func.func @transform_25(%arg0: i32) -> (i32, i32, i32) {
    %c0_i32 = arith.constant 0 : i32
    %c0_i32_0 = arith.constant 0 : i32
    %c0_i32_1 = arith.constant 0 : i32
    %c0_i32_2 = arith.constant 0 : i32
    return %c0_i32, %c0_i32_0, %c0_i32_1 : i32, i32, i32
  }
  func.func @transform_26(%arg0: i32) -> (i32, i32, i32) {
    %c0_i32 = arith.constant 0 : i32
    %c0_i32_0 = arith.constant 0 : i32
    %c0_i32_1 = arith.constant 0 : i32
    %c0_i32_2 = arith.constant 0 : i32
    return %c0_i32, %c0_i32_0, %c0_i32_1 : i32, i32, i32
  }
  func.func @transform_27(%arg0: i32) -> (i32, i32, i32) {
    %c0_i32 = arith.constant 0 : i32
    %c0_i32_0 = arith.constant 0 : i32
    %c0_i32_1 = arith.constant 0 : i32
    %c0_i32_2 = arith.constant 0 : i32
    return %c0_i32, %c0_i32_0, %c0_i32_1 : i32, i32, i32
  }
  func.func @transform_28(%arg0: i32) -> (i32, i32, i32) {
    %c0_i32 = arith.constant 0 : i32
    %c0_i32_0 = arith.constant 0 : i32
    %c0_i32_1 = arith.constant 0 : i32
    %c0_i32_2 = arith.constant 0 : i32
    return %c0_i32, %c0_i32_0, %c0_i32_1 : i32, i32, i32
  }
  func.func @transform_29(%arg0: i32) -> (i32, i32, i32) {
    %c0_i32 = arith.constant 0 : i32
    %c0_i32_0 = arith.constant 0 : i32
    %c0_i32_1 = arith.constant 0 : i32
    %c0_i32_2 = arith.constant 0 : i32
    return %c0_i32, %c0_i32_0, %c0_i32_1 : i32, i32, i32
  }
  func.func @transform_30(%arg0: i32) -> (i32, i32, i32) {
    %c0_i32 = arith.constant 0 : i32
    %c0_i32_0 = arith.constant 0 : i32
    %c0_i32_1 = arith.constant 0 : i32
    %c0_i32_2 = arith.constant 0 : i32
    return %c0_i32, %c0_i32_0, %c0_i32_1 : i32, i32, i32
  }
  func.func @transform_31(%arg0: i32) -> (i32, i32, i32) {
    %c0_i32 = arith.constant 0 : i32
    %c0_i32_0 = arith.constant 0 : i32
    %c0_i32_1 = arith.constant 0 : i32
    %c0_i32_2 = arith.constant 0 : i32
    return %c0_i32, %c0_i32_0, %c0_i32_1 : i32, i32, i32
  }
  func.func @transform_32(%arg0: i32) -> (i32, i32, i32) {
    %c0_i32 = arith.constant 0 : i32
    %c0_i32_0 = arith.constant 0 : i32
    %c0_i32_1 = arith.constant 0 : i32
    %c0_i32_2 = arith.constant 0 : i32
    return %c0_i32, %c0_i32_0, %c0_i32_1 : i32, i32, i32
  }
  func.func @transform_33(%arg0: i32) -> (i32, i32, i32) {
    %c0_i32 = arith.constant 0 : i32
    %c0_i32_0 = arith.constant 0 : i32
    %c0_i32_1 = arith.constant 0 : i32
    %c0_i32_2 = arith.constant 0 : i32
    return %c0_i32, %c0_i32_0, %c0_i32_1 : i32, i32, i32
  }
  func.func @transform_34(%arg0: i32) -> (i32, i32, i32) {
    %c0_i32 = arith.constant 0 : i32
    %c0_i32_0 = arith.constant 0 : i32
    %c0_i32_1 = arith.constant 0 : i32
    %c0_i32_2 = arith.constant 0 : i32
    return %c0_i32, %c0_i32_0, %c0_i32_1 : i32, i32, i32
  }
  func.func @transform_35(%arg0: i32) -> (i32, i32, i32) {
    %c0_i32 = arith.constant 0 : i32
    %c0_i32_0 = arith.constant 0 : i32
    %c0_i32_1 = arith.constant 0 : i32
    %c0_i32_2 = arith.constant 0 : i32
    return %c0_i32, %c0_i32_0, %c0_i32_1 : i32, i32, i32
  }
  func.func @transform_36(%arg0: i32) -> (i32, i32, i32) {
    %c0_i32 = arith.constant 0 : i32
    %c0_i32_0 = arith.constant 0 : i32
    %c0_i32_1 = arith.constant 0 : i32
    %c0_i32_2 = arith.constant 0 : i32
    return %c0_i32, %c0_i32_0, %c0_i32_1 : i32, i32, i32
  }
  func.func @transform_37(%arg0: i32) -> (i32, i32, i32) {
    %c0_i32 = arith.constant 0 : i32
    %c0_i32_0 = arith.constant 0 : i32
    %c0_i32_1 = arith.constant 0 : i32
    %c0_i32_2 = arith.constant 0 : i32
    return %c0_i32, %c0_i32_0, %c0_i32_1 : i32, i32, i32
  }
  func.func @transform_38(%arg0: i32) -> (i32, i32) {
    %c0_i32 = arith.constant 0 : i32
    %c0_i32_0 = arith.constant 0 : i32
    %c0_i32_1 = arith.constant 0 : i32
    return %c0_i32, %c0_i32_0 : i32, i32
  }
  func.func @transform_39(%arg0: i32) -> (i32, i32) {
    %c0_i32 = arith.constant 0 : i32
    %c0_i32_0 = arith.constant 0 : i32
    %c0_i32_1 = arith.constant 0 : i32
    return %c0_i32, %c0_i32_0 : i32, i32
  }
  func.func @transform_40(%arg0: i32) -> (i32, i32) {
    %c0_i32 = arith.constant 0 : i32
    %c0_i32_0 = arith.constant 0 : i32
    %c0_i32_1 = arith.constant 0 : i32
    return %c0_i32, %c0_i32_0 : i32, i32
  }
  func.func @transform_41(%arg0: i32) -> (i32, i32) {
    %c0_i32 = arith.constant 0 : i32
    %c0_i32_0 = arith.constant 0 : i32
    %c0_i32_1 = arith.constant 0 : i32
    return %c0_i32, %c0_i32_0 : i32, i32
  }
  func.func @transform_42(%arg0: i32) -> (i32, i32, i32) {
    %c0_i32 = arith.constant 0 : i32
    %c0_i32_0 = arith.constant 0 : i32
    %c0_i32_1 = arith.constant 0 : i32
    return %arg0, %c0_i32, %c0_i32_0 : i32, i32, i32
  }
}

</mosaic_0001>

<llo_original>
// kernel: own_transformer_forward.1
$region0: #{own_transformer_forward.1}
  #allocation0 [shape = 'u32[]', space=smem, size = 0x4, offset = 0x4, fixed_abs, tag = 'smem constant byte address 0x4 - core index']
  #allocation1 [shape = 'u32[144,128]{1,0:T(1,128)}', space=vmem, size = 0x12000, scoped, tag = 'internal scratch']
  #allocation2 [shape = 'f32[4,32]{1,0:T(4,128)}', space=vmem, size = 0x800, scoped, tag = 'scratch operand']
  %s0 = inlined_call_operand.smem [shape: u32[43], index: -1, kind: input, shape index: {}]
  %s1 = sld [smem:[%s0]]
  %s2 = scalar_lea.smem %s0, 1
  %s3 = sld [smem:[%s2]]
  %s4 = scalar_lea.smem %s0, 2
  %s5 = sld [smem:[%s4]]
  %s6 = scalar_lea.smem %s0, 3
  %s7 = sld [smem:[%s6]]
  %s8 = scalar_lea.smem %s0, 4
  %s9 = sld [smem:[%s8]]
  %s10 = scalar_lea.smem %s0, 5
  %s11 = sld [smem:[%s10]]
  %s12 = scalar_lea.smem %s0, 6
  %s13 = sld [smem:[%s12]]
  %s14 = scalar_lea.smem %s0, 7
  %s15 = sld [smem:[%s14]]
  %s16 = scalar_lea.smem %s0, 8
  %s17 = sld [smem:[%s16]]
  %s18 = scalar_lea.smem %s0, 9
  %s19 = sld [smem:[%s18]]
  %s20 = scalar_lea.smem %s0, 10
  %s21 = sld [smem:[%s20]]
  %s22 = scalar_lea.smem %s0, 11
  %s23 = sld [smem:[%s22]]
  %s24 = scalar_lea.smem %s0, 12
  %s25 = sld [smem:[%s24]]
  %s26 = scalar_lea.smem %s0, 13
  %s27 = sld [smem:[%s26]]
  %s28 = scalar_lea.smem %s0, 14
  %s29 = sld [smem:[%s28]]
  %s30 = scalar_lea.smem %s0, 15
  %s31 = sld [smem:[%s30]]
  %s32 = scalar_lea.smem %s0, 16
  %s33 = sld [smem:[%s32]]
  %s34 = scalar_lea.smem %s0, 17
  %s35 = sld [smem:[%s34]]
  %s36 = scalar_lea.smem %s0, 18
  %s37 = sld [smem:[%s36]]
  %s38 = scalar_lea.smem %s0, 19
  %s39 = sld [smem:[%s38]]
  %s40 = scalar_lea.smem %s0, 20
  %s41 = sld [smem:[%s40]]
  %s42 = scalar_lea.smem %s0, 21
  %s43 = sld [smem:[%s42]]
  %s44 = scalar_lea.smem %s0, 22
  %s45 = sld [smem:[%s44]]
  %s46 = scalar_lea.smem %s0, 23
  %s47 = sld [smem:[%s46]]
  %s48 = scalar_lea.smem %s0, 24
  %s49 = sld [smem:[%s48]]
  %s50 = scalar_lea.smem %s0, 25
  %s51 = sld [smem:[%s50]]
  %s52 = scalar_lea.smem %s0, 26
  %s53 = sld [smem:[%s52]]
  %s54 = scalar_lea.smem %s0, 27
  %s55 = sld [smem:[%s54]]
  %s56 = scalar_lea.smem %s0, 28
  %s57 = sld [smem:[%s56]]
  %s58 = scalar_lea.smem %s0, 29
  %s59 = sld [smem:[%s58]]
  %s60 = scalar_lea.smem %s0, 30
  %s61 = sld [smem:[%s60]]
  %s62 = scalar_lea.smem %s0, 31
  %s63 = sld [smem:[%s62]]
  %s64 = scalar_lea.smem %s0, 32
  %s65 = sld [smem:[%s64]]
  %s66 = scalar_lea.smem %s0, 33
  %s67 = sld [smem:[%s66]]
  %s68 = scalar_lea.smem %s0, 34
  %s69 = sld [smem:[%s68]]
  %s70 = scalar_lea.smem %s0, 35
  %s71 = sld [smem:[%s70]]
  %s72 = scalar_lea.smem %s0, 36
  %s73 = sld [smem:[%s72]]
  %s74 = scalar_lea.smem %s0, 37
  %s75 = sld [smem:[%s74]]
  %s76 = scalar_lea.smem %s0, 38
  %s77 = sld [smem:[%s76]]
  %s78 = scalar_lea.smem %s0, 39
  %s79 = sld [smem:[%s78]]
  %s80 = scalar_lea.smem %s0, 40
  %s81 = sld [smem:[%s80]]
  %s82 = scalar_lea.smem %s0, 41
  %s83 = sld [smem:[%s82]]
  %s84 = scalar_lea.smem %s0, 42
  %s85 = sld [smem:[%s84]]
  %s86 = sld [smem:[#allocation0]]
  $region281: #{own_transformer_forward.1} parent=0
    _
  %s88 = ssub.s32 1, %s86
  %s89 = scalar_select 0, %s88, %s86
  $region1: #{own_transformer_forward.1} parent=0
    #allocation3 [shape = 'u8[1024]{0}', space=vmem, size = 0x400, scoped, tag = 'input window, operand 11, single buffered']
    #allocation4 [shape = 's32[2]{0}', space=sflag, size = 0x8, scoped, tag = 'scoped memory for own_transformer_forward.1']
    #allocation5 [shape = 'u8[1024]{0}', space=vmem, size = 0x400, scoped, tag = 'input window, operand 13, single buffered']
    #allocation6 [shape = 's32[1]{0}', space=sflag, size = 0x4, scoped, tag = 'scoped memory for own_transformer_forward.1']
    #allocation7 [shape = 'u8[1024]{0}', space=vmem, size = 0x400, scoped, tag = 'input window, operand 19, single buffered']
    #allocation8 [shape = 'u8[1024]{0}', space=vmem, size = 0x400, scoped, tag = 'input window, operand 21, single buffered']
    #allocation9 [shape = 's32[1]{0}', space=sflag, size = 0x4, scoped, tag = 'scoped memory for own_transformer_forward.1']
    #allocation10 [shape = 'u8[1024]{0}', space=vmem, size = 0x400, scoped, tag = 'input window, operand 22, single buffered']
    #allocation11 [shape = 'u8[1024]{0}', space=vmem, size = 0x400, scoped, tag = 'input window, operand 23, single buffered']
    #allocation12 [shape = 's32[1]{0}', space=sflag, size = 0x4, scoped, tag = 'scoped memory for own_transformer_forward.1']
    #allocation13 [shape = 'u8[1024]{0}', space=vmem, size = 0x400, scoped, tag = 'input window, operand 25, single buffered']
    #allocation14 [shape = 'u8[32768]{0}', space=vmem, size = 0x8000, scoped, tag = 'input window, operand 26, single buffered']
    #allocation15 [shape = 's32[1]{0}', space=sflag, size = 0x4, scoped, tag = 'scoped memory for own_transformer_forward.1']
    #allocation16 [shape = 'u8[1024]{0}', space=vmem, size = 0x400, scoped, tag = 'input window, operand 27, single buffered']
    #allocation17 [shape = 'u8[32768]{0}', space=vmem, size = 0x8000, scoped, tag = 'input window, operand 28, single buffered']
    #allocation18 [shape = 's32[1]{0}', space=sflag, size = 0x4, scoped, tag = 'scoped memory for own_transformer_forward.1']
    #allocation19 [shape = 'u8[1024]{0}', space=vmem, size = 0x400, scoped, tag = 'input window, operand 29, single buffered']
    #allocation20 [shape = 'u8[1024]{0}', space=vmem, size = 0x400, scoped, tag = 'input window, operand 30, single buffered']
    #allocation21 [shape = 's32[1]{0}', space=sflag, size = 0x4, scoped, tag = 'scoped memory for own_transformer_forward.1']
    #allocation22 [shape = 'u8[1024]{0}', space=vmem, size = 0x400, scoped, tag = 'input window, operand 31, single buffered']
    #allocation23 [shape = 'u8[32768]{0}', space=vmem, size = 0x8000, scoped, tag = 'input window, operand 32, single buffered']
    #allocation24 [shape = 's32[1]{0}', space=sflag, size = 0x4, scoped, tag = 'scoped memory for own_transformer_forward.1']
    #allocation25 [shape = 'u8[1024]{0}', space=vmem, size = 0x400, scoped, tag = 'input window, operand 33, single buffered']
    #allocation26 [shape = 'u8[1024]{0}', space=vmem, size = 0x400, scoped, tag = 'input window, operand 35, single buffered']
    #allocation27 [shape = 's32[1]{0}', space=sflag, size = 0x4, scoped, tag = 'scoped memory for own_transformer_forward.1']
    #allocation28 [shape = 'u8[1024]{0}', space=vmem, size = 0x400, scoped, tag = 'input window, operand 36, single buffered']
    #allocation29 [shape = 'u8[1024]{0}', space=vmem, size = 0x400, scoped, tag = 'input window, operand 37, single buffered']
    #allocation30 [shape = 's32[1]{0}', space=sflag, size = 0x4, scoped, tag = 'scoped memory for own_transformer_forward.1']
    #allocation31 [shape = 'u8[512]{0}', space=vmem, size = 0x400, scoped, tag = 'input window, operand 38, single buffered']
    #allocation32 [shape = 'u8[512]{0}', space=vmem, size = 0x400, scoped, tag = 'input window, operand 39, single buffered']
    #allocation33 [shape = 's32[1]{0}', space=sflag, size = 0x4, scoped, tag = 'scoped memory for own_transformer_forward.1']
    %90 = vsyncpa [#allocation4], 0
    %91 = vsyncpa [#allocation6], 0
    %92 = vsyncpa [#allocation9], 0
    %93 = vsyncpa [#allocation12], 0
    %94 = vsyncpa [#allocation15], 0
    %95 = vsyncpa [#allocation18], 0
    %96 = vsyncpa [#allocation21], 0
    %97 = vsyncpa [#allocation24], 0
    %98 = vsyncpa [#allocation27], 0
    %99 = vsyncpa [#allocation30], 0
    %100 = vsyncpa [#allocation33], 0
    loop: start=0, step=1, limit=4
    $region2: #{own_transformer_forward.1} parent=1 // loop_pre_header
      _
    $region3: #{own_transformer_forward.1} parent=1 // loop_header
      %s102 = sphi 0, %s106
      %p103 = scmp.ge.s32.totalorder %s102, 4
      %s112 = sphi 0, %s114
      %s115 = sphi 0, %s112
      %s116 = sphi 0, %s115
      %s132 = sphi 0, %s116
      %s138 = sphi 0, %s140
      %s141 = sphi 0, %s138
      %s142 = sphi 0, %s141
      %s158 = sphi 0, %s142
      %s162 = sphi 0, %s162
      %s164 = sphi 0, %s162
      %s165 = sphi 0, %s164
      %s179 = sphi 0, %s165
      %s183 = sphi 0, %s183
      %s185 = sphi 0, %s183
      %s186 = sphi 0, %s185
      %s200 = sphi 0, %s186
      %s204 = sphi 0, %s204
      %s206 = sphi 0, %s204
      %s207 = sphi 0, %s206
      %s221 = sphi 0, %s207
      %s225 = sphi 0, %s225
      %s227 = sphi 0, %s225
      %s228 = sphi 0, %s227
      %s242 = sphi 0, %s228
      %s246 = sphi 0, %s246
      %s248 = sphi 0, %s246
      %s249 = sphi 0, %s248
      %s263 = sphi 0, %s249
      %s267 = sphi 0, %s267
      %s269 = sphi 0, %s267
      %s270 = sphi 0, %s269
      %s284 = sphi 0, %s270
      %s288 = sphi 0, %s288
      %s290 = sphi 0, %s288
      %s291 = sphi 0, %s290
      %s305 = sphi 0, %s291
      %s309 = sphi 0, %s309
      %s311 = sphi 0, %s309
      %s312 = sphi 0, %s311
      %s326 = sphi 0, %s312
      %s330 = sphi 0, %s330
      %s332 = sphi 0, %s330
      %s333 = sphi 0, %s332
      %s347 = sphi 0, %s333
      %s351 = sphi 0, %s351
      %s353 = sphi 0, %s351
      %s354 = sphi 0, %s353
      %s368 = sphi 0, %s354
      %s372 = sphi 0, %s372
      %s374 = sphi 0, %s372
      %s375 = sphi 0, %s374
      %s389 = sphi 0, %s375
      %s393 = sphi 0, %s393
      %s395 = sphi 0, %s393
      %s396 = sphi 0, %s395
      %s410 = sphi 0, %s396
      %s414 = sphi 0, %s414
      %s416 = sphi 0, %s414
      %s417 = sphi 0, %s416
      %s431 = sphi 0, %s417
      %s435 = sphi 0, %s435
      %s437 = sphi 0, %s435
      %s438 = sphi 0, %s437
      %s452 = sphi 0, %s438
      %s456 = sphi 0, %s456
      %s458 = sphi 0, %s456
      %s459 = sphi 0, %s458
      %s473 = sphi 0, %s459
      %s477 = sphi 0, %s477
      %s479 = sphi 0, %s477
      %s480 = sphi 0, %s479
      %s494 = sphi 0, %s480
      %s498 = sphi 0, %s498
      %s500 = sphi 0, %s498
      %s501 = sphi 0, %s500
      %s515 = sphi 0, %s501
      %s519 = sphi 0, %s519
      %s521 = sphi 0, %s519
      %s522 = sphi 0, %s521
      %s536 = sphi 0, %s522
      %s540 = sphi 0, %s540
      %s542 = sphi 0, %s540
      %s543 = sphi 0, %s542
      %s557 = sphi 0, %s543
      %s561 = sphi 0, %s561
      %s563 = sphi 0, %s561
      %s564 = sphi 0, %s563
      %s578 = sphi 0, %s564
      %s582 = sphi 0, %s582
      %s584 = sphi 0, %s582
      %s585 = sphi 0, %s584
      %s599 = sphi 0, %s585
      %s603 = sphi 0, %s603
      %s605 = sphi 0, %s603
      %s606 = sphi 0, %s605
      %s620 = sphi 0, %s606
      %s624 = sphi 0, %s624
      %s626 = sphi 0, %s624
      %s627 = sphi 0, %s626
      %s641 = sphi 0, %s627
      %s645 = sphi 0, %s645
      %s647 = sphi 0, %s645
      %s648 = sphi 0, %s647
      %s662 = sphi 0, %s648
      %s666 = sphi 0, %s666
      %s668 = sphi 0, %s666
      %s669 = sphi 0, %s668
      %s683 = sphi 0, %s669
      %s687 = sphi 0, %s687
      %s689 = sphi 0, %s687
      %s690 = sphi 0, %s689
      %s704 = sphi 0, %s690
      %s708 = sphi 0, %s708
      %s710 = sphi 0, %s708
      %s711 = sphi 0, %s710
      %s725 = sphi 0, %s711
      %s729 = sphi 0, %s729
      %s731 = sphi 0, %s729
      %s732 = sphi 0, %s731
      %s746 = sphi 0, %s732
      %s750 = sphi 0, %s750
      %s752 = sphi 0, %s750
      %s753 = sphi 0, %s752
      %s767 = sphi 0, %s753
      %s771 = sphi 0, %s771
      %s773 = sphi 0, %s771
      %s774 = sphi 0, %s773
      %s788 = sphi 0, %s774
      %s792 = sphi 0, %s792
      %s794 = sphi 0, %s792
      %s795 = sphi 0, %s794
      %s809 = sphi 0, %s795
      %s813 = sphi 0, %s813
      %s815 = sphi 0, %s813
      %s816 = sphi 0, %s815
      %s830 = sphi 0, %s816
      %s834 = sphi 0, %s834
      %s836 = sphi 0, %s834
      %s837 = sphi 0, %s836
      %s851 = sphi 0, %s837
      %s855 = sphi 0, %s855
      %s857 = sphi 0, %s855
      %s858 = sphi 0, %s857
      %s872 = sphi 0, %s858
      %s876 = sphi 0, %s876
      %s878 = sphi 0, %s876
      %s879 = sphi 0, %s878
      %s893 = sphi 0, %s879
      %s897 = sphi 0, %s897
      %s899 = sphi 0, %s897
      %s900 = sphi 0, %s899
      %s914 = sphi 0, %s900
      %s918 = sphi 0, %s918
      %s920 = sphi 0, %s918
      %s921 = sphi 0, %s920
      %s935 = sphi 0, %s921
      %s939 = sphi 0, %s939
      %s941 = sphi 0, %s939
      %s942 = sphi 0, %s941
      %s956 = sphi 0, %s942
      %s960 = sphi 0, %s960
      %s962 = sphi 0, %s960
      %s963 = sphi 0, %s962
      %s977 = sphi 0, %s963
      %s981 = sphi 0, %s981
      %s983 = sphi 0, %s981
      %s984 = sphi 0, %s983
      %s998 = sphi 0, %s984
      %s1004 = sphi 0, %s1006
      %s1007 = sphi 0, %s1004
      %s1008 = sphi 0, %s1007
      %s1024 = sphi 0, %s1008
    $region4: #{own_transformer_forward.1} parent=1 // loop_header_branch
      %105 = sbr.rel (%p103) target = $region8
    $region5: #{own_transformer_forward.1} parent=1 // loop_body
      %s107 = ssub.s32 %s102, 1
      %s108 = ssub.s32 %s102, 2
      %s109 = sadd.s32 %s102, 1
      %s110 = ssub.s32 %s102, %s109
      %p111 = scmp.eq.s32.totalorder %s110, 0
      %s113 = sadd.s32 %s112, 1
      %s114 = scalar_select %p111, %s112, %s113
      %p117 = pneg %p111
      %p118 = scmp.eq.s32.totalorder %s102, 1
      %p119 = por %p117, %p118
      %p120 = scmp.ne.s32.totalorder %s112, %s115
      %p121 = scmp.eq.s32.totalorder %s102, 0
      %p122 = por %p120, %p121
      %p123 = scmp.ne.s32.totalorder %s112, %s115
      %p124 = scmp.eq.s32.totalorder %s107, 1
      %p125 = por %p123, %p124
      %p126 = scmp.ne.s32.totalorder %s115, %s116
      %p127 = scmp.eq.s32.totalorder %s107, 0
      %p128 = por %p126, %p127
      %p129 = scmp.ne.s32.totalorder %s115, %s116
      %p130 = scmp.eq.s32.totalorder %s108, 1
      %p131 = por %p129, %p130
      %p133 = scmp.ne.s32.totalorder %s116, %s132
      %p134 = scmp.eq.s32.totalorder %s108, 0
      %p135 = por %p133, %p134
      %s136 = ssub.s32 %s102, %s109
      %p137 = scmp.eq.s32.totalorder %s136, 0
      %s139 = sadd.s32 %s138, 1
      %s140 = scalar_select %p137, %s138, %s139
      %p143 = pneg %p137
      %p144 = scmp.eq.s32.totalorder %s102, 1
      %p145 = por %p143, %p144
      %p146 = scmp.ne.s32.totalorder %s138, %s141
      %p147 = scmp.eq.s32.totalorder %s102, 0
      %p148 = por %p146, %p147
      %p149 = scmp.ne.s32.totalorder %s138, %s141
      %p150 = scmp.eq.s32.totalorder %s107, 1
      %p151 = por %p149, %p150
      %p152 = scmp.ne.s32.totalorder %s141, %s142
      %p153 = scmp.eq.s32.totalorder %s107, 0
      %p154 = por %p152, %p153
      %p155 = scmp.ne.s32.totalorder %s141, %s142
      %p156 = scmp.eq.s32.totalorder %s108, 1
      %p157 = por %p155, %p156
      %p159 = scmp.ne.s32.totalorder %s142, %s158
      %p160 = scmp.eq.s32.totalorder %s108, 0
      %p161 = por %p159, %p160
      %s163 = sadd.s32 %s162, 1
      %p166 = scmp.eq.s32.totalorder %s102, 1
      %p167 = scmp.ne.s32.totalorder %s162, %s164
      %p168 = scmp.eq.s32.totalorder %s102, 0
      %p169 = por %p167, %p168
      %p170 = scmp.ne.s32.totalorder %s162, %s164
      %p171 = scmp.eq.s32.totalorder %s107, 1
      %p172 = por %p170, %p171
      %p173 = scmp.ne.s32.totalorder %s164, %s165
      %p174 = scmp.eq.s32.totalorder %s107, 0
      %p175 = por %p173, %p174
      %p176 = scmp.ne.s32.totalorder %s164, %s165
      %p177 = scmp.eq.s32.totalorder %s108, 1
      %p178 = por %p176, %p177
      %p180 = scmp.ne.s32.totalorder %s165, %s179
      %p181 = scmp.eq.s32.totalorder %s108, 0
      %p182 = por %p180, %p181
      %s184 = sadd.s32 %s183, 1
      %p187 = scmp.eq.s32.totalorder %s102, 1
      %p188 = scmp.ne.s32.totalorder %s183, %s185
      %p189 = scmp.eq.s32.totalorder %s102, 0
      %p190 = por %p188, %p189
      %p191 = scmp.ne.s32.totalorder %s183, %s185
      %p192 = scmp.eq.s32.totalorder %s107, 1
      %p193 = por %p191, %p192
      %p194 = scmp.ne.s32.totalorder %s185, %s186
      %p195 = scmp.eq.s32.totalorder %s107, 0
      %p196 = por %p194, %p195
      %p197 = scmp.ne.s32.totalorder %s185, %s186
      %p198 = scmp.eq.s32.totalorder %s108, 1
      %p199 = por %p197, %p198
      %p201 = scmp.ne.s32.totalorder %s186, %s200
      %p202 = scmp.eq.s32.totalorder %s108, 0
      %p203 = por %p201, %p202
      %s205 = sadd.s32 %s204, 1
      %p208 = scmp.eq.s32.totalorder %s102, 1
      %p209 = scmp.ne.s32.totalorder %s204, %s206
      %p210 = scmp.eq.s32.totalorder %s102, 0
      %p211 = por %p209, %p210
      %p212 = scmp.ne.s32.totalorder %s204, %s206
      %p213 = scmp.eq.s32.totalorder %s107, 1
      %p214 = por %p212, %p213
      %p215 = scmp.ne.s32.totalorder %s206, %s207
      %p216 = scmp.eq.s32.totalorder %s107, 0
      %p217 = por %p215, %p216
      %p218 = scmp.ne.s32.totalorder %s206, %s207
      %p219 = scmp.eq.s32.totalorder %s108, 1
      %p220 = por %p218, %p219
      %p222 = scmp.ne.s32.totalorder %s207, %s221
      %p223 = scmp.eq.s32.totalorder %s108, 0
      %p224 = por %p222, %p223
      %s226 = sadd.s32 %s225, 1
      %p229 = scmp.eq.s32.totalorder %s102, 1
      %p230 = scmp.ne.s32.totalorder %s225, %s227
      %p231 = scmp.eq.s32.totalorder %s102, 0
      %p232 = por %p230, %p231
      %p233 = scmp.ne.s32.totalorder %s225, %s227
      %p234 = scmp.eq.s32.totalorder %s107, 1
      %p235 = por %p233, %p234
      %p236 = scmp.ne.s32.totalorder %s227, %s228
      %p237 = scmp.eq.s32.totalorder %s107, 0
      %p238 = por %p236, %p237
      %p239 = scmp.ne.s32.totalorder %s227, %s228
      %p240 = scmp.eq.s32.totalorder %s108, 1
      %p241 = por %p239, %p240
      %p243 = scmp.ne.s32.totalorder %s228, %s242
      %p244 = scmp.eq.s32.totalorder %s108, 0
      %p245 = por %p243, %p244
      %s247 = sadd.s32 %s246, 1
      %p250 = scmp.eq.s32.totalorder %s102, 1
      %p251 = scmp.ne.s32.totalorder %s246, %s248
      %p252 = scmp.eq.s32.totalorder %s102, 0
      %p253 = por %p251, %p252
      %p254 = scmp.ne.s32.totalorder %s246, %s248
      %p255 = scmp.eq.s32.totalorder %s107, 1
      %p256 = por %p254, %p255
      %p257 = scmp.ne.s32.totalorder %s248, %s249
      %p258 = scmp.eq.s32.totalorder %s107, 0
      %p259 = por %p257, %p258
      %p260 = scmp.ne.s32.totalorder %s248, %s249
      %p261 = scmp.eq.s32.totalorder %s108, 1
      %p262 = por %p260, %p261
      %p264 = scmp.ne.s32.totalorder %s249, %s263
      %p265 = scmp.eq.s32.totalorder %s108, 0
      %p266 = por %p264, %p265
      %s268 = sadd.s32 %s267, 1
      %p271 = scmp.eq.s32.totalorder %s102, 1
      %p272 = scmp.ne.s32.totalorder %s267, %s269
      %p273 = scmp.eq.s32.totalorder %s102, 0
      %p274 = por %p272, %p273
      %p275 = scmp.ne.s32.totalorder %s267, %s269
      %p276 = scmp.eq.s32.totalorder %s107, 1
      %p277 = por %p275, %p276
      %p278 = scmp.ne.s32.totalorder %s269, %s270
      %p279 = scmp.eq.s32.totalorder %s107, 0
      %p280 = por %p278, %p279
      %p281 = scmp.ne.s32.totalorder %s269, %s270
      %p282 = scmp.eq.s32.totalorder %s108, 1
      %p283 = por %p281, %p282
      %p285 = scmp.ne.s32.totalorder %s270, %s284
      %p286 = scmp.eq.s32.totalorder %s108, 0
      %p287 = por %p285, %p286
      %s289 = sadd.s32 %s288, 1
      %p292 = scmp.eq.s32.totalorder %s102, 1
      %p293 = scmp.ne.s32.totalorder %s288, %s290
      %p294 = scmp.eq.s32.totalorder %s102, 0
      %p295 = por %p293, %p294
      %p296 = scmp.ne.s32.totalorder %s288, %s290
      %p297 = scmp.eq.s32.totalorder %s107, 1
      %p298 = por %p296, %p297
      %p299 = scmp.ne.s32.totalorder %s290, %s291
      %p300 = scmp.eq.s32.totalorder %s107, 0
      %p301 = por %p299, %p300
      %p302 = scmp.ne.s32.totalorder %s290, %s291
      %p303 = scmp.eq.s32.totalorder %s108, 1
      %p304 = por %p302, %p303
      %p306 = scmp.ne.s32.totalorder %s291, %s305
      %p307 = scmp.eq.s32.totalorder %s108, 0
      %p308 = por %p306, %p307
      %s310 = sadd.s32 %s309, 1
      %p313 = scmp.eq.s32.totalorder %s102, 1
      %p314 = scmp.ne.s32.totalorder %s309, %s311
      %p315 = scmp.eq.s32.totalorder %s102, 0
      %p316 = por %p314, %p315
      %p317 = scmp.ne.s32.totalorder %s309, %s311
      %p318 = scmp.eq.s32.totalorder %s107, 1
      %p319 = por %p317, %p318
      %p320 = scmp.ne.s32.totalorder %s311, %s312
      %p321 = scmp.eq.s32.totalorder %s107, 0
      %p322 = por %p320, %p321
      %p323 = scmp.ne.s32.totalorder %s311, %s312
      %p324 = scmp.eq.s32.totalorder %s108, 1
      %p325 = por %p323, %p324
      %p327 = scmp.ne.s32.totalorder %s312, %s326
      %p328 = scmp.eq.s32.totalorder %s108, 0
      %p329 = por %p327, %p328
      %s331 = sadd.s32 %s330, 1
      %p334 = scmp.eq.s32.totalorder %s102, 1
      %p335 = scmp.ne.s32.totalorder %s330, %s332
      %p336 = scmp.eq.s32.totalorder %s102, 0
      %p337 = por %p335, %p336
      %p338 = scmp.ne.s32.totalorder %s330, %s332
      %p339 = scmp.eq.s32.totalorder %s107, 1
      %p340 = por %p338, %p339
      %p341 = scmp.ne.s32.totalorder %s332, %s333
      %p342 = scmp.eq.s32.totalorder %s107, 0
      %p343 = por %p341, %p342
      %p344 = scmp.ne.s32.totalorder %s332, %s333
      %p345 = scmp.eq.s32.totalorder %s108, 1
      %p346 = por %p344, %p345
      %p348 = scmp.ne.s32.totalorder %s333, %s347
      %p349 = scmp.eq.s32.totalorder %s108, 0
      %p350 = por %p348, %p349
      %s352 = sadd.s32 %s351, 1
      %p355 = scmp.eq.s32.totalorder %s102, 1
      %p356 = scmp.ne.s32.totalorder %s351, %s353
      %p357 = scmp.eq.s32.totalorder %s102, 0
      %p358 = por %p356, %p357
      %p359 = scmp.ne.s32.totalorder %s351, %s353
      %p360 = scmp.eq.s32.totalorder %s107, 1
      %p361 = por %p359, %p360
      %p362 = scmp.ne.s32.totalorder %s353, %s354
      %p363 = scmp.eq.s32.totalorder %s107, 0
      %p364 = por %p362, %p363
      %p365 = scmp.ne.s32.totalorder %s353, %s354
      %p366 = scmp.eq.s32.totalorder %s108, 1
      %p367 = por %p365, %p366
      %p369 = scmp.ne.s32.totalorder %s354, %s368
      %p370 = scmp.eq.s32.totalorder %s108, 0
      %p371 = por %p369, %p370
      %s373 = sadd.s32 %s372, 1
      %p376 = scmp.eq.s32.totalorder %s102, 1
      %p377 = scmp.ne.s32.totalorder %s372, %s374
      %p378 = scmp.eq.s32.totalorder %s102, 0
      %p379 = por %p377, %p378
      %p380 = scmp.ne.s32.totalorder %s372, %s374
      %p381 = scmp.eq.s32.totalorder %s107, 1
      %p382 = por %p380, %p381
      %p383 = scmp.ne.s32.totalorder %s374, %s375
      %p384 = scmp.eq.s32.totalorder %s107, 0
      %p385 = por %p383, %p384
      %p386 = scmp.ne.s32.totalorder %s374, %s375
      %p387 = scmp.eq.s32.totalorder %s108, 1
      %p388 = por %p386, %p387
      %p390 = scmp.ne.s32.totalorder %s375, %s389
      %p391 = scmp.eq.s32.totalorder %s108, 0
      %p392 = por %p390, %p391
      %s394 = sadd.s32 %s393, 1
      %p397 = scmp.eq.s32.totalorder %s102, 1
      %p398 = scmp.ne.s32.totalorder %s393, %s395
      %p399 = scmp.eq.s32.totalorder %s102, 0
      %p400 = por %p398, %p399
      %p401 = scmp.ne.s32.totalorder %s393, %s395
      %p402 = scmp.eq.s32.totalorder %s107, 1
      %p403 = por %p401, %p402
      %p404 = scmp.ne.s32.totalorder %s395, %s396
      %p405 = scmp.eq.s32.totalorder %s107, 0
      %p406 = por %p404, %p405
      %p407 = scmp.ne.s32.totalorder %s395, %s396
      %p408 = scmp.eq.s32.totalorder %s108, 1
      %p409 = por %p407, %p408
      %p411 = scmp.ne.s32.totalorder %s396, %s410
      %p412 = scmp.eq.s32.totalorder %s108, 0
      %p413 = por %p411, %p412
      %s415 = sadd.s32 %s414, 1
      %p418 = scmp.eq.s32.totalorder %s102, 1
      %p419 = scmp.ne.s32.totalorder %s414, %s416
      %p420 = scmp.eq.s32.totalorder %s102, 0
      %p421 = por %p419, %p420
      %p422 = scmp.ne.s32.totalorder %s414, %s416
      %p423 = scmp.eq.s32.totalorder %s107, 1
      %p424 = por %p422, %p423
      %p425 = scmp.ne.s32.totalorder %s416, %s417
      %p426 = scmp.eq.s32.totalorder %s107, 0
      %p427 = por %p425, %p426
      %p428 = scmp.ne.s32.totalorder %s416, %s417
      %p429 = scmp.eq.s32.totalorder %s108, 1
      %p430 = por %p428, %p429
      %p432 = scmp.ne.s32.totalorder %s417, %s431
      %p433 = scmp.eq.s32.totalorder %s108, 0
      %p434 = por %p432, %p433
      %s436 = sadd.s32 %s435, 1
      %p439 = scmp.eq.s32.totalorder %s102, 1
      %p440 = scmp.ne.s32.totalorder %s435, %s437
      %p441 = scmp.eq.s32.totalorder %s102, 0
      %p442 = por %p440, %p441
      %p443 = scmp.ne.s32.totalorder %s435, %s437
      %p444 = scmp.eq.s32.totalorder %s107, 1
      %p445 = por %p443, %p444
      %p446 = scmp.ne.s32.totalorder %s437, %s438
      %p447 = scmp.eq.s32.totalorder %s107, 0
      %p448 = por %p446, %p447
      %p449 = scmp.ne.s32.totalorder %s437, %s438
      %p450 = scmp.eq.s32.totalorder %s108, 1
      %p451 = por %p449, %p450
      %p453 = scmp.ne.s32.totalorder %s438, %s452
      %p454 = scmp.eq.s32.totalorder %s108, 0
      %p455 = por %p453, %p454
      %s457 = sadd.s32 %s456, 1
      %p460 = scmp.eq.s32.totalorder %s102, 1
      %p461 = scmp.ne.s32.totalorder %s456, %s458
      %p462 = scmp.eq.s32.totalorder %s102, 0
      %p463 = por %p461, %p462
      %p464 = scmp.ne.s32.totalorder %s456, %s458
      %p465 = scmp.eq.s32.totalorder %s107, 1
      %p466 = por %p464, %p465
      %p467 = scmp.ne.s32.totalorder %s458, %s459
      %p468 = scmp.eq.s32.totalorder %s107, 0
      %p469 = por %p467, %p468
      %p470 = scmp.ne.s32.totalorder %s458, %s459
      %p471 = scmp.eq.s32.totalorder %s108, 1
      %p472 = por %p470, %p471
      %p474 = scmp.ne.s32.totalorder %s459, %s473
      %p475 = scmp.eq.s32.totalorder %s108, 0
      %p476 = por %p474, %p475
      %s478 = sadd.s32 %s477, 1
      %p481 = scmp.eq.s32.totalorder %s102, 1
      %p482 = scmp.ne.s32.totalorder %s477, %s479
      %p483 = scmp.eq.s32.totalorder %s102, 0
      %p484 = por %p482, %p483
      %p485 = scmp.ne.s32.totalorder %s477, %s479
      %p486 = scmp.eq.s32.totalorder %s107, 1
      %p487 = por %p485, %p486
      %p488 = scmp.ne.s32.totalorder %s479, %s480
      %p489 = scmp.eq.s32.totalorder %s107, 0
      %p490 = por %p488, %p489
      %p491 = scmp.ne.s32.totalorder %s479, %s480
      %p492 = scmp.eq.s32.totalorder %s108, 1
      %p493 = por %p491, %p492
      %p495 = scmp.ne.s32.totalorder %s480, %s494
      %p496 = scmp.eq.s32.totalorder %s108, 0
      %p497 = por %p495, %p496
      %s499 = sadd.s32 %s498, 1
      %p502 = scmp.eq.s32.totalorder %s102, 1
      %p503 = scmp.ne.s32.totalorder %s498, %s500
      %p504 = scmp.eq.s32.totalorder %s102, 0
      %p505 = por %p503, %p504
      %p506 = scmp.ne.s32.totalorder %s498, %s500
      %p507 = scmp.eq.s32.totalorder %s107, 1
      %p508 = por %p506, %p507
      %p509 = scmp.ne.s32.totalorder %s500, %s501
      %p510 = scmp.eq.s32.totalorder %s107, 0
      %p511 = por %p509, %p510
      %p512 = scmp.ne.s32.totalorder %s500, %s501
      %p513 = scmp.eq.s32.totalorder %s108, 1
      %p514 = por %p512, %p513
      %p516 = scmp.ne.s32.totalorder %s501, %s515
      %p517 = scmp.eq.s32.totalorder %s108, 0
      %p518 = por %p516, %p517
      %s520 = sadd.s32 %s519, 1
      %p523 = scmp.eq.s32.totalorder %s102, 1
      %p524 = scmp.ne.s32.totalorder %s519, %s521
      %p525 = scmp.eq.s32.totalorder %s102, 0
      %p526 = por %p524, %p525
      %p527 = scmp.ne.s32.totalorder %s519, %s521
      %p528 = scmp.eq.s32.totalorder %s107, 1
      %p529 = por %p527, %p528
      %p530 = scmp.ne.s32.totalorder %s521, %s522
      %p531 = scmp.eq.s32.totalorder %s107, 0
      %p532 = por %p530, %p531
      %p533 = scmp.ne.s32.totalorder %s521, %s522
      %p534 = scmp.eq.s32.totalorder %s108, 1
      %p535 = por %p533, %p534
      %p537 = scmp.ne.s32.totalorder %s522, %s536
      %p538 = scmp.eq.s32.totalorder %s108, 0
      %p539 = por %p537, %p538
      %s541 = sadd.s32 %s540, 1
      %p544 = scmp.eq.s32.totalorder %s102, 1
      %p545 = scmp.ne.s32.totalorder %s540, %s542
      %p546 = scmp.eq.s32.totalorder %s102, 0
      %p547 = por %p545, %p546
      %p548 = scmp.ne.s32.totalorder %s540, %s542
      %p549 = scmp.eq.s32.totalorder %s107, 1
      %p550 = por %p548, %p549
      %p551 = scmp.ne.s32.totalorder %s542, %s543
      %p552 = scmp.eq.s32.totalorder %s107, 0
      %p553 = por %p551, %p552
      %p554 = scmp.ne.s32.totalorder %s542, %s543
      %p555 = scmp.eq.s32.totalorder %s108, 1
      %p556 = por %p554, %p555
      %p558 = scmp.ne.s32.totalorder %s543, %s557
      %p559 = scmp.eq.s32.totalorder %s108, 0
      %p560 = por %p558, %p559
      %s562 = sadd.s32 %s561, 1
      %p565 = scmp.eq.s32.totalorder %s102, 1
      %p566 = scmp.ne.s32.totalorder %s561, %s563
      %p567 = scmp.eq.s32.totalorder %s102, 0
      %p568 = por %p566, %p567
      %p569 = scmp.ne.s32.totalorder %s561, %s563
      %p570 = scmp.eq.s32.totalorder %s107, 1
      %p571 = por %p569, %p570
      %p572 = scmp.ne.s32.totalorder %s563, %s564
      %p573 = scmp.eq.s32.totalorder %s107, 0
      %p574 = por %p572, %p573
      %p575 = scmp.ne.s32.totalorder %s563, %s564
      %p576 = scmp.eq.s32.totalorder %s108, 1
      %p577 = por %p575, %p576
      %p579 = scmp.ne.s32.totalorder %s564, %s578
      %p580 = scmp.eq.s32.totalorder %s108, 0
      %p581 = por %p579, %p580
      %s583 = sadd.s32 %s582, 1
      %p586 = scmp.eq.s32.totalorder %s102, 1
      %p587 = scmp.ne.s32.totalorder %s582, %s584
      %p588 = scmp.eq.s32.totalorder %s102, 0
      %p589 = por %p587, %p588
      %p590 = scmp.ne.s32.totalorder %s582, %s584
      %p591 = scmp.eq.s32.totalorder %s107, 1
      %p592 = por %p590, %p591
      %p593 = scmp.ne.s32.totalorder %s584, %s585
      %p594 = scmp.eq.s32.totalorder %s107, 0
      %p595 = por %p593, %p594
      %p596 = scmp.ne.s32.totalorder %s584, %s585
      %p597 = scmp.eq.s32.totalorder %s108, 1
      %p598 = por %p596, %p597
      %p600 = scmp.ne.s32.totalorder %s585, %s599
      %p601 = scmp.eq.s32.totalorder %s108, 0
      %p602 = por %p600, %p601
      %s604 = sadd.s32 %s603, 1
      %p607 = scmp.eq.s32.totalorder %s102, 1
      %p608 = scmp.ne.s32.totalorder %s603, %s605
      %p609 = scmp.eq.s32.totalorder %s102, 0
      %p610 = por %p608, %p609
      %p611 = scmp.ne.s32.totalorder %s603, %s605
      %p612 = scmp.eq.s32.totalorder %s107, 1
      %p613 = por %p611, %p612
      %p614 = scmp.ne.s32.totalorder %s605, %s606
      %p615 = scmp.eq.s32.totalorder %s107, 0
      %p616 = por %p614, %p615
      %p617 = scmp.ne.s32.totalorder %s605, %s606
      %p618 = scmp.eq.s32.totalorder %s108, 1
      %p619 = por %p617, %p618
      %p621 = scmp.ne.s32.totalorder %s606, %s620
      %p622 = scmp.eq.s32.totalorder %s108, 0
      %p623 = por %p621, %p622
      %s625 = sadd.s32 %s624, 1
      %p628 = scmp.eq.s32.totalorder %s102, 1
      %p629 = scmp.ne.s32.totalorder %s624, %s626
      %p630 = scmp.eq.s32.totalorder %s102, 0
      %p631 = por %p629, %p630
      %p632 = scmp.ne.s32.totalorder %s624, %s626
      %p633 = scmp.eq.s32.totalorder %s107, 1
      %p634 = por %p632, %p633
      %p635 = scmp.ne.s32.totalorder %s626, %s627
      %p636 = scmp.eq.s32.totalorder %s107, 0
      %p637 = por %p635, %p636
      %p638 = scmp.ne.s32.totalorder %s626, %s627
      %p639 = scmp.eq.s32.totalorder %s108, 1
      %p640 = por %p638, %p639
      %p642 = scmp.ne.s32.totalorder %s627, %s641
      %p643 = scmp.eq.s32.totalorder %s108, 0
      %p644 = por %p642, %p643
      %s646 = sadd.s32 %s645, 1
      %p649 = scmp.eq.s32.totalorder %s102, 1
      %p650 = scmp.ne.s32.totalorder %s645, %s647
      %p651 = scmp.eq.s32.totalorder %s102, 0
      %p652 = por %p650, %p651
      %p653 = scmp.ne.s32.totalorder %s645, %s647
      %p654 = scmp.eq.s32.totalorder %s107, 1
      %p655 = por %p653, %p654
      %p656 = scmp.ne.s32.totalorder %s647, %s648
      %p657 = scmp.eq.s32.totalorder %s107, 0
      %p658 = por %p656, %p657
      %p659 = scmp.ne.s32.totalorder %s647, %s648
      %p660 = scmp.eq.s32.totalorder %s108, 1
      %p661 = por %p659, %p660
      %p663 = scmp.ne.s32.totalorder %s648, %s662
      %p664 = scmp.eq.s32.totalorder %s108, 0
      %p665 = por %p663, %p664
      %s667 = sadd.s32 %s666, 1
      %p670 = scmp.eq.s32.totalorder %s102, 1
      %p671 = scmp.ne.s32.totalorder %s666, %s668
      %p672 = scmp.eq.s32.totalorder %s102, 0
      %p673 = por %p671, %p672
      %p674 = scmp.ne.s32.totalorder %s666, %s668
      %p675 = scmp.eq.s32.totalorder %s107, 1
      %p676 = por %p674, %p675
      %p677 = scmp.ne.s32.totalorder %s668, %s669
      %p678 = scmp.eq.s32.totalorder %s107, 0
      %p679 = por %p677, %p678
      %p680 = scmp.ne.s32.totalorder %s668, %s669
      %p681 = scmp.eq.s32.totalorder %s108, 1
      %p682 = por %p680, %p681
      %p684 = scmp.ne.s32.totalorder %s669, %s683
      %p685 = scmp.eq.s32.totalorder %s108, 0
      %p686 = por %p684, %p685
      %s688 = sadd.s32 %s687, 1
      %p691 = scmp.eq.s32.totalorder %s102, 1
      %p692 = scmp.ne.s32.totalorder %s687, %s689
      %p693 = scmp.eq.s32.totalorder %s102, 0
      %p694 = por %p692, %p693
      %p695 = scmp.ne.s32.totalorder %s687, %s689
      %p696 = scmp.eq.s32.totalorder %s107, 1
      %p697 = por %p695, %p696
      %p698 = scmp.ne.s32.totalorder %s689, %s690
      %p699 = scmp.eq.s32.totalorder %s107, 0
      %p700 = por %p698, %p699
      %p701 = scmp.ne.s32.totalorder %s689, %s690
      %p702 = scmp.eq.s32.totalorder %s108, 1
      %p703 = por %p701, %p702
      %p705 = scmp.ne.s32.totalorder %s690, %s704
      %p706 = scmp.eq.s32.totalorder %s108, 0
      %p707 = por %p705, %p706
      %s709 = sadd.s32 %s708, 1
      %p712 = scmp.eq.s32.totalorder %s102, 1
      %p713 = scmp.ne.s32.totalorder %s708, %s710
      %p714 = scmp.eq.s32.totalorder %s102, 0
      %p715 = por %p713, %p714
      %p716 = scmp.ne.s32.totalorder %s708, %s710
      %p717 = scmp.eq.s32.totalorder %s107, 1
      %p718 = por %p716, %p717
      %p719 = scmp.ne.s32.totalorder %s710, %s711
      %p720 = scmp.eq.s32.totalorder %s107, 0
      %p721 = por %p719, %p720
      %p722 = scmp.ne.s32.totalorder %s710, %s711
      %p723 = scmp.eq.s32.totalorder %s108, 1
      %p724 = por %p722, %p723
      %p726 = scmp.ne.s32.totalorder %s711, %s725
      %p727 = scmp.eq.s32.totalorder %s108, 0
      %p728 = por %p726, %p727
      %s730 = sadd.s32 %s729, 1
      %p733 = scmp.eq.s32.totalorder %s102, 1
      %p734 = scmp.ne.s32.totalorder %s729, %s731
      %p735 = scmp.eq.s32.totalorder %s102, 0
      %p736 = por %p734, %p735
      %p737 = scmp.ne.s32.totalorder %s729, %s731
      %p738 = scmp.eq.s32.totalorder %s107, 1
      %p739 = por %p737, %p738
      %p740 = scmp.ne.s32.totalorder %s731, %s732
      %p741 = scmp.eq.s32.totalorder %s107, 0
      %p742 = por %p740, %p741
      %p743 = scmp.ne.s32.totalorder %s731, %s732
      %p744 = scmp.eq.s32.totalorder %s108, 1
      %p745 = por %p743, %p744
      %p747 = scmp.ne.s32.totalorder %s732, %s746
      %p748 = scmp.eq.s32.totalorder %s108, 0
      %p749 = por %p747, %p748
      %s751 = sadd.s32 %s750, 1
      %p754 = scmp.eq.s32.totalorder %s102, 1
      %p755 = scmp.ne.s32.totalorder %s750, %s752
      %p756 = scmp.eq.s32.totalorder %s102, 0
      %p757 = por %p755, %p756
      %p758 = scmp.ne.s32.totalorder %s750, %s752
      %p759 = scmp.eq.s32.totalorder %s107, 1
      %p760 = por %p758, %p759
      %p761 = scmp.ne.s32.totalorder %s752, %s753
      %p762 = scmp.eq.s32.totalorder %s107, 0
      %p763 = por %p761, %p762
      %p764 = scmp.ne.s32.totalorder %s752, %s753
      %p765 = scmp.eq.s32.totalorder %s108, 1
      %p766 = por %p764, %p765
      %p768 = scmp.ne.s32.totalorder %s753, %s767
      %p769 = scmp.eq.s32.totalorder %s108, 0
      %p770 = por %p768, %p769
      %s772 = sadd.s32 %s771, 1
      %p775 = scmp.eq.s32.totalorder %s102, 1
      %p776 = scmp.ne.s32.totalorder %s771, %s773
      %p777 = scmp.eq.s32.totalorder %s102, 0
      %p778 = por %p776, %p777
      %p779 = scmp.ne.s32.totalorder %s771, %s773
      %p780 = scmp.eq.s32.totalorder %s107, 1
      %p781 = por %p779, %p780
      %p782 = scmp.ne.s32.totalorder %s773, %s774
      %p783 = scmp.eq.s32.totalorder %s107, 0
      %p784 = por %p782, %p783
      %p785 = scmp.ne.s32.totalorder %s773, %s774
      %p786 = scmp.eq.s32.totalorder %s108, 1
      %p787 = por %p785, %p786
      %p789 = scmp.ne.s32.totalorder %s774, %s788
      %p790 = scmp.eq.s32.totalorder %s108, 0
      %p791 = por %p789, %p790
      %s793 = sadd.s32 %s792, 1
      %p796 = scmp.eq.s32.totalorder %s102, 1
      %p797 = scmp.ne.s32.totalorder %s792, %s794
      %p798 = scmp.eq.s32.totalorder %s102, 0
      %p799 = por %p797, %p798
      %p800 = scmp.ne.s32.totalorder %s792, %s794
      %p801 = scmp.eq.s32.totalorder %s107, 1
      %p802 = por %p800, %p801
      %p803 = scmp.ne.s32.totalorder %s794, %s795
      %p804 = scmp.eq.s32.totalorder %s107, 0
      %p805 = por %p803, %p804
      %p806 = scmp.ne.s32.totalorder %s794, %s795
      %p807 = scmp.eq.s32.totalorder %s108, 1
      %p808 = por %p806, %p807
      %p810 = scmp.ne.s32.totalorder %s795, %s809
      %p811 = scmp.eq.s32.totalorder %s108, 0
      %p812 = por %p810, %p811
      %s814 = sadd.s32 %s813, 1
      %p817 = scmp.eq.s32.totalorder %s102, 1
      %p818 = scmp.ne.s32.totalorder %s813, %s815
      %p819 = scmp.eq.s32.totalorder %s102, 0
      %p820 = por %p818, %p819
      %p821 = scmp.ne.s32.totalorder %s813, %s815
      %p822 = scmp.eq.s32.totalorder %s107, 1
      %p823 = por %p821, %p822
      %p824 = scmp.ne.s32.totalorder %s815, %s816
      %p825 = scmp.eq.s32.totalorder %s107, 0
      %p826 = por %p824, %p825
      %p827 = scmp.ne.s32.totalorder %s815, %s816
      %p828 = scmp.eq.s32.totalorder %s108, 1
      %p829 = por %p827, %p828
      %p831 = scmp.ne.s32.totalorder %s816, %s830
      %p832 = scmp.eq.s32.totalorder %s108, 0
      %p833 = por %p831, %p832
      %s835 = sadd.s32 %s834, 1
      %p838 = scmp.eq.s32.totalorder %s102, 1
      %p839 = scmp.ne.s32.totalorder %s834, %s836
      %p840 = scmp.eq.s32.totalorder %s102, 0
      %p841 = por %p839, %p840
      %p842 = scmp.ne.s32.totalorder %s834, %s836
      %p843 = scmp.eq.s32.totalorder %s107, 1
      %p844 = por %p842, %p843
      %p845 = scmp.ne.s32.totalorder %s836, %s837
      %p846 = scmp.eq.s32.totalorder %s107, 0
      %p847 = por %p845, %p846
      %p848 = scmp.ne.s32.totalorder %s836, %s837
      %p849 = scmp.eq.s32.totalorder %s108, 1
      %p850 = por %p848, %p849
      %p852 = scmp.ne.s32.totalorder %s837, %s851
      %p853 = scmp.eq.s32.totalorder %s108, 0
      %p854 = por %p852, %p853
      %s856 = sadd.s32 %s855, 1
      %p859 = scmp.eq.s32.totalorder %s102, 1
      %p860 = scmp.ne.s32.totalorder %s855, %s857
      %p861 = scmp.eq.s32.totalorder %s102, 0
      %p862 = por %p860, %p861
      %p863 = scmp.ne.s32.totalorder %s855, %s857
      %p864 = scmp.eq.s32.totalorder %s107, 1
      %p865 = por %p863, %p864
      %p866 = scmp.ne.s32.totalorder %s857, %s858
      %p867 = scmp.eq.s32.totalorder %s107, 0
      %p868 = por %p866, %p867
      %p869 = scmp.ne.s32.totalorder %s857, %s858
      %p870 = scmp.eq.s32.totalorder %s108, 1
      %p871 = por %p869, %p870
      %p873 = scmp.ne.s32.totalorder %s858, %s872
      %p874 = scmp.eq.s32.totalorder %s108, 0
      %p875 = por %p873, %p874
      %s877 = sadd.s32 %s876, 1
      %p880 = scmp.eq.s32.totalorder %s102, 1
      %p881 = scmp.ne.s32.totalorder %s876, %s878
      %p882 = scmp.eq.s32.totalorder %s102, 0
      %p883 = por %p881, %p882
      %p884 = scmp.ne.s32.totalorder %s876, %s878
      %p885 = scmp.eq.s32.totalorder %s107, 1
      %p886 = por %p884, %p885
      %p887 = scmp.ne.s32.totalorder %s878, %s879
      %p888 = scmp.eq.s32.totalorder %s107, 0
      %p889 = por %p887, %p888
      %p890 = scmp.ne.s32.totalorder %s878, %s879
      %p891 = scmp.eq.s32.totalorder %s108, 1
      %p892 = por %p890, %p891
      %p894 = scmp.ne.s32.totalorder %s879, %s893
      %p895 = scmp.eq.s32.totalorder %s108, 0
      %p896 = por %p894, %p895
      %s898 = sadd.s32 %s897, 1
      %p901 = scmp.eq.s32.totalorder %s102, 1
      %p902 = scmp.ne.s32.totalorder %s897, %s899
      %p903 = scmp.eq.s32.totalorder %s102, 0
      %p904 = por %p902, %p903
      %p905 = scmp.ne.s32.totalorder %s897, %s899
      %p906 = scmp.eq.s32.totalorder %s107, 1
      %p907 = por %p905, %p906
      %p908 = scmp.ne.s32.totalorder %s899, %s900
      %p909 = scmp.eq.s32.totalorder %s107, 0
      %p910 = por %p908, %p909
      %p911 = scmp.ne.s32.totalorder %s899, %s900
      %p912 = scmp.eq.s32.totalorder %s108, 1
      %p913 = por %p911, %p912
      %p915 = scmp.ne.s32.totalorder %s900, %s914
      %p916 = scmp.eq.s32.totalorder %s108, 0
      %p917 = por %p915, %p916
      %s919 = sadd.s32 %s918, 1
      %p922 = scmp.eq.s32.totalorder %s102, 1
      %p923 = scmp.ne.s32.totalorder %s918, %s920
      %p924 = scmp.eq.s32.totalorder %s102, 0
      %p925 = por %p923, %p924
      %p926 = scmp.ne.s32.totalorder %s918, %s920
      %p927 = scmp.eq.s32.totalorder %s107, 1
      %p928 = por %p926, %p927
      %p929 = scmp.ne.s32.totalorder %s920, %s921
      %p930 = scmp.eq.s32.totalorder %s107, 0
      %p931 = por %p929, %p930
      %p932 = scmp.ne.s32.totalorder %s920, %s921
      %p933 = scmp.eq.s32.totalorder %s108, 1
      %p934 = por %p932, %p933
      %p936 = scmp.ne.s32.totalorder %s921, %s935
      %p937 = scmp.eq.s32.totalorder %s108, 0
      %p938 = por %p936, %p937
      %s940 = sadd.s32 %s939, 1
      %p943 = scmp.eq.s32.totalorder %s102, 1
      %p944 = scmp.ne.s32.totalorder %s939, %s941
      %p945 = scmp.eq.s32.totalorder %s102, 0
      %p946 = por %p944, %p945
      %p947 = scmp.ne.s32.totalorder %s939, %s941
      %p948 = scmp.eq.s32.totalorder %s107, 1
      %p949 = por %p947, %p948
      %p950 = scmp.ne.s32.totalorder %s941, %s942
      %p951 = scmp.eq.s32.totalorder %s107, 0
      %p952 = por %p950, %p951
      %p953 = scmp.ne.s32.totalorder %s941, %s942
      %p954 = scmp.eq.s32.totalorder %s108, 1
      %p955 = por %p953, %p954
      %p957 = scmp.ne.s32.totalorder %s942, %s956
      %p958 = scmp.eq.s32.totalorder %s108, 0
      %p959 = por %p957, %p958
      %s961 = sadd.s32 %s960, 1
      %p964 = scmp.eq.s32.totalorder %s102, 1
      %p965 = scmp.ne.s32.totalorder %s960, %s962
      %p966 = scmp.eq.s32.totalorder %s102, 0
      %p967 = por %p965, %p966
      %p968 = scmp.ne.s32.totalorder %s960, %s962
      %p969 = scmp.eq.s32.totalorder %s107, 1
      %p970 = por %p968, %p969
      %p971 = scmp.ne.s32.totalorder %s962, %s963
      %p972 = scmp.eq.s32.totalorder %s107, 0
      %p973 = por %p971, %p972
      %p974 = scmp.ne.s32.totalorder %s962, %s963
      %p975 = scmp.eq.s32.totalorder %s108, 1
      %p976 = por %p974, %p975
      %p978 = scmp.ne.s32.totalorder %s963, %s977
      %p979 = scmp.eq.s32.totalorder %s108, 0
      %p980 = por %p978, %p979
      %s982 = sadd.s32 %s981, 1
      %p985 = scmp.eq.s32.totalorder %s102, 1
      %p986 = scmp.ne.s32.totalorder %s981, %s983
      %p987 = scmp.eq.s32.totalorder %s102, 0
      %p988 = por %p986, %p987
      %p989 = scmp.ne.s32.totalorder %s981, %s983
      %p990 = scmp.eq.s32.totalorder %s107, 1
      %p991 = por %p989, %p990
      %p992 = scmp.ne.s32.totalorder %s983, %s984
      %p993 = scmp.eq.s32.totalorder %s107, 0
      %p994 = por %p992, %p993
      %p995 = scmp.ne.s32.totalorder %s983, %s984
      %p996 = scmp.eq.s32.totalorder %s108, 1
      %p997 = por %p995, %p996
      %p999 = scmp.ne.s32.totalorder %s984, %s998
      %p1000 = scmp.eq.s32.totalorder %s108, 0
      %p1001 = por %p999, %p1000
      %s1002 = ssub.s32 %s102, %s109
      %p1003 = scmp.eq.s32.totalorder %s1002, 0
      %s1005 = sadd.s32 %s1004, 1
      %s1006 = scalar_select %p1003, %s1004, %s1005
      %p1009 = pneg %p1003
      %p1010 = scmp.eq.s32.totalorder %s102, 1
      %p1011 = por %p1009, %p1010
      %p1012 = scmp.ne.s32.totalorder %s1004, %s1007
      %p1013 = scmp.eq.s32.totalorder %s102, 0
      %p1014 = por %p1012, %p1013
      %p1015 = scmp.ne.s32.totalorder %s1004, %s1007
      %p1016 = scmp.eq.s32.totalorder %s107, 1
      %p1017 = por %p1015, %p1016
      %p1018 = scmp.ne.s32.totalorder %s1007, %s1008
      %p1019 = scmp.eq.s32.totalorder %s107, 0
      %p1020 = por %p1018, %p1019
      %p1021 = scmp.ne.s32.totalorder %s1007, %s1008
      %p1022 = scmp.eq.s32.totalorder %s108, 1
      %p1023 = por %p1021, %p1022
      %p1025 = scmp.ne.s32.totalorder %s1008, %s1024
      %p1026 = scmp.eq.s32.totalorder %s108, 0
      %p1027 = por %p1025, %p1026
      %p1028 = scmp.le.s32.totalorder 1, %s102
      %p1029 = scmp.lt.s32.totalorder %s102, 3
      %p1030 = pnand %p1028, %p1029
      %p1031 = pneg %p1030
      // Predicated region
      $region9: #{own_transformer_forward.1} parent=5 // pred_check
        _
      $region10: #{own_transformer_forward.1} parent=5 // pred_check_branch
        %1033 = sbr.rel (%p1030) target = $region12
      $region11: #{own_transformer_forward.1} parent=5 // pred_region
        %s1034 = ssub.s32 %s102, 1
        // Predicated region
        $region13: #{own_transformer_forward.1} parent=11 // pred_check
          %p1035 = pneg %p175
        $region14: #{own_transformer_forward.1} parent=11 // pred_check_branch
          %1037 = sbr.rel (%p1035) target = $region16
        $region15: #{own_transformer_forward.1} parent=11 // pred_region
          _
        $region16: #{own_transformer_forward.1} parent=11 // pred_fallthru
          _
        // Predicated region
        $region17: #{own_transformer_forward.1} parent=11 // pred_check
          %p1038 = pneg %p196
        $region18: #{own_transformer_forward.1} parent=11 // pred_check_branch
          %1040 = sbr.rel (%p1038) target = $region20
        $region19: #{own_transformer_forward.1} parent=11 // pred_region
          _
        $region20: #{own_transformer_forward.1} parent=11 // pred_fallthru
          _
        // Predicated region
        $region21: #{own_transformer_forward.1} parent=11 // pred_check
          %p1041 = pneg %p217
        $region22: #{own_transformer_forward.1} parent=11 // pred_check_branch
          %1043 = sbr.rel (%p1041) target = $region24
        $region23: #{own_transformer_forward.1} parent=11 // pred_region
          _
        $region24: #{own_transformer_forward.1} parent=11 // pred_fallthru
          _
        // Predicated region
        $region25: #{own_transformer_forward.1} parent=11 // pred_check
          %p1044 = pneg %p238
        $region26: #{own_transformer_forward.1} parent=11 // pred_check_branch
          %1046 = sbr.rel (%p1044) target = $region28
        $region27: #{own_transformer_forward.1} parent=11 // pred_region
          _
        $region28: #{own_transformer_forward.1} parent=11 // pred_fallthru
          _
        // Predicated region
        $region29: #{own_transformer_forward.1} parent=11 // pred_check
          %p1047 = pneg %p259
        $region30: #{own_transformer_forward.1} parent=11 // pred_check_branch
          %1049 = sbr.rel (%p1047) target = $region32
        $region31: #{own_transformer_forward.1} parent=11 // pred_region
          _
        $region32: #{own_transformer_forward.1} parent=11 // pred_fallthru
          _
        // Predicated region
        $region33: #{own_transformer_forward.1} parent=11 // pred_check
          %p1050 = pneg %p280
        $region34: #{own_transformer_forward.1} parent=11 // pred_check_branch
          %1052 = sbr.rel (%p1050) target = $region36
        $region35: #{own_transformer_forward.1} parent=11 // pred_region
          _
        $region36: #{own_transformer_forward.1} parent=11 // pred_fallthru
          _
        // Predicated region
        $region37: #{own_transformer_forward.1} parent=11 // pred_check
          %p1053 = pneg %p301
        $region38: #{own_transformer_forward.1} parent=11 // pred_check_branch
          %1055 = sbr.rel (%p1053) target = $region40
        $region39: #{own_transformer_forward.1} parent=11 // pred_region
          _
        $region40: #{own_transformer_forward.1} parent=11 // pred_fallthru
          _
        // Predicated region
        $region41: #{own_transformer_forward.1} parent=11 // pred_check
          %p1056 = pneg %p322
        $region42: #{own_transformer_forward.1} parent=11 // pred_check_branch
          %1058 = sbr.rel (%p1056) target = $region44
        $region43: #{own_transformer_forward.1} parent=11 // pred_region
          _
        $region44: #{own_transformer_forward.1} parent=11 // pred_fallthru
          _
        // Predicated region
        $region45: #{own_transformer_forward.1} parent=11 // pred_check
          %p1059 = pneg %p343
        $region46: #{own_transformer_forward.1} parent=11 // pred_check_branch
          %1061 = sbr.rel (%p1059) target = $region48
        $region47: #{own_transformer_forward.1} parent=11 // pred_region
          _
        $region48: #{own_transformer_forward.1} parent=11 // pred_fallthru
          _
        // Predicated region
        $region49: #{own_transformer_forward.1} parent=11 // pred_check
          %p1062 = pneg %p364
        $region50: #{own_transformer_forward.1} parent=11 // pred_check_branch
          %1064 = sbr.rel (%p1062) target = $region52
        $region51: #{own_transformer_forward.1} parent=11 // pred_region
          %s1066 = ssub.s32 32, 32
          %1067 = vsyncadd [#allocation4], %s1066
          %s1068 = sshll.u32 [#allocation3], 4
          %s1069 = int_to_ptr.vmem [resolvable:$true] %s1068
          %1074 = dma.hbm_to_vmem [thread:$0]  %s23, 32, %s1069, [#allocation4], 16, 16, 1
        $region52: #{own_transformer_forward.1} parent=11 // pred_fallthru
          _
        // Predicated region
        $region53: #{own_transformer_forward.1} parent=11 // pred_check
          %p1075 = pneg %p385
        $region54: #{own_transformer_forward.1} parent=11 // pred_check_branch
          %1077 = sbr.rel (%p1075) target = $region56
        $region55: #{own_transformer_forward.1} parent=11 // pred_region
          _
        $region56: #{own_transformer_forward.1} parent=11 // pred_fallthru
          _
        // Predicated region
        $region57: #{own_transformer_forward.1} parent=11 // pred_check
          %p1078 = pneg %p406
        $region58: #{own_transformer_forward.1} parent=11 // pred_check_branch
          %1080 = sbr.rel (%p1078) target = $region60
        $region59: #{own_transformer_forward.1} parent=11 // pred_region
          %s1082 = ssub.s32 32, 32
          %1083 = vsyncadd [#allocation6], %s1082
          %s1084 = sshll.u32 [#allocation5], 4
          %s1085 = int_to_ptr.vmem [resolvable:$true] %s1084
          %1090 = dma.hbm_to_vmem [thread:$0]  %s27, 32, %s1085, [#allocation6], 16, 16, 1
        $region60: #{own_transformer_forward.1} parent=11 // pred_fallthru
          _
        // Predicated region
        $region61: #{own_transformer_forward.1} parent=11 // pred_check
          %p1091 = pneg %p427
        $region62: #{own_transformer_forward.1} parent=11 // pred_check_branch
          %1093 = sbr.rel (%p1091) target = $region64
        $region63: #{own_transformer_forward.1} parent=11 // pred_region
          _
        $region64: #{own_transformer_forward.1} parent=11 // pred_fallthru
          _
        // Predicated region
        $region65: #{own_transformer_forward.1} parent=11 // pred_check
          %p1094 = pneg %p448
        $region66: #{own_transformer_forward.1} parent=11 // pred_check_branch
          %1096 = sbr.rel (%p1094) target = $region68
        $region67: #{own_transformer_forward.1} parent=11 // pred_region
          _
        $region68: #{own_transformer_forward.1} parent=11 // pred_fallthru
          _
        // Predicated region
        $region69: #{own_transformer_forward.1} parent=11 // pred_check
          %p1097 = pneg %p469
        $region70: #{own_transformer_forward.1} parent=11 // pred_check_branch
          %1099 = sbr.rel (%p1097) target = $region72
        $region71: #{own_transformer_forward.1} parent=11 // pred_region
          _
        $region72: #{own_transformer_forward.1} parent=11 // pred_fallthru
          _
        // Predicated region
        $region73: #{own_transformer_forward.1} parent=11 // pred_check
          %p1100 = pneg %p490
        $region74: #{own_transformer_forward.1} parent=11 // pred_check_branch
          %1102 = sbr.rel (%p1100) target = $region76
        $region75: #{own_transformer_forward.1} parent=11 // pred_region
          _
        $region76: #{own_transformer_forward.1} parent=11 // pred_fallthru
          _
        // Predicated region
        $region77: #{own_transformer_forward.1} parent=11 // pred_check
          %p1103 = pneg %p511
        $region78: #{own_transformer_forward.1} parent=11 // pred_check_branch
          %1105 = sbr.rel (%p1103) target = $region80
        $region79: #{own_transformer_forward.1} parent=11 // pred_region
          _
        $region80: #{own_transformer_forward.1} parent=11 // pred_fallthru
          _
        // Predicated region
        $region81: #{own_transformer_forward.1} parent=11 // pred_check
          %p1106 = pneg %p532
        $region82: #{own_transformer_forward.1} parent=11 // pred_check_branch
          %1108 = sbr.rel (%p1106) target = $region84
        $region83: #{own_transformer_forward.1} parent=11 // pred_region
          %s1110 = ssub.s32 32, 32
          %1111 = vsyncadd [#allocation6], %s1110
          %s1112 = sshll.u32 [#allocation7], 4
          %s1113 = int_to_ptr.vmem [resolvable:$true] %s1112
          %1118 = dma.hbm_to_vmem [thread:$0]  %s39, 32, %s1113, [#allocation6], 16, 16, 1
        $region84: #{own_transformer_forward.1} parent=11 // pred_fallthru
          _
        // Predicated region
        $region85: #{own_transformer_forward.1} parent=11 // pred_check
          %p1119 = pneg %p553
        $region86: #{own_transformer_forward.1} parent=11 // pred_check_branch
          %1121 = sbr.rel (%p1119) target = $region88
        $region87: #{own_transformer_forward.1} parent=11 // pred_region
          _
        $region88: #{own_transformer_forward.1} parent=11 // pred_fallthru
          _
        // Predicated region
        $region89: #{own_transformer_forward.1} parent=11 // pred_check
          %p1122 = pneg %p574
        $region90: #{own_transformer_forward.1} parent=11 // pred_check_branch
          %1124 = sbr.rel (%p1122) target = $region92
        $region91: #{own_transformer_forward.1} parent=11 // pred_region
          %s1126 = ssub.s32 32, 32
          %1127 = vsyncadd [#allocation9], %s1126
          %s1128 = sshll.u32 [#allocation8], 4
          %s1129 = int_to_ptr.vmem [resolvable:$true] %s1128
          %1134 = dma.hbm_to_vmem [thread:$0]  %s43, 32, %s1129, [#allocation9], 16, 16, 1
        $region92: #{own_transformer_forward.1} parent=11 // pred_fallthru
          _
        // Predicated region
        $region93: #{own_transformer_forward.1} parent=11 // pred_check
          %p1135 = pneg %p595
        $region94: #{own_transformer_forward.1} parent=11 // pred_check_branch
          %1137 = sbr.rel (%p1135) target = $region96
        $region95: #{own_transformer_forward.1} parent=11 // pred_region
          %s1139 = ssub.s32 32, 32
          %1140 = vsyncadd [#allocation9], %s1139
          %s1141 = sshll.u32 [#allocation10], 4
          %s1142 = int_to_ptr.vmem [resolvable:$true] %s1141
          %1147 = dma.hbm_to_vmem [thread:$0]  %s45, 32, %s1142, [#allocation9], 16, 16, 1
        $region96: #{own_transformer_forward.1} parent=11 // pred_fallthru
          _
        // Predicated region
        $region97: #{own_transformer_forward.1} parent=11 // pred_check
          %p1148 = pneg %p616
        $region98: #{own_transformer_forward.1} parent=11 // pred_check_branch
          %1150 = sbr.rel (%p1148) target = $region100
        $region99: #{own_transformer_forward.1} parent=11 // pred_region
          %s1152 = ssub.s32 32, 32
          %1153 = vsyncadd [#allocation12], %s1152
          %s1154 = sshll.u32 [#allocation11], 4
          %s1155 = int_to_ptr.vmem [resolvable:$true] %s1154
          %1160 = dma.hbm_to_vmem [thread:$0]  %s47, 32, %s1155, [#allocation12], 16, 16, 1
        $region100: #{own_transformer_forward.1} parent=11 // pred_fallthru
          _
        // Predicated region
        $region101: #{own_transformer_forward.1} parent=11 // pred_check
          %p1161 = pneg %p637
        $region102: #{own_transformer_forward.1} parent=11 // pred_check_branch
          %1163 = sbr.rel (%p1161) target = $region104
        $region103: #{own_transformer_forward.1} parent=11 // pred_region
          _
        $region104: #{own_transformer_forward.1} parent=11 // pred_fallthru
          _
        // Predicated region
        $region105: #{own_transformer_forward.1} parent=11 // pred_check
          %p1164 = pneg %p658
        $region106: #{own_transformer_forward.1} parent=11 // pred_check_branch
          %1166 = sbr.rel (%p1164) target = $region108
        $region107: #{own_transformer_forward.1} parent=11 // pred_region
          %s1168 = ssub.s32 32, 32
          %1169 = vsyncadd [#allocation12], %s1168
          %s1170 = sshll.u32 [#allocation13], 4
          %s1171 = int_to_ptr.vmem [resolvable:$true] %s1170
          %1176 = dma.hbm_to_vmem [thread:$0]  %s51, 32, %s1171, [#allocation12], 16, 16, 1
        $region108: #{own_transformer_forward.1} parent=11 // pred_fallthru
          _
        // Predicated region
        $region109: #{own_transformer_forward.1} parent=11 // pred_check
          %p1177 = pneg %p679
        $region110: #{own_transformer_forward.1} parent=11 // pred_check_branch
          %1179 = sbr.rel (%p1177) target = $region112
        $region111: #{own_transformer_forward.1} parent=11 // pred_region
          %s1181 = ssub.s32 1024, 1024
          %1182 = vsyncadd [#allocation15], %s1181
          %s1183 = sshll.u32 [#allocation14], 4
          %s1184 = int_to_ptr.vmem [resolvable:$true] %s1183
          %1189 = dma.hbm_to_vmem [thread:$0]  %s53, 1024, %s1184, [#allocation15], 128, 128, 8
        $region112: #{own_transformer_forward.1} parent=11 // pred_fallthru
          _
        // Predicated region
        $region113: #{own_transformer_forward.1} parent=11 // pred_check
          %p1190 = pneg %p700
        $region114: #{own_transformer_forward.1} parent=11 // pred_check_branch
          %1192 = sbr.rel (%p1190) target = $region116
        $region115: #{own_transformer_forward.1} parent=11 // pred_region
          %s1194 = ssub.s32 32, 32
          %1195 = vsyncadd [#allocation15], %s1194
          %s1196 = sshll.u32 [#allocation16], 4
          %s1197 = int_to_ptr.vmem [resolvable:$true] %s1196
          %1202 = dma.hbm_to_vmem [thread:$0]  %s55, 32, %s1197, [#allocation15], 16, 16, 1
        $region116: #{own_transformer_forward.1} parent=11 // pred_fallthru
          _
        // Predicated region
        $region117: #{own_transformer_forward.1} parent=11 // pred_check
          %p1203 = pneg %p721
        $region118: #{own_transformer_forward.1} parent=11 // pred_check_branch
          %1205 = sbr.rel (%p1203) target = $region120
        $region119: #{own_transformer_forward.1} parent=11 // pred_region
          %s1207 = ssub.s32 1024, 1024
          %1208 = vsyncadd [#allocation18], %s1207
          %s1209 = sshll.u32 [#allocation17], 4
          %s1210 = int_to_ptr.vmem [resolvable:$true] %s1209
          %1215 = dma.hbm_to_vmem [thread:$0]  %s57, 1024, %s1210, [#allocation18], 128, 128, 8
        $region120: #{own_transformer_forward.1} parent=11 // pred_fallthru
          _
        // Predicated region
        $region121: #{own_transformer_forward.1} parent=11 // pred_check
          %p1216 = pneg %p742
        $region122: #{own_transformer_forward.1} parent=11 // pred_check_branch
          %1218 = sbr.rel (%p1216) target = $region124
        $region123: #{own_transformer_forward.1} parent=11 // pred_region
          %s1220 = ssub.s32 32, 32
          %1221 = vsyncadd [#allocation18], %s1220
          %s1222 = sshll.u32 [#allocation19], 4
          %s1223 = int_to_ptr.vmem [resolvable:$true] %s1222
          %1228 = dma.hbm_to_vmem [thread:$0]  %s59, 32, %s1223, [#allocation18], 16, 16, 1
        $region124: #{own_transformer_forward.1} parent=11 // pred_fallthru
          _
        // Predicated region
        $region125: #{own_transformer_forward.1} parent=11 // pred_check
          %p1229 = pneg %p763
        $region126: #{own_transformer_forward.1} parent=11 // pred_check_branch
          %1231 = sbr.rel (%p1229) target = $region128
        $region127: #{own_transformer_forward.1} parent=11 // pred_region
          %s1233 = ssub.s32 32, 32
          %1234 = vsyncadd [#allocation21], %s1233
          %s1235 = sshll.u32 [#allocation20], 4
          %s1236 = int_to_ptr.vmem [resolvable:$true] %s1235
          %1241 = dma.hbm_to_vmem [thread:$0]  %s61, 32, %s1236, [#allocation21], 16, 16, 1
        $region128: #{own_transformer_forward.1} parent=11 // pred_fallthru
          _
        // Predicated region
        $region129: #{own_transformer_forward.1} parent=11 // pred_check
          %p1242 = pneg %p784
        $region130: #{own_transformer_forward.1} parent=11 // pred_check_branch
          %1244 = sbr.rel (%p1242) target = $region132
        $region131: #{own_transformer_forward.1} parent=11 // pred_region
          %s1246 = ssub.s32 32, 32
          %1247 = vsyncadd [#allocation21], %s1246
          %s1248 = sshll.u32 [#allocation22], 4
          %s1249 = int_to_ptr.vmem [resolvable:$true] %s1248
          %1254 = dma.hbm_to_vmem [thread:$0]  %s63, 32, %s1249, [#allocation21], 16, 16, 1
        $region132: #{own_transformer_forward.1} parent=11 // pred_fallthru
          _
        // Predicated region
        $region133: #{own_transformer_forward.1} parent=11 // pred_check
          %p1255 = pneg %p805
        $region134: #{own_transformer_forward.1} parent=11 // pred_check_branch
          %1257 = sbr.rel (%p1255) target = $region136
        $region135: #{own_transformer_forward.1} parent=11 // pred_region
          %s1259 = ssub.s32 1024, 1024
          %1260 = vsyncadd [#allocation24], %s1259
          %s1261 = sshll.u32 [#allocation23], 4
          %s1262 = int_to_ptr.vmem [resolvable:$true] %s1261
          %1267 = dma.hbm_to_vmem [thread:$0]  %s65, 1024, %s1262, [#allocation24], 128, 128, 8
        $region136: #{own_transformer_forward.1} parent=11 // pred_fallthru
          _
        // Predicated region
        $region137: #{own_transformer_forward.1} parent=11 // pred_check
          %p1268 = pneg %p826
        $region138: #{own_transformer_forward.1} parent=11 // pred_check_branch
          %1270 = sbr.rel (%p1268) target = $region140
        $region139: #{own_transformer_forward.1} parent=11 // pred_region
          %s1272 = ssub.s32 32, 32
          %1273 = vsyncadd [#allocation24], %s1272
          %s1274 = sshll.u32 [#allocation25], 4
          %s1275 = int_to_ptr.vmem [resolvable:$true] %s1274
          %1280 = dma.hbm_to_vmem [thread:$0]  %s67, 32, %s1275, [#allocation24], 16, 16, 1
        $region140: #{own_transformer_forward.1} parent=11 // pred_fallthru
          _
        // Predicated region
        $region141: #{own_transformer_forward.1} parent=11 // pred_check
          %p1281 = pneg %p847
        $region142: #{own_transformer_forward.1} parent=11 // pred_check_branch
          %1283 = sbr.rel (%p1281) target = $region144
        $region143: #{own_transformer_forward.1} parent=11 // pred_region
          _
        $region144: #{own_transformer_forward.1} parent=11 // pred_fallthru
          _
        // Predicated region
        $region145: #{own_transformer_forward.1} parent=11 // pred_check
          %p1284 = pneg %p868
        $region146: #{own_transformer_forward.1} parent=11 // pred_check_branch
          %1286 = sbr.rel (%p1284) target = $region148
        $region147: #{own_transformer_forward.1} parent=11 // pred_region
          %s1288 = ssub.s32 32, 32
          %1289 = vsyncadd [#allocation27], %s1288
          %s1290 = sshll.u32 [#allocation26], 4
          %s1291 = int_to_ptr.vmem [resolvable:$true] %s1290
          %1296 = dma.hbm_to_vmem [thread:$0]  %s71, 32, %s1291, [#allocation27], 16, 16, 1
        $region148: #{own_transformer_forward.1} parent=11 // pred_fallthru
          _
        // Predicated region
        $region149: #{own_transformer_forward.1} parent=11 // pred_check
          %p1297 = pneg %p889
        $region150: #{own_transformer_forward.1} parent=11 // pred_check_branch
          %1299 = sbr.rel (%p1297) target = $region152
        $region151: #{own_transformer_forward.1} parent=11 // pred_region
          %s1301 = ssub.s32 32, 32
          %1302 = vsyncadd [#allocation27], %s1301
          %s1303 = sshll.u32 [#allocation28], 4
          %s1304 = int_to_ptr.vmem [resolvable:$true] %s1303
          %1309 = dma.hbm_to_vmem [thread:$0]  %s73, 32, %s1304, [#allocation27], 16, 16, 1
        $region152: #{own_transformer_forward.1} parent=11 // pred_fallthru
          _
        // Predicated region
        $region153: #{own_transformer_forward.1} parent=11 // pred_check
          %p1310 = pneg %p910
        $region154: #{own_transformer_forward.1} parent=11 // pred_check_branch
          %1312 = sbr.rel (%p1310) target = $region156
        $region155: #{own_transformer_forward.1} parent=11 // pred_region
          %s1314 = ssub.s32 32, 32
          %1315 = vsyncadd [#allocation30], %s1314
          %s1316 = sshll.u32 [#allocation29], 4
          %s1317 = int_to_ptr.vmem [resolvable:$true] %s1316
          %1322 = dma.hbm_to_vmem [thread:$0]  %s75, 32, %s1317, [#allocation30], 16, 16, 1
        $region156: #{own_transformer_forward.1} parent=11 // pred_fallthru
          _
        // Predicated region
        $region157: #{own_transformer_forward.1} parent=11 // pred_check
          %p1323 = pneg %p931
        $region158: #{own_transformer_forward.1} parent=11 // pred_check_branch
          %1325 = sbr.rel (%p1323) target = $region160
        $region159: #{own_transformer_forward.1} parent=11 // pred_region
          %s1327 = ssub.s32 16, 16
          %1328 = vsyncadd [#allocation30], %s1327
          %s1330 = sshll.u32 [#allocation31], 4
          %s1331 = int_to_ptr.vmem [resolvable:$true] %s1330
          %1333 = dma.hbm_to_vmem [thread:$0]  %s77, 16, %s1331, [#allocation30]
        $region160: #{own_transformer_forward.1} parent=11 // pred_fallthru
          _
        // Predicated region
        $region161: #{own_transformer_forward.1} parent=11 // pred_check
          %p1334 = pneg %p952
        $region162: #{own_transformer_forward.1} parent=11 // pred_check_branch
          %1336 = sbr.rel (%p1334) target = $region164
        $region163: #{own_transformer_forward.1} parent=11 // pred_region
          %s1338 = ssub.s32 16, 16
          %1339 = vsyncadd [#allocation33], %s1338
          %s1341 = sshll.u32 [#allocation32], 4
          %s1342 = int_to_ptr.vmem [resolvable:$true] %s1341
          %1344 = dma.hbm_to_vmem [thread:$0]  %s79, 16, %s1342, [#allocation33]
        $region164: #{own_transformer_forward.1} parent=11 // pred_fallthru
          _
        // Predicated region
        $region165: #{own_transformer_forward.1} parent=11 // pred_check
          %p1345 = pneg %p973
        $region166: #{own_transformer_forward.1} parent=11 // pred_check_branch
          %1347 = sbr.rel (%p1345) target = $region168
        $region167: #{own_transformer_forward.1} parent=11 // pred_region
          _
        $region168: #{own_transformer_forward.1} parent=11 // pred_fallthru
          _
        // Predicated region
        $region169: #{own_transformer_forward.1} parent=11 // pred_check
          %p1348 = pneg %p994
        $region170: #{own_transformer_forward.1} parent=11 // pred_check_branch
          %1350 = sbr.rel (%p1348) target = $region172
        $region171: #{own_transformer_forward.1} parent=11 // pred_region
          _
        $region172: #{own_transformer_forward.1} parent=11 // pred_fallthru
          _
      $region12: #{own_transformer_forward.1} parent=5 // pred_fallthru
        _
      %p1351 = scmp.lt.s32.totalorder %s102, 2
      // Predicated region
      $region173: #{own_transformer_forward.1} parent=5 // pred_check
        %p1352 = pneg %p1351
      $region174: #{own_transformer_forward.1} parent=5 // pred_check_branch
        %1354 = sbr.rel (%p1352) target = $region176
      $region175: #{own_transformer_forward.1} parent=5 // pred_region
        // Predicated region
        $region177: #{own_transformer_forward.1} parent=175 // pred_check
          %p1355 = pneg %p122
        $region178: #{own_transformer_forward.1} parent=175 // pred_check_branch
          %1357 = sbr.rel (%p1355) target = $region180
        $region179: #{own_transformer_forward.1} parent=175 // pred_region
          %p1358 = scmp.lt.s32.totalorder %s102, 1
          %s1359 = scalar_select %p1358, %s102, 1
          %s1360 = smul.addr %s1359, 4
          %s1361 = scalar_lea.vmem %s1, %s1360
        $region180: #{own_transformer_forward.1} parent=175 // pred_fallthru
          _
        // Predicated region
        $region181: #{own_transformer_forward.1} parent=175 // pred_check
          %p1362 = pneg %p148
        $region182: #{own_transformer_forward.1} parent=175 // pred_check_branch
          %1364 = sbr.rel (%p1362) target = $region184
        $region183: #{own_transformer_forward.1} parent=175 // pred_region
          %p1365 = scmp.lt.s32.totalorder %s102, 1
          %s1366 = scalar_select %p1365, %s102, 1
          %s1367 = smul.addr %s1366, 4
          %s1368 = scalar_lea.vmem %s3, %s1367
        $region184: #{own_transformer_forward.1} parent=175 // pred_fallthru
          _
      $region176: #{own_transformer_forward.1} parent=5 // pred_fallthru
        _
      %p1369 = scmp.le.s32.totalorder 1, %s102
      %p1370 = scmp.lt.s32.totalorder %s102, 3
      %p1371 = pnand %p1369, %p1370
      %p1372 = pneg %p1371
      // Predicated region
      $region185: #{own_transformer_forward.1} parent=5 // pred_check
        _
      $region186: #{own_transformer_forward.1} parent=5 // pred_check_branch
        %1374 = sbr.rel (%p1371) target = $region188
      $region187: #{own_transformer_forward.1} parent=5 // pred_region
        %s1375 = ssub.s32 %s102, 1
        // Predicated region
        $region189: #{own_transformer_forward.1} parent=187 // pred_check
          %p1376 = pneg %p364
        $region190: #{own_transformer_forward.1} parent=187 // pred_check_branch
          %1378 = sbr.rel (%p1376) target = $region192
        $region191: #{own_transformer_forward.1} parent=187 // pred_region
          %1379 = dma.done [#allocation4], 32
        $region192: #{own_transformer_forward.1} parent=187 // pred_fallthru
          _
        // Predicated region
        $region193: #{own_transformer_forward.1} parent=187 // pred_check
          %p1380 = pneg %p406
        $region194: #{own_transformer_forward.1} parent=187 // pred_check_branch
          %1382 = sbr.rel (%p1380) target = $region196
        $region195: #{own_transformer_forward.1} parent=187 // pred_region
          %1383 = dma.done [#allocation6], 32
        $region196: #{own_transformer_forward.1} parent=187 // pred_fallthru
          _
        // Predicated region
        $region197: #{own_transformer_forward.1} parent=187 // pred_check
          %p1384 = pneg %p532
        $region198: #{own_transformer_forward.1} parent=187 // pred_check_branch
          %1386 = sbr.rel (%p1384) target = $region200
        $region199: #{own_transformer_forward.1} parent=187 // pred_region
          %1387 = dma.done [#allocation6], 32
        $region200: #{own_transformer_forward.1} parent=187 // pred_fallthru
          _
        // Predicated region
        $region201: #{own_transformer_forward.1} parent=187 // pred_check
          %p1388 = pneg %p574
        $region202: #{own_transformer_forward.1} parent=187 // pred_check_branch
          %1390 = sbr.rel (%p1388) target = $region204
        $region203: #{own_transformer_forward.1} parent=187 // pred_region
          %1391 = dma.done [#allocation9], 32
        $region204: #{own_transformer_forward.1} parent=187 // pred_fallthru
          _
        // Predicated region
        $region205: #{own_transformer_forward.1} parent=187 // pred_check
          %p1392 = pneg %p595
        $region206: #{own_transformer_forward.1} parent=187 // pred_check_branch
          %1394 = sbr.rel (%p1392) target = $region208
        $region207: #{own_transformer_forward.1} parent=187 // pred_region
          %1395 = dma.done [#allocation9], 32
        $region208: #{own_transformer_forward.1} parent=187 // pred_fallthru
          _
        // Predicated region
        $region209: #{own_transformer_forward.1} parent=187 // pred_check
          %p1396 = pneg %p616
        $region210: #{own_transformer_forward.1} parent=187 // pred_check_branch
          %1398 = sbr.rel (%p1396) target = $region212
        $region211: #{own_transformer_forward.1} parent=187 // pred_region
          %1399 = dma.done [#allocation12], 32
        $region212: #{own_transformer_forward.1} parent=187 // pred_fallthru
          _
        // Predicated region
        $region213: #{own_transformer_forward.1} parent=187 // pred_check
          %p1400 = pneg %p658
        $region214: #{own_transformer_forward.1} parent=187 // pred_check_branch
          %1402 = sbr.rel (%p1400) target = $region216
        $region215: #{own_transformer_forward.1} parent=187 // pred_region
          %1403 = dma.done [#allocation12], 32
        $region216: #{own_transformer_forward.1} parent=187 // pred_fallthru
          _
        // Predicated region
        $region217: #{own_transformer_forward.1} parent=187 // pred_check
          %p1404 = pneg %p679
        $region218: #{own_transformer_forward.1} parent=187 // pred_check_branch
          %1406 = sbr.rel (%p1404) target = $region220
        $region219: #{own_transformer_forward.1} parent=187 // pred_region
          %1407 = dma.done [#allocation15], 1024
        $region220: #{own_transformer_forward.1} parent=187 // pred_fallthru
          _
        // Predicated region
        $region221: #{own_transformer_forward.1} parent=187 // pred_check
          %p1408 = pneg %p700
        $region222: #{own_transformer_forward.1} parent=187 // pred_check_branch
          %1410 = sbr.rel (%p1408) target = $region224
        $region223: #{own_transformer_forward.1} parent=187 // pred_region
          %1411 = dma.done [#allocation15], 32
        $region224: #{own_transformer_forward.1} parent=187 // pred_fallthru
          _
        // Predicated region
        $region225: #{own_transformer_forward.1} parent=187 // pred_check
          %p1412 = pneg %p721
        $region226: #{own_transformer_forward.1} parent=187 // pred_check_branch
          %1414 = sbr.rel (%p1412) target = $region228
        $region227: #{own_transformer_forward.1} parent=187 // pred_region
          %1415 = dma.done [#allocation18], 1024
        $region228: #{own_transformer_forward.1} parent=187 // pred_fallthru
          _
        // Predicated region
        $region229: #{own_transformer_forward.1} parent=187 // pred_check
          %p1416 = pneg %p742
        $region230: #{own_transformer_forward.1} parent=187 // pred_check_branch
          %1418 = sbr.rel (%p1416) target = $region232
        $region231: #{own_transformer_forward.1} parent=187 // pred_region
          %1419 = dma.done [#allocation18], 32
        $region232: #{own_transformer_forward.1} parent=187 // pred_fallthru
          _
        // Predicated region
        $region233: #{own_transformer_forward.1} parent=187 // pred_check
          %p1420 = pneg %p763
        $region234: #{own_transformer_forward.1} parent=187 // pred_check_branch
          %1422 = sbr.rel (%p1420) target = $region236
        $region235: #{own_transformer_forward.1} parent=187 // pred_region
          %1423 = dma.done [#allocation21], 32
        $region236: #{own_transformer_forward.1} parent=187 // pred_fallthru
          _
        // Predicated region
        $region237: #{own_transformer_forward.1} parent=187 // pred_check
          %p1424 = pneg %p784
        $region238: #{own_transformer_forward.1} parent=187 // pred_check_branch
          %1426 = sbr.rel (%p1424) target = $region240
        $region239: #{own_transformer_forward.1} parent=187 // pred_region
          %1427 = dma.done [#allocation21], 32
        $region240: #{own_transformer_forward.1} parent=187 // pred_fallthru
          _
        // Predicated region
        $region241: #{own_transformer_forward.1} parent=187 // pred_check
          %p1428 = pneg %p805
        $region242: #{own_transformer_forward.1} parent=187 // pred_check_branch
          %1430 = sbr.rel (%p1428) target = $region244
        $region243: #{own_transformer_forward.1} parent=187 // pred_region
          %1431 = dma.done [#allocation24], 1024
        $region244: #{own_transformer_forward.1} parent=187 // pred_fallthru
          _
        // Predicated region
        $region245: #{own_transformer_forward.1} parent=187 // pred_check
          %p1432 = pneg %p826
        $region246: #{own_transformer_forward.1} parent=187 // pred_check_branch
          %1434 = sbr.rel (%p1432) target = $region248
        $region247: #{own_transformer_forward.1} parent=187 // pred_region
          %1435 = dma.done [#allocation24], 32
        $region248: #{own_transformer_forward.1} parent=187 // pred_fallthru
          _
        // Predicated region
        $region249: #{own_transformer_forward.1} parent=187 // pred_check
          %p1436 = pneg %p868
        $region250: #{own_transformer_forward.1} parent=187 // pred_check_branch
          %1438 = sbr.rel (%p1436) target = $region252
        $region251: #{own_transformer_forward.1} parent=187 // pred_region
          %1439 = dma.done [#allocation27], 32
        $region252: #{own_transformer_forward.1} parent=187 // pred_fallthru
          _
        // Predicated region
        $region253: #{own_transformer_forward.1} parent=187 // pred_check
          %p1440 = pneg %p889
        $region254: #{own_transformer_forward.1} parent=187 // pred_check_branch
          %1442 = sbr.rel (%p1440) target = $region256
        $region255: #{own_transformer_forward.1} parent=187 // pred_region
          %1443 = dma.done [#allocation27], 32
        $region256: #{own_transformer_forward.1} parent=187 // pred_fallthru
          _
        // Predicated region
        $region257: #{own_transformer_forward.1} parent=187 // pred_check
          %p1444 = pneg %p910
        $region258: #{own_transformer_forward.1} parent=187 // pred_check_branch
          %1446 = sbr.rel (%p1444) target = $region260
        $region259: #{own_transformer_forward.1} parent=187 // pred_region
          %1447 = dma.done [#allocation30], 32
        $region260: #{own_transformer_forward.1} parent=187 // pred_fallthru
          _
        // Predicated region
        $region261: #{own_transformer_forward.1} parent=187 // pred_check
          %p1448 = pneg %p931
        $region262: #{own_transformer_forward.1} parent=187 // pred_check_branch
          %1450 = sbr.rel (%p1448) target = $region264
        $region263: #{own_transformer_forward.1} parent=187 // pred_region
          %1451 = dma.done [#allocation30], 16
        $region264: #{own_transformer_forward.1} parent=187 // pred_fallthru
          _
        // Predicated region
        $region265: #{own_transformer_forward.1} parent=187 // pred_check
          %p1452 = pneg %p952
        $region266: #{own_transformer_forward.1} parent=187 // pred_check_branch
          %1454 = sbr.rel (%p1452) target = $region268
        $region267: #{own_transformer_forward.1} parent=187 // pred_region
          %1455 = dma.done [#allocation33], 16
        $region268: #{own_transformer_forward.1} parent=187 // pred_fallthru
          _
        %p1456 = scmp.lt.s32.totalorder %s107, 1
        %s1457 = scalar_select %p1456, %s107, 1
        %s1458 = smul.addr %s1457, 4
        %s1459 = scalar_lea.vmem %s1, %s1458
        %p1460 = pneg %p128
        %p1461 = pneg %p125
        %p1462 = scmp.lt.s32.totalorder %s107, 1
        %s1463 = scalar_select %p1462, %s107, 1
        %s1464 = smul.addr %s1463, 4
        %s1465 = scalar_lea.vmem %s3, %s1464
        %p1466 = pneg %p154
        %p1467 = pneg %p151
        %p1468 = pneg %p175
        %p1469 = pneg %p172
        %p1470 = pneg %p196
        %p1471 = pneg %p193
        %p1472 = pneg %p217
        %p1473 = pneg %p214
        %p1474 = pneg %p238
        %p1475 = pneg %p235
        %p1476 = pneg %p259
        %p1477 = pneg %p256
        %p1478 = pneg %p280
        %p1479 = pneg %p277
        %p1480 = pneg %p301
        %p1481 = pneg %p298
        %p1482 = pneg %p322
        %p1483 = pneg %p319
        %p1484 = pneg %p343
        %p1485 = pneg %p340
        %p1486 = pneg %p364
        %p1487 = pneg %p361
        %p1488 = pneg %p385
        %p1489 = pneg %p382
        %p1490 = pneg %p406
        %p1491 = pneg %p403
        %p1492 = pneg %p427
        %p1493 = pneg %p424
        %p1494 = pneg %p448
        %p1495 = pneg %p445
        %p1496 = pneg %p469
        %p1497 = pneg %p466
        %p1498 = pneg %p490
        %p1499 = pneg %p487
        %p1500 = pneg %p511
        %p1501 = pneg %p508
        %p1502 = pneg %p532
        %p1503 = pneg %p529
        %p1504 = pneg %p553
        %p1505 = pneg %p550
        %p1506 = pneg %p574
        %p1507 = pneg %p571
        %p1508 = pneg %p595
        %p1509 = pneg %p592
        %p1510 = pneg %p616
        %p1511 = pneg %p613
        %p1512 = pneg %p637
        %p1513 = pneg %p634
        %p1514 = pneg %p658
        %p1515 = pneg %p655
        %p1516 = pneg %p679
        %p1517 = pneg %p676
        %p1518 = pneg %p700
        %p1519 = pneg %p697
        %p1520 = pneg %p721
        %p1521 = pneg %p718
        %p1522 = pneg %p742
        %p1523 = pneg %p739
        %p1524 = pneg %p763
        %p1525 = pneg %p760
        %p1526 = pneg %p784
        %p1527 = pneg %p781
        %p1528 = pneg %p805
        %p1529 = pneg %p802
        %p1530 = pneg %p826
        %p1531 = pneg %p823
        %p1532 = pneg %p847
        %p1533 = pneg %p844
        %p1534 = pneg %p868
        %p1535 = pneg %p865
        %p1536 = pneg %p889
        %p1537 = pneg %p886
        %p1538 = pneg %p910
        %p1539 = pneg %p907
        %p1540 = pneg %p931
        %p1541 = pneg %p928
        %p1542 = pneg %p952
        %p1543 = pneg %p949
        %p1544 = pneg %p973
        %p1545 = pneg %p970
        %p1546 = pneg %p994
        %p1547 = pneg %p991
        %p1548 = pneg %p1020
        %p1549 = pneg %p1017
        %p1550 = scmp.lt.s32.totalorder %s107, 1
        %s1551 = scalar_select %p1550, %s107, 1
        %s1552 = smul.addr %s1551, 4
        %s1553 = scalar_lea.vmem %s85, %s1552
        %p1554 = scmp.lt.s32.totalorder %s107, 1
        %s1555 = scalar_select %p1554, %s107, 1
        %s1556 = smul.addr %s1555, 4
        %s1557 = scalar_lea.vmem %s1, %s1556
        %p1558 = scmp.lt.s32.totalorder %s107, 1
        %s1559 = scalar_select %p1558, %s107, 1
        %s1560 = smul.addr %s1559, 4
        %s1561 = scalar_lea.vmem %s3, %s1560
        %p1562 = scmp.lt.s32.totalorder %s107, 1
        %s1563 = scalar_select %p1562, %s107, 1
        %s1564 = smul.addr %s1563, 4
        %s1565 = scalar_lea.vmem %s85, %s1564
        %v1566 = vld [vmem:[%s1557] sm:$0xf]
        %v1567 = vld [vmem:[%s5] sm:$0xff]
        %v1568 = vld [vmem:[%s5 + $0x8] sm:$0xff]
        %v1569 = vld [vmem:[%s5 + $0x10] sm:$0xff]
        %v1570 = vld [vmem:[%s5 + $0x18] sm:$0x3f]
        %v1571 = vld [vmem:[%s7] sm:$0x1]
        %v1573 = vlaneseq
        %v1574 = vshrl.u32 %v1573, 7
        %v1575 = vsub.s32 0, %v1574
        %v1576 = vrot.slane %v1571, %v1575
        %vm1578 = vcmask 244736
        %v1580 = vsel %vm1578, %v1566, 0
        %vm1582 = vcmask 1045504
        %v1584 = vsel %vm1582, %v1570, 0
        %1586 = vmatprep.subr.mxu0 0.0
        %1587 = vmatpush1.msra.mxu0 %v1567
        %1588 = vmatprep.subr.mxu0 0.0
        %1589 = vmatpush1.msra.mxu0 %v1568
        %1590 = vmatprep.subr.mxu0 0.0
        %1591 = vmatpush1.msra.mxu0 %v1569
        %1592 = vmatprep.subr.mxu0 0.0
        %1593 = vmatpush1.msra.mxu0 %v1584
        %1594 = vmatprep.subr.mxu0 0.0
        %1595 = vmatpush1.msra.mxu0 0.0
        %1596 = vmatprep.subr.mxu0 0.0
        %1597 = vmatpush1.msra.mxu0 0.0
        %1598 = vmatprep.subr.mxu0 0.0
        %1599 = vmatpush1.msra.mxu0 0.0
        %1600 = vmatprep.subr.mxu0 0.0
        %1601 = vmatpush1.msra.mxu0 0.0
        %1602 = vmatprep.subr.mxu0 0.0
        %1603 = vmatpush1.msra.mxu0 0.0
        %1604 = vmatprep.subr.mxu0 0.0
        %1605 = vmatpush1.msra.mxu0 0.0
        %1606 = vmatprep.subr.mxu0 0.0
        %1607 = vmatpush1.msra.mxu0 0.0
        %1608 = vmatprep.subr.mxu0 0.0
        %1609 = vmatpush1.msra.mxu0 0.0
        %1610 = vmatprep.subr.mxu0 0.0
        %1611 = vmatpush1.msra.mxu0 0.0
        %1612 = vmatprep.subr.mxu0 0.0
        %1613 = vmatpush1.msra.mxu0 0.0
        %1614 = vmatprep.subr.mxu0 0.0
        %1615 = vmatpush1.msra.mxu0 0.0
        %1616 = vmatprep.subr.mxu0 0.0
        %1617 = vmatpush1.msra.mxu0 0.0
        %1618 = vmatprep.subr.mxu0 0.0
        %1619 = vmatpush1.msra.mxu0 0.0
        %1620 = vmatprep.subr.mxu0 0.0
        %1621 = vmatpush1.msra.mxu0 0.0
        %1622 = vmatprep.subr.mxu0 0.0
        %1623 = vmatpush1.msra.mxu0 0.0
        %1624 = vmatprep.subr.mxu0 0.0
        %1625 = vmatpush1.msra.mxu0 0.0
        %1626 = vmatprep.subr.mxu0 0.0
        %1627 = vmatpush1.msra.mxu0 0.0
        %1628 = vmatprep.subr.mxu0 0.0
        %1629 = vmatpush1.msra.mxu0 0.0
        %1630 = vmatprep.subr.mxu0 0.0
        %1631 = vmatpush1.msra.mxu0 0.0
        %1632 = vmatprep.subr.mxu0 0.0
        %1633 = vmatpush1.msra.mxu0 0.0
        %1634 = vmatprep.subr.mxu0 0.0
        %1635 = vmatpush1.msra.mxu0 0.0
        %1636 = vmatprep.subr.mxu0 0.0
        %1637 = vmatpush1.msra.mxu0 0.0
        %1638 = vmatprep.subr.mxu0 0.0
        %1639 = vmatpush1.msra.mxu0 0.0
        %1640 = vmatprep.subr.mxu0 0.0
        %1641 = vmatpush1.msra.mxu0 0.0
        %1642 = vmatprep.subr.mxu0 0.0
        %1643 = vmatpush1.msra.mxu0 0.0
        %1644 = vmatprep.subr.mxu0 0.0
        %1645 = vmatpush1.msra.mxu0 0.0
        %1646 = vmatprep.subr.mxu0 0.0
        %1647 = vmatpush1.msra.mxu0 0.0
        %1648 = vmatprep.subr.mxu0 0.0
        %1649 = vmatpush1.msra.mxu0 0.0
        %1650 = vmatprep.mubr.f32.mxu0 0.0
        %1651 = vmatmul.mubr.f32.gmra.mrb[0].mxu0 %v1580
        %v1652 = vpop.f32.mrb[0].mxu0
        %v1653 = vadd.f32 %v1576, %v1652
        %v1654 = vpop.f32.mrb[0].mxu0
        %1655 = vdwg.mxu0
        %v1656 = vld [vmem:[%s9] sm:$0xff]
        %v1657 = vld [vmem:[%s9 + $0x8] sm:$0xff]
        %v1658 = vld [vmem:[%s9 + $0x10] sm:$0xff]
        %v1659 = vld [vmem:[%s9 + $0x18] sm:$0xff]
        %v1660 = vld [vmem:[%s11] sm:$0x1]
        %v1661 = vld [vmem:[%s13] sm:$0xff]
        %v1662 = vld [vmem:[%s13 + $0x8] sm:$0xff]
        %v1663 = vld [vmem:[%s13 + $0x10] sm:$0xff]
        %v1664 = vld [vmem:[%s13 + $0x18] sm:$0xff]
        %v1665 = vld [vmem:[%s15] sm:$0x1]
        %v1666 = vld [vmem:[%s17] sm:$0x1]
        %v1667 = vld [vmem:[%s19] sm:$0x1]
        %v1668 = vld [vmem:[%s21] sm:$0xff]
        %v1669 = vld [vmem:[%s21 + $0x8] sm:$0xff]
        %v1670 = vld [vmem:[%s21 + $0x10] sm:$0xff]
        %v1671 = vld [vmem:[%s21 + $0x18] sm:$0xff]
        %v1672 = vld [vmem:[#allocation3] sm:$0x1]
        %v1673 = vld [vmem:[%s25] sm:$0xff]
        %v1674 = vld [vmem:[%s25 + $0x8] sm:$0xff]
        %v1675 = vld [vmem:[%s25 + $0x10] sm:$0xff]
        %v1676 = vld [vmem:[%s25 + $0x18] sm:$0xff]
        %v1677 = vld [vmem:[%s25 + $0x20] sm:$0xff]
        %v1678 = vld [vmem:[%s25 + $0x28] sm:$0xff]
        %v1679 = vld [vmem:[%s25 + $0x30] sm:$0xff]
        %v1680 = vld [vmem:[%s25 + $0x38] sm:$0xff]
        %v1681 = vld [vmem:[#allocation5] sm:$0x1]
        %v1682 = vld [vmem:[%s29] sm:$0x1]
        %v1683 = vld [vmem:[%s31] sm:$0x1]
        %v1685 = vlaneseq
        %v1686 = vshrl.u32 %v1685, 7
        %v1687 = vsub.s32 0, %v1686
        %v1688 = vrot.slane %v1660, %v1687
        %vm1690 = vcmask 261120
        %v1692 = vsel %vm1690, %v1653, 0
        %1694 = vmatprep.subr.mxu0 0.0
        %1695 = vmatpush1.msra.mxu0 %v1656
        %1696 = vmatprep.subr.mxu0 0.0
        %1697 = vmatpush1.msra.mxu0 %v1657
        %1698 = vmatprep.subr.mxu0 0.0
        %1699 = vmatpush1.msra.mxu0 %v1658
        %1700 = vmatprep.subr.mxu0 0.0
        %1701 = vmatpush1.msra.mxu0 %v1659
        %1702 = vmatprep.subr.mxu0 0.0
        %1703 = vmatpush1.msra.mxu0 0.0
        %1704 = vmatprep.subr.mxu0 0.0
        %1705 = vmatpush1.msra.mxu0 0.0
        %1706 = vmatprep.subr.mxu0 0.0
        %1707 = vmatpush1.msra.mxu0 0.0
        %1708 = vmatprep.subr.mxu0 0.0
        %1709 = vmatpush1.msra.mxu0 0.0
        %1710 = vmatprep.subr.mxu0 0.0
        %1711 = vmatpush1.msra.mxu0 0.0
        %1712 = vmatprep.subr.mxu0 0.0
        %1713 = vmatpush1.msra.mxu0 0.0
        %1714 = vmatprep.subr.mxu0 0.0
        %1715 = vmatpush1.msra.mxu0 0.0
        %1716 = vmatprep.subr.mxu0 0.0
        %1717 = vmatpush1.msra.mxu0 0.0
        %1718 = vmatprep.subr.mxu0 0.0
        %1719 = vmatpush1.msra.mxu0 0.0
        %1720 = vmatprep.subr.mxu0 0.0
        %1721 = vmatpush1.msra.mxu0 0.0
        %1722 = vmatprep.subr.mxu0 0.0
        %1723 = vmatpush1.msra.mxu0 0.0
        %1724 = vmatprep.subr.mxu0 0.0
        %1725 = vmatpush1.msra.mxu0 0.0
        %1726 = vmatprep.subr.mxu0 0.0
        %1727 = vmatpush1.msra.mxu0 0.0
        %1728 = vmatprep.subr.mxu0 0.0
        %1729 = vmatpush1.msra.mxu0 0.0
        %1730 = vmatprep.subr.mxu0 0.0
        %1731 = vmatpush1.msra.mxu0 0.0
        %1732 = vmatprep.subr.mxu0 0.0
        %1733 = vmatpush1.msra.mxu0 0.0
        %1734 = vmatprep.subr.mxu0 0.0
        %1735 = vmatpush1.msra.mxu0 0.0
        %1736 = vmatprep.subr.mxu0 0.0
        %1737 = vmatpush1.msra.mxu0 0.0
        %1738 = vmatprep.subr.mxu0 0.0
        %1739 = vmatpush1.msra.mxu0 0.0
        %1740 = vmatprep.subr.mxu0 0.0
        %1741 = vmatpush1.msra.mxu0 0.0
        %1742 = vmatprep.subr.mxu0 0.0
        %1743 = vmatpush1.msra.mxu0 0.0
        %1744 = vmatprep.subr.mxu0 0.0
        %1745 = vmatpush1.msra.mxu0 0.0
        %1746 = vmatprep.subr.mxu0 0.0
        %1747 = vmatpush1.msra.mxu0 0.0
        %1748 = vmatprep.subr.mxu0 0.0
        %1749 = vmatpush1.msra.mxu0 0.0
        %1750 = vmatprep.subr.mxu0 0.0
        %1751 = vmatpush1.msra.mxu0 0.0
        %1752 = vmatprep.subr.mxu0 0.0
        %1753 = vmatpush1.msra.mxu0 0.0
        %1754 = vmatprep.subr.mxu0 0.0
        %1755 = vmatpush1.msra.mxu0 0.0
        %1756 = vmatprep.subr.mxu0 0.0
        %1757 = vmatpush1.msra.mxu0 0.0
        %1758 = vmatprep.mubr.f32.mxu0 0.0
        %1759 = vmatmul.mubr.f32.gmra.mrb[0].mxu0 %v1692
        %v1760 = vpop.f32.mrb[0].mxu0
        %v1761 = vadd.f32 %v1688, %v1760
        %v1762 = vpop.f32.mrb[0].mxu0
        %1763 = vdwg.mxu0
        %1765 = vrot.lane.b32.xlu0 %v1761, 96
        %v1766 = vpop.permute.xlu0 %1765
        %vm1767 = vcmask 64512
        %v1768 = vsel %vm1767, %v1761, 0
        %v1770 = vsel %vm1767, %v1766, 0
        %1772 = vmatprep.subr.mxu0 0.0
        %1773 = vmatpush1.xpose.msra.mxu0 %v1770
        %1774 = vmatprep.subr.mxu0 0.0
        %1775 = vmatpush1.xpose.msra.mxu0 0.0
        %1776 = vmatprep.subr.mxu0 0.0
        %1777 = vmatpush1.xpose.msra.mxu0 0.0
        %1778 = vmatprep.subr.mxu0 0.0
        %1779 = vmatpush1.xpose.msra.mxu0 0.0
        %1780 = vmatprep.subr.mxu0 0.0
        %1781 = vmatpush1.xpose.msra.mxu0 0.0
        %1782 = vmatprep.subr.mxu0 0.0
        %1783 = vmatpush1.xpose.msra.mxu0 0.0
        %1784 = vmatprep.subr.mxu0 0.0
        %1785 = vmatpush1.xpose.msra.mxu0 0.0
        %1786 = vmatprep.subr.mxu0 0.0
        %1787 = vmatpush1.xpose.msra.mxu0 0.0
        %1788 = vmatprep.subr.mxu0 0.0
        %1789 = vmatpush1.xpose.msra.mxu0 0.0
        %1790 = vmatprep.subr.mxu0 0.0
        %1791 = vmatpush1.xpose.msra.mxu0 0.0
        %1792 = vmatprep.subr.mxu0 0.0
        %1793 = vmatpush1.xpose.msra.mxu0 0.0
        %1794 = vmatprep.subr.mxu0 0.0
        %1795 = vmatpush1.xpose.msra.mxu0 0.0
        %1796 = vmatprep.subr.mxu0 0.0
        %1797 = vmatpush1.xpose.msra.mxu0 0.0
        %1798 = vmatprep.subr.mxu0 0.0
        %1799 = vmatpush1.xpose.msra.mxu0 0.0
        %1800 = vmatprep.subr.mxu0 0.0
        %1801 = vmatpush1.xpose.msra.mxu0 0.0
        %1802 = vmatprep.subr.mxu0 0.0
        %1803 = vmatpush1.xpose.msra.mxu0 0.0
        %1804 = vmatprep.subr.mxu0 0.0
        %1805 = vmatpush1.xpose.msra.mxu0 0.0
        %1806 = vmatprep.subr.mxu0 0.0
        %1807 = vmatpush1.xpose.msra.mxu0 0.0
        %1808 = vmatprep.subr.mxu0 0.0
        %1809 = vmatpush1.xpose.msra.mxu0 0.0
        %1810 = vmatprep.subr.mxu0 0.0
        %1811 = vmatpush1.xpose.msra.mxu0 0.0
        %1812 = vmatprep.subr.mxu0 0.0
        %1813 = vmatpush1.xpose.msra.mxu0 0.0
        %1814 = vmatprep.subr.mxu0 0.0
        %1815 = vmatpush1.xpose.msra.mxu0 0.0
        %1816 = vmatprep.subr.mxu0 0.0
        %1817 = vmatpush1.xpose.msra.mxu0 0.0
        %1818 = vmatprep.subr.mxu0 0.0
        %1819 = vmatpush1.xpose.msra.mxu0 0.0
        %1820 = vmatprep.subr.mxu0 0.0
        %1821 = vmatpush1.xpose.msra.mxu0 0.0
        %1822 = vmatprep.subr.mxu0 0.0
        %1823 = vmatpush1.xpose.msra.mxu0 0.0
        %1824 = vmatprep.subr.mxu0 0.0
        %1825 = vmatpush1.xpose.msra.mxu0 0.0
        %1826 = vmatprep.subr.mxu0 0.0
        %1827 = vmatpush1.xpose.msra.mxu0 0.0
        %1828 = vmatprep.subr.mxu0 0.0
        %1829 = vmatpush1.xpose.msra.mxu0 0.0
        %1830 = vmatprep.subr.mxu0 0.0
        %1831 = vmatpush1.xpose.msra.mxu0 0.0
        %1832 = vmatprep.subr.mxu0 0.0
        %1833 = vmatpush1.xpose.msra.mxu0 0.0
        %1834 = vmatprep.subr.mxu0 0.0
        %1835 = vmatpush1.xpose.msra.mxu0 0.0
        %1836 = vmatprep.mubr.f32.mxu0 0.0
        %1837 = vmatmul.mubr.f32.gmra.mrb[0].mxu0 %v1768
        %v1838 = vpop.f32.mrb[0].mxu0
        %v1839 = vadd.f32 0.0, %v1838
        %v1840 = vpop.f32.mrb[0].mxu0
        %1841 = vdwg.mxu0
        %v1842 = vmul.f32 %v1839, 0.35355338
        %vm1843 = vcmask 27648
        %v1844 = vsel %vm1843, %v1842, -inf
        %1845 = vmax.xlane.f32.xlu0 %v1844
        %v1846 = vpop.xlane.xlu0 %1845
        %v1847 = vsub.f32 %v1842, %v1846
        %v1848 = vmul.f32 %v1847, 1.442695
        %v1849 = vpow.pop %v1848
        %v1850 = vsel %vm1843, %v1849, 0.0
        %1851 = vadd.xlane.f32.xlu0 %v1850
        %v1852 = vpop.xlane.xlu0 %1851
        %v1853 = vrcp.pop %v1852
        %v1854 = vmul.f32 %v1849, %v1853
        %1855 = vrot.lane.b32.xlu0 %v1761, 64
        %v1856 = vpop.permute.xlu0 %1855
        %vm1857 = vcmask 31744
        %v1859 = vsel %vm1857, %v1854, 0
        %vm1861 = vcmask 1043456
        %v1862 = vsel %vm1861, %v1856, 0
        %1864 = vmatprep.subr.mxu0 0.0
        %1865 = vmatpush1.msra.mxu0 %v1862
        %1866 = vmatprep.subr.mxu0 0.0
        %1867 = vmatpush1.msra.mxu0 0.0
        %1868 = vmatprep.subr.mxu0 0.0
        %1869 = vmatpush1.msra.mxu0 0.0
        %1870 = vmatprep.subr.mxu0 0.0
        %1871 = vmatpush1.msra.mxu0 0.0
        %1872 = vmatprep.subr.mxu0 0.0
        %1873 = vmatpush1.msra.mxu0 0.0
        %1874 = vmatprep.subr.mxu0 0.0
        %1875 = vmatpush1.msra.mxu0 0.0
        %1876 = vmatprep.subr.mxu0 0.0
        %1877 = vmatpush1.msra.mxu0 0.0
        %1878 = vmatprep.subr.mxu0 0.0
        %1879 = vmatpush1.msra.mxu0 0.0
        %1880 = vmatprep.subr.mxu0 0.0
        %1881 = vmatpush1.msra.mxu0 0.0
        %1882 = vmatprep.subr.mxu0 0.0
        %1883 = vmatpush1.msra.mxu0 0.0
        %1884 = vmatprep.subr.mxu0 0.0
        %1885 = vmatpush1.msra.mxu0 0.0
        %1886 = vmatprep.subr.mxu0 0.0
        %1887 = vmatpush1.msra.mxu0 0.0
        %1888 = vmatprep.subr.mxu0 0.0
        %1889 = vmatpush1.msra.mxu0 0.0
        %1890 = vmatprep.subr.mxu0 0.0
        %1891 = vmatpush1.msra.mxu0 0.0
        %1892 = vmatprep.subr.mxu0 0.0
        %1893 = vmatpush1.msra.mxu0 0.0
        %1894 = vmatprep.subr.mxu0 0.0
        %1895 = vmatpush1.msra.mxu0 0.0
        %1896 = vmatprep.subr.mxu0 0.0
        %1897 = vmatpush1.msra.mxu0 0.0
        %1898 = vmatprep.subr.mxu0 0.0
        %1899 = vmatpush1.msra.mxu0 0.0
        %1900 = vmatprep.subr.mxu0 0.0
        %1901 = vmatpush1.msra.mxu0 0.0
        %1902 = vmatprep.subr.mxu0 0.0
        %1903 = vmatpush1.msra.mxu0 0.0
        %1904 = vmatprep.subr.mxu0 0.0
        %1905 = vmatpush1.msra.mxu0 0.0
        %1906 = vmatprep.subr.mxu0 0.0
        %1907 = vmatpush1.msra.mxu0 0.0
        %1908 = vmatprep.subr.mxu0 0.0
        %1909 = vmatpush1.msra.mxu0 0.0
        %1910 = vmatprep.subr.mxu0 0.0
        %1911 = vmatpush1.msra.mxu0 0.0
        %1912 = vmatprep.subr.mxu0 0.0
        %1913 = vmatpush1.msra.mxu0 0.0
        %1914 = vmatprep.subr.mxu0 0.0
        %1915 = vmatpush1.msra.mxu0 0.0
        %1916 = vmatprep.subr.mxu0 0.0
        %1917 = vmatpush1.msra.mxu0 0.0
        %1918 = vmatprep.subr.mxu0 0.0
        %1919 = vmatpush1.msra.mxu0 0.0
        %1920 = vmatprep.subr.mxu0 0.0
        %1921 = vmatpush1.msra.mxu0 0.0
        %1922 = vmatprep.subr.mxu0 0.0
        %1923 = vmatpush1.msra.mxu0 0.0
        %1924 = vmatprep.subr.mxu0 0.0
        %1925 = vmatpush1.msra.mxu0 0.0
        %1926 = vmatprep.subr.mxu0 0.0
        %1927 = vmatpush1.msra.mxu0 0.0
        %1928 = vmatprep.mubr.f32.mxu0 0.0
        %1929 = vmatmul.mubr.f32.gmra.mrb[0].mxu0 %v1859
        %v1930 = vpop.f32.mrb[0].mxu0
        %v1931 = vadd.f32 0.0, %v1930
        %v1932 = vpop.f32.mrb[0].mxu0
        %1933 = vdwg.mxu0
        %vm1934 = vcmask 60416
        %1935 = vst.msk [vmem:[#allocation2] sm:$0xf] %vm1934, %v1931
        %1936 = vrot.lane.b32.xlu0 %v1761, 120
        %v1937 = vpop.permute.xlu0 %1936
        %1938 = vrot.lane.b32.xlu0 %v1761, 88
        %v1939 = vpop.permute.xlu0 %1938
        %v1940 = vsel %vm1767, %v1937, 0
        %v1942 = vsel %vm1767, %v1939, 0
        %1944 = vmatprep.subr.mxu0 0.0
        %1945 = vmatpush1.xpose.msra.mxu0 %v1942
        %1946 = vmatprep.subr.mxu0 0.0
        %1947 = vmatpush1.xpose.msra.mxu0 0.0
        %1948 = vmatprep.subr.mxu0 0.0
        %1949 = vmatpush1.xpose.msra.mxu0 0.0
        %1950 = vmatprep.subr.mxu0 0.0
        %1951 = vmatpush1.xpose.msra.mxu0 0.0
        %1952 = vmatprep.subr.mxu0 0.0
        %1953 = vmatpush1.xpose.msra.mxu0 0.0
        %1954 = vmatprep.subr.mxu0 0.0
        %1955 = vmatpush1.xpose.msra.mxu0 0.0
        %1956 = vmatprep.subr.mxu0 0.0
        %1957 = vmatpush1.xpose.msra.mxu0 0.0
        %1958 = vmatprep.subr.mxu0 0.0
        %1959 = vmatpush1.xpose.msra.mxu0 0.0
        %1960 = vmatprep.subr.mxu0 0.0
        %1961 = vmatpush1.xpose.msra.mxu0 0.0
        %1962 = vmatprep.subr.mxu0 0.0
        %1963 = vmatpush1.xpose.msra.mxu0 0.0
        %1964 = vmatprep.subr.mxu0 0.0
        %1965 = vmatpush1.xpose.msra.mxu0 0.0
        %1966 = vmatprep.subr.mxu0 0.0
        %1967 = vmatpush1.xpose.msra.mxu0 0.0
        %1968 = vmatprep.subr.mxu0 0.0
        %1969 = vmatpush1.xpose.msra.mxu0 0.0
        %1970 = vmatprep.subr.mxu0 0.0
        %1971 = vmatpush1.xpose.msra.mxu0 0.0
        %1972 = vmatprep.subr.mxu0 0.0
        %1973 = vmatpush1.xpose.msra.mxu0 0.0
        %1974 = vmatprep.subr.mxu0 0.0
        %1975 = vmatpush1.xpose.msra.mxu0 0.0
        %1976 = vmatprep.subr.mxu0 0.0
        %1977 = vmatpush1.xpose.msra.mxu0 0.0
        %1978 = vmatprep.subr.mxu0 0.0
        %1979 = vmatpush1.xpose.msra.mxu0 0.0
        %1980 = vmatprep.subr.mxu0 0.0
        %1981 = vmatpush1.xpose.msra.mxu0 0.0
        %1982 = vmatprep.subr.mxu0 0.0
        %1983 = vmatpush1.xpose.msra.mxu0 0.0
        %1984 = vmatprep.subr.mxu0 0.0
        %1985 = vmatpush1.xpose.msra.mxu0 0.0
        %1986 = vmatprep.subr.mxu0 0.0
        %1987 = vmatpush1.xpose.msra.mxu0 0.0
        %1988 = vmatprep.subr.mxu0 0.0
        %1989 = vmatpush1.xpose.msra.mxu0 0.0
        %1990 = vmatprep.subr.mxu0 0.0
        %1991 = vmatpush1.xpose.msra.mxu0 0.0
        %1992 = vmatprep.subr.mxu0 0.0
        %1993 = vmatpush1.xpose.msra.mxu0 0.0
        %1994 = vmatprep.subr.mxu0 0.0
        %1995 = vmatpush1.xpose.msra.mxu0 0.0
        %1996 = vmatprep.subr.mxu0 0.0
        %1997 = vmatpush1.xpose.msra.mxu0 0.0
        %1998 = vmatprep.subr.mxu0 0.0
        %1999 = vmatpush1.xpose.msra.mxu0 0.0
        %2000 = vmatprep.subr.mxu0 0.0
        %2001 = vmatpush1.xpose.msra.mxu0 0.0
        %2002 = vmatprep.subr.mxu0 0.0
        %2003 = vmatpush1.xpose.msra.mxu0 0.0
        %2004 = vmatprep.subr.mxu0 0.0
        %2005 = vmatpush1.xpose.msra.mxu0 0.0
        %2006 = vmatprep.subr.mxu0 0.0
        %2007 = vmatpush1.xpose.msra.mxu0 0.0
        %2008 = vmatprep.mubr.f32.mxu0 0.0
        %2009 = vmatmul.mubr.f32.gmra.mrb[0].mxu0 %v1940
        %v2010 = vpop.f32.mrb[0].mxu0
        %v2011 = vadd.f32 0.0, %v2010
        %v2012 = vpop.f32.mrb[0].mxu0
        %2013 = vdwg.mxu0
        %v2014 = vmul.f32 %v2011, 0.35355338
        %v2015 = vsel %vm1843, %v2014, -inf
        %2016 = vmax.xlane.f32.xlu0 %v2015
        %v2017 = vpop.xlane.xlu0 %2016
        %v2018 = vsub.f32 %v2014, %v2017
        %v2019 = vmul.f32 %v2018, 1.442695
        %v2020 = vpow.pop %v2019
        %v2021 = vsel %vm1843, %v2020, 0.0
        %2022 = vadd.xlane.f32.xlu0 %v2021
        %v2023 = vpop.xlane.xlu0 %2022
        %v2024 = vrcp.pop %v2023
        %v2025 = vmul.f32 %v2020, %v2024
        %2026 = vrot.lane.b32.xlu0 %v1761, 56
        %v2027 = vpop.permute.xlu0 %2026
        %v2029 = vsel %vm1857, %v2025, 0
        %v2031 = vsel %vm1861, %v2027, 0
        %2033 = vmatprep.subr.mxu0 0.0
        %2034 = vmatpush1.msra.mxu0 %v2031
        %2035 = vmatprep.subr.mxu0 0.0
        %2036 = vmatpush1.msra.mxu0 0.0
        %2037 = vmatprep.subr.mxu0 0.0
        %2038 = vmatpush1.msra.mxu0 0.0
        %2039 = vmatprep.subr.mxu0 0.0
        %2040 = vmatpush1.msra.mxu0 0.0
        %2041 = vmatprep.subr.mxu0 0.0
        %2042 = vmatpush1.msra.mxu0 0.0
        %2043 = vmatprep.subr.mxu0 0.0
        %2044 = vmatpush1.msra.mxu0 0.0
        %2045 = vmatprep.subr.mxu0 0.0
        %2046 = vmatpush1.msra.mxu0 0.0
        %2047 = vmatprep.subr.mxu0 0.0
        %2048 = vmatpush1.msra.mxu0 0.0
        %2049 = vmatprep.subr.mxu0 0.0
        %2050 = vmatpush1.msra.mxu0 0.0
        %2051 = vmatprep.subr.mxu0 0.0
        %2052 = vmatpush1.msra.mxu0 0.0
        %2053 = vmatprep.subr.mxu0 0.0
        %2054 = vmatpush1.msra.mxu0 0.0
        %2055 = vmatprep.subr.mxu0 0.0
        %2056 = vmatpush1.msra.mxu0 0.0
        %2057 = vmatprep.subr.mxu0 0.0
        %2058 = vmatpush1.msra.mxu0 0.0
        %2059 = vmatprep.subr.mxu0 0.0
        %2060 = vmatpush1.msra.mxu0 0.0
        %2061 = vmatprep.subr.mxu0 0.0
        %2062 = vmatpush1.msra.mxu0 0.0
        %2063 = vmatprep.subr.mxu0 0.0
        %2064 = vmatpush1.msra.mxu0 0.0
        %2065 = vmatprep.subr.mxu0 0.0
        %2066 = vmatpush1.msra.mxu0 0.0
        %2067 = vmatprep.subr.mxu0 0.0
        %2068 = vmatpush1.msra.mxu0 0.0
        %2069 = vmatprep.subr.mxu0 0.0
        %2070 = vmatpush1.msra.mxu0 0.0
        %2071 = vmatprep.subr.mxu0 0.0
        %2072 = vmatpush1.msra.mxu0 0.0
        %2073 = vmatprep.subr.mxu0 0.0
        %2074 = vmatpush1.msra.mxu0 0.0
        %2075 = vmatprep.subr.mxu0 0.0
        %2076 = vmatpush1.msra.mxu0 0.0
        %2077 = vmatprep.subr.mxu0 0.0
        %2078 = vmatpush1.msra.mxu0 0.0
        %2079 = vmatprep.subr.mxu0 0.0
        %2080 = vmatpush1.msra.mxu0 0.0
        %2081 = vmatprep.subr.mxu0 0.0
        %2082 = vmatpush1.msra.mxu0 0.0
        %2083 = vmatprep.subr.mxu0 0.0
        %2084 = vmatpush1.msra.mxu0 0.0
        %2085 = vmatprep.subr.mxu0 0.0
        %2086 = vmatpush1.msra.mxu0 0.0
        %2087 = vmatprep.subr.mxu0 0.0
        %2088 = vmatpush1.msra.mxu0 0.0
        %2089 = vmatprep.subr.mxu0 0.0
        %2090 = vmatpush1.msra.mxu0 0.0
        %2091 = vmatprep.subr.mxu0 0.0
        %2092 = vmatpush1.msra.mxu0 0.0
        %2093 = vmatprep.subr.mxu0 0.0
        %2094 = vmatpush1.msra.mxu0 0.0
        %2095 = vmatprep.subr.mxu0 0.0
        %2096 = vmatpush1.msra.mxu0 0.0
        %2097 = vmatprep.mubr.f32.mxu0 0.0
        %2098 = vmatmul.mubr.f32.gmra.mrb[0].mxu0 %v2029
        %v2099 = vpop.f32.mrb[0].mxu0
        %v2100 = vadd.f32 0.0, %v2099
        %v2101 = vpop.f32.mrb[0].mxu0
        %2102 = vdwg.mxu0
        %2104 = vrot.lane.b32.xlu0 %v2100, 8
        %v2105 = vpop.permute.xlu0 %2104
        %vm2107 = vcmask 126016
        %2108 = vst.msk [vmem:[#allocation2] sm:$0xf] %vm2107, %v2105
        %2109 = vrot.lane.b32.xlu0 %v1761, 112
        %v2110 = vpop.permute.xlu0 %2109
        %2111 = vrot.lane.b32.xlu0 %v1761, 80
        %v2112 = vpop.permute.xlu0 %2111
        %v2113 = vsel %vm1767, %v2110, 0
        %v2115 = vsel %vm1767, %v2112, 0
        %2117 = vmatprep.subr.mxu0 0.0
        %2118 = vmatpush1.xpose.msra.mxu0 %v2115
        %2119 = vmatprep.subr.mxu0 0.0
        %2120 = vmatpush1.xpose.msra.mxu0 0.0
        %2121 = vmatprep.subr.mxu0 0.0
        %2122 = vmatpush1.xpose.msra.mxu0 0.0
        %2123 = vmatprep.subr.mxu0 0.0
        %2124 = vmatpush1.xpose.msra.mxu0 0.0
        %2125 = vmatprep.subr.mxu0 0.0
        %2126 = vmatpush1.xpose.msra.mxu0 0.0
        %2127 = vmatprep.subr.mxu0 0.0
        %2128 = vmatpush1.xpose.msra.mxu0 0.0
        %2129 = vmatprep.subr.mxu0 0.0
        %2130 = vmatpush1.xpose.msra.mxu0 0.0
        %2131 = vmatprep.subr.mxu0 0.0
        %2132 = vmatpush1.xpose.msra.mxu0 0.0
        %2133 = vmatprep.subr.mxu0 0.0
        %2134 = vmatpush1.xpose.msra.mxu0 0.0
        %2135 = vmatprep.subr.mxu0 0.0
        %2136 = vmatpush1.xpose.msra.mxu0 0.0
        %2137 = vmatprep.subr.mxu0 0.0
        %2138 = vmatpush1.xpose.msra.mxu0 0.0
        %2139 = vmatprep.subr.mxu0 0.0
        %2140 = vmatpush1.xpose.msra.mxu0 0.0
        %2141 = vmatprep.subr.mxu0 0.0
        %2142 = vmatpush1.xpose.msra.mxu0 0.0
        %2143 = vmatprep.subr.mxu0 0.0
        %2144 = vmatpush1.xpose.msra.mxu0 0.0
        %2145 = vmatprep.subr.mxu0 0.0
        %2146 = vmatpush1.xpose.msra.mxu0 0.0
        %2147 = vmatprep.subr.mxu0 0.0
        %2148 = vmatpush1.xpose.msra.mxu0 0.0
        %2149 = vmatprep.subr.mxu0 0.0
        %2150 = vmatpush1.xpose.msra.mxu0 0.0
        %2151 = vmatprep.subr.mxu0 0.0
        %2152 = vmatpush1.xpose.msra.mxu0 0.0
        %2153 = vmatprep.subr.mxu0 0.0
        %2154 = vmatpush1.xpose.msra.mxu0 0.0
        %2155 = vmatprep.subr.mxu0 0.0
        %2156 = vmatpush1.xpose.msra.mxu0 0.0
        %2157 = vmatprep.subr.mxu0 0.0
        %2158 = vmatpush1.xpose.msra.mxu0 0.0
        %2159 = vmatprep.subr.mxu0 0.0
        %2160 = vmatpush1.xpose.msra.mxu0 0.0
        %2161 = vmatprep.subr.mxu0 0.0
        %2162 = vmatpush1.xpose.msra.mxu0 0.0
        %2163 = vmatprep.subr.mxu0 0.0
        %2164 = vmatpush1.xpose.msra.mxu0 0.0
        %2165 = vmatprep.subr.mxu0 0.0
        %2166 = vmatpush1.xpose.msra.mxu0 0.0
        %2167 = vmatprep.subr.mxu0 0.0
        %2168 = vmatpush1.xpose.msra.mxu0 0.0
        %2169 = vmatprep.subr.mxu0 0.0
        %2170 = vmatpush1.xpose.msra.mxu0 0.0
        %2171 = vmatprep.subr.mxu0 0.0
        %2172 = vmatpush1.xpose.msra.mxu0 0.0
        %2173 = vmatprep.subr.mxu0 0.0
        %2174 = vmatpush1.xpose.msra.mxu0 0.0
        %2175 = vmatprep.subr.mxu0 0.0
        %2176 = vmatpush1.xpose.msra.mxu0 0.0
        %2177 = vmatprep.subr.mxu0 0.0
        %2178 = vmatpush1.xpose.msra.mxu0 0.0
        %2179 = vmatprep.subr.mxu0 0.0
        %2180 = vmatpush1.xpose.msra.mxu0 0.0
        %2181 = vmatprep.mubr.f32.mxu0 0.0
        %2182 = vmatmul.mubr.f32.gmra.mrb[0].mxu0 %v2113
        %v2183 = vpop.f32.mrb[0].mxu0
        %v2184 = vadd.f32 0.0, %v2183
        %v2185 = vpop.f32.mrb[0].mxu0
        %2186 = vdwg.mxu0
        %v2187 = vmul.f32 %v2184, 0.35355338
        %v2188 = vsel %vm1843, %v2187, -inf
        %2189 = vmax.xlane.f32.xlu0 %v2188
        %v2190 = vpop.xlane.xlu0 %2189
        %v2191 = vsub.f32 %v2187, %v2190
        %v2192 = vmul.f32 %v2191, 1.442695
        %v2193 = vpow.pop %v2192
        %v2194 = vsel %vm1843, %v2193, 0.0
        %2195 = vadd.xlane.f32.xlu0 %v2194
        %v2196 = vpop.xlane.xlu0 %2195
        %v2197 = vrcp.pop %v2196
        %v2198 = vmul.f32 %v2193, %v2197
        %2199 = vrot.lane.b32.xlu0 %v1761, 48
        %v2200 = vpop.permute.xlu0 %2199
        %v2202 = vsel %vm1857, %v2198, 0
        %v2204 = vsel %vm1861, %v2200, 0
        %2206 = vmatprep.subr.mxu0 0.0
        %2207 = vmatpush1.msra.mxu0 %v2204
        %2208 = vmatprep.subr.mxu0 0.0
        %2209 = vmatpush1.msra.mxu0 0.0
        %2210 = vmatprep.subr.mxu0 0.0
        %2211 = vmatpush1.msra.mxu0 0.0
        %2212 = vmatprep.subr.mxu0 0.0
        %2213 = vmatpush1.msra.mxu0 0.0
        %2214 = vmatprep.subr.mxu0 0.0
        %2215 = vmatpush1.msra.mxu0 0.0
        %2216 = vmatprep.subr.mxu0 0.0
        %2217 = vmatpush1.msra.mxu0 0.0
        %2218 = vmatprep.subr.mxu0 0.0
        %2219 = vmatpush1.msra.mxu0 0.0
        %2220 = vmatprep.subr.mxu0 0.0
        %2221 = vmatpush1.msra.mxu0 0.0
        %2222 = vmatprep.subr.mxu0 0.0
        %2223 = vmatpush1.msra.mxu0 0.0
        %2224 = vmatprep.subr.mxu0 0.0
        %2225 = vmatpush1.msra.mxu0 0.0
        %2226 = vmatprep.subr.mxu0 0.0
        %2227 = vmatpush1.msra.mxu0 0.0
        %2228 = vmatprep.subr.mxu0 0.0
        %2229 = vmatpush1.msra.mxu0 0.0
        %2230 = vmatprep.subr.mxu0 0.0
        %2231 = vmatpush1.msra.mxu0 0.0
        %2232 = vmatprep.subr.mxu0 0.0
        %2233 = vmatpush1.msra.mxu0 0.0
        %2234 = vmatprep.subr.mxu0 0.0
        %2235 = vmatpush1.msra.mxu0 0.0
        %2236 = vmatprep.subr.mxu0 0.0
        %2237 = vmatpush1.msra.mxu0 0.0
        %2238 = vmatprep.subr.mxu0 0.0
        %2239 = vmatpush1.msra.mxu0 0.0
        %2240 = vmatprep.subr.mxu0 0.0
        %2241 = vmatpush1.msra.mxu0 0.0
        %2242 = vmatprep.subr.mxu0 0.0
        %2243 = vmatpush1.msra.mxu0 0.0
        %2244 = vmatprep.subr.mxu0 0.0
        %2245 = vmatpush1.msra.mxu0 0.0
        %2246 = vmatprep.subr.mxu0 0.0
        %2247 = vmatpush1.msra.mxu0 0.0
        %2248 = vmatprep.subr.mxu0 0.0
        %2249 = vmatpush1.msra.mxu0 0.0
        %2250 = vmatprep.subr.mxu0 0.0
        %2251 = vmatpush1.msra.mxu0 0.0
        %2252 = vmatprep.subr.mxu0 0.0
        %2253 = vmatpush1.msra.mxu0 0.0
        %2254 = vmatprep.subr.mxu0 0.0
        %2255 = vmatpush1.msra.mxu0 0.0
        %2256 = vmatprep.subr.mxu0 0.0
        %2257 = vmatpush1.msra.mxu0 0.0
        %2258 = vmatprep.subr.mxu0 0.0
        %2259 = vmatpush1.msra.mxu0 0.0
        %2260 = vmatprep.subr.mxu0 0.0
        %2261 = vmatpush1.msra.mxu0 0.0
        %2262 = vmatprep.subr.mxu0 0.0
        %2263 = vmatpush1.msra.mxu0 0.0
        %2264 = vmatprep.subr.mxu0 0.0
        %2265 = vmatpush1.msra.mxu0 0.0
        %2266 = vmatprep.subr.mxu0 0.0
        %2267 = vmatpush1.msra.mxu0 0.0
        %2268 = vmatprep.subr.mxu0 0.0
        %2269 = vmatpush1.msra.mxu0 0.0
        %2270 = vmatprep.mubr.f32.mxu0 0.0
        %2271 = vmatmul.mubr.f32.gmra.mrb[0].mxu0 %v2202
        %v2272 = vpop.f32.mrb[0].mxu0
        %v2273 = vadd.f32 0.0, %v2272
        %v2274 = vpop.f32.mrb[0].mxu0
        %2275 = vdwg.mxu0
        %2277 = vrot.lane.b32.xlu0 %v2273, 16
        %v2278 = vpop.permute.xlu0 %2277
        %vm2280 = vcmask 191616
        %2281 = vst.msk [vmem:[#allocation2] sm:$0xf] %vm2280, %v2278
        %2282 = vrot.lane.b32.xlu0 %v1761, 104
        %v2283 = vpop.permute.xlu0 %2282
        %2284 = vrot.lane.b32.xlu0 %v1761, 72
        %v2285 = vpop.permute.xlu0 %2284
        %v2286 = vsel %vm1767, %v2283, 0
        %v2288 = vsel %vm1767, %v2285, 0
        %2290 = vmatprep.subr.mxu0 0.0
        %2291 = vmatpush1.xpose.msra.mxu0 %v2288
        %2292 = vmatprep.subr.mxu0 0.0
        %2293 = vmatpush1.xpose.msra.mxu0 0.0
        %2294 = vmatprep.subr.mxu0 0.0
        %2295 = vmatpush1.xpose.msra.mxu0 0.0
        %2296 = vmatprep.subr.mxu0 0.0
        %2297 = vmatpush1.xpose.msra.mxu0 0.0
        %2298 = vmatprep.subr.mxu0 0.0
        %2299 = vmatpush1.xpose.msra.mxu0 0.0
        %2300 = vmatprep.subr.mxu0 0.0
        %2301 = vmatpush1.xpose.msra.mxu0 0.0
        %2302 = vmatprep.subr.mxu0 0.0
        %2303 = vmatpush1.xpose.msra.mxu0 0.0
        %2304 = vmatprep.subr.mxu0 0.0
        %2305 = vmatpush1.xpose.msra.mxu0 0.0
        %2306 = vmatprep.subr.mxu0 0.0
        %2307 = vmatpush1.xpose.msra.mxu0 0.0
        %2308 = vmatprep.subr.mxu0 0.0
        %2309 = vmatpush1.xpose.msra.mxu0 0.0
        %2310 = vmatprep.subr.mxu0 0.0
        %2311 = vmatpush1.xpose.msra.mxu0 0.0
        %2312 = vmatprep.subr.mxu0 0.0
        %2313 = vmatpush1.xpose.msra.mxu0 0.0
        %2314 = vmatprep.subr.mxu0 0.0
        %2315 = vmatpush1.xpose.msra.mxu0 0.0
        %2316 = vmatprep.subr.mxu0 0.0
        %2317 = vmatpush1.xpose.msra.mxu0 0.0
        %2318 = vmatprep.subr.mxu0 0.0
        %2319 = vmatpush1.xpose.msra.mxu0 0.0
        %2320 = vmatprep.subr.mxu0 0.0
        %2321 = vmatpush1.xpose.msra.mxu0 0.0
        %2322 = vmatprep.subr.mxu0 0.0
        %2323 = vmatpush1.xpose.msra.mxu0 0.0
        %2324 = vmatprep.subr.mxu0 0.0
        %2325 = vmatpush1.xpose.msra.mxu0 0.0
        %2326 = vmatprep.subr.mxu0 0.0
        %2327 = vmatpush1.xpose.msra.mxu0 0.0
        %2328 = vmatprep.subr.mxu0 0.0
        %2329 = vmatpush1.xpose.msra.mxu0 0.0
        %2330 = vmatprep.subr.mxu0 0.0
        %2331 = vmatpush1.xpose.msra.mxu0 0.0
        %2332 = vmatprep.subr.mxu0 0.0
        %2333 = vmatpush1.xpose.msra.mxu0 0.0
        %2334 = vmatprep.subr.mxu0 0.0
        %2335 = vmatpush1.xpose.msra.mxu0 0.0
        %2336 = vmatprep.subr.mxu0 0.0
        %2337 = vmatpush1.xpose.msra.mxu0 0.0
        %2338 = vmatprep.subr.mxu0 0.0
        %2339 = vmatpush1.xpose.msra.mxu0 0.0
        %2340 = vmatprep.subr.mxu0 0.0
        %2341 = vmatpush1.xpose.msra.mxu0 0.0
        %2342 = vmatprep.subr.mxu0 0.0
        %2343 = vmatpush1.xpose.msra.mxu0 0.0
        %2344 = vmatprep.subr.mxu0 0.0
        %2345 = vmatpush1.xpose.msra.mxu0 0.0
        %2346 = vmatprep.subr.mxu0 0.0
        %2347 = vmatpush1.xpose.msra.mxu0 0.0
        %2348 = vmatprep.subr.mxu0 0.0
        %2349 = vmatpush1.xpose.msra.mxu0 0.0
        %2350 = vmatprep.subr.mxu0 0.0
        %2351 = vmatpush1.xpose.msra.mxu0 0.0
        %2352 = vmatprep.subr.mxu0 0.0
        %2353 = vmatpush1.xpose.msra.mxu0 0.0
        %2354 = vmatprep.mubr.f32.mxu0 0.0
        %2355 = vmatmul.mubr.f32.gmra.mrb[0].mxu0 %v2286
        %v2356 = vpop.f32.mrb[0].mxu0
        %v2357 = vadd.f32 0.0, %v2356
        %v2358 = vpop.f32.mrb[0].mxu0
        %2359 = vdwg.mxu0
        %v2360 = vmul.f32 %v2357, 0.35355338
        %v2361 = vsel %vm1843, %v2360, -inf
        %2362 = vmax.xlane.f32.xlu0 %v2361
        %v2363 = vpop.xlane.xlu0 %2362
        %v2364 = vsub.f32 %v2360, %v2363
        %v2365 = vmul.f32 %v2364, 1.442695
        %v2366 = vpow.pop %v2365
        %v2367 = vsel %vm1843, %v2366, 0.0
        %2368 = vadd.xlane.f32.xlu0 %v2367
        %v2369 = vpop.xlane.xlu0 %2368
        %v2370 = vrcp.pop %v2369
        %v2371 = vmul.f32 %v2366, %v2370
        %2372 = vrot.lane.b32.xlu0 %v1761, 40
        %v2373 = vpop.permute.xlu0 %2372
        %v2375 = vsel %vm1857, %v2371, 0
        %v2377 = vsel %vm1861, %v2373, 0
        %2379 = vmatprep.subr.mxu0 0.0
        %2380 = vmatpush1.msra.mxu0 %v2377
        %2381 = vmatprep.subr.mxu0 0.0
        %2382 = vmatpush1.msra.mxu0 0.0
        %2383 = vmatprep.subr.mxu0 0.0
        %2384 = vmatpush1.msra.mxu0 0.0
        %2385 = vmatprep.subr.mxu0 0.0
        %2386 = vmatpush1.msra.mxu0 0.0
        %2387 = vmatprep.subr.mxu0 0.0
        %2388 = vmatpush1.msra.mxu0 0.0
        %2389 = vmatprep.subr.mxu0 0.0
        %2390 = vmatpush1.msra.mxu0 0.0
        %2391 = vmatprep.subr.mxu0 0.0
        %2392 = vmatpush1.msra.mxu0 0.0
        %2393 = vmatprep.subr.mxu0 0.0
        %2394 = vmatpush1.msra.mxu0 0.0
        %2395 = vmatprep.subr.mxu0 0.0
        %2396 = vmatpush1.msra.mxu0 0.0
        %2397 = vmatprep.subr.mxu0 0.0
        %2398 = vmatpush1.msra.mxu0 0.0
        %2399 = vmatprep.subr.mxu0 0.0
        %2400 = vmatpush1.msra.mxu0 0.0
        %2401 = vmatprep.subr.mxu0 0.0
        %2402 = vmatpush1.msra.mxu0 0.0
        %2403 = vmatprep.subr.mxu0 0.0
        %2404 = vmatpush1.msra.mxu0 0.0
        %2405 = vmatprep.subr.mxu0 0.0
        %2406 = vmatpush1.msra.mxu0 0.0
        %2407 = vmatprep.subr.mxu0 0.0
        %2408 = vmatpush1.msra.mxu0 0.0
        %2409 = vmatprep.subr.mxu0 0.0
        %2410 = vmatpush1.msra.mxu0 0.0
        %2411 = vmatprep.subr.mxu0 0.0
        %2412 = vmatpush1.msra.mxu0 0.0
        %2413 = vmatprep.subr.mxu0 0.0
        %2414 = vmatpush1.msra.mxu0 0.0
        %2415 = vmatprep.subr.mxu0 0.0
        %2416 = vmatpush1.msra.mxu0 0.0
        %2417 = vmatprep.subr.mxu0 0.0
        %2418 = vmatpush1.msra.mxu0 0.0
        %2419 = vmatprep.subr.mxu0 0.0
        %2420 = vmatpush1.msra.mxu0 0.0
        %2421 = vmatprep.subr.mxu0 0.0
        %2422 = vmatpush1.msra.mxu0 0.0
        %2423 = vmatprep.subr.mxu0 0.0
        %2424 = vmatpush1.msra.mxu0 0.0
        %2425 = vmatprep.subr.mxu0 0.0
        %2426 = vmatpush1.msra.mxu0 0.0
        %2427 = vmatprep.subr.mxu0 0.0
        %2428 = vmatpush1.msra.mxu0 0.0
        %2429 = vmatprep.subr.mxu0 0.0
        %2430 = vmatpush1.msra.mxu0 0.0
        %2431 = vmatprep.subr.mxu0 0.0
        %2432 = vmatpush1.msra.mxu0 0.0
        %2433 = vmatprep.subr.mxu0 0.0
        %2434 = vmatpush1.msra.mxu0 0.0
        %2435 = vmatprep.subr.mxu0 0.0
        %2436 = vmatpush1.msra.mxu0 0.0
        %2437 = vmatprep.subr.mxu0 0.0
        %2438 = vmatpush1.msra.mxu0 0.0
        %2439 = vmatprep.subr.mxu0 0.0
        %2440 = vmatpush1.msra.mxu0 0.0
        %2441 = vmatprep.subr.mxu0 0.0
        %2442 = vmatpush1.msra.mxu0 0.0
        %2443 = vmatprep.mubr.f32.mxu0 0.0
        %2444 = vmatmul.mubr.f32.gmra.mrb[0].mxu0 %v2375
        %v2445 = vpop.f32.mrb[0].mxu0
        %v2446 = vadd.f32 0.0, %v2445
        %v2447 = vpop.f32.mrb[0].mxu0
        %2448 = vdwg.mxu0
        %2450 = vrot.lane.b32.xlu0 %v2446, 24
        %v2451 = vpop.permute.xlu0 %2450
        %vm2453 = vcmask 257216
        %2454 = vst.msk [vmem:[#allocation2] sm:$0xf] %vm2453, %v2451
        %v2455 = vld [vmem:[#allocation2] sm:$0xf]
        %v2457 = vlaneseq
        %v2458 = vshrl.u32 %v2457, 7
        %v2459 = vsub.s32 0, %v2458
        %v2460 = vrot.slane %v1665, %v2459
        %v2463 = vsel %vm1690, %v2455, 0
        %2465 = vmatprep.subr.mxu0 0.0
        %2466 = vmatpush1.msra.mxu0 %v1661
        %2467 = vmatprep.subr.mxu0 0.0
        %2468 = vmatpush1.msra.mxu0 %v1662
        %2469 = vmatprep.subr.mxu0 0.0
        %2470 = vmatpush1.msra.mxu0 %v1663
        %2471 = vmatprep.subr.mxu0 0.0
        %2472 = vmatpush1.msra.mxu0 %v1664
        %2473 = vmatprep.subr.mxu0 0.0
        %2474 = vmatpush1.msra.mxu0 0.0
        %2475 = vmatprep.subr.mxu0 0.0
        %2476 = vmatpush1.msra.mxu0 0.0
        %2477 = vmatprep.subr.mxu0 0.0
        %2478 = vmatpush1.msra.mxu0 0.0
        %2479 = vmatprep.subr.mxu0 0.0
        %2480 = vmatpush1.msra.mxu0 0.0
        %2481 = vmatprep.subr.mxu0 0.0
        %2482 = vmatpush1.msra.mxu0 0.0
        %2483 = vmatprep.subr.mxu0 0.0
        %2484 = vmatpush1.msra.mxu0 0.0
        %2485 = vmatprep.subr.mxu0 0.0
        %2486 = vmatpush1.msra.mxu0 0.0
        %2487 = vmatprep.subr.mxu0 0.0
        %2488 = vmatpush1.msra.mxu0 0.0
        %2489 = vmatprep.subr.mxu0 0.0
        %2490 = vmatpush1.msra.mxu0 0.0
        %2491 = vmatprep.subr.mxu0 0.0
        %2492 = vmatpush1.msra.mxu0 0.0
        %2493 = vmatprep.subr.mxu0 0.0
        %2494 = vmatpush1.msra.mxu0 0.0
        %2495 = vmatprep.subr.mxu0 0.0
        %2496 = vmatpush1.msra.mxu0 0.0
        %2497 = vmatprep.subr.mxu0 0.0
        %2498 = vmatpush1.msra.mxu0 0.0
        %2499 = vmatprep.subr.mxu0 0.0
        %2500 = vmatpush1.msra.mxu0 0.0
        %2501 = vmatprep.subr.mxu0 0.0
        %2502 = vmatpush1.msra.mxu0 0.0
        %2503 = vmatprep.subr.mxu0 0.0
        %2504 = vmatpush1.msra.mxu0 0.0
        %2505 = vmatprep.subr.mxu0 0.0
        %2506 = vmatpush1.msra.mxu0 0.0
        %2507 = vmatprep.subr.mxu0 0.0
        %2508 = vmatpush1.msra.mxu0 0.0
        %2509 = vmatprep.subr.mxu0 0.0
        %2510 = vmatpush1.msra.mxu0 0.0
        %2511 = vmatprep.subr.mxu0 0.0
        %2512 = vmatpush1.msra.mxu0 0.0
        %2513 = vmatprep.subr.mxu0 0.0
        %2514 = vmatpush1.msra.mxu0 0.0
        %2515 = vmatprep.subr.mxu0 0.0
        %2516 = vmatpush1.msra.mxu0 0.0
        %2517 = vmatprep.subr.mxu0 0.0
        %2518 = vmatpush1.msra.mxu0 0.0
        %2519 = vmatprep.subr.mxu0 0.0
        %2520 = vmatpush1.msra.mxu0 0.0
        %2521 = vmatprep.subr.mxu0 0.0
        %2522 = vmatpush1.msra.mxu0 0.0
        %2523 = vmatprep.subr.mxu0 0.0
        %2524 = vmatpush1.msra.mxu0 0.0
        %2525 = vmatprep.subr.mxu0 0.0
        %2526 = vmatpush1.msra.mxu0 0.0
        %2527 = vmatprep.subr.mxu0 0.0
        %2528 = vmatpush1.msra.mxu0 0.0
        %2529 = vmatprep.mubr.f32.mxu0 0.0
        %2530 = vmatmul.mubr.f32.gmra.mrb[0].mxu0 %v2463
        %v2531 = vpop.f32.mrb[0].mxu0
        %v2532 = vadd.f32 %v2460, %v2531
        %v2533 = vpop.f32.mrb[0].mxu0
        %2534 = vdwg.mxu0
        %v2535 = vadd.f32 %v1653, %v2532
        %vm2536 = vcmask 257024
        %v2537 = vsel %vm2536, %v2535, 0.0
        %2538 = vadd.xlane.f32.xlu0 %v2537
        %v2539 = vpop.xlane.xlu0 %2538
        %v2540 = vrcp.pop 32.0
        %v2541 = vmul.f32 %v2539, %v2540
        %v2542 = vsub.f32 %v2535, %v2541
        %v2543 = vmul.f32 %v2542, %v2542
        %v2544 = vsel %vm2536, %v2543, 0.0
        %2545 = vadd.xlane.f32.xlu0 %v2544
        %v2546 = vpop.xlane.xlu0 %2545
        %v2547 = vmul.f32 %v2546, %v2540
        %v2548 = vadd.f32 %v2547, 1e-05
        %v2549 = vrsqrt.pop %v2548
        %v2550 = vmul.f32 %v2542, %v2549
        %v2552 = vlaneseq
        %v2553 = vshrl.u32 %v2552, 7
        %v2554 = vsub.s32 0, %v2553
        %v2555 = vrot.slane %v1666, %v2554
        %v2557 = vmul.f32 %v2550, %v2555
        %v2559 = vlaneseq
        %v2560 = vshrl.u32 %v2559, 7
        %v2561 = vsub.s32 0, %v2560
        %v2562 = vrot.slane %v1667, %v2561
        %v2564 = vadd.f32 %v2557, %v2562
        %v2566 = vlaneseq
        %v2567 = vshrl.u32 %v2566, 7
        %v2568 = vsub.s32 0, %v2567
        %v2569 = vrot.slane %v1672, %v2568
        %v2572 = vsel %vm1690, %v2564, 0
        %2574 = vmatprep.subr.mxu0 0.0
        %2575 = vmatpush1.msra.mxu0 %v1668
        %2576 = vmatprep.subr.mxu0 0.0
        %2577 = vmatpush1.msra.mxu0 %v1669
        %2578 = vmatprep.subr.mxu0 0.0
        %2579 = vmatpush1.msra.mxu0 %v1670
        %2580 = vmatprep.subr.mxu0 0.0
        %2581 = vmatpush1.msra.mxu0 %v1671
        %2582 = vmatprep.subr.mxu0 0.0
        %2583 = vmatpush1.msra.mxu0 0.0
        %2584 = vmatprep.subr.mxu0 0.0
        %2585 = vmatpush1.msra.mxu0 0.0
        %2586 = vmatprep.subr.mxu0 0.0
        %2587 = vmatpush1.msra.mxu0 0.0
        %2588 = vmatprep.subr.mxu0 0.0
        %2589 = vmatpush1.msra.mxu0 0.0
        %2590 = vmatprep.subr.mxu0 0.0
        %2591 = vmatpush1.msra.mxu0 0.0
        %2592 = vmatprep.subr.mxu0 0.0
        %2593 = vmatpush1.msra.mxu0 0.0
        %2594 = vmatprep.subr.mxu0 0.0
        %2595 = vmatpush1.msra.mxu0 0.0
        %2596 = vmatprep.subr.mxu0 0.0
        %2597 = vmatpush1.msra.mxu0 0.0
        %2598 = vmatprep.subr.mxu0 0.0
        %2599 = vmatpush1.msra.mxu0 0.0
        %2600 = vmatprep.subr.mxu0 0.0
        %2601 = vmatpush1.msra.mxu0 0.0
        %2602 = vmatprep.subr.mxu0 0.0
        %2603 = vmatpush1.msra.mxu0 0.0
        %2604 = vmatprep.subr.mxu0 0.0
        %2605 = vmatpush1.msra.mxu0 0.0
        %2606 = vmatprep.subr.mxu0 0.0
        %2607 = vmatpush1.msra.mxu0 0.0
        %2608 = vmatprep.subr.mxu0 0.0
        %2609 = vmatpush1.msra.mxu0 0.0
        %2610 = vmatprep.subr.mxu0 0.0
        %2611 = vmatpush1.msra.mxu0 0.0
        %2612 = vmatprep.subr.mxu0 0.0
        %2613 = vmatpush1.msra.mxu0 0.0
        %2614 = vmatprep.subr.mxu0 0.0
        %2615 = vmatpush1.msra.mxu0 0.0
        %2616 = vmatprep.subr.mxu0 0.0
        %2617 = vmatpush1.msra.mxu0 0.0
        %2618 = vmatprep.subr.mxu0 0.0
        %2619 = vmatpush1.msra.mxu0 0.0
        %2620 = vmatprep.subr.mxu0 0.0
        %2621 = vmatpush1.msra.mxu0 0.0
        %2622 = vmatprep.subr.mxu0 0.0
        %2623 = vmatpush1.msra.mxu0 0.0
        %2624 = vmatprep.subr.mxu0 0.0
        %2625 = vmatpush1.msra.mxu0 0.0
        %2626 = vmatprep.subr.mxu0 0.0
        %2627 = vmatpush1.msra.mxu0 0.0
        %2628 = vmatprep.subr.mxu0 0.0
        %2629 = vmatpush1.msra.mxu0 0.0
        %2630 = vmatprep.subr.mxu0 0.0
        %2631 = vmatpush1.msra.mxu0 0.0
        %2632 = vmatprep.subr.mxu0 0.0
        %2633 = vmatpush1.msra.mxu0 0.0
        %2634 = vmatprep.subr.mxu0 0.0
        %2635 = vmatpush1.msra.mxu0 0.0
        %2636 = vmatprep.subr.mxu0 0.0
        %2637 = vmatpush1.msra.mxu0 0.0
        %2638 = vmatprep.mubr.f32.mxu0 0.0
        %2639 = vmatmul.mubr.f32.gmra.mrb[0].mxu0 %v2572
        %v2640 = vpop.f32.mrb[0].mxu0
        %v2641 = vadd.f32 %v2569, %v2640
        %v2642 = vpop.f32.mrb[0].mxu0
        %2643 = vdwg.mxu0
        %v2644 = vmax.f32 %v2641, 0.0
        %v2646 = vlaneseq
        %v2647 = vshrl.u32 %v2646, 7
        %v2648 = vsub.s32 0, %v2647
        %v2649 = vrot.slane %v1681, %v2648
        %vm2651 = vcmask 523264
        %v2653 = vsel %vm2651, %v2644, 0
        %2655 = vmatprep.subr.mxu0 0.0
        %2656 = vmatpush1.msra.mxu0 %v1673
        %2657 = vmatprep.subr.mxu0 0.0
        %2658 = vmatpush1.msra.mxu0 %v1674
        %2659 = vmatprep.subr.mxu0 0.0
        %2660 = vmatpush1.msra.mxu0 %v1675
        %2661 = vmatprep.subr.mxu0 0.0
        %2662 = vmatpush1.msra.mxu0 %v1676
        %2663 = vmatprep.subr.mxu0 0.0
        %2664 = vmatpush1.msra.mxu0 %v1677
        %2665 = vmatprep.subr.mxu0 0.0
        %2666 = vmatpush1.msra.mxu0 %v1678
        %2667 = vmatprep.subr.mxu0 0.0
        %2668 = vmatpush1.msra.mxu0 %v1679
        %2669 = vmatprep.subr.mxu0 0.0
        %2670 = vmatpush1.msra.mxu0 %v1680
        %2671 = vmatprep.subr.mxu0 0.0
        %2672 = vmatpush1.msra.mxu0 0.0
        %2673 = vmatprep.subr.mxu0 0.0
        %2674 = vmatpush1.msra.mxu0 0.0
        %2675 = vmatprep.subr.mxu0 0.0
        %2676 = vmatpush1.msra.mxu0 0.0
        %2677 = vmatprep.subr.mxu0 0.0
        %2678 = vmatpush1.msra.mxu0 0.0
        %2679 = vmatprep.subr.mxu0 0.0
        %2680 = vmatpush1.msra.mxu0 0.0
        %2681 = vmatprep.subr.mxu0 0.0
        %2682 = vmatpush1.msra.mxu0 0.0
        %2683 = vmatprep.subr.mxu0 0.0
        %2684 = vmatpush1.msra.mxu0 0.0
        %2685 = vmatprep.subr.mxu0 0.0
        %2686 = vmatpush1.msra.mxu0 0.0
        %2687 = vmatprep.subr.mxu0 0.0
        %2688 = vmatpush1.msra.mxu0 0.0
        %2689 = vmatprep.subr.mxu0 0.0
        %2690 = vmatpush1.msra.mxu0 0.0
        %2691 = vmatprep.subr.mxu0 0.0
        %2692 = vmatpush1.msra.mxu0 0.0
        %2693 = vmatprep.subr.mxu0 0.0
        %2694 = vmatpush1.msra.mxu0 0.0
        %2695 = vmatprep.subr.mxu0 0.0
        %2696 = vmatpush1.msra.mxu0 0.0
        %2697 = vmatprep.subr.mxu0 0.0
        %2698 = vmatpush1.msra.mxu0 0.0
        %2699 = vmatprep.subr.mxu0 0.0
        %2700 = vmatpush1.msra.mxu0 0.0
        %2701 = vmatprep.subr.mxu0 0.0
        %2702 = vmatpush1.msra.mxu0 0.0
        %2703 = vmatprep.subr.mxu0 0.0
        %2704 = vmatpush1.msra.mxu0 0.0
        %2705 = vmatprep.subr.mxu0 0.0
        %2706 = vmatpush1.msra.mxu0 0.0
        %2707 = vmatprep.subr.mxu0 0.0
        %2708 = vmatpush1.msra.mxu0 0.0
        %2709 = vmatprep.subr.mxu0 0.0
        %2710 = vmatpush1.msra.mxu0 0.0
        %2711 = vmatprep.subr.mxu0 0.0
        %2712 = vmatpush1.msra.mxu0 0.0
        %2713 = vmatprep.subr.mxu0 0.0
        %2714 = vmatpush1.msra.mxu0 0.0
        %2715 = vmatprep.subr.mxu0 0.0
        %2716 = vmatpush1.msra.mxu0 0.0
        %2717 = vmatprep.subr.mxu0 0.0
        %2718 = vmatpush1.msra.mxu0 0.0
        %2719 = vmatprep.mubr.f32.mxu0 0.0
        %2720 = vmatmul.mubr.f32.gmra.mrb[0].mxu0 %v2653
        %v2721 = vpop.f32.mrb[0].mxu0
        %v2722 = vadd.f32 %v2649, %v2721
        %v2723 = vpop.f32.mrb[0].mxu0
        %2724 = vdwg.mxu0
        %v2725 = vadd.f32 %v2564, %v2722
        %v2726 = vsel %vm2536, %v2725, 0.0
        %2727 = vadd.xlane.f32.xlu0 %v2726
        %v2728 = vpop.xlane.xlu0 %2727
        %v2729 = vmul.f32 %v2728, %v2540
        %v2730 = vsub.f32 %v2725, %v2729
        %v2731 = vmul.f32 %v2730, %v2730
        %v2732 = vsel %vm2536, %v2731, 0.0
        %2733 = vadd.xlane.f32.xlu0 %v2732
        %v2734 = vpop.xlane.xlu0 %2733
        %v2735 = vmul.f32 %v2734, %v2540
        %v2736 = vadd.f32 %v2735, 1e-05
        %v2737 = vrsqrt.pop %v2736
        %v2738 = vmul.f32 %v2730, %v2737
        %v2740 = vlaneseq
        %v2741 = vshrl.u32 %v2740, 7
        %v2742 = vsub.s32 0, %v2741
        %v2743 = vrot.slane %v1682, %v2742
        %v2745 = vmul.f32 %v2738, %v2743
        %v2747 = vlaneseq
        %v2748 = vshrl.u32 %v2747, 7
        %v2749 = vsub.s32 0, %v2748
        %v2750 = vrot.slane %v1683, %v2749
        %v2752 = vadd.f32 %v2745, %v2750
        %s2753 = scalar_lea.vmem %s9, 32
        %v2754 = vld [vmem:[%s2753] sm:$0xff]
        %v2755 = vld [vmem:[%s2753 + $0x8] sm:$0xff]
        %v2756 = vld [vmem:[%s2753 + $0x10] sm:$0xff]
        %v2757 = vld [vmem:[%s2753 + $0x18] sm:$0xff]
        %s2758 = scalar_lea.vmem %s11, 1
        %v2759 = vld [vmem:[%s2758] sm:$0x1]
        %s2760 = scalar_lea.vmem %s13, 32
        %v2761 = vld [vmem:[%s2760] sm:$0xff]
        %v2762 = vld [vmem:[%s2760 + $0x8] sm:$0xff]
        %v2763 = vld [vmem:[%s2760 + $0x10] sm:$0xff]
        %v2764 = vld [vmem:[%s2760 + $0x18] sm:$0xff]
        %s2765 = scalar_lea.vmem %s15, 1
        %v2766 = vld [vmem:[%s2765] sm:$0x1]
        %s2767 = scalar_lea.vmem %s17, 1
        %v2768 = vld [vmem:[%s2767] sm:$0x1]
        %s2769 = scalar_lea.vmem %s19, 1
        %v2770 = vld [vmem:[%s2769] sm:$0x1]
        %s2771 = scalar_lea.vmem %s21, 32
        %v2772 = vld [vmem:[%s2771] sm:$0xff]
        %v2773 = vld [vmem:[%s2771 + $0x8] sm:$0xff]
        %v2774 = vld [vmem:[%s2771 + $0x10] sm:$0xff]
        %v2775 = vld [vmem:[%s2771 + $0x18] sm:$0xff]
        %s2776 = scalar_lea.vmem [#allocation3], 1
        %v2777 = vld [vmem:[%s2776] sm:$0x1]
        %s2778 = scalar_lea.vmem %s25, 64
        %v2779 = vld [vmem:[%s2778] sm:$0xff]
        %v2780 = vld [vmem:[%s2778 + $0x8] sm:$0xff]
        %v2781 = vld [vmem:[%s2778 + $0x10] sm:$0xff]
        %v2782 = vld [vmem:[%s2778 + $0x18] sm:$0xff]
        %v2783 = vld [vmem:[%s2778 + $0x20] sm:$0xff]
        %v2784 = vld [vmem:[%s2778 + $0x28] sm:$0xff]
        %v2785 = vld [vmem:[%s2778 + $0x30] sm:$0xff]
        %v2786 = vld [vmem:[%s2778 + $0x38] sm:$0xff]
        %s2787 = scalar_lea.vmem [#allocation5], 1
        %v2788 = vld [vmem:[%s2787] sm:$0x1]
        %s2789 = scalar_lea.vmem %s29, 1
        %v2790 = vld [vmem:[%s2789] sm:$0x1]
        %s2791 = scalar_lea.vmem %s31, 1
        %v2792 = vld [vmem:[%s2791] sm:$0x1]
        %v2794 = vlaneseq
        %v2795 = vshrl.u32 %v2794, 7
        %v2796 = vsub.s32 0, %v2795
        %v2797 = vrot.slane %v2759, %v2796
        %v2800 = vsel %vm1690, %v2752, 0
        %2802 = vmatprep.subr.mxu0 0.0
        %2803 = vmatpush1.msra.mxu0 %v2754
        %2804 = vmatprep.subr.mxu0 0.0
        %2805 = vmatpush1.msra.mxu0 %v2755
        %2806 = vmatprep.subr.mxu0 0.0
        %2807 = vmatpush1.msra.mxu0 %v2756
        %2808 = vmatprep.subr.mxu0 0.0
        %2809 = vmatpush1.msra.mxu0 %v2757
        %2810 = vmatprep.subr.mxu0 0.0
        %2811 = vmatpush1.msra.mxu0 0.0
        %2812 = vmatprep.subr.mxu0 0.0
        %2813 = vmatpush1.msra.mxu0 0.0
        %2814 = vmatprep.subr.mxu0 0.0
        %2815 = vmatpush1.msra.mxu0 0.0
        %2816 = vmatprep.subr.mxu0 0.0
        %2817 = vmatpush1.msra.mxu0 0.0
        %2818 = vmatprep.subr.mxu0 0.0
        %2819 = vmatpush1.msra.mxu0 0.0
        %2820 = vmatprep.subr.mxu0 0.0
        %2821 = vmatpush1.msra.mxu0 0.0
        %2822 = vmatprep.subr.mxu0 0.0
        %2823 = vmatpush1.msra.mxu0 0.0
        %2824 = vmatprep.subr.mxu0 0.0
        %2825 = vmatpush1.msra.mxu0 0.0
        %2826 = vmatprep.subr.mxu0 0.0
        %2827 = vmatpush1.msra.mxu0 0.0
        %2828 = vmatprep.subr.mxu0 0.0
        %2829 = vmatpush1.msra.mxu0 0.0
        %2830 = vmatprep.subr.mxu0 0.0
        %2831 = vmatpush1.msra.mxu0 0.0
        %2832 = vmatprep.subr.mxu0 0.0
        %2833 = vmatpush1.msra.mxu0 0.0
        %2834 = vmatprep.subr.mxu0 0.0
        %2835 = vmatpush1.msra.mxu0 0.0
        %2836 = vmatprep.subr.mxu0 0.0
        %2837 = vmatpush1.msra.mxu0 0.0
        %2838 = vmatprep.subr.mxu0 0.0
        %2839 = vmatpush1.msra.mxu0 0.0
        %2840 = vmatprep.subr.mxu0 0.0
        %2841 = vmatpush1.msra.mxu0 0.0
        %2842 = vmatprep.subr.mxu0 0.0
        %2843 = vmatpush1.msra.mxu0 0.0
        %2844 = vmatprep.subr.mxu0 0.0
        %2845 = vmatpush1.msra.mxu0 0.0
        %2846 = vmatprep.subr.mxu0 0.0
        %2847 = vmatpush1.msra.mxu0 0.0
        %2848 = vmatprep.subr.mxu0 0.0
        %2849 = vmatpush1.msra.mxu0 0.0
        %2850 = vmatprep.subr.mxu0 0.0
        %2851 = vmatpush1.msra.mxu0 0.0
        %2852 = vmatprep.subr.mxu0 0.0
        %2853 = vmatpush1.msra.mxu0 0.0
        %2854 = vmatprep.subr.mxu0 0.0
        %2855 = vmatpush1.msra.mxu0 0.0
        %2856 = vmatprep.subr.mxu0 0.0
        %2857 = vmatpush1.msra.mxu0 0.0
        %2858 = vmatprep.subr.mxu0 0.0
        %2859 = vmatpush1.msra.mxu0 0.0
        %2860 = vmatprep.subr.mxu0 0.0
        %2861 = vmatpush1.msra.mxu0 0.0
        %2862 = vmatprep.subr.mxu0 0.0
        %2863 = vmatpush1.msra.mxu0 0.0
        %2864 = vmatprep.subr.mxu0 0.0
        %2865 = vmatpush1.msra.mxu0 0.0
        %2866 = vmatprep.mubr.f32.mxu0 0.0
        %2867 = vmatmul.mubr.f32.gmra.mrb[0].mxu0 %v2800
        %v2868 = vpop.f32.mrb[0].mxu0
        %v2869 = vadd.f32 %v2797, %v2868
        %v2870 = vpop.f32.mrb[0].mxu0
        %2871 = vdwg.mxu0
        %2873 = vrot.lane.b32.xlu0 %v2869, 96
        %v2874 = vpop.permute.xlu0 %2873
        %v2875 = vsel %vm1767, %v2869, 0
        %v2877 = vsel %vm1767, %v2874, 0
        %2879 = vmatprep.subr.mxu0 0.0
        %2880 = vmatpush1.xpose.msra.mxu0 %v2877
        %2881 = vmatprep.subr.mxu0 0.0
        %2882 = vmatpush1.xpose.msra.mxu0 0.0
        %2883 = vmatprep.subr.mxu0 0.0
        %2884 = vmatpush1.xpose.msra.mxu0 0.0
        %2885 = vmatprep.subr.mxu0 0.0
        %2886 = vmatpush1.xpose.msra.mxu0 0.0
        %2887 = vmatprep.subr.mxu0 0.0
        %2888 = vmatpush1.xpose.msra.mxu0 0.0
        %2889 = vmatprep.subr.mxu0 0.0
        %2890 = vmatpush1.xpose.msra.mxu0 0.0
        %2891 = vmatprep.subr.mxu0 0.0
        %2892 = vmatpush1.xpose.msra.mxu0 0.0
        %2893 = vmatprep.subr.mxu0 0.0
        %2894 = vmatpush1.xpose.msra.mxu0 0.0
        %2895 = vmatprep.subr.mxu0 0.0
        %2896 = vmatpush1.xpose.msra.mxu0 0.0
        %2897 = vmatprep.subr.mxu0 0.0
        %2898 = vmatpush1.xpose.msra.mxu0 0.0
        %2899 = vmatprep.subr.mxu0 0.0
        %2900 = vmatpush1.xpose.msra.mxu0 0.0
        %2901 = vmatprep.subr.mxu0 0.0
        %2902 = vmatpush1.xpose.msra.mxu0 0.0
        %2903 = vmatprep.subr.mxu0 0.0
        %2904 = vmatpush1.xpose.msra.mxu0 0.0
        %2905 = vmatprep.subr.mxu0 0.0
        %2906 = vmatpush1.xpose.msra.mxu0 0.0
        %2907 = vmatprep.subr.mxu0 0.0
        %2908 = vmatpush1.xpose.msra.mxu0 0.0
        %2909 = vmatprep.subr.mxu0 0.0
        %2910 = vmatpush1.xpose.msra.mxu0 0.0
        %2911 = vmatprep.subr.mxu0 0.0
        %2912 = vmatpush1.xpose.msra.mxu0 0.0
        %2913 = vmatprep.subr.mxu0 0.0
        %2914 = vmatpush1.xpose.msra.mxu0 0.0
        %2915 = vmatprep.subr.mxu0 0.0
        %2916 = vmatpush1.xpose.msra.mxu0 0.0
        %2917 = vmatprep.subr.mxu0 0.0
        %2918 = vmatpush1.xpose.msra.mxu0 0.0
        %2919 = vmatprep.subr.mxu0 0.0
        %2920 = vmatpush1.xpose.msra.mxu0 0.0
        %2921 = vmatprep.subr.mxu0 0.0
        %2922 = vmatpush1.xpose.msra.mxu0 0.0
        %2923 = vmatprep.subr.mxu0 0.0
        %2924 = vmatpush1.xpose.msra.mxu0 0.0
        %2925 = vmatprep.subr.mxu0 0.0
        %2926 = vmatpush1.xpose.msra.mxu0 0.0
        %2927 = vmatprep.subr.mxu0 0.0
        %2928 = vmatpush1.xpose.msra.mxu0 0.0
        %2929 = vmatprep.subr.mxu0 0.0
        %2930 = vmatpush1.xpose.msra.mxu0 0.0
        %2931 = vmatprep.subr.mxu0 0.0
        %2932 = vmatpush1.xpose.msra.mxu0 0.0
        %2933 = vmatprep.subr.mxu0 0.0
        %2934 = vmatpush1.xpose.msra.mxu0 0.0
        %2935 = vmatprep.subr.mxu0 0.0
        %2936 = vmatpush1.xpose.msra.mxu0 0.0
        %2937 = vmatprep.subr.mxu0 0.0
        %2938 = vmatpush1.xpose.msra.mxu0 0.0
        %2939 = vmatprep.subr.mxu0 0.0
        %2940 = vmatpush1.xpose.msra.mxu0 0.0
        %2941 = vmatprep.subr.mxu0 0.0
        %2942 = vmatpush1.xpose.msra.mxu0 0.0
        %2943 = vmatprep.mubr.f32.mxu0 0.0
        %2944 = vmatmul.mubr.f32.gmra.mrb[0].mxu0 %v2875
        %v2945 = vpop.f32.mrb[0].mxu0
        %v2946 = vadd.f32 0.0, %v2945
        %v2947 = vpop.f32.mrb[0].mxu0
        %2948 = vdwg.mxu0
        %v2949 = vmul.f32 %v2946, 0.35355338
        %v2950 = vsel %vm1843, %v2949, -inf
        %2951 = vmax.xlane.f32.xlu0 %v2950
        %v2952 = vpop.xlane.xlu0 %2951
        %v2953 = vsub.f32 %v2949, %v2952
        %v2954 = vmul.f32 %v2953, 1.442695
        %v2955 = vpow.pop %v2954
        %v2956 = vsel %vm1843, %v2955, 0.0
        %2957 = vadd.xlane.f32.xlu0 %v2956
        %v2958 = vpop.xlane.xlu0 %2957
        %v2959 = vrcp.pop %v2958
        %v2960 = vmul.f32 %v2955, %v2959
        %2961 = vrot.lane.b32.xlu0 %v2869, 64
        %v2962 = vpop.permute.xlu0 %2961
        %v2964 = vsel %vm1857, %v2960, 0
        %v2966 = vsel %vm1861, %v2962, 0
        %2968 = vmatprep.subr.mxu0 0.0
        %2969 = vmatpush1.msra.mxu0 %v2966
        %2970 = vmatprep.subr.mxu0 0.0
        %2971 = vmatpush1.msra.mxu0 0.0
        %2972 = vmatprep.subr.mxu0 0.0
        %2973 = vmatpush1.msra.mxu0 0.0
        %2974 = vmatprep.subr.mxu0 0.0
        %2975 = vmatpush1.msra.mxu0 0.0
        %2976 = vmatprep.subr.mxu0 0.0
        %2977 = vmatpush1.msra.mxu0 0.0
        %2978 = vmatprep.subr.mxu0 0.0
        %2979 = vmatpush1.msra.mxu0 0.0
        %2980 = vmatprep.subr.mxu0 0.0
        %2981 = vmatpush1.msra.mxu0 0.0
        %2982 = vmatprep.subr.mxu0 0.0
        %2983 = vmatpush1.msra.mxu0 0.0
        %2984 = vmatprep.subr.mxu0 0.0
        %2985 = vmatpush1.msra.mxu0 0.0
        %2986 = vmatprep.subr.mxu0 0.0
        %2987 = vmatpush1.msra.mxu0 0.0
        %2988 = vmatprep.subr.mxu0 0.0
        %2989 = vmatpush1.msra.mxu0 0.0
        %2990 = vmatprep.subr.mxu0 0.0
        %2991 = vmatpush1.msra.mxu0 0.0
        %2992 = vmatprep.subr.mxu0 0.0
        %2993 = vmatpush1.msra.mxu0 0.0
        %2994 = vmatprep.subr.mxu0 0.0
        %2995 = vmatpush1.msra.mxu0 0.0
        %2996 = vmatprep.subr.mxu0 0.0
        %2997 = vmatpush1.msra.mxu0 0.0
        %2998 = vmatprep.subr.mxu0 0.0
        %2999 = vmatpush1.msra.mxu0 0.0
        %3000 = vmatprep.subr.mxu0 0.0
        %3001 = vmatpush1.msra.mxu0 0.0
        %3002 = vmatprep.subr.mxu0 0.0
        %3003 = vmatpush1.msra.mxu0 0.0
        %3004 = vmatprep.subr.mxu0 0.0
        %3005 = vmatpush1.msra.mxu0 0.0
        %3006 = vmatprep.subr.mxu0 0.0
        %3007 = vmatpush1.msra.mxu0 0.0
        %3008 = vmatprep.subr.mxu0 0.0
        %3009 = vmatpush1.msra.mxu0 0.0
        %3010 = vmatprep.subr.mxu0 0.0
        %3011 = vmatpush1.msra.mxu0 0.0
        %3012 = vmatprep.subr.mxu0 0.0
        %3013 = vmatpush1.msra.mxu0 0.0
        %3014 = vmatprep.subr.mxu0 0.0
        %3015 = vmatpush1.msra.mxu0 0.0
        %3016 = vmatprep.subr.mxu0 0.0
        %3017 = vmatpush1.msra.mxu0 0.0
        %3018 = vmatprep.subr.mxu0 0.0
        %3019 = vmatpush1.msra.mxu0 0.0
        %3020 = vmatprep.subr.mxu0 0.0
        %3021 = vmatpush1.msra.mxu0 0.0
        %3022 = vmatprep.subr.mxu0 0.0
        %3023 = vmatpush1.msra.mxu0 0.0
        %3024 = vmatprep.subr.mxu0 0.0
        %3025 = vmatpush1.msra.mxu0 0.0
        %3026 = vmatprep.subr.mxu0 0.0
        %3027 = vmatpush1.msra.mxu0 0.0
        %3028 = vmatprep.subr.mxu0 0.0
        %3029 = vmatpush1.msra.mxu0 0.0
        %3030 = vmatprep.subr.mxu0 0.0
        %3031 = vmatpush1.msra.mxu0 0.0
        %3032 = vmatprep.mubr.f32.mxu0 0.0
        %3033 = vmatmul.mubr.f32.gmra.mrb[0].mxu0 %v2964
        %v3034 = vpop.f32.mrb[0].mxu0
        %v3035 = vadd.f32 0.0, %v3034
        %v3036 = vpop.f32.mrb[0].mxu0
        %3037 = vdwg.mxu0
        %3038 = vst.msk [vmem:[#allocation2] sm:$0xf] %vm1934, %v3035
        %3039 = vrot.lane.b32.xlu0 %v2869, 120
        %v3040 = vpop.permute.xlu0 %3039
        %3041 = vrot.lane.b32.xlu0 %v2869, 88
        %v3042 = vpop.permute.xlu0 %3041
        %v3043 = vsel %vm1767, %v3040, 0
        %v3045 = vsel %vm1767, %v3042, 0
        %3047 = vmatprep.subr.mxu0 0.0
        %3048 = vmatpush1.xpose.msra.mxu0 %v3045
        %3049 = vmatprep.subr.mxu0 0.0
        %3050 = vmatpush1.xpose.msra.mxu0 0.0
        %3051 = vmatprep.subr.mxu0 0.0
        %3052 = vmatpush1.xpose.msra.mxu0 0.0
        %3053 = vmatprep.subr.mxu0 0.0
        %3054 = vmatpush1.xpose.msra.mxu0 0.0
        %3055 = vmatprep.subr.mxu0 0.0
        %3056 = vmatpush1.xpose.msra.mxu0 0.0
        %3057 = vmatprep.subr.mxu0 0.0
        %3058 = vmatpush1.xpose.msra.mxu0 0.0
        %3059 = vmatprep.subr.mxu0 0.0
        %3060 = vmatpush1.xpose.msra.mxu0 0.0
        %3061 = vmatprep.subr.mxu0 0.0
        %3062 = vmatpush1.xpose.msra.mxu0 0.0
        %3063 = vmatprep.subr.mxu0 0.0
        %3064 = vmatpush1.xpose.msra.mxu0 0.0
        %3065 = vmatprep.subr.mxu0 0.0
        %3066 = vmatpush1.xpose.msra.mxu0 0.0
        %3067 = vmatprep.subr.mxu0 0.0
        %3068 = vmatpush1.xpose.msra.mxu0 0.0
        %3069 = vmatprep.subr.mxu0 0.0
        %3070 = vmatpush1.xpose.msra.mxu0 0.0
        %3071 = vmatprep.subr.mxu0 0.0
        %3072 = vmatpush1.xpose.msra.mxu0 0.0
        %3073 = vmatprep.subr.mxu0 0.0
        %3074 = vmatpush1.xpose.msra.mxu0 0.0
        %3075 = vmatprep.subr.mxu0 0.0
        %3076 = vmatpush1.xpose.msra.mxu0 0.0
        %3077 = vmatprep.subr.mxu0 0.0
        %3078 = vmatpush1.xpose.msra.mxu0 0.0
        %3079 = vmatprep.subr.mxu0 0.0
        %3080 = vmatpush1.xpose.msra.mxu0 0.0
        %3081 = vmatprep.subr.mxu0 0.0
        %3082 = vmatpush1.xpose.msra.mxu0 0.0
        %3083 = vmatprep.subr.mxu0 0.0
        %3084 = vmatpush1.xpose.msra.mxu0 0.0
        %3085 = vmatprep.subr.mxu0 0.0
        %3086 = vmatpush1.xpose.msra.mxu0 0.0
        %3087 = vmatprep.subr.mxu0 0.0
        %3088 = vmatpush1.xpose.msra.mxu0 0.0
        %3089 = vmatprep.subr.mxu0 0.0
        %3090 = vmatpush1.xpose.msra.mxu0 0.0
        %3091 = vmatprep.subr.mxu0 0.0
        %3092 = vmatpush1.xpose.msra.mxu0 0.0
        %3093 = vmatprep.subr.mxu0 0.0
        %3094 = vmatpush1.xpose.msra.mxu0 0.0
        %3095 = vmatprep.subr.mxu0 0.0
        %3096 = vmatpush1.xpose.msra.mxu0 0.0
        %3097 = vmatprep.subr.mxu0 0.0
        %3098 = vmatpush1.xpose.msra.mxu0 0.0
        %3099 = vmatprep.subr.mxu0 0.0
        %3100 = vmatpush1.xpose.msra.mxu0 0.0
        %3101 = vmatprep.subr.mxu0 0.0
        %3102 = vmatpush1.xpose.msra.mxu0 0.0
        %3103 = vmatprep.subr.mxu0 0.0
        %3104 = vmatpush1.xpose.msra.mxu0 0.0
        %3105 = vmatprep.subr.mxu0 0.0
        %3106 = vmatpush1.xpose.msra.mxu0 0.0
        %3107 = vmatprep.subr.mxu0 0.0
        %3108 = vmatpush1.xpose.msra.mxu0 0.0
        %3109 = vmatprep.subr.mxu0 0.0
        %3110 = vmatpush1.xpose.msra.mxu0 0.0
        %3111 = vmatprep.mubr.f32.mxu0 0.0
        %3112 = vmatmul.mubr.f32.gmra.mrb[0].mxu0 %v3043
        %v3113 = vpop.f32.mrb[0].mxu0
        %v3114 = vadd.f32 0.0, %v3113
        %v3115 = vpop.f32.mrb[0].mxu0
        %3116 = vdwg.mxu0
        %v3117 = vmul.f32 %v3114, 0.35355338
        %v3118 = vsel %vm1843, %v3117, -inf
        %3119 = vmax.xlane.f32.xlu0 %v3118
        %v3120 = vpop.xlane.xlu0 %3119
        %v3121 = vsub.f32 %v3117, %v3120
        %v3122 = vmul.f32 %v3121, 1.442695
        %v3123 = vpow.pop %v3122
        %v3124 = vsel %vm1843, %v3123, 0.0
        %3125 = vadd.xlane.f32.xlu0 %v3124
        %v3126 = vpop.xlane.xlu0 %3125
        %v3127 = vrcp.pop %v3126
        %v3128 = vmul.f32 %v3123, %v3127
        %3129 = vrot.lane.b32.xlu0 %v2869, 56
        %v3130 = vpop.permute.xlu0 %3129
        %v3132 = vsel %vm1857, %v3128, 0
        %v3134 = vsel %vm1861, %v3130, 0
        %3136 = vmatprep.subr.mxu0 0.0
        %3137 = vmatpush1.msra.mxu0 %v3134
        %3138 = vmatprep.subr.mxu0 0.0
        %3139 = vmatpush1.msra.mxu0 0.0
        %3140 = vmatprep.subr.mxu0 0.0
        %3141 = vmatpush1.msra.mxu0 0.0
        %3142 = vmatprep.subr.mxu0 0.0
        %3143 = vmatpush1.msra.mxu0 0.0
        %3144 = vmatprep.subr.mxu0 0.0
        %3145 = vmatpush1.msra.mxu0 0.0
        %3146 = vmatprep.subr.mxu0 0.0
        %3147 = vmatpush1.msra.mxu0 0.0
        %3148 = vmatprep.subr.mxu0 0.0
        %3149 = vmatpush1.msra.mxu0 0.0
        %3150 = vmatprep.subr.mxu0 0.0
        %3151 = vmatpush1.msra.mxu0 0.0
        %3152 = vmatprep.subr.mxu0 0.0
        %3153 = vmatpush1.msra.mxu0 0.0
        %3154 = vmatprep.subr.mxu0 0.0
        %3155 = vmatpush1.msra.mxu0 0.0
        %3156 = vmatprep.subr.mxu0 0.0
        %3157 = vmatpush1.msra.mxu0 0.0
        %3158 = vmatprep.subr.mxu0 0.0
        %3159 = vmatpush1.msra.mxu0 0.0
        %3160 = vmatprep.subr.mxu0 0.0
        %3161 = vmatpush1.msra.mxu0 0.0
        %3162 = vmatprep.subr.mxu0 0.0
        %3163 = vmatpush1.msra.mxu0 0.0
        %3164 = vmatprep.subr.mxu0 0.0
        %3165 = vmatpush1.msra.mxu0 0.0
        %3166 = vmatprep.subr.mxu0 0.0
        %3167 = vmatpush1.msra.mxu0 0.0
        %3168 = vmatprep.subr.mxu0 0.0
        %3169 = vmatpush1.msra.mxu0 0.0
        %3170 = vmatprep.subr.mxu0 0.0
        %3171 = vmatpush1.msra.mxu0 0.0
        %3172 = vmatprep.subr.mxu0 0.0
        %3173 = vmatpush1.msra.mxu0 0.0
        %3174 = vmatprep.subr.mxu0 0.0
        %3175 = vmatpush1.msra.mxu0 0.0
        %3176 = vmatprep.subr.mxu0 0.0
        %3177 = vmatpush1.msra.mxu0 0.0
        %3178 = vmatprep.subr.mxu0 0.0
        %3179 = vmatpush1.msra.mxu0 0.0
        %3180 = vmatprep.subr.mxu0 0.0
        %3181 = vmatpush1.msra.mxu0 0.0
        %3182 = vmatprep.subr.mxu0 0.0
        %3183 = vmatpush1.msra.mxu0 0.0
        %3184 = vmatprep.subr.mxu0 0.0
        %3185 = vmatpush1.msra.mxu0 0.0
        %3186 = vmatprep.subr.mxu0 0.0
        %3187 = vmatpush1.msra.mxu0 0.0
        %3188 = vmatprep.subr.mxu0 0.0
        %3189 = vmatpush1.msra.mxu0 0.0
        %3190 = vmatprep.subr.mxu0 0.0
        %3191 = vmatpush1.msra.mxu0 0.0
        %3192 = vmatprep.subr.mxu0 0.0
        %3193 = vmatpush1.msra.mxu0 0.0
        %3194 = vmatprep.subr.mxu0 0.0
        %3195 = vmatpush1.msra.mxu0 0.0
        %3196 = vmatprep.subr.mxu0 0.0
        %3197 = vmatpush1.msra.mxu0 0.0
        %3198 = vmatprep.subr.mxu0 0.0
        %3199 = vmatpush1.msra.mxu0 0.0
        %3200 = vmatprep.mubr.f32.mxu0 0.0
        %3201 = vmatmul.mubr.f32.gmra.mrb[0].mxu0 %v3132
        %v3202 = vpop.f32.mrb[0].mxu0
        %v3203 = vadd.f32 0.0, %v3202
        %v3204 = vpop.f32.mrb[0].mxu0
        %3205 = vdwg.mxu0
        %3207 = vrot.lane.b32.xlu0 %v3203, 8
        %v3208 = vpop.permute.xlu0 %3207
        %3210 = vst.msk [vmem:[#allocation2] sm:$0xf] %vm2107, %v3208
        %3211 = vrot.lane.b32.xlu0 %v2869, 112
        %v3212 = vpop.permute.xlu0 %3211
        %3213 = vrot.lane.b32.xlu0 %v2869, 80
        %v3214 = vpop.permute.xlu0 %3213
        %v3215 = vsel %vm1767, %v3212, 0
        %v3217 = vsel %vm1767, %v3214, 0
        %3219 = vmatprep.subr.mxu0 0.0
        %3220 = vmatpush1.xpose.msra.mxu0 %v3217
        %3221 = vmatprep.subr.mxu0 0.0
        %3222 = vmatpush1.xpose.msra.mxu0 0.0
        %3223 = vmatprep.subr.mxu0 0.0
        %3224 = vmatpush1.xpose.msra.mxu0 0.0
        %3225 = vmatprep.subr.mxu0 0.0
        %3226 = vmatpush1.xpose.msra.mxu0 0.0
        %3227 = vmatprep.subr.mxu0 0.0
        %3228 = vmatpush1.xpose.msra.mxu0 0.0
        %3229 = vmatprep.subr.mxu0 0.0
        %3230 = vmatpush1.xpose.msra.mxu0 0.0
        %3231 = vmatprep.subr.mxu0 0.0
        %3232 = vmatpush1.xpose.msra.mxu0 0.0
        %3233 = vmatprep.subr.mxu0 0.0
        %3234 = vmatpush1.xpose.msra.mxu0 0.0
        %3235 = vmatprep.subr.mxu0 0.0
        %3236 = vmatpush1.xpose.msra.mxu0 0.0
        %3237 = vmatprep.subr.mxu0 0.0
        %3238 = vmatpush1.xpose.msra.mxu0 0.0
        %3239 = vmatprep.subr.mxu0 0.0
        %3240 = vmatpush1.xpose.msra.mxu0 0.0
        %3241 = vmatprep.subr.mxu0 0.0
        %3242 = vmatpush1.xpose.msra.mxu0 0.0
        %3243 = vmatprep.subr.mxu0 0.0
        %3244 = vmatpush1.xpose.msra.mxu0 0.0
        %3245 = vmatprep.subr.mxu0 0.0
        %3246 = vmatpush1.xpose.msra.mxu0 0.0
        %3247 = vmatprep.subr.mxu0 0.0
        %3248 = vmatpush1.xpose.msra.mxu0 0.0
        %3249 = vmatprep.subr.mxu0 0.0
        %3250 = vmatpush1.xpose.msra.mxu0 0.0
        %3251 = vmatprep.subr.mxu0 0.0
        %3252 = vmatpush1.xpose.msra.mxu0 0.0
        %3253 = vmatprep.subr.mxu0 0.0
        %3254 = vmatpush1.xpose.msra.mxu0 0.0
        %3255 = vmatprep.subr.mxu0 0.0
        %3256 = vmatpush1.xpose.msra.mxu0 0.0
        %3257 = vmatprep.subr.mxu0 0.0
        %3258 = vmatpush1.xpose.msra.mxu0 0.0
        %3259 = vmatprep.subr.mxu0 0.0
        %3260 = vmatpush1.xpose.msra.mxu0 0.0
        %3261 = vmatprep.subr.mxu0 0.0
        %3262 = vmatpush1.xpose.msra.mxu0 0.0
        %3263 = vmatprep.subr.mxu0 0.0
        %3264 = vmatpush1.xpose.msra.mxu0 0.0
        %3265 = vmatprep.subr.mxu0 0.0
        %3266 = vmatpush1.xpose.msra.mxu0 0.0
        %3267 = vmatprep.subr.mxu0 0.0
        %3268 = vmatpush1.xpose.msra.mxu0 0.0
        %3269 = vmatprep.subr.mxu0 0.0
        %3270 = vmatpush1.xpose.msra.mxu0 0.0
        %3271 = vmatprep.subr.mxu0 0.0
        %3272 = vmatpush1.xpose.msra.mxu0 0.0
        %3273 = vmatprep.subr.mxu0 0.0
        %3274 = vmatpush1.xpose.msra.mxu0 0.0
        %3275 = vmatprep.subr.mxu0 0.0
        %3276 = vmatpush1.xpose.msra.mxu0 0.0
        %3277 = vmatprep.subr.mxu0 0.0
        %3278 = vmatpush1.xpose.msra.mxu0 0.0
        %3279 = vmatprep.subr.mxu0 0.0
        %3280 = vmatpush1.xpose.msra.mxu0 0.0
        %3281 = vmatprep.subr.mxu0 0.0
        %3282 = vmatpush1.xpose.msra.mxu0 0.0
        %3283 = vmatprep.mubr.f32.mxu0 0.0
        %3284 = vmatmul.mubr.f32.gmra.mrb[0].mxu0 %v3215
        %v3285 = vpop.f32.mrb[0].mxu0
        %v3286 = vadd.f32 0.0, %v3285
        %v3287 = vpop.f32.mrb[0].mxu0
        %3288 = vdwg.mxu0
        %v3289 = vmul.f32 %v3286, 0.35355338
        %v3290 = vsel %vm1843, %v3289, -inf
        %3291 = vmax.xlane.f32.xlu0 %v3290
        %v3292 = vpop.xlane.xlu0 %3291
        %v3293 = vsub.f32 %v3289, %v3292
        %v3294 = vmul.f32 %v3293, 1.442695
        %v3295 = vpow.pop %v3294
        %v3296 = vsel %vm1843, %v3295, 0.0
        %3297 = vadd.xlane.f32.xlu0 %v3296
        %v3298 = vpop.xlane.xlu0 %3297
        %v3299 = vrcp.pop %v3298
        %v3300 = vmul.f32 %v3295, %v3299
        %3301 = vrot.lane.b32.xlu0 %v2869, 48
        %v3302 = vpop.permute.xlu0 %3301
        %v3304 = vsel %vm1857, %v3300, 0
        %v3306 = vsel %vm1861, %v3302, 0
        %3308 = vmatprep.subr.mxu0 0.0
        %3309 = vmatpush1.msra.mxu0 %v3306
        %3310 = vmatprep.subr.mxu0 0.0
        %3311 = vmatpush1.msra.mxu0 0.0
        %3312 = vmatprep.subr.mxu0 0.0
        %3313 = vmatpush1.msra.mxu0 0.0
        %3314 = vmatprep.subr.mxu0 0.0
        %3315 = vmatpush1.msra.mxu0 0.0
        %3316 = vmatprep.subr.mxu0 0.0
        %3317 = vmatpush1.msra.mxu0 0.0
        %3318 = vmatprep.subr.mxu0 0.0
        %3319 = vmatpush1.msra.mxu0 0.0
        %3320 = vmatprep.subr.mxu0 0.0
        %3321 = vmatpush1.msra.mxu0 0.0
        %3322 = vmatprep.subr.mxu0 0.0
        %3323 = vmatpush1.msra.mxu0 0.0
        %3324 = vmatprep.subr.mxu0 0.0
        %3325 = vmatpush1.msra.mxu0 0.0
        %3326 = vmatprep.subr.mxu0 0.0
        %3327 = vmatpush1.msra.mxu0 0.0
        %3328 = vmatprep.subr.mxu0 0.0
        %3329 = vmatpush1.msra.mxu0 0.0
        %3330 = vmatprep.subr.mxu0 0.0
        %3331 = vmatpush1.msra.mxu0 0.0
        %3332 = vmatprep.subr.mxu0 0.0
        %3333 = vmatpush1.msra.mxu0 0.0
        %3334 = vmatprep.subr.mxu0 0.0
        %3335 = vmatpush1.msra.mxu0 0.0
        %3336 = vmatprep.subr.mxu0 0.0
        %3337 = vmatpush1.msra.mxu0 0.0
        %3338 = vmatprep.subr.mxu0 0.0
        %3339 = vmatpush1.msra.mxu0 0.0
        %3340 = vmatprep.subr.mxu0 0.0
        %3341 = vmatpush1.msra.mxu0 0.0
        %3342 = vmatprep.subr.mxu0 0.0
        %3343 = vmatpush1.msra.mxu0 0.0
        %3344 = vmatprep.subr.mxu0 0.0
        %3345 = vmatpush1.msra.mxu0 0.0
        %3346 = vmatprep.subr.mxu0 0.0
        %3347 = vmatpush1.msra.mxu0 0.0
        %3348 = vmatprep.subr.mxu0 0.0
        %3349 = vmatpush1.msra.mxu0 0.0
        %3350 = vmatprep.subr.mxu0 0.0
        %3351 = vmatpush1.msra.mxu0 0.0
        %3352 = vmatprep.subr.mxu0 0.0
        %3353 = vmatpush1.msra.mxu0 0.0
        %3354 = vmatprep.subr.mxu0 0.0
        %3355 = vmatpush1.msra.mxu0 0.0
        %3356 = vmatprep.subr.mxu0 0.0
        %3357 = vmatpush1.msra.mxu0 0.0
        %3358 = vmatprep.subr.mxu0 0.0
        %3359 = vmatpush1.msra.mxu0 0.0
        %3360 = vmatprep.subr.mxu0 0.0
        %3361 = vmatpush1.msra.mxu0 0.0
        %3362 = vmatprep.subr.mxu0 0.0
        %3363 = vmatpush1.msra.mxu0 0.0
        %3364 = vmatprep.subr.mxu0 0.0
        %3365 = vmatpush1.msra.mxu0 0.0
        %3366 = vmatprep.subr.mxu0 0.0
        %3367 = vmatpush1.msra.mxu0 0.0
        %3368 = vmatprep.subr.mxu0 0.0
        %3369 = vmatpush1.msra.mxu0 0.0
        %3370 = vmatprep.subr.mxu0 0.0
        %3371 = vmatpush1.msra.mxu0 0.0
        %3372 = vmatprep.mubr.f32.mxu0 0.0
        %3373 = vmatmul.mubr.f32.gmra.mrb[0].mxu0 %v3304
        %v3374 = vpop.f32.mrb[0].mxu0
        %v3375 = vadd.f32 0.0, %v3374
        %v3376 = vpop.f32.mrb[0].mxu0
        %3377 = vdwg.mxu0
        %3379 = vrot.lane.b32.xlu0 %v3375, 16
        %v3380 = vpop.permute.xlu0 %3379
        %3382 = vst.msk [vmem:[#allocation2] sm:$0xf] %vm2280, %v3380
        %3383 = vrot.lane.b32.xlu0 %v2869, 104
        %v3384 = vpop.permute.xlu0 %3383
        %3385 = vrot.lane.b32.xlu0 %v2869, 72
        %v3386 = vpop.permute.xlu0 %3385
        %v3387 = vsel %vm1767, %v3384, 0
        %v3389 = vsel %vm1767, %v3386, 0
        %3391 = vmatprep.subr.mxu0 0.0
        %3392 = vmatpush1.xpose.msra.mxu0 %v3389
        %3393 = vmatprep.subr.mxu0 0.0
        %3394 = vmatpush1.xpose.msra.mxu0 0.0
        %3395 = vmatprep.subr.mxu0 0.0
        %3396 = vmatpush1.xpose.msra.mxu0 0.0
        %3397 = vmatprep.subr.mxu0 0.0
        %3398 = vmatpush1.xpose.msra.mxu0 0.0
        %3399 = vmatprep.subr.mxu0 0.0
        %3400 = vmatpush1.xpose.msra.mxu0 0.0
        %3401 = vmatprep.subr.mxu0 0.0
        %3402 = vmatpush1.xpose.msra.mxu0 0.0
        %3403 = vmatprep.subr.mxu0 0.0
        %3404 = vmatpush1.xpose.msra.mxu0 0.0
        %3405 = vmatprep.subr.mxu0 0.0
        %3406 = vmatpush1.xpose.msra.mxu0 0.0
        %3407 = vmatprep.subr.mxu0 0.0
        %3408 = vmatpush1.xpose.msra.mxu0 0.0
        %3409 = vmatprep.subr.mxu0 0.0
        %3410 = vmatpush1.xpose.msra.mxu0 0.0
        %3411 = vmatprep.subr.mxu0 0.0
        %3412 = vmatpush1.xpose.msra.mxu0 0.0
        %3413 = vmatprep.subr.mxu0 0.0
        %3414 = vmatpush1.xpose.msra.mxu0 0.0
        %3415 = vmatprep.subr.mxu0 0.0
        %3416 = vmatpush1.xpose.msra.mxu0 0.0
        %3417 = vmatprep.subr.mxu0 0.0
        %3418 = vmatpush1.xpose.msra.mxu0 0.0
        %3419 = vmatprep.subr.mxu0 0.0
        %3420 = vmatpush1.xpose.msra.mxu0 0.0
        %3421 = vmatprep.subr.mxu0 0.0
        %3422 = vmatpush1.xpose.msra.mxu0 0.0
        %3423 = vmatprep.subr.mxu0 0.0
        %3424 = vmatpush1.xpose.msra.mxu0 0.0
        %3425 = vmatprep.subr.mxu0 0.0
        %3426 = vmatpush1.xpose.msra.mxu0 0.0
        %3427 = vmatprep.subr.mxu0 0.0
        %3428 = vmatpush1.xpose.msra.mxu0 0.0
        %3429 = vmatprep.subr.mxu0 0.0
        %3430 = vmatpush1.xpose.msra.mxu0 0.0
        %3431 = vmatprep.subr.mxu0 0.0
        %3432 = vmatpush1.xpose.msra.mxu0 0.0
        %3433 = vmatprep.subr.mxu0 0.0
        %3434 = vmatpush1.xpose.msra.mxu0 0.0
        %3435 = vmatprep.subr.mxu0 0.0
        %3436 = vmatpush1.xpose.msra.mxu0 0.0
        %3437 = vmatprep.subr.mxu0 0.0
        %3438 = vmatpush1.xpose.msra.mxu0 0.0
        %3439 = vmatprep.subr.mxu0 0.0
        %3440 = vmatpush1.xpose.msra.mxu0 0.0
        %3441 = vmatprep.subr.mxu0 0.0
        %3442 = vmatpush1.xpose.msra.mxu0 0.0
        %3443 = vmatprep.subr.mxu0 0.0
        %3444 = vmatpush1.xpose.msra.mxu0 0.0
        %3445 = vmatprep.subr.mxu0 0.0
        %3446 = vmatpush1.xpose.msra.mxu0 0.0
        %3447 = vmatprep.subr.mxu0 0.0
        %3448 = vmatpush1.xpose.msra.mxu0 0.0
        %3449 = vmatprep.subr.mxu0 0.0
        %3450 = vmatpush1.xpose.msra.mxu0 0.0
        %3451 = vmatprep.subr.mxu0 0.0
        %3452 = vmatpush1.xpose.msra.mxu0 0.0
        %3453 = vmatprep.subr.mxu0 0.0
        %3454 = vmatpush1.xpose.msra.mxu0 0.0
        %3455 = vmatprep.mubr.f32.mxu0 0.0
        %3456 = vmatmul.mubr.f32.gmra.mrb[0].mxu0 %v3387
        %v3457 = vpop.f32.mrb[0].mxu0
        %v3458 = vadd.f32 0.0, %v3457
        %v3459 = vpop.f32.mrb[0].mxu0
        %3460 = vdwg.mxu0
        %v3461 = vmul.f32 %v3458, 0.35355338
        %v3462 = vsel %vm1843, %v3461, -inf
        %3463 = vmax.xlane.f32.xlu0 %v3462
        %v3464 = vpop.xlane.xlu0 %3463
        %v3465 = vsub.f32 %v3461, %v3464
        %v3466 = vmul.f32 %v3465, 1.442695
        %v3467 = vpow.pop %v3466
        %v3468 = vsel %vm1843, %v3467, 0.0
        %3469 = vadd.xlane.f32.xlu0 %v3468
        %v3470 = vpop.xlane.xlu0 %3469
        %v3471 = vrcp.pop %v3470
        %v3472 = vmul.f32 %v3467, %v3471
        %3473 = vrot.lane.b32.xlu0 %v2869, 40
        %v3474 = vpop.permute.xlu0 %3473
        %v3476 = vsel %vm1857, %v3472, 0
        %v3478 = vsel %vm1861, %v3474, 0
        %3480 = vmatprep.subr.mxu0 0.0
        %3481 = vmatpush1.msra.mxu0 %v3478
        %3482 = vmatprep.subr.mxu0 0.0
        %3483 = vmatpush1.msra.mxu0 0.0
        %3484 = vmatprep.subr.mxu0 0.0
        %3485 = vmatpush1.msra.mxu0 0.0
        %3486 = vmatprep.subr.mxu0 0.0
        %3487 = vmatpush1.msra.mxu0 0.0
        %3488 = vmatprep.subr.mxu0 0.0
        %3489 = vmatpush1.msra.mxu0 0.0
        %3490 = vmatprep.subr.mxu0 0.0
        %3491 = vmatpush1.msra.mxu0 0.0
        %3492 = vmatprep.subr.mxu0 0.0
        %3493 = vmatpush1.msra.mxu0 0.0
        %3494 = vmatprep.subr.mxu0 0.0
        %3495 = vmatpush1.msra.mxu0 0.0
        %3496 = vmatprep.subr.mxu0 0.0
        %3497 = vmatpush1.msra.mxu0 0.0
        %3498 = vmatprep.subr.mxu0 0.0
        %3499 = vmatpush1.msra.mxu0 0.0
        %3500 = vmatprep.subr.mxu0 0.0
        %3501 = vmatpush1.msra.mxu0 0.0
        %3502 = vmatprep.subr.mxu0 0.0
        %3503 = vmatpush1.msra.mxu0 0.0
        %3504 = vmatprep.subr.mxu0 0.0
        %3505 = vmatpush1.msra.mxu0 0.0
        %3506 = vmatprep.subr.mxu0 0.0
        %3507 = vmatpush1.msra.mxu0 0.0
        %3508 = vmatprep.subr.mxu0 0.0
        %3509 = vmatpush1.msra.mxu0 0.0
        %3510 = vmatprep.subr.mxu0 0.0
        %3511 = vmatpush1.msra.mxu0 0.0
        %3512 = vmatprep.subr.mxu0 0.0
        %3513 = vmatpush1.msra.mxu0 0.0
        %3514 = vmatprep.subr.mxu0 0.0
        %3515 = vmatpush1.msra.mxu0 0.0
        %3516 = vmatprep.subr.mxu0 0.0
        %3517 = vmatpush1.msra.mxu0 0.0
        %3518 = vmatprep.subr.mxu0 0.0
        %3519 = vmatpush1.msra.mxu0 0.0
        %3520 = vmatprep.subr.mxu0 0.0
        %3521 = vmatpush1.msra.mxu0 0.0
        %3522 = vmatprep.subr.mxu0 0.0
        %3523 = vmatpush1.msra.mxu0 0.0
        %3524 = vmatprep.subr.mxu0 0.0
        %3525 = vmatpush1.msra.mxu0 0.0
        %3526 = vmatprep.subr.mxu0 0.0
        %3527 = vmatpush1.msra.mxu0 0.0
        %3528 = vmatprep.subr.mxu0 0.0
        %3529 = vmatpush1.msra.mxu0 0.0
        %3530 = vmatprep.subr.mxu0 0.0
        %3531 = vmatpush1.msra.mxu0 0.0
        %3532 = vmatprep.subr.mxu0 0.0
        %3533 = vmatpush1.msra.mxu0 0.0
        %3534 = vmatprep.subr.mxu0 0.0
        %3535 = vmatpush1.msra.mxu0 0.0
        %3536 = vmatprep.subr.mxu0 0.0
        %3537 = vmatpush1.msra.mxu0 0.0
        %3538 = vmatprep.subr.mxu0 0.0
        %3539 = vmatpush1.msra.mxu0 0.0
        %3540 = vmatprep.subr.mxu0 0.0
        %3541 = vmatpush1.msra.mxu0 0.0
        %3542 = vmatprep.subr.mxu0 0.0
        %3543 = vmatpush1.msra.mxu0 0.0
        %3544 = vmatprep.mubr.f32.mxu0 0.0
        %3545 = vmatmul.mubr.f32.gmra.mrb[0].mxu0 %v3476
        %v3546 = vpop.f32.mrb[0].mxu0
        %v3547 = vadd.f32 0.0, %v3546
        %v3548 = vpop.f32.mrb[0].mxu0
        %3549 = vdwg.mxu0
        %3551 = vrot.lane.b32.xlu0 %v3547, 24
        %v3552 = vpop.permute.xlu0 %3551
        %3554 = vst.msk [vmem:[#allocation2] sm:$0xf] %vm2453, %v3552
        %v3555 = vld [vmem:[#allocation2] sm:$0xf]
        %v3557 = vlaneseq
        %v3558 = vshrl.u32 %v3557, 7
        %v3559 = vsub.s32 0, %v3558
        %v3560 = vrot.slane %v2766, %v3559
        %v3563 = vsel %vm1690, %v3555, 0
        %3565 = vmatprep.subr.mxu0 0.0
        %3566 = vmatpush1.msra.mxu0 %v2761
        %3567 = vmatprep.subr.mxu0 0.0
        %3568 = vmatpush1.msra.mxu0 %v2762
        %3569 = vmatprep.subr.mxu0 0.0
        %3570 = vmatpush1.msra.mxu0 %v2763
        %3571 = vmatprep.subr.mxu0 0.0
        %3572 = vmatpush1.msra.mxu0 %v2764
        %3573 = vmatprep.subr.mxu0 0.0
        %3574 = vmatpush1.msra.mxu0 0.0
        %3575 = vmatprep.subr.mxu0 0.0
        %3576 = vmatpush1.msra.mxu0 0.0
        %3577 = vmatprep.subr.mxu0 0.0
        %3578 = vmatpush1.msra.mxu0 0.0
        %3579 = vmatprep.subr.mxu0 0.0
        %3580 = vmatpush1.msra.mxu0 0.0
        %3581 = vmatprep.subr.mxu0 0.0
        %3582 = vmatpush1.msra.mxu0 0.0
        %3583 = vmatprep.subr.mxu0 0.0
        %3584 = vmatpush1.msra.mxu0 0.0
        %3585 = vmatprep.subr.mxu0 0.0
        %3586 = vmatpush1.msra.mxu0 0.0
        %3587 = vmatprep.subr.mxu0 0.0
        %3588 = vmatpush1.msra.mxu0 0.0
        %3589 = vmatprep.subr.mxu0 0.0
        %3590 = vmatpush1.msra.mxu0 0.0
        %3591 = vmatprep.subr.mxu0 0.0
        %3592 = vmatpush1.msra.mxu0 0.0
        %3593 = vmatprep.subr.mxu0 0.0
        %3594 = vmatpush1.msra.mxu0 0.0
        %3595 = vmatprep.subr.mxu0 0.0
        %3596 = vmatpush1.msra.mxu0 0.0
        %3597 = vmatprep.subr.mxu0 0.0
        %3598 = vmatpush1.msra.mxu0 0.0
        %3599 = vmatprep.subr.mxu0 0.0
        %3600 = vmatpush1.msra.mxu0 0.0
        %3601 = vmatprep.subr.mxu0 0.0
        %3602 = vmatpush1.msra.mxu0 0.0
        %3603 = vmatprep.subr.mxu0 0.0
        %3604 = vmatpush1.msra.mxu0 0.0
        %3605 = vmatprep.subr.mxu0 0.0
        %3606 = vmatpush1.msra.mxu0 0.0
        %3607 = vmatprep.subr.mxu0 0.0
        %3608 = vmatpush1.msra.mxu0 0.0
        %3609 = vmatprep.subr.mxu0 0.0
        %3610 = vmatpush1.msra.mxu0 0.0
        %3611 = vmatprep.subr.mxu0 0.0
        %3612 = vmatpush1.msra.mxu0 0.0
        %3613 = vmatprep.subr.mxu0 0.0
        %3614 = vmatpush1.msra.mxu0 0.0
        %3615 = vmatprep.subr.mxu0 0.0
        %3616 = vmatpush1.msra.mxu0 0.0
        %3617 = vmatprep.subr.mxu0 0.0
        %3618 = vmatpush1.msra.mxu0 0.0
        %3619 = vmatprep.subr.mxu0 0.0
        %3620 = vmatpush1.msra.mxu0 0.0
        %3621 = vmatprep.subr.mxu0 0.0
        %3622 = vmatpush1.msra.mxu0 0.0
        %3623 = vmatprep.subr.mxu0 0.0
        %3624 = vmatpush1.msra.mxu0 0.0
        %3625 = vmatprep.subr.mxu0 0.0
        %3626 = vmatpush1.msra.mxu0 0.0
        %3627 = vmatprep.subr.mxu0 0.0
        %3628 = vmatpush1.msra.mxu0 0.0
        %3629 = vmatprep.mubr.f32.mxu0 0.0
        %3630 = vmatmul.mubr.f32.gmra.mrb[0].mxu0 %v3563
        %v3631 = vpop.f32.mrb[0].mxu0
        %v3632 = vadd.f32 %v3560, %v3631
        %v3633 = vpop.f32.mrb[0].mxu0
        %3634 = vdwg.mxu0
        %v3635 = vadd.f32 %v2752, %v3632
        %v3636 = vsel %vm2536, %v3635, 0.0
        %3637 = vadd.xlane.f32.xlu0 %v3636
        %v3638 = vpop.xlane.xlu0 %3637
        %v3639 = vmul.f32 %v3638, %v2540
        %v3640 = vsub.f32 %v3635, %v3639
        %v3641 = vmul.f32 %v3640, %v3640
        %v3642 = vsel %vm2536, %v3641, 0.0
        %3643 = vadd.xlane.f32.xlu0 %v3642
        %v3644 = vpop.xlane.xlu0 %3643
        %v3645 = vmul.f32 %v3644, %v2540
        %v3646 = vadd.f32 %v3645, 1e-05
        %v3647 = vrsqrt.pop %v3646
        %v3648 = vmul.f32 %v3640, %v3647
        %v3650 = vlaneseq
        %v3651 = vshrl.u32 %v3650, 7
        %v3652 = vsub.s32 0, %v3651
        %v3653 = vrot.slane %v2768, %v3652
        %v3655 = vmul.f32 %v3648, %v3653
        %v3657 = vlaneseq
        %v3658 = vshrl.u32 %v3657, 7
        %v3659 = vsub.s32 0, %v3658
        %v3660 = vrot.slane %v2770, %v3659
        %v3662 = vadd.f32 %v3655, %v3660
        %v3664 = vlaneseq
        %v3665 = vshrl.u32 %v3664, 7
        %v3666 = vsub.s32 0, %v3665
        %v3667 = vrot.slane %v2777, %v3666
        %v3670 = vsel %vm1690, %v3662, 0
        %3672 = vmatprep.subr.mxu0 0.0
        %3673 = vmatpush1.msra.mxu0 %v2772
        %3674 = vmatprep.subr.mxu0 0.0
        %3675 = vmatpush1.msra.mxu0 %v2773
        %3676 = vmatprep.subr.mxu0 0.0
        %3677 = vmatpush1.msra.mxu0 %v2774
        %3678 = vmatprep.subr.mxu0 0.0
        %3679 = vmatpush1.msra.mxu0 %v2775
        %3680 = vmatprep.subr.mxu0 0.0
        %3681 = vmatpush1.msra.mxu0 0.0
        %3682 = vmatprep.subr.mxu0 0.0
        %3683 = vmatpush1.msra.mxu0 0.0
        %3684 = vmatprep.subr.mxu0 0.0
        %3685 = vmatpush1.msra.mxu0 0.0
        %3686 = vmatprep.subr.mxu0 0.0
        %3687 = vmatpush1.msra.mxu0 0.0
        %3688 = vmatprep.subr.mxu0 0.0
        %3689 = vmatpush1.msra.mxu0 0.0
        %3690 = vmatprep.subr.mxu0 0.0
        %3691 = vmatpush1.msra.mxu0 0.0
        %3692 = vmatprep.subr.mxu0 0.0
        %3693 = vmatpush1.msra.mxu0 0.0
        %3694 = vmatprep.subr.mxu0 0.0
        %3695 = vmatpush1.msra.mxu0 0.0
        %3696 = vmatprep.subr.mxu0 0.0
        %3697 = vmatpush1.msra.mxu0 0.0
        %3698 = vmatprep.subr.mxu0 0.0
        %3699 = vmatpush1.msra.mxu0 0.0
        %3700 = vmatprep.subr.mxu0 0.0
        %3701 = vmatpush1.msra.mxu0 0.0
        %3702 = vmatprep.subr.mxu0 0.0
        %3703 = vmatpush1.msra.mxu0 0.0
        %3704 = vmatprep.subr.mxu0 0.0
        %3705 = vmatpush1.msra.mxu0 0.0
        %3706 = vmatprep.subr.mxu0 0.0
        %3707 = vmatpush1.msra.mxu0 0.0
        %3708 = vmatprep.subr.mxu0 0.0
        %3709 = vmatpush1.msra.mxu0 0.0
        %3710 = vmatprep.subr.mxu0 0.0
        %3711 = vmatpush1.msra.mxu0 0.0
        %3712 = vmatprep.subr.mxu0 0.0
        %3713 = vmatpush1.msra.mxu0 0.0
        %3714 = vmatprep.subr.mxu0 0.0
        %3715 = vmatpush1.msra.mxu0 0.0
        %3716 = vmatprep.subr.mxu0 0.0
        %3717 = vmatpush1.msra.mxu0 0.0
        %3718 = vmatprep.subr.mxu0 0.0
        %3719 = vmatpush1.msra.mxu0 0.0
        %3720 = vmatprep.subr.mxu0 0.0
        %3721 = vmatpush1.msra.mxu0 0.0
        %3722 = vmatprep.subr.mxu0 0.0
        %3723 = vmatpush1.msra.mxu0 0.0
        %3724 = vmatprep.subr.mxu0 0.0
        %3725 = vmatpush1.msra.mxu0 0.0
        %3726 = vmatprep.subr.mxu0 0.0
        %3727 = vmatpush1.msra.mxu0 0.0
        %3728 = vmatprep.subr.mxu0 0.0
        %3729 = vmatpush1.msra.mxu0 0.0
        %3730 = vmatprep.subr.mxu0 0.0
        %3731 = vmatpush1.msra.mxu0 0.0
        %3732 = vmatprep.subr.mxu0 0.0
        %3733 = vmatpush1.msra.mxu0 0.0
        %3734 = vmatprep.subr.mxu0 0.0
        %3735 = vmatpush1.msra.mxu0 0.0
        %3736 = vmatprep.mubr.f32.mxu0 0.0
        %3737 = vmatmul.mubr.f32.gmra.mrb[0].mxu0 %v3670
        %v3738 = vpop.f32.mrb[0].mxu0
        %v3739 = vadd.f32 %v3667, %v3738
        %v3740 = vpop.f32.mrb[0].mxu0
        %3741 = vdwg.mxu0
        %v3742 = vmax.f32 %v3739, 0.0
        %v3744 = vlaneseq
        %v3745 = vshrl.u32 %v3744, 7
        %v3746 = vsub.s32 0, %v3745
        %v3747 = vrot.slane %v2788, %v3746
        %v3750 = vsel %vm2651, %v3742, 0
        %3752 = vmatprep.subr.mxu0 0.0
        %3753 = vmatpush1.msra.mxu0 %v2779
        %3754 = vmatprep.subr.mxu0 0.0
        %3755 = vmatpush1.msra.mxu0 %v2780
        %3756 = vmatprep.subr.mxu0 0.0
        %3757 = vmatpush1.msra.mxu0 %v2781
        %3758 = vmatprep.subr.mxu0 0.0
        %3759 = vmatpush1.msra.mxu0 %v2782
        %3760 = vmatprep.subr.mxu0 0.0
        %3761 = vmatpush1.msra.mxu0 %v2783
        %3762 = vmatprep.subr.mxu0 0.0
        %3763 = vmatpush1.msra.mxu0 %v2784
        %3764 = vmatprep.subr.mxu0 0.0
        %3765 = vmatpush1.msra.mxu0 %v2785
        %3766 = vmatprep.subr.mxu0 0.0
        %3767 = vmatpush1.msra.mxu0 %v2786
        %3768 = vmatprep.subr.mxu0 0.0
        %3769 = vmatpush1.msra.mxu0 0.0
        %3770 = vmatprep.subr.mxu0 0.0
        %3771 = vmatpush1.msra.mxu0 0.0
        %3772 = vmatprep.subr.mxu0 0.0
        %3773 = vmatpush1.msra.mxu0 0.0
        %3774 = vmatprep.subr.mxu0 0.0
        %3775 = vmatpush1.msra.mxu0 0.0
        %3776 = vmatprep.subr.mxu0 0.0
        %3777 = vmatpush1.msra.mxu0 0.0
        %3778 = vmatprep.subr.mxu0 0.0
        %3779 = vmatpush1.msra.mxu0 0.0
        %3780 = vmatprep.subr.mxu0 0.0
        %3781 = vmatpush1.msra.mxu0 0.0
        %3782 = vmatprep.subr.mxu0 0.0
        %3783 = vmatpush1.msra.mxu0 0.0
        %3784 = vmatprep.subr.mxu0 0.0
        %3785 = vmatpush1.msra.mxu0 0.0
        %3786 = vmatprep.subr.mxu0 0.0
        %3787 = vmatpush1.msra.mxu0 0.0
        %3788 = vmatprep.subr.mxu0 0.0
        %3789 = vmatpush1.msra.mxu0 0.0
        %3790 = vmatprep.subr.mxu0 0.0
        %3791 = vmatpush1.msra.mxu0 0.0
        %3792 = vmatprep.subr.mxu0 0.0
        %3793 = vmatpush1.msra.mxu0 0.0
        %3794 = vmatprep.subr.mxu0 0.0
        %3795 = vmatpush1.msra.mxu0 0.0
        %3796 = vmatprep.subr.mxu0 0.0
        %3797 = vmatpush1.msra.mxu0 0.0
        %3798 = vmatprep.subr.mxu0 0.0
        %3799 = vmatpush1.msra.mxu0 0.0
        %3800 = vmatprep.subr.mxu0 0.0
        %3801 = vmatpush1.msra.mxu0 0.0
        %3802 = vmatprep.subr.mxu0 0.0
        %3803 = vmatpush1.msra.mxu0 0.0
        %3804 = vmatprep.subr.mxu0 0.0
        %3805 = vmatpush1.msra.mxu0 0.0
        %3806 = vmatprep.subr.mxu0 0.0
        %3807 = vmatpush1.msra.mxu0 0.0
        %3808 = vmatprep.subr.mxu0 0.0
        %3809 = vmatpush1.msra.mxu0 0.0
        %3810 = vmatprep.subr.mxu0 0.0
        %3811 = vmatpush1.msra.mxu0 0.0
        %3812 = vmatprep.subr.mxu0 0.0
        %3813 = vmatpush1.msra.mxu0 0.0
        %3814 = vmatprep.subr.mxu0 0.0
        %3815 = vmatpush1.msra.mxu0 0.0
        %3816 = vmatprep.mubr.f32.mxu0 0.0
        %3817 = vmatmul.mubr.f32.gmra.mrb[0].mxu0 %v3750
        %v3818 = vpop.f32.mrb[0].mxu0
        %v3819 = vadd.f32 %v3747, %v3818
        %v3820 = vpop.f32.mrb[0].mxu0
        %3821 = vdwg.mxu0
        %v3822 = vadd.f32 %v3662, %v3819
        %v3823 = vsel %vm2536, %v3822, 0.0
        %3824 = vadd.xlane.f32.xlu0 %v3823
        %v3825 = vpop.xlane.xlu0 %3824
        %v3826 = vmul.f32 %v3825, %v2540
        %v3827 = vsub.f32 %v3822, %v3826
        %v3828 = vmul.f32 %v3827, %v3827
        %v3829 = vsel %vm2536, %v3828, 0.0
        %3830 = vadd.xlane.f32.xlu0 %v3829
        %v3831 = vpop.xlane.xlu0 %3830
        %v3832 = vmul.f32 %v3831, %v2540
        %v3833 = vadd.f32 %v3832, 1e-05
        %v3834 = vrsqrt.pop %v3833
        %v3835 = vmul.f32 %v3827, %v3834
        %v3837 = vlaneseq
        %v3838 = vshrl.u32 %v3837, 7
        %v3839 = vsub.s32 0, %v3838
        %v3840 = vrot.slane %v2790, %v3839
        %v3842 = vmul.f32 %v3835, %v3840
        %v3844 = vlaneseq
        %v3845 = vshrl.u32 %v3844, 7
        %v3846 = vsub.s32 0, %v3845
        %v3847 = vrot.slane %v2792, %v3846
        %v3849 = vadd.f32 %v3842, %v3847
        %v3850 = vld [vmem:[%s33] sm:$0x1]
        %v3851 = vld [vmem:[%s35] sm:$0x1]
        %v3852 = vsel %vm2536, %v3849, 0.0
        %3853 = vadd.xlane.f32.xlu0 %v3852
        %v3854 = vpop.xlane.xlu0 %3853
        %v3855 = vmul.f32 %v3854, %v2540
        %v3856 = vsub.f32 %v3849, %v3855
        %v3857 = vmul.f32 %v3856, %v3856
        %v3858 = vsel %vm2536, %v3857, 0.0
        %3859 = vadd.xlane.f32.xlu0 %v3858
        %v3860 = vpop.xlane.xlu0 %3859
        %v3861 = vmul.f32 %v3860, %v2540
        %v3862 = vadd.f32 %v3861, 1e-05
        %v3863 = vrsqrt.pop %v3862
        %v3864 = vmul.f32 %v3856, %v3863
        %v3866 = vlaneseq
        %v3867 = vshrl.u32 %v3866, 7
        %v3868 = vsub.s32 0, %v3867
        %v3869 = vrot.slane %v3850, %v3868
        %v3871 = vmul.f32 %v3864, %v3869
        %v3873 = vlaneseq
        %v3874 = vshrl.u32 %v3873, 7
        %v3875 = vsub.s32 0, %v3874
        %v3876 = vrot.slane %v3851, %v3875
        %v3878 = vadd.f32 %v3871, %v3876
        %v3879 = vld [vmem:[%s1561] sm:$0xf]
        %v3880 = vld [vmem:[%s37] sm:$0xff]
        %v3881 = vld [vmem:[%s37 + $0x8] sm:$0xff]
        %v3882 = vld [vmem:[%s37 + $0x10] sm:$0xff]
        %v3883 = vld [vmem:[%s37 + $0x18] sm:$0xff]
        %v3884 = vld [vmem:[#allocation7] sm:$0x1]
        %v3885 = vld [vmem:[%s41] sm:$0xff]
        %v3886 = vld [vmem:[%s41 + $0x8] sm:$0xff]
        %v3887 = vld [vmem:[%s41 + $0x10] sm:$0xff]
        %v3888 = vld [vmem:[%s41 + $0x18] sm:$0xff]
        %v3889 = vld [vmem:[#allocation8] sm:$0x1]
        %v3890 = vld [vmem:[#allocation10] sm:$0x1]
        %v3891 = vld [vmem:[#allocation11] sm:$0x1]
        %v3892 = vld [vmem:[%s49] sm:$0xff]
        %v3893 = vld [vmem:[%s49 + $0x8] sm:$0xff]
        %v3894 = vld [vmem:[%s49 + $0x10] sm:$0xff]
        %v3895 = vld [vmem:[%s49 + $0x18] sm:$0xff]
        %v3896 = vld [vmem:[#allocation13] sm:$0x1]
        %v3897 = vld [vmem:[#allocation14] sm:$0xff]
        %v3898 = vld [vmem:[#allocation14 + $0x8] sm:$0xff]
        %v3899 = vld [vmem:[#allocation14 + $0x10] sm:$0xff]
        %v3900 = vld [vmem:[#allocation14 + $0x18] sm:$0xff]
        %v3901 = vld [vmem:[#allocation16] sm:$0x1]
        %v3902 = vld [vmem:[#allocation17] sm:$0xff]
        %v3903 = vld [vmem:[#allocation17 + $0x8] sm:$0xff]
        %v3904 = vld [vmem:[#allocation17 + $0x10] sm:$0xff]
        %v3905 = vld [vmem:[#allocation17 + $0x18] sm:$0xff]
        %v3906 = vld [vmem:[#allocation19] sm:$0x1]
        %v3907 = vld [vmem:[#allocation20] sm:$0x1]
        %v3908 = vld [vmem:[#allocation22] sm:$0x1]
        %v3909 = vld [vmem:[#allocation23] sm:$0xff]
        %v3910 = vld [vmem:[#allocation23 + $0x8] sm:$0xff]
        %v3911 = vld [vmem:[#allocation23 + $0x10] sm:$0xff]
        %v3912 = vld [vmem:[#allocation23 + $0x18] sm:$0xff]
        %v3913 = vld [vmem:[#allocation25] sm:$0x1]
        %v3914 = vld [vmem:[%s69] sm:$0xff]
        %v3915 = vld [vmem:[%s69 + $0x8] sm:$0xff]
        %v3916 = vld [vmem:[%s69 + $0x10] sm:$0xff]
        %v3917 = vld [vmem:[%s69 + $0x18] sm:$0xff]
        %v3918 = vld [vmem:[%s69 + $0x20] sm:$0xff]
        %v3919 = vld [vmem:[%s69 + $0x28] sm:$0xff]
        %v3920 = vld [vmem:[%s69 + $0x30] sm:$0xff]
        %v3921 = vld [vmem:[%s69 + $0x38] sm:$0xff]
        %v3922 = vld [vmem:[#allocation26] sm:$0x1]
        %v3923 = vld [vmem:[#allocation28] sm:$0x1]
        %v3924 = vld [vmem:[#allocation29] sm:$0x1]
        %v3926 = vlaneseq
        %v3927 = vshrl.u32 %v3926, 7
        %v3928 = vsub.s32 0, %v3927
        %v3929 = vrot.slane %v3884, %v3928
        %v3932 = vsel %vm1690, %v3879, 0
        %3934 = vmatprep.subr.mxu0 0.0
        %3935 = vmatpush1.msra.mxu0 %v3880
        %3936 = vmatprep.subr.mxu0 0.0
        %3937 = vmatpush1.msra.mxu0 %v3881
        %3938 = vmatprep.subr.mxu0 0.0
        %3939 = vmatpush1.msra.mxu0 %v3882
        %3940 = vmatprep.subr.mxu0 0.0
        %3941 = vmatpush1.msra.mxu0 %v3883
        %3942 = vmatprep.subr.mxu0 0.0
        %3943 = vmatpush1.msra.mxu0 0.0
        %3944 = vmatprep.subr.mxu0 0.0
        %3945 = vmatpush1.msra.mxu0 0.0
        %3946 = vmatprep.subr.mxu0 0.0
        %3947 = vmatpush1.msra.mxu0 0.0
        %3948 = vmatprep.subr.mxu0 0.0
        %3949 = vmatpush1.msra.mxu0 0.0
        %3950 = vmatprep.subr.mxu0 0.0
        %3951 = vmatpush1.msra.mxu0 0.0
        %3952 = vmatprep.subr.mxu0 0.0
        %3953 = vmatpush1.msra.mxu0 0.0
        %3954 = vmatprep.subr.mxu0 0.0
        %3955 = vmatpush1.msra.mxu0 0.0
        %3956 = vmatprep.subr.mxu0 0.0
        %3957 = vmatpush1.msra.mxu0 0.0
        %3958 = vmatprep.subr.mxu0 0.0
        %3959 = vmatpush1.msra.mxu0 0.0
        %3960 = vmatprep.subr.mxu0 0.0
        %3961 = vmatpush1.msra.mxu0 0.0
        %3962 = vmatprep.subr.mxu0 0.0
        %3963 = vmatpush1.msra.mxu0 0.0
        %3964 = vmatprep.subr.mxu0 0.0
        %3965 = vmatpush1.msra.mxu0 0.0
        %3966 = vmatprep.subr.mxu0 0.0
        %3967 = vmatpush1.msra.mxu0 0.0
        %3968 = vmatprep.subr.mxu0 0.0
        %3969 = vmatpush1.msra.mxu0 0.0
        %3970 = vmatprep.subr.mxu0 0.0
        %3971 = vmatpush1.msra.mxu0 0.0
        %3972 = vmatprep.subr.mxu0 0.0
        %3973 = vmatpush1.msra.mxu0 0.0
        %3974 = vmatprep.subr.mxu0 0.0
        %3975 = vmatpush1.msra.mxu0 0.0
        %3976 = vmatprep.subr.mxu0 0.0
        %3977 = vmatpush1.msra.mxu0 0.0
        %3978 = vmatprep.subr.mxu0 0.0
        %3979 = vmatpush1.msra.mxu0 0.0
        %3980 = vmatprep.subr.mxu0 0.0
        %3981 = vmatpush1.msra.mxu0 0.0
        %3982 = vmatprep.subr.mxu0 0.0
        %3983 = vmatpush1.msra.mxu0 0.0
        %3984 = vmatprep.subr.mxu0 0.0
        %3985 = vmatpush1.msra.mxu0 0.0
        %3986 = vmatprep.subr.mxu0 0.0
        %3987 = vmatpush1.msra.mxu0 0.0
        %3988 = vmatprep.subr.mxu0 0.0
        %3989 = vmatpush1.msra.mxu0 0.0
        %3990 = vmatprep.subr.mxu0 0.0
        %3991 = vmatpush1.msra.mxu0 0.0
        %3992 = vmatprep.subr.mxu0 0.0
        %3993 = vmatpush1.msra.mxu0 0.0
        %3994 = vmatprep.subr.mxu0 0.0
        %3995 = vmatpush1.msra.mxu0 0.0
        %3996 = vmatprep.subr.mxu0 0.0
        %3997 = vmatpush1.msra.mxu0 0.0
        %3998 = vmatprep.mubr.f32.mxu0 0.0
        %3999 = vmatmul.mubr.f32.gmra.mrb[0].mxu0 %v3932
        %v4000 = vpop.f32.mrb[0].mxu0
        %v4001 = vadd.f32 %v3929, %v4000
        %v4002 = vpop.f32.mrb[0].mxu0
        %4003 = vdwg.mxu0
        %4005 = vrot.lane.b32.xlu0 %v4001, 96
        %v4006 = vpop.permute.xlu0 %4005
        %v4007 = vsel %vm1767, %v4001, 0
        %v4009 = vsel %vm1767, %v4006, 0
        %4011 = vmatprep.subr.mxu0 0.0
        %4012 = vmatpush1.xpose.msra.mxu0 %v4009
        %4013 = vmatprep.subr.mxu0 0.0
        %4014 = vmatpush1.xpose.msra.mxu0 0.0
        %4015 = vmatprep.subr.mxu0 0.0
        %4016 = vmatpush1.xpose.msra.mxu0 0.0
        %4017 = vmatprep.subr.mxu0 0.0
        %4018 = vmatpush1.xpose.msra.mxu0 0.0
        %4019 = vmatprep.subr.mxu0 0.0
        %4020 = vmatpush1.xpose.msra.mxu0 0.0
        %4021 = vmatprep.subr.mxu0 0.0
        %4022 = vmatpush1.xpose.msra.mxu0 0.0
        %4023 = vmatprep.subr.mxu0 0.0
        %4024 = vmatpush1.xpose.msra.mxu0 0.0
        %4025 = vmatprep.subr.mxu0 0.0
        %4026 = vmatpush1.xpose.msra.mxu0 0.0
        %4027 = vmatprep.subr.mxu0 0.0
        %4028 = vmatpush1.xpose.msra.mxu0 0.0
        %4029 = vmatprep.subr.mxu0 0.0
        %4030 = vmatpush1.xpose.msra.mxu0 0.0
        %4031 = vmatprep.subr.mxu0 0.0
        %4032 = vmatpush1.xpose.msra.mxu0 0.0
        %4033 = vmatprep.subr.mxu0 0.0
        %4034 = vmatpush1.xpose.msra.mxu0 0.0
        %4035 = vmatprep.subr.mxu0 0.0
        %4036 = vmatpush1.xpose.msra.mxu0 0.0
        %4037 = vmatprep.subr.mxu0 0.0
        %4038 = vmatpush1.xpose.msra.mxu0 0.0
        %4039 = vmatprep.subr.mxu0 0.0
        %4040 = vmatpush1.xpose.msra.mxu0 0.0
        %4041 = vmatprep.subr.mxu0 0.0
        %4042 = vmatpush1.xpose.msra.mxu0 0.0
        %4043 = vmatprep.subr.mxu0 0.0
        %4044 = vmatpush1.xpose.msra.mxu0 0.0
        %4045 = vmatprep.subr.mxu0 0.0
        %4046 = vmatpush1.xpose.msra.mxu0 0.0
        %4047 = vmatprep.subr.mxu0 0.0
        %4048 = vmatpush1.xpose.msra.mxu0 0.0
        %4049 = vmatprep.subr.mxu0 0.0
        %4050 = vmatpush1.xpose.msra.mxu0 0.0
        %4051 = vmatprep.subr.mxu0 0.0
        %4052 = vmatpush1.xpose.msra.mxu0 0.0
        %4053 = vmatprep.subr.mxu0 0.0
        %4054 = vmatpush1.xpose.msra.mxu0 0.0
        %4055 = vmatprep.subr.mxu0 0.0
        %4056 = vmatpush1.xpose.msra.mxu0 0.0
        %4057 = vmatprep.subr.mxu0 0.0
        %4058 = vmatpush1.xpose.msra.mxu0 0.0
        %4059 = vmatprep.subr.mxu0 0.0
        %4060 = vmatpush1.xpose.msra.mxu0 0.0
        %4061 = vmatprep.subr.mxu0 0.0
        %4062 = vmatpush1.xpose.msra.mxu0 0.0
        %4063 = vmatprep.subr.mxu0 0.0
        %4064 = vmatpush1.xpose.msra.mxu0 0.0
        %4065 = vmatprep.subr.mxu0 0.0
        %4066 = vmatpush1.xpose.msra.mxu0 0.0
        %4067 = vmatprep.subr.mxu0 0.0
        %4068 = vmatpush1.xpose.msra.mxu0 0.0
        %4069 = vmatprep.subr.mxu0 0.0
        %4070 = vmatpush1.xpose.msra.mxu0 0.0
        %4071 = vmatprep.subr.mxu0 0.0
        %4072 = vmatpush1.xpose.msra.mxu0 0.0
        %4073 = vmatprep.subr.mxu0 0.0
        %4074 = vmatpush1.xpose.msra.mxu0 0.0
        %4075 = vmatprep.mubr.f32.mxu0 0.0
        %4076 = vmatmul.mubr.f32.gmra.mrb[0].mxu0 %v4007
        %v4077 = vpop.f32.mrb[0].mxu0
        %v4078 = vadd.f32 0.0, %v4077
        %v4079 = vpop.f32.mrb[0].mxu0
        %4080 = vdwg.mxu0
        %v4081 = vmul.f32 %v4078, 0.35355338
        %v4082 = vsel %vm1843, %v4081, -inf
        %4083 = vmax.xlane.f32.xlu0 %v4082
        %v4084 = vpop.xlane.xlu0 %4083
        %v4085 = vsub.f32 %v4081, %v4084
        %v4086 = vmul.f32 %v4085, 1.442695
        %v4087 = vpow.pop %v4086
        %v4088 = vsel %vm1843, %v4087, 0.0
        %4089 = vadd.xlane.f32.xlu0 %v4088
        %v4090 = vpop.xlane.xlu0 %4089
        %v4091 = vrcp.pop %v4090
        %v4092 = vmul.f32 %v4087, %v4091
        %4093 = vrot.lane.b32.xlu0 %v4001, 64
        %v4094 = vpop.permute.xlu0 %4093
        %v4096 = vsel %vm1857, %v4092, 0
        %v4098 = vsel %vm1861, %v4094, 0
        %4100 = vmatprep.subr.mxu0 0.0
        %4101 = vmatpush1.msra.mxu0 %v4098
        %4102 = vmatprep.subr.mxu0 0.0
        %4103 = vmatpush1.msra.mxu0 0.0
        %4104 = vmatprep.subr.mxu0 0.0
        %4105 = vmatpush1.msra.mxu0 0.0
        %4106 = vmatprep.subr.mxu0 0.0
        %4107 = vmatpush1.msra.mxu0 0.0
        %4108 = vmatprep.subr.mxu0 0.0
        %4109 = vmatpush1.msra.mxu0 0.0
        %4110 = vmatprep.subr.mxu0 0.0
        %4111 = vmatpush1.msra.mxu0 0.0
        %4112 = vmatprep.subr.mxu0 0.0
        %4113 = vmatpush1.msra.mxu0 0.0
        %4114 = vmatprep.subr.mxu0 0.0
        %4115 = vmatpush1.msra.mxu0 0.0
        %4116 = vmatprep.subr.mxu0 0.0
        %4117 = vmatpush1.msra.mxu0 0.0
        %4118 = vmatprep.subr.mxu0 0.0
        %4119 = vmatpush1.msra.mxu0 0.0
        %4120 = vmatprep.subr.mxu0 0.0
        %4121 = vmatpush1.msra.mxu0 0.0
        %4122 = vmatprep.subr.mxu0 0.0
        %4123 = vmatpush1.msra.mxu0 0.0
        %4124 = vmatprep.subr.mxu0 0.0
        %4125 = vmatpush1.msra.mxu0 0.0
        %4126 = vmatprep.subr.mxu0 0.0
        %4127 = vmatpush1.msra.mxu0 0.0
        %4128 = vmatprep.subr.mxu0 0.0
        %4129 = vmatpush1.msra.mxu0 0.0
        %4130 = vmatprep.subr.mxu0 0.0
        %4131 = vmatpush1.msra.mxu0 0.0
        %4132 = vmatprep.subr.mxu0 0.0
        %4133 = vmatpush1.msra.mxu0 0.0
        %4134 = vmatprep.subr.mxu0 0.0
        %4135 = vmatpush1.msra.mxu0 0.0
        %4136 = vmatprep.subr.mxu0 0.0
        %4137 = vmatpush1.msra.mxu0 0.0
        %4138 = vmatprep.subr.mxu0 0.0
        %4139 = vmatpush1.msra.mxu0 0.0
        %4140 = vmatprep.subr.mxu0 0.0
        %4141 = vmatpush1.msra.mxu0 0.0
        %4142 = vmatprep.subr.mxu0 0.0
        %4143 = vmatpush1.msra.mxu0 0.0
        %4144 = vmatprep.subr.mxu0 0.0
        %4145 = vmatpush1.msra.mxu0 0.0
        %4146 = vmatprep.subr.mxu0 0.0
        %4147 = vmatpush1.msra.mxu0 0.0
        %4148 = vmatprep.subr.mxu0 0.0
        %4149 = vmatpush1.msra.mxu0 0.0
        %4150 = vmatprep.subr.mxu0 0.0
        %4151 = vmatpush1.msra.mxu0 0.0
        %4152 = vmatprep.subr.mxu0 0.0
        %4153 = vmatpush1.msra.mxu0 0.0
        %4154 = vmatprep.subr.mxu0 0.0
        %4155 = vmatpush1.msra.mxu0 0.0
        %4156 = vmatprep.subr.mxu0 0.0
        %4157 = vmatpush1.msra.mxu0 0.0
        %4158 = vmatprep.subr.mxu0 0.0
        %4159 = vmatpush1.msra.mxu0 0.0
        %4160 = vmatprep.subr.mxu0 0.0
        %4161 = vmatpush1.msra.mxu0 0.0
        %4162 = vmatprep.subr.mxu0 0.0
        %4163 = vmatpush1.msra.mxu0 0.0
        %4164 = vmatprep.mubr.f32.mxu0 0.0
        %4165 = vmatmul.mubr.f32.gmra.mrb[0].mxu0 %v4096
        %v4166 = vpop.f32.mrb[0].mxu0
        %v4167 = vadd.f32 0.0, %v4166
        %v4168 = vpop.f32.mrb[0].mxu0
        %4169 = vdwg.mxu0
        %4170 = vst.msk [vmem:[#allocation2] sm:$0xf] %vm1934, %v4167
        %4171 = vrot.lane.b32.xlu0 %v4001, 120
        %v4172 = vpop.permute.xlu0 %4171
        %4173 = vrot.lane.b32.xlu0 %v4001, 88
        %v4174 = vpop.permute.xlu0 %4173
        %v4175 = vsel %vm1767, %v4172, 0
        %v4177 = vsel %vm1767, %v4174, 0
        %4179 = vmatprep.subr.mxu0 0.0
        %4180 = vmatpush1.xpose.msra.mxu0 %v4177
        %4181 = vmatprep.subr.mxu0 0.0
        %4182 = vmatpush1.xpose.msra.mxu0 0.0
        %4183 = vmatprep.subr.mxu0 0.0
        %4184 = vmatpush1.xpose.msra.mxu0 0.0
        %4185 = vmatprep.subr.mxu0 0.0
        %4186 = vmatpush1.xpose.msra.mxu0 0.0
        %4187 = vmatprep.subr.mxu0 0.0
        %4188 = vmatpush1.xpose.msra.mxu0 0.0
        %4189 = vmatprep.subr.mxu0 0.0
        %4190 = vmatpush1.xpose.msra.mxu0 0.0
        %4191 = vmatprep.subr.mxu0 0.0
        %4192 = vmatpush1.xpose.msra.mxu0 0.0
        %4193 = vmatprep.subr.mxu0 0.0
        %4194 = vmatpush1.xpose.msra.mxu0 0.0
        %4195 = vmatprep.subr.mxu0 0.0
        %4196 = vmatpush1.xpose.msra.mxu0 0.0
        %4197 = vmatprep.subr.mxu0 0.0
        %4198 = vmatpush1.xpose.msra.mxu0 0.0
        %4199 = vmatprep.subr.mxu0 0.0
        %4200 = vmatpush1.xpose.msra.mxu0 0.0
        %4201 = vmatprep.subr.mxu0 0.0
        %4202 = vmatpush1.xpose.msra.mxu0 0.0
        %4203 = vmatprep.subr.mxu0 0.0
        %4204 = vmatpush1.xpose.msra.mxu0 0.0
        %4205 = vmatprep.subr.mxu0 0.0
        %4206 = vmatpush1.xpose.msra.mxu0 0.0
        %4207 = vmatprep.subr.mxu0 0.0
        %4208 = vmatpush1.xpose.msra.mxu0 0.0
        %4209 = vmatprep.subr.mxu0 0.0
        %4210 = vmatpush1.xpose.msra.mxu0 0.0
        %4211 = vmatprep.subr.mxu0 0.0
        %4212 = vmatpush1.xpose.msra.mxu0 0.0
        %4213 = vmatprep.subr.mxu0 0.0
        %4214 = vmatpush1.xpose.msra.mxu0 0.0
        %4215 = vmatprep.subr.mxu0 0.0
        %4216 = vmatpush1.xpose.msra.mxu0 0.0
        %4217 = vmatprep.subr.mxu0 0.0
        %4218 = vmatpush1.xpose.msra.mxu0 0.0
        %4219 = vmatprep.subr.mxu0 0.0
        %4220 = vmatpush1.xpose.msra.mxu0 0.0
        %4221 = vmatprep.subr.mxu0 0.0
        %4222 = vmatpush1.xpose.msra.mxu0 0.0
        %4223 = vmatprep.subr.mxu0 0.0
        %4224 = vmatpush1.xpose.msra.mxu0 0.0
        %4225 = vmatprep.subr.mxu0 0.0
        %4226 = vmatpush1.xpose.msra.mxu0 0.0
        %4227 = vmatprep.subr.mxu0 0.0
        %4228 = vmatpush1.xpose.msra.mxu0 0.0
        %4229 = vmatprep.subr.mxu0 0.0
        %4230 = vmatpush1.xpose.msra.mxu0 0.0
        %4231 = vmatprep.subr.mxu0 0.0
        %4232 = vmatpush1.xpose.msra.mxu0 0.0
        %4233 = vmatprep.subr.mxu0 0.0
        %4234 = vmatpush1.xpose.msra.mxu0 0.0
        %4235 = vmatprep.subr.mxu0 0.0
        %4236 = vmatpush1.xpose.msra.mxu0 0.0
        %4237 = vmatprep.subr.mxu0 0.0
        %4238 = vmatpush1.xpose.msra.mxu0 0.0
        %4239 = vmatprep.subr.mxu0 0.0
        %4240 = vmatpush1.xpose.msra.mxu0 0.0
        %4241 = vmatprep.subr.mxu0 0.0
        %4242 = vmatpush1.xpose.msra.mxu0 0.0
        %4243 = vmatprep.mubr.f32.mxu0 0.0
        %4244 = vmatmul.mubr.f32.gmra.mrb[0].mxu0 %v4175
        %v4245 = vpop.f32.mrb[0].mxu0
        %v4246 = vadd.f32 0.0, %v4245
        %v4247 = vpop.f32.mrb[0].mxu0
        %4248 = vdwg.mxu0
        %v4249 = vmul.f32 %v4246, 0.35355338
        %v4250 = vsel %vm1843, %v4249, -inf
        %4251 = vmax.xlane.f32.xlu0 %v4250
        %v4252 = vpop.xlane.xlu0 %4251
        %v4253 = vsub.f32 %v4249, %v4252
        %v4254 = vmul.f32 %v4253, 1.442695
        %v4255 = vpow.pop %v4254
        %v4256 = vsel %vm1843, %v4255, 0.0
        %4257 = vadd.xlane.f32.xlu0 %v4256
        %v4258 = vpop.xlane.xlu0 %4257
        %v4259 = vrcp.pop %v4258
        %v4260 = vmul.f32 %v4255, %v4259
        %4261 = vrot.lane.b32.xlu0 %v4001, 56
        %v4262 = vpop.permute.xlu0 %4261
        %v4264 = vsel %vm1857, %v4260, 0
        %v4266 = vsel %vm1861, %v4262, 0
        %4268 = vmatprep.subr.mxu0 0.0
        %4269 = vmatpush1.msra.mxu0 %v4266
        %4270 = vmatprep.subr.mxu0 0.0
        %4271 = vmatpush1.msra.mxu0 0.0
        %4272 = vmatprep.subr.mxu0 0.0
        %4273 = vmatpush1.msra.mxu0 0.0
        %4274 = vmatprep.subr.mxu0 0.0
        %4275 = vmatpush1.msra.mxu0 0.0
        %4276 = vmatprep.subr.mxu0 0.0
        %4277 = vmatpush1.msra.mxu0 0.0
        %4278 = vmatprep.subr.mxu0 0.0
        %4279 = vmatpush1.msra.mxu0 0.0
        %4280 = vmatprep.subr.mxu0 0.0
        %4281 = vmatpush1.msra.mxu0 0.0
        %4282 = vmatprep.subr.mxu0 0.0
        %4283 = vmatpush1.msra.mxu0 0.0
        %4284 = vmatprep.subr.mxu0 0.0
        %4285 = vmatpush1.msra.mxu0 0.0
        %4286 = vmatprep.subr.mxu0 0.0
        %4287 = vmatpush1.msra.mxu0 0.0
        %4288 = vmatprep.subr.mxu0 0.0
        %4289 = vmatpush1.msra.mxu0 0.0
        %4290 = vmatprep.subr.mxu0 0.0
        %4291 = vmatpush1.msra.mxu0 0.0
        %4292 = vmatprep.subr.mxu0 0.0
        %4293 = vmatpush1.msra.mxu0 0.0
        %4294 = vmatprep.subr.mxu0 0.0
        %4295 = vmatpush1.msra.mxu0 0.0
        %4296 = vmatprep.subr.mxu0 0.0
        %4297 = vmatpush1.msra.mxu0 0.0
        %4298 = vmatprep.subr.mxu0 0.0
        %4299 = vmatpush1.msra.mxu0 0.0
        %4300 = vmatprep.subr.mxu0 0.0
        %4301 = vmatpush1.msra.mxu0 0.0
        %4302 = vmatprep.subr.mxu0 0.0
        %4303 = vmatpush1.msra.mxu0 0.0
        %4304 = vmatprep.subr.mxu0 0.0
        %4305 = vmatpush1.msra.mxu0 0.0
        %4306 = vmatprep.subr.mxu0 0.0
        %4307 = vmatpush1.msra.mxu0 0.0
        %4308 = vmatprep.subr.mxu0 0.0
        %4309 = vmatpush1.msra.mxu0 0.0
        %4310 = vmatprep.subr.mxu0 0.0
        %4311 = vmatpush1.msra.mxu0 0.0
        %4312 = vmatprep.subr.mxu0 0.0
        %4313 = vmatpush1.msra.mxu0 0.0
        %4314 = vmatprep.subr.mxu0 0.0
        %4315 = vmatpush1.msra.mxu0 0.0
        %4316 = vmatprep.subr.mxu0 0.0
        %4317 = vmatpush1.msra.mxu0 0.0
        %4318 = vmatprep.subr.mxu0 0.0
        %4319 = vmatpush1.msra.mxu0 0.0
        %4320 = vmatprep.subr.mxu0 0.0
        %4321 = vmatpush1.msra.mxu0 0.0
        %4322 = vmatprep.subr.mxu0 0.0
        %4323 = vmatpush1.msra.mxu0 0.0
        %4324 = vmatprep.subr.mxu0 0.0
        %4325 = vmatpush1.msra.mxu0 0.0
        %4326 = vmatprep.subr.mxu0 0.0
        %4327 = vmatpush1.msra.mxu0 0.0
        %4328 = vmatprep.subr.mxu0 0.0
        %4329 = vmatpush1.msra.mxu0 0.0
        %4330 = vmatprep.subr.mxu0 0.0
        %4331 = vmatpush1.msra.mxu0 0.0
        %4332 = vmatprep.mubr.f32.mxu0 0.0
        %4333 = vmatmul.mubr.f32.gmra.mrb[0].mxu0 %v4264
        %v4334 = vpop.f32.mrb[0].mxu0
        %v4335 = vadd.f32 0.0, %v4334
        %v4336 = vpop.f32.mrb[0].mxu0
        %4337 = vdwg.mxu0
        %4339 = vrot.lane.b32.xlu0 %v4335, 8
        %v4340 = vpop.permute.xlu0 %4339
        %4342 = vst.msk [vmem:[#allocation2] sm:$0xf] %vm2107, %v4340
        %4343 = vrot.lane.b32.xlu0 %v4001, 112
        %v4344 = vpop.permute.xlu0 %4343
        %4345 = vrot.lane.b32.xlu0 %v4001, 80
        %v4346 = vpop.permute.xlu0 %4345
        %v4347 = vsel %vm1767, %v4344, 0
        %v4349 = vsel %vm1767, %v4346, 0
        %4351 = vmatprep.subr.mxu0 0.0
        %4352 = vmatpush1.xpose.msra.mxu0 %v4349
        %4353 = vmatprep.subr.mxu0 0.0
        %4354 = vmatpush1.xpose.msra.mxu0 0.0
        %4355 = vmatprep.subr.mxu0 0.0
        %4356 = vmatpush1.xpose.msra.mxu0 0.0
        %4357 = vmatprep.subr.mxu0 0.0
        %4358 = vmatpush1.xpose.msra.mxu0 0.0
        %4359 = vmatprep.subr.mxu0 0.0
        %4360 = vmatpush1.xpose.msra.mxu0 0.0
        %4361 = vmatprep.subr.mxu0 0.0
        %4362 = vmatpush1.xpose.msra.mxu0 0.0
        %4363 = vmatprep.subr.mxu0 0.0
        %4364 = vmatpush1.xpose.msra.mxu0 0.0
        %4365 = vmatprep.subr.mxu0 0.0
        %4366 = vmatpush1.xpose.msra.mxu0 0.0
        %4367 = vmatprep.subr.mxu0 0.0
        %4368 = vmatpush1.xpose.msra.mxu0 0.0
        %4369 = vmatprep.subr.mxu0 0.0
        %4370 = vmatpush1.xpose.msra.mxu0 0.0
        %4371 = vmatprep.subr.mxu0 0.0
        %4372 = vmatpush1.xpose.msra.mxu0 0.0
        %4373 = vmatprep.subr.mxu0 0.0
        %4374 = vmatpush1.xpose.msra.mxu0 0.0
        %4375 = vmatprep.subr.mxu0 0.0
        %4376 = vmatpush1.xpose.msra.mxu0 0.0
        %4377 = vmatprep.subr.mxu0 0.0
        %4378 = vmatpush1.xpose.msra.mxu0 0.0
        %4379 = vmatprep.subr.mxu0 0.0
        %4380 = vmatpush1.xpose.msra.mxu0 0.0
        %4381 = vmatprep.subr.mxu0 0.0
        %4382 = vmatpush1.xpose.msra.mxu0 0.0
        %4383 = vmatprep.subr.mxu0 0.0
        %4384 = vmatpush1.xpose.msra.mxu0 0.0
        %4385 = vmatprep.subr.mxu0 0.0
        %4386 = vmatpush1.xpose.msra.mxu0 0.0
        %4387 = vmatprep.subr.mxu0 0.0
        %4388 = vmatpush1.xpose.msra.mxu0 0.0
        %4389 = vmatprep.subr.mxu0 0.0
        %4390 = vmatpush1.xpose.msra.mxu0 0.0
        %4391 = vmatprep.subr.mxu0 0.0
        %4392 = vmatpush1.xpose.msra.mxu0 0.0
        %4393 = vmatprep.subr.mxu0 0.0
        %4394 = vmatpush1.xpose.msra.mxu0 0.0
        %4395 = vmatprep.subr.mxu0 0.0
        %4396 = vmatpush1.xpose.msra.mxu0 0.0
        %4397 = vmatprep.subr.mxu0 0.0
        %4398 = vmatpush1.xpose.msra.mxu0 0.0
        %4399 = vmatprep.subr.mxu0 0.0
        %4400 = vmatpush1.xpose.msra.mxu0 0.0
        %4401 = vmatprep.subr.mxu0 0.0
        %4402 = vmatpush1.xpose.msra.mxu0 0.0
        %4403 = vmatprep.subr.mxu0 0.0
        %4404 = vmatpush1.xpose.msra.mxu0 0.0
        %4405 = vmatprep.subr.mxu0 0.0
        %4406 = vmatpush1.xpose.msra.mxu0 0.0
        %4407 = vmatprep.subr.mxu0 0.0
        %4408 = vmatpush1.xpose.msra.mxu0 0.0
        %4409 = vmatprep.subr.mxu0 0.0
        %4410 = vmatpush1.xpose.msra.mxu0 0.0
        %4411 = vmatprep.subr.mxu0 0.0
        %4412 = vmatpush1.xpose.msra.mxu0 0.0
        %4413 = vmatprep.subr.mxu0 0.0
        %4414 = vmatpush1.xpose.msra.mxu0 0.0
        %4415 = vmatprep.mubr.f32.mxu0 0.0
        %4416 = vmatmul.mubr.f32.gmra.mrb[0].mxu0 %v4347
        %v4417 = vpop.f32.mrb[0].mxu0
        %v4418 = vadd.f32 0.0, %v4417
        %v4419 = vpop.f32.mrb[0].mxu0
        %4420 = vdwg.mxu0
        %v4421 = vmul.f32 %v4418, 0.35355338
        %v4422 = vsel %vm1843, %v4421, -inf
        %4423 = vmax.xlane.f32.xlu0 %v4422
        %v4424 = vpop.xlane.xlu0 %4423
        %v4425 = vsub.f32 %v4421, %v4424
        %v4426 = vmul.f32 %v4425, 1.442695
        %v4427 = vpow.pop %v4426
        %v4428 = vsel %vm1843, %v4427, 0.0
        %4429 = vadd.xlane.f32.xlu0 %v4428
        %v4430 = vpop.xlane.xlu0 %4429
        %v4431 = vrcp.pop %v4430
        %v4432 = vmul.f32 %v4427, %v4431
        %4433 = vrot.lane.b32.xlu0 %v4001, 48
        %v4434 = vpop.permute.xlu0 %4433
        %v4436 = vsel %vm1857, %v4432, 0
        %v4438 = vsel %vm1861, %v4434, 0
        %4440 = vmatprep.subr.mxu0 0.0
        %4441 = vmatpush1.msra.mxu0 %v4438
        %4442 = vmatprep.subr.mxu0 0.0
        %4443 = vmatpush1.msra.mxu0 0.0
        %4444 = vmatprep.subr.mxu0 0.0
        %4445 = vmatpush1.msra.mxu0 0.0
        %4446 = vmatprep.subr.mxu0 0.0
        %4447 = vmatpush1.msra.mxu0 0.0
        %4448 = vmatprep.subr.mxu0 0.0
        %4449 = vmatpush1.msra.mxu0 0.0
        %4450 = vmatprep.subr.mxu0 0.0
        %4451 = vmatpush1.msra.mxu0 0.0
        %4452 = vmatprep.subr.mxu0 0.0
        %4453 = vmatpush1.msra.mxu0 0.0
        %4454 = vmatprep.subr.mxu0 0.0
        %4455 = vmatpush1.msra.mxu0 0.0
        %4456 = vmatprep.subr.mxu0 0.0
        %4457 = vmatpush1.msra.mxu0 0.0
        %4458 = vmatprep.subr.mxu0 0.0
        %4459 = vmatpush1.msra.mxu0 0.0
        %4460 = vmatprep.subr.mxu0 0.0
        %4461 = vmatpush1.msra.mxu0 0.0
        %4462 = vmatprep.subr.mxu0 0.0
        %4463 = vmatpush1.msra.mxu0 0.0
        %4464 = vmatprep.subr.mxu0 0.0
        %4465 = vmatpush1.msra.mxu0 0.0
        %4466 = vmatprep.subr.mxu0 0.0
        %4467 = vmatpush1.msra.mxu0 0.0
        %4468 = vmatprep.subr.mxu0 0.0
        %4469 = vmatpush1.msra.mxu0 0.0
        %4470 = vmatprep.subr.mxu0 0.0
        %4471 = vmatpush1.msra.mxu0 0.0
        %4472 = vmatprep.subr.mxu0 0.0
        %4473 = vmatpush1.msra.mxu0 0.0
        %4474 = vmatprep.subr.mxu0 0.0
        %4475 = vmatpush1.msra.mxu0 0.0
        %4476 = vmatprep.subr.mxu0 0.0
        %4477 = vmatpush1.msra.mxu0 0.0
        %4478 = vmatprep.subr.mxu0 0.0
        %4479 = vmatpush1.msra.mxu0 0.0
        %4480 = vmatprep.subr.mxu0 0.0
        %4481 = vmatpush1.msra.mxu0 0.0
        %4482 = vmatprep.subr.mxu0 0.0
        %4483 = vmatpush1.msra.mxu0 0.0
        %4484 = vmatprep.subr.mxu0 0.0
        %4485 = vmatpush1.msra.mxu0 0.0
        %4486 = vmatprep.subr.mxu0 0.0
        %4487 = vmatpush1.msra.mxu0 0.0
        %4488 = vmatprep.subr.mxu0 0.0
        %4489 = vmatpush1.msra.mxu0 0.0
        %4490 = vmatprep.subr.mxu0 0.0
        %4491 = vmatpush1.msra.mxu0 0.0
        %4492 = vmatprep.subr.mxu0 0.0
        %4493 = vmatpush1.msra.mxu0 0.0
        %4494 = vmatprep.subr.mxu0 0.0
        %4495 = vmatpush1.msra.mxu0 0.0
        %4496 = vmatprep.subr.mxu0 0.0
        %4497 = vmatpush1.msra.mxu0 0.0
        %4498 = vmatprep.subr.mxu0 0.0
        %4499 = vmatpush1.msra.mxu0 0.0
        %4500 = vmatprep.subr.mxu0 0.0
        %4501 = vmatpush1.msra.mxu0 0.0
        %4502 = vmatprep.subr.mxu0 0.0
        %4503 = vmatpush1.msra.mxu0 0.0
        %4504 = vmatprep.mubr.f32.mxu0 0.0
        %4505 = vmatmul.mubr.f32.gmra.mrb[0].mxu0 %v4436
        %v4506 = vpop.f32.mrb[0].mxu0
        %v4507 = vadd.f32 0.0, %v4506
        %v4508 = vpop.f32.mrb[0].mxu0
        %4509 = vdwg.mxu0
        %4511 = vrot.lane.b32.xlu0 %v4507, 16
        %v4512 = vpop.permute.xlu0 %4511
        %4514 = vst.msk [vmem:[#allocation2] sm:$0xf] %vm2280, %v4512
        %4515 = vrot.lane.b32.xlu0 %v4001, 104
        %v4516 = vpop.permute.xlu0 %4515
        %4517 = vrot.lane.b32.xlu0 %v4001, 72
        %v4518 = vpop.permute.xlu0 %4517
        %v4519 = vsel %vm1767, %v4516, 0
        %v4521 = vsel %vm1767, %v4518, 0
        %4523 = vmatprep.subr.mxu0 0.0
        %4524 = vmatpush1.xpose.msra.mxu0 %v4521
        %4525 = vmatprep.subr.mxu0 0.0
        %4526 = vmatpush1.xpose.msra.mxu0 0.0
        %4527 = vmatprep.subr.mxu0 0.0
        %4528 = vmatpush1.xpose.msra.mxu0 0.0
        %4529 = vmatprep.subr.mxu0 0.0
        %4530 = vmatpush1.xpose.msra.mxu0 0.0
        %4531 = vmatprep.subr.mxu0 0.0
        %4532 = vmatpush1.xpose.msra.mxu0 0.0
        %4533 = vmatprep.subr.mxu0 0.0
        %4534 = vmatpush1.xpose.msra.mxu0 0.0
        %4535 = vmatprep.subr.mxu0 0.0
        %4536 = vmatpush1.xpose.msra.mxu0 0.0
        %4537 = vmatprep.subr.mxu0 0.0
        %4538 = vmatpush1.xpose.msra.mxu0 0.0
        %4539 = vmatprep.subr.mxu0 0.0
        %4540 = vmatpush1.xpose.msra.mxu0 0.0
        %4541 = vmatprep.subr.mxu0 0.0
        %4542 = vmatpush1.xpose.msra.mxu0 0.0
        %4543 = vmatprep.subr.mxu0 0.0
        %4544 = vmatpush1.xpose.msra.mxu0 0.0
        %4545 = vmatprep.subr.mxu0 0.0
        %4546 = vmatpush1.xpose.msra.mxu0 0.0
        %4547 = vmatprep.subr.mxu0 0.0
        %4548 = vmatpush1.xpose.msra.mxu0 0.0
        %4549 = vmatprep.subr.mxu0 0.0
        %4550 = vmatpush1.xpose.msra.mxu0 0.0
        %4551 = vmatprep.subr.mxu0 0.0
        %4552 = vmatpush1.xpose.msra.mxu0 0.0
        %4553 = vmatprep.subr.mxu0 0.0
        %4554 = vmatpush1.xpose.msra.mxu0 0.0
        %4555 = vmatprep.subr.mxu0 0.0
        %4556 = vmatpush1.xpose.msra.mxu0 0.0
        %4557 = vmatprep.subr.mxu0 0.0
        %4558 = vmatpush1.xpose.msra.mxu0 0.0
        %4559 = vmatprep.subr.mxu0 0.0
        %4560 = vmatpush1.xpose.msra.mxu0 0.0
        %4561 = vmatprep.subr.mxu0 0.0
        %4562 = vmatpush1.xpose.msra.mxu0 0.0
        %4563 = vmatprep.subr.mxu0 0.0
        %4564 = vmatpush1.xpose.msra.mxu0 0.0
        %4565 = vmatprep.subr.mxu0 0.0
        %4566 = vmatpush1.xpose.msra.mxu0 0.0
        %4567 = vmatprep.subr.mxu0 0.0
        %4568 = vmatpush1.xpose.msra.mxu0 0.0
        %4569 = vmatprep.subr.mxu0 0.0
        %4570 = vmatpush1.xpose.msra.mxu0 0.0
        %4571 = vmatprep.subr.mxu0 0.0
        %4572 = vmatpush1.xpose.msra.mxu0 0.0
        %4573 = vmatprep.subr.mxu0 0.0
        %4574 = vmatpush1.xpose.msra.mxu0 0.0
        %4575 = vmatprep.subr.mxu0 0.0
        %4576 = vmatpush1.xpose.msra.mxu0 0.0
        %4577 = vmatprep.subr.mxu0 0.0
        %4578 = vmatpush1.xpose.msra.mxu0 0.0
        %4579 = vmatprep.subr.mxu0 0.0
        %4580 = vmatpush1.xpose.msra.mxu0 0.0
        %4581 = vmatprep.subr.mxu0 0.0
        %4582 = vmatpush1.xpose.msra.mxu0 0.0
        %4583 = vmatprep.subr.mxu0 0.0
        %4584 = vmatpush1.xpose.msra.mxu0 0.0
        %4585 = vmatprep.subr.mxu0 0.0
        %4586 = vmatpush1.xpose.msra.mxu0 0.0
        %4587 = vmatprep.mubr.f32.mxu0 0.0
        %4588 = vmatmul.mubr.f32.gmra.mrb[0].mxu0 %v4519
        %v4589 = vpop.f32.mrb[0].mxu0
        %v4590 = vadd.f32 0.0, %v4589
        %v4591 = vpop.f32.mrb[0].mxu0
        %4592 = vdwg.mxu0
        %v4593 = vmul.f32 %v4590, 0.35355338
        %v4594 = vsel %vm1843, %v4593, -inf
        %4595 = vmax.xlane.f32.xlu0 %v4594
        %v4596 = vpop.xlane.xlu0 %4595
        %v4597 = vsub.f32 %v4593, %v4596
        %v4598 = vmul.f32 %v4597, 1.442695
        %v4599 = vpow.pop %v4598
        %v4600 = vsel %vm1843, %v4599, 0.0
        %4601 = vadd.xlane.f32.xlu0 %v4600
        %v4602 = vpop.xlane.xlu0 %4601
        %v4603 = vrcp.pop %v4602
        %v4604 = vmul.f32 %v4599, %v4603
        %4605 = vrot.lane.b32.xlu0 %v4001, 40
        %v4606 = vpop.permute.xlu0 %4605
        %v4608 = vsel %vm1857, %v4604, 0
        %v4610 = vsel %vm1861, %v4606, 0
        %4612 = vmatprep.subr.mxu0 0.0
        %4613 = vmatpush1.msra.mxu0 %v4610
        %4614 = vmatprep.subr.mxu0 0.0
        %4615 = vmatpush1.msra.mxu0 0.0
        %4616 = vmatprep.subr.mxu0 0.0
        %4617 = vmatpush1.msra.mxu0 0.0
        %4618 = vmatprep.subr.mxu0 0.0
        %4619 = vmatpush1.msra.mxu0 0.0
        %4620 = vmatprep.subr.mxu0 0.0
        %4621 = vmatpush1.msra.mxu0 0.0
        %4622 = vmatprep.subr.mxu0 0.0
        %4623 = vmatpush1.msra.mxu0 0.0
        %4624 = vmatprep.subr.mxu0 0.0
        %4625 = vmatpush1.msra.mxu0 0.0
        %4626 = vmatprep.subr.mxu0 0.0
        %4627 = vmatpush1.msra.mxu0 0.0
        %4628 = vmatprep.subr.mxu0 0.0
        %4629 = vmatpush1.msra.mxu0 0.0
        %4630 = vmatprep.subr.mxu0 0.0
        %4631 = vmatpush1.msra.mxu0 0.0
        %4632 = vmatprep.subr.mxu0 0.0
        %4633 = vmatpush1.msra.mxu0 0.0
        %4634 = vmatprep.subr.mxu0 0.0
        %4635 = vmatpush1.msra.mxu0 0.0
        %4636 = vmatprep.subr.mxu0 0.0
        %4637 = vmatpush1.msra.mxu0 0.0
        %4638 = vmatprep.subr.mxu0 0.0
        %4639 = vmatpush1.msra.mxu0 0.0
        %4640 = vmatprep.subr.mxu0 0.0
        %4641 = vmatpush1.msra.mxu0 0.0
        %4642 = vmatprep.subr.mxu0 0.0
        %4643 = vmatpush1.msra.mxu0 0.0
        %4644 = vmatprep.subr.mxu0 0.0
        %4645 = vmatpush1.msra.mxu0 0.0
        %4646 = vmatprep.subr.mxu0 0.0
        %4647 = vmatpush1.msra.mxu0 0.0
        %4648 = vmatprep.subr.mxu0 0.0
        %4649 = vmatpush1.msra.mxu0 0.0
        %4650 = vmatprep.subr.mxu0 0.0
        %4651 = vmatpush1.msra.mxu0 0.0
        %4652 = vmatprep.subr.mxu0 0.0
        %4653 = vmatpush1.msra.mxu0 0.0
        %4654 = vmatprep.subr.mxu0 0.0
        %4655 = vmatpush1.msra.mxu0 0.0
        %4656 = vmatprep.subr.mxu0 0.0
        %4657 = vmatpush1.msra.mxu0 0.0
        %4658 = vmatprep.subr.mxu0 0.0
        %4659 = vmatpush1.msra.mxu0 0.0
        %4660 = vmatprep.subr.mxu0 0.0
        %4661 = vmatpush1.msra.mxu0 0.0
        %4662 = vmatprep.subr.mxu0 0.0
        %4663 = vmatpush1.msra.mxu0 0.0
        %4664 = vmatprep.subr.mxu0 0.0
        %4665 = vmatpush1.msra.mxu0 0.0
        %4666 = vmatprep.subr.mxu0 0.0
        %4667 = vmatpush1.msra.mxu0 0.0
        %4668 = vmatprep.subr.mxu0 0.0
        %4669 = vmatpush1.msra.mxu0 0.0
        %4670 = vmatprep.subr.mxu0 0.0
        %4671 = vmatpush1.msra.mxu0 0.0
        %4672 = vmatprep.subr.mxu0 0.0
        %4673 = vmatpush1.msra.mxu0 0.0
        %4674 = vmatprep.subr.mxu0 0.0
        %4675 = vmatpush1.msra.mxu0 0.0
        %4676 = vmatprep.mubr.f32.mxu0 0.0
        %4677 = vmatmul.mubr.f32.gmra.mrb[0].mxu0 %v4608
        %v4678 = vpop.f32.mrb[0].mxu0
        %v4679 = vadd.f32 0.0, %v4678
        %v4680 = vpop.f32.mrb[0].mxu0
        %4681 = vdwg.mxu0
        %4683 = vrot.lane.b32.xlu0 %v4679, 24
        %v4684 = vpop.permute.xlu0 %4683
        %4686 = vst.msk [vmem:[#allocation2] sm:$0xf] %vm2453, %v4684
        %v4687 = vld [vmem:[#allocation2] sm:$0xf]
        %v4689 = vlaneseq
        %v4690 = vshrl.u32 %v4689, 7
        %v4691 = vsub.s32 0, %v4690
        %v4692 = vrot.slane %v3889, %v4691
        %v4695 = vsel %vm1690, %v4687, 0
        %4697 = vmatprep.subr.mxu0 0.0
        %4698 = vmatpush1.msra.mxu0 %v3885
        %4699 = vmatprep.subr.mxu0 0.0
        %4700 = vmatpush1.msra.mxu0 %v3886
        %4701 = vmatprep.subr.mxu0 0.0
        %4702 = vmatpush1.msra.mxu0 %v3887
        %4703 = vmatprep.subr.mxu0 0.0
        %4704 = vmatpush1.msra.mxu0 %v3888
        %4705 = vmatprep.subr.mxu0 0.0
        %4706 = vmatpush1.msra.mxu0 0.0
        %4707 = vmatprep.subr.mxu0 0.0
        %4708 = vmatpush1.msra.mxu0 0.0
        %4709 = vmatprep.subr.mxu0 0.0
        %4710 = vmatpush1.msra.mxu0 0.0
        %4711 = vmatprep.subr.mxu0 0.0
        %4712 = vmatpush1.msra.mxu0 0.0
        %4713 = vmatprep.subr.mxu0 0.0
        %4714 = vmatpush1.msra.mxu0 0.0
        %4715 = vmatprep.subr.mxu0 0.0
        %4716 = vmatpush1.msra.mxu0 0.0
        %4717 = vmatprep.subr.mxu0 0.0
        %4718 = vmatpush1.msra.mxu0 0.0
        %4719 = vmatprep.subr.mxu0 0.0
        %4720 = vmatpush1.msra.mxu0 0.0
        %4721 = vmatprep.subr.mxu0 0.0
        %4722 = vmatpush1.msra.mxu0 0.0
        %4723 = vmatprep.subr.mxu0 0.0
        %4724 = vmatpush1.msra.mxu0 0.0
        %4725 = vmatprep.subr.mxu0 0.0
        %4726 = vmatpush1.msra.mxu0 0.0
        %4727 = vmatprep.subr.mxu0 0.0
        %4728 = vmatpush1.msra.mxu0 0.0
        %4729 = vmatprep.subr.mxu0 0.0
        %4730 = vmatpush1.msra.mxu0 0.0
        %4731 = vmatprep.subr.mxu0 0.0
        %4732 = vmatpush1.msra.mxu0 0.0
        %4733 = vmatprep.subr.mxu0 0.0
        %4734 = vmatpush1.msra.mxu0 0.0
        %4735 = vmatprep.subr.mxu0 0.0
        %4736 = vmatpush1.msra.mxu0 0.0
        %4737 = vmatprep.subr.mxu0 0.0
        %4738 = vmatpush1.msra.mxu0 0.0
        %4739 = vmatprep.subr.mxu0 0.0
        %4740 = vmatpush1.msra.mxu0 0.0
        %4741 = vmatprep.subr.mxu0 0.0
        %4742 = vmatpush1.msra.mxu0 0.0
        %4743 = vmatprep.subr.mxu0 0.0
        %4744 = vmatpush1.msra.mxu0 0.0
        %4745 = vmatprep.subr.mxu0 0.0
        %4746 = vmatpush1.msra.mxu0 0.0
        %4747 = vmatprep.subr.mxu0 0.0
        %4748 = vmatpush1.msra.mxu0 0.0
        %4749 = vmatprep.subr.mxu0 0.0
        %4750 = vmatpush1.msra.mxu0 0.0
        %4751 = vmatprep.subr.mxu0 0.0
        %4752 = vmatpush1.msra.mxu0 0.0
        %4753 = vmatprep.subr.mxu0 0.0
        %4754 = vmatpush1.msra.mxu0 0.0
        %4755 = vmatprep.subr.mxu0 0.0
        %4756 = vmatpush1.msra.mxu0 0.0
        %4757 = vmatprep.subr.mxu0 0.0
        %4758 = vmatpush1.msra.mxu0 0.0
        %4759 = vmatprep.subr.mxu0 0.0
        %4760 = vmatpush1.msra.mxu0 0.0
        %4761 = vmatprep.mubr.f32.mxu0 0.0
        %4762 = vmatmul.mubr.f32.gmra.mrb[0].mxu0 %v4695
        %v4763 = vpop.f32.mrb[0].mxu0
        %v4764 = vadd.f32 %v4692, %v4763
        %v4765 = vpop.f32.mrb[0].mxu0
        %4766 = vdwg.mxu0
        %v4767 = vadd.f32 %v3879, %v4764
        %v4768 = vsel %vm2536, %v4767, 0.0
        %4769 = vadd.xlane.f32.xlu0 %v4768
        %v4770 = vpop.xlane.xlu0 %4769
        %v4771 = vmul.f32 %v4770, %v2540
        %v4772 = vsub.f32 %v4767, %v4771
        %v4773 = vmul.f32 %v4772, %v4772
        %v4774 = vsel %vm2536, %v4773, 0.0
        %4775 = vadd.xlane.f32.xlu0 %v4774
        %v4776 = vpop.xlane.xlu0 %4775
        %v4777 = vmul.f32 %v4776, %v2540
        %v4778 = vadd.f32 %v4777, 1e-05
        %v4779 = vrsqrt.pop %v4778
        %v4780 = vmul.f32 %v4772, %v4779
        %v4782 = vlaneseq
        %v4783 = vshrl.u32 %v4782, 7
        %v4784 = vsub.s32 0, %v4783
        %v4785 = vrot.slane %v3890, %v4784
        %v4787 = vmul.f32 %v4780, %v4785
        %v4789 = vlaneseq
        %v4790 = vshrl.u32 %v4789, 7
        %v4791 = vsub.s32 0, %v4790
        %v4792 = vrot.slane %v3891, %v4791
        %v4794 = vadd.f32 %v4787, %v4792
        %v4796 = vlaneseq
        %v4797 = vshrl.u32 %v4796, 7
        %v4798 = vsub.s32 0, %v4797
        %v4799 = vrot.slane %v3896, %v4798
        %v4802 = vsel %vm1690, %v4794, 0
        %4804 = vmatprep.subr.mxu0 0.0
        %4805 = vmatpush1.msra.mxu0 %v3892
        %4806 = vmatprep.subr.mxu0 0.0
        %4807 = vmatpush1.msra.mxu0 %v3893
        %4808 = vmatprep.subr.mxu0 0.0
        %4809 = vmatpush1.msra.mxu0 %v3894
        %4810 = vmatprep.subr.mxu0 0.0
        %4811 = vmatpush1.msra.mxu0 %v3895
        %4812 = vmatprep.subr.mxu0 0.0
        %4813 = vmatpush1.msra.mxu0 0.0
        %4814 = vmatprep.subr.mxu0 0.0
        %4815 = vmatpush1.msra.mxu0 0.0
        %4816 = vmatprep.subr.mxu0 0.0
        %4817 = vmatpush1.msra.mxu0 0.0
        %4818 = vmatprep.subr.mxu0 0.0
        %4819 = vmatpush1.msra.mxu0 0.0
        %4820 = vmatprep.subr.mxu0 0.0
        %4821 = vmatpush1.msra.mxu0 0.0
        %4822 = vmatprep.subr.mxu0 0.0
        %4823 = vmatpush1.msra.mxu0 0.0
        %4824 = vmatprep.subr.mxu0 0.0
        %4825 = vmatpush1.msra.mxu0 0.0
        %4826 = vmatprep.subr.mxu0 0.0
        %4827 = vmatpush1.msra.mxu0 0.0
        %4828 = vmatprep.subr.mxu0 0.0
        %4829 = vmatpush1.msra.mxu0 0.0
        %4830 = vmatprep.subr.mxu0 0.0
        %4831 = vmatpush1.msra.mxu0 0.0
        %4832 = vmatprep.subr.mxu0 0.0
        %4833 = vmatpush1.msra.mxu0 0.0
        %4834 = vmatprep.subr.mxu0 0.0
        %4835 = vmatpush1.msra.mxu0 0.0
        %4836 = vmatprep.subr.mxu0 0.0
        %4837 = vmatpush1.msra.mxu0 0.0
        %4838 = vmatprep.subr.mxu0 0.0
        %4839 = vmatpush1.msra.mxu0 0.0
        %4840 = vmatprep.subr.mxu0 0.0
        %4841 = vmatpush1.msra.mxu0 0.0
        %4842 = vmatprep.subr.mxu0 0.0
        %4843 = vmatpush1.msra.mxu0 0.0
        %4844 = vmatprep.subr.mxu0 0.0
        %4845 = vmatpush1.msra.mxu0 0.0
        %4846 = vmatprep.subr.mxu0 0.0
        %4847 = vmatpush1.msra.mxu0 0.0
        %4848 = vmatprep.subr.mxu0 0.0
        %4849 = vmatpush1.msra.mxu0 0.0
        %4850 = vmatprep.subr.mxu0 0.0
        %4851 = vmatpush1.msra.mxu0 0.0
        %4852 = vmatprep.subr.mxu0 0.0
        %4853 = vmatpush1.msra.mxu0 0.0
        %4854 = vmatprep.subr.mxu0 0.0
        %4855 = vmatpush1.msra.mxu0 0.0
        %4856 = vmatprep.subr.mxu0 0.0
        %4857 = vmatpush1.msra.mxu0 0.0
        %4858 = vmatprep.subr.mxu0 0.0
        %4859 = vmatpush1.msra.mxu0 0.0
        %4860 = vmatprep.subr.mxu0 0.0
        %4861 = vmatpush1.msra.mxu0 0.0
        %4862 = vmatprep.subr.mxu0 0.0
        %4863 = vmatpush1.msra.mxu0 0.0
        %4864 = vmatprep.subr.mxu0 0.0
        %4865 = vmatpush1.msra.mxu0 0.0
        %4866 = vmatprep.subr.mxu0 0.0
        %4867 = vmatpush1.msra.mxu0 0.0
        %4868 = vmatprep.mubr.f32.mxu0 0.0
        %4869 = vmatmul.mubr.f32.gmra.mrb[0].mxu0 %v4802
        %v4870 = vpop.f32.mrb[0].mxu0
        %v4871 = vadd.f32 %v4799, %v4870
        %v4872 = vpop.f32.mrb[0].mxu0
        %4873 = vdwg.mxu0
        %v4875 = vlaneseq
        %v4876 = vshrl.u32 %v4875, 7
        %v4877 = vsub.s32 0, %v4876
        %v4878 = vrot.slane %v3901, %v4877
        %v4881 = vsel %vm1690, %v3878, 0
        %4883 = vmatprep.subr.mxu0 0.0
        %4884 = vmatpush1.msra.mxu0 %v3897
        %4885 = vmatprep.subr.mxu0 0.0
        %4886 = vmatpush1.msra.mxu0 %v3898
        %4887 = vmatprep.subr.mxu0 0.0
        %4888 = vmatpush1.msra.mxu0 %v3899
        %4889 = vmatprep.subr.mxu0 0.0
        %4890 = vmatpush1.msra.mxu0 %v3900
        %4891 = vmatprep.subr.mxu0 0.0
        %4892 = vmatpush1.msra.mxu0 0.0
        %4893 = vmatprep.subr.mxu0 0.0
        %4894 = vmatpush1.msra.mxu0 0.0
        %4895 = vmatprep.subr.mxu0 0.0
        %4896 = vmatpush1.msra.mxu0 0.0
        %4897 = vmatprep.subr.mxu0 0.0
        %4898 = vmatpush1.msra.mxu0 0.0
        %4899 = vmatprep.subr.mxu0 0.0
        %4900 = vmatpush1.msra.mxu0 0.0
        %4901 = vmatprep.subr.mxu0 0.0
        %4902 = vmatpush1.msra.mxu0 0.0
        %4903 = vmatprep.subr.mxu0 0.0
        %4904 = vmatpush1.msra.mxu0 0.0
        %4905 = vmatprep.subr.mxu0 0.0
        %4906 = vmatpush1.msra.mxu0 0.0
        %4907 = vmatprep.subr.mxu0 0.0
        %4908 = vmatpush1.msra.mxu0 0.0
        %4909 = vmatprep.subr.mxu0 0.0
        %4910 = vmatpush1.msra.mxu0 0.0
        %4911 = vmatprep.subr.mxu0 0.0
        %4912 = vmatpush1.msra.mxu0 0.0
        %4913 = vmatprep.subr.mxu0 0.0
        %4914 = vmatpush1.msra.mxu0 0.0
        %4915 = vmatprep.subr.mxu0 0.0
        %4916 = vmatpush1.msra.mxu0 0.0
        %4917 = vmatprep.subr.mxu0 0.0
        %4918 = vmatpush1.msra.mxu0 0.0
        %4919 = vmatprep.subr.mxu0 0.0
        %4920 = vmatpush1.msra.mxu0 0.0
        %4921 = vmatprep.subr.mxu0 0.0
        %4922 = vmatpush1.msra.mxu0 0.0
        %4923 = vmatprep.subr.mxu0 0.0
        %4924 = vmatpush1.msra.mxu0 0.0
        %4925 = vmatprep.subr.mxu0 0.0
        %4926 = vmatpush1.msra.mxu0 0.0
        %4927 = vmatprep.subr.mxu0 0.0
        %4928 = vmatpush1.msra.mxu0 0.0
        %4929 = vmatprep.subr.mxu0 0.0
        %4930 = vmatpush1.msra.mxu0 0.0
        %4931 = vmatprep.subr.mxu0 0.0
        %4932 = vmatpush1.msra.mxu0 0.0
        %4933 = vmatprep.subr.mxu0 0.0
        %4934 = vmatpush1.msra.mxu0 0.0
        %4935 = vmatprep.subr.mxu0 0.0
        %4936 = vmatpush1.msra.mxu0 0.0
        %4937 = vmatprep.subr.mxu0 0.0
        %4938 = vmatpush1.msra.mxu0 0.0
        %4939 = vmatprep.subr.mxu0 0.0
        %4940 = vmatpush1.msra.mxu0 0.0
        %4941 = vmatprep.subr.mxu0 0.0
        %4942 = vmatpush1.msra.mxu0 0.0
        %4943 = vmatprep.subr.mxu0 0.0
        %4944 = vmatpush1.msra.mxu0 0.0
        %4945 = vmatprep.subr.mxu0 0.0
        %4946 = vmatpush1.msra.mxu0 0.0
        %4947 = vmatprep.mubr.f32.mxu0 0.0
        %4948 = vmatmul.mubr.f32.gmra.mrb[0].mxu0 %v4881
        %v4949 = vpop.f32.mrb[0].mxu0
        %v4950 = vadd.f32 %v4878, %v4949
        %v4951 = vpop.f32.mrb[0].mxu0
        %4952 = vdwg.mxu0
        %v4954 = vsel %vm1767, %v4871, 0
        %v4957 = vsel %vm1767, %v4950, 0
        %4959 = vmatprep.subr.mxu0 0.0
        %4960 = vmatpush1.xpose.msra.mxu0 %v4957
        %4961 = vmatprep.subr.mxu0 0.0
        %4962 = vmatpush1.xpose.msra.mxu0 0.0
        %4963 = vmatprep.subr.mxu0 0.0
        %4964 = vmatpush1.xpose.msra.mxu0 0.0
        %4965 = vmatprep.subr.mxu0 0.0
        %4966 = vmatpush1.xpose.msra.mxu0 0.0
        %4967 = vmatprep.subr.mxu0 0.0
        %4968 = vmatpush1.xpose.msra.mxu0 0.0
        %4969 = vmatprep.subr.mxu0 0.0
        %4970 = vmatpush1.xpose.msra.mxu0 0.0
        %4971 = vmatprep.subr.mxu0 0.0
        %4972 = vmatpush1.xpose.msra.mxu0 0.0
        %4973 = vmatprep.subr.mxu0 0.0
        %4974 = vmatpush1.xpose.msra.mxu0 0.0
        %4975 = vmatprep.subr.mxu0 0.0
        %4976 = vmatpush1.xpose.msra.mxu0 0.0
        %4977 = vmatprep.subr.mxu0 0.0
        %4978 = vmatpush1.xpose.msra.mxu0 0.0
        %4979 = vmatprep.subr.mxu0 0.0
        %4980 = vmatpush1.xpose.msra.mxu0 0.0
        %4981 = vmatprep.subr.mxu0 0.0
        %4982 = vmatpush1.xpose.msra.mxu0 0.0
        %4983 = vmatprep.subr.mxu0 0.0
        %4984 = vmatpush1.xpose.msra.mxu0 0.0
        %4985 = vmatprep.subr.mxu0 0.0
        %4986 = vmatpush1.xpose.msra.mxu0 0.0
        %4987 = vmatprep.subr.mxu0 0.0
        %4988 = vmatpush1.xpose.msra.mxu0 0.0
        %4989 = vmatprep.subr.mxu0 0.0
        %4990 = vmatpush1.xpose.msra.mxu0 0.0
        %4991 = vmatprep.subr.mxu0 0.0
        %4992 = vmatpush1.xpose.msra.mxu0 0.0
        %4993 = vmatprep.subr.mxu0 0.0
        %4994 = vmatpush1.xpose.msra.mxu0 0.0
        %4995 = vmatprep.subr.mxu0 0.0
        %4996 = vmatpush1.xpose.msra.mxu0 0.0
        %4997 = vmatprep.subr.mxu0 0.0
        %4998 = vmatpush1.xpose.msra.mxu0 0.0
        %4999 = vmatprep.subr.mxu0 0.0
        %5000 = vmatpush1.xpose.msra.mxu0 0.0
        %5001 = vmatprep.subr.mxu0 0.0
        %5002 = vmatpush1.xpose.msra.mxu0 0.0
        %5003 = vmatprep.subr.mxu0 0.0
        %5004 = vmatpush1.xpose.msra.mxu0 0.0
        %5005 = vmatprep.subr.mxu0 0.0
        %5006 = vmatpush1.xpose.msra.mxu0 0.0
        %5007 = vmatprep.subr.mxu0 0.0
        %5008 = vmatpush1.xpose.msra.mxu0 0.0
        %5009 = vmatprep.subr.mxu0 0.0
        %5010 = vmatpush1.xpose.msra.mxu0 0.0
        %5011 = vmatprep.subr.mxu0 0.0
        %5012 = vmatpush1.xpose.msra.mxu0 0.0
        %5013 = vmatprep.subr.mxu0 0.0
        %5014 = vmatpush1.xpose.msra.mxu0 0.0
        %5015 = vmatprep.subr.mxu0 0.0
        %5016 = vmatpush1.xpose.msra.mxu0 0.0
        %5017 = vmatprep.subr.mxu0 0.0
        %5018 = vmatpush1.xpose.msra.mxu0 0.0
        %5019 = vmatprep.subr.mxu0 0.0
        %5020 = vmatpush1.xpose.msra.mxu0 0.0
        %5021 = vmatprep.subr.mxu0 0.0
        %5022 = vmatpush1.xpose.msra.mxu0 0.0
        %5023 = vmatprep.mubr.f32.mxu0 0.0
        %5024 = vmatmul.mubr.f32.gmra.mrb[0].mxu0 %v4954
        %v5025 = vpop.f32.mrb[0].mxu0
        %v5026 = vadd.f32 0.0, %v5025
        %v5027 = vpop.f32.mrb[0].mxu0
        %5028 = vdwg.mxu0
        %v5029 = vmul.f32 %v5026, 0.35355338
        %v5030 = vsel %vm1843, %v5029, -inf
        %5031 = vmax.xlane.f32.xlu0 %v5030
        %v5032 = vpop.xlane.xlu0 %5031
        %v5033 = vsub.f32 %v5029, %v5032
        %v5034 = vmul.f32 %v5033, 1.442695
        %v5035 = vpow.pop %v5034
        %v5036 = vsel %vm1843, %v5035, 0.0
        %5037 = vadd.xlane.f32.xlu0 %v5036
        %v5038 = vpop.xlane.xlu0 %5037
        %v5039 = vrcp.pop %v5038
        %v5040 = vmul.f32 %v5035, %v5039
        %5041 = vrot.lane.b32.xlu0 %v4950, 96
        %v5042 = vpop.permute.xlu0 %5041
        %v5044 = vsel %vm1857, %v5040, 0
        %v5046 = vsel %vm1861, %v5042, 0
        %5048 = vmatprep.subr.mxu0 0.0
        %5049 = vmatpush1.msra.mxu0 %v5046
        %5050 = vmatprep.subr.mxu0 0.0
        %5051 = vmatpush1.msra.mxu0 0.0
        %5052 = vmatprep.subr.mxu0 0.0
        %5053 = vmatpush1.msra.mxu0 0.0
        %5054 = vmatprep.subr.mxu0 0.0
        %5055 = vmatpush1.msra.mxu0 0.0
        %5056 = vmatprep.subr.mxu0 0.0
        %5057 = vmatpush1.msra.mxu0 0.0
        %5058 = vmatprep.subr.mxu0 0.0
        %5059 = vmatpush1.msra.mxu0 0.0
        %5060 = vmatprep.subr.mxu0 0.0
        %5061 = vmatpush1.msra.mxu0 0.0
        %5062 = vmatprep.subr.mxu0 0.0
        %5063 = vmatpush1.msra.mxu0 0.0
        %5064 = vmatprep.subr.mxu0 0.0
        %5065 = vmatpush1.msra.mxu0 0.0
        %5066 = vmatprep.subr.mxu0 0.0
        %5067 = vmatpush1.msra.mxu0 0.0
        %5068 = vmatprep.subr.mxu0 0.0
        %5069 = vmatpush1.msra.mxu0 0.0
        %5070 = vmatprep.subr.mxu0 0.0
        %5071 = vmatpush1.msra.mxu0 0.0
        %5072 = vmatprep.subr.mxu0 0.0
        %5073 = vmatpush1.msra.mxu0 0.0
        %5074 = vmatprep.subr.mxu0 0.0
        %5075 = vmatpush1.msra.mxu0 0.0
        %5076 = vmatprep.subr.mxu0 0.0
        %5077 = vmatpush1.msra.mxu0 0.0
        %5078 = vmatprep.subr.mxu0 0.0
        %5079 = vmatpush1.msra.mxu0 0.0
        %5080 = vmatprep.subr.mxu0 0.0
        %5081 = vmatpush1.msra.mxu0 0.0
        %5082 = vmatprep.subr.mxu0 0.0
        %5083 = vmatpush1.msra.mxu0 0.0
        %5084 = vmatprep.subr.mxu0 0.0
        %5085 = vmatpush1.msra.mxu0 0.0
        %5086 = vmatprep.subr.mxu0 0.0
        %5087 = vmatpush1.msra.mxu0 0.0
        %5088 = vmatprep.subr.mxu0 0.0
        %5089 = vmatpush1.msra.mxu0 0.0
        %5090 = vmatprep.subr.mxu0 0.0
        %5091 = vmatpush1.msra.mxu0 0.0
        %5092 = vmatprep.subr.mxu0 0.0
        %5093 = vmatpush1.msra.mxu0 0.0
        %5094 = vmatprep.subr.mxu0 0.0
        %5095 = vmatpush1.msra.mxu0 0.0
        %5096 = vmatprep.subr.mxu0 0.0
        %5097 = vmatpush1.msra.mxu0 0.0
        %5098 = vmatprep.subr.mxu0 0.0
        %5099 = vmatpush1.msra.mxu0 0.0
        %5100 = vmatprep.subr.mxu0 0.0
        %5101 = vmatpush1.msra.mxu0 0.0
        %5102 = vmatprep.subr.mxu0 0.0
        %5103 = vmatpush1.msra.mxu0 0.0
        %5104 = vmatprep.subr.mxu0 0.0
        %5105 = vmatpush1.msra.mxu0 0.0
        %5106 = vmatprep.subr.mxu0 0.0
        %5107 = vmatpush1.msra.mxu0 0.0
        %5108 = vmatprep.subr.mxu0 0.0
        %5109 = vmatpush1.msra.mxu0 0.0
        %5110 = vmatprep.subr.mxu0 0.0
        %5111 = vmatpush1.msra.mxu0 0.0
        %5112 = vmatprep.mubr.f32.mxu0 0.0
        %5113 = vmatmul.mubr.f32.gmra.mrb[0].mxu0 %v5044
        %v5114 = vpop.f32.mrb[0].mxu0
        %v5115 = vadd.f32 0.0, %v5114
        %v5116 = vpop.f32.mrb[0].mxu0
        %5117 = vdwg.mxu0
        %5118 = vst.msk [vmem:[#allocation2] sm:$0xf] %vm1934, %v5115
        %5119 = vrot.lane.b32.xlu0 %v4871, 120
        %v5120 = vpop.permute.xlu0 %5119
        %5121 = vrot.lane.b32.xlu0 %v4950, 120
        %v5122 = vpop.permute.xlu0 %5121
        %v5123 = vsel %vm1767, %v5120, 0
        %v5125 = vsel %vm1767, %v5122, 0
        %5127 = vmatprep.subr.mxu0 0.0
        %5128 = vmatpush1.xpose.msra.mxu0 %v5125
        %5129 = vmatprep.subr.mxu0 0.0
        %5130 = vmatpush1.xpose.msra.mxu0 0.0
        %5131 = vmatprep.subr.mxu0 0.0
        %5132 = vmatpush1.xpose.msra.mxu0 0.0
        %5133 = vmatprep.subr.mxu0 0.0
        %5134 = vmatpush1.xpose.msra.mxu0 0.0
        %5135 = vmatprep.subr.mxu0 0.0
        %5136 = vmatpush1.xpose.msra.mxu0 0.0
        %5137 = vmatprep.subr.mxu0 0.0
        %5138 = vmatpush1.xpose.msra.mxu0 0.0
        %5139 = vmatprep.subr.mxu0 0.0
        %5140 = vmatpush1.xpose.msra.mxu0 0.0
        %5141 = vmatprep.subr.mxu0 0.0
        %5142 = vmatpush1.xpose.msra.mxu0 0.0
        %5143 = vmatprep.subr.mxu0 0.0
        %5144 = vmatpush1.xpose.msra.mxu0 0.0
        %5145 = vmatprep.subr.mxu0 0.0
        %5146 = vmatpush1.xpose.msra.mxu0 0.0
        %5147 = vmatprep.subr.mxu0 0.0
        %5148 = vmatpush1.xpose.msra.mxu0 0.0
        %5149 = vmatprep.subr.mxu0 0.0
        %5150 = vmatpush1.xpose.msra.mxu0 0.0
        %5151 = vmatprep.subr.mxu0 0.0
        %5152 = vmatpush1.xpose.msra.mxu0 0.0
        %5153 = vmatprep.subr.mxu0 0.0
        %5154 = vmatpush1.xpose.msra.mxu0 0.0
        %5155 = vmatprep.subr.mxu0 0.0
        %5156 = vmatpush1.xpose.msra.mxu0 0.0
        %5157 = vmatprep.subr.mxu0 0.0
        %5158 = vmatpush1.xpose.msra.mxu0 0.0
        %5159 = vmatprep.subr.mxu0 0.0
        %5160 = vmatpush1.xpose.msra.mxu0 0.0
        %5161 = vmatprep.subr.mxu0 0.0
        %5162 = vmatpush1.xpose.msra.mxu0 0.0
        %5163 = vmatprep.subr.mxu0 0.0
        %5164 = vmatpush1.xpose.msra.mxu0 0.0
        %5165 = vmatprep.subr.mxu0 0.0
        %5166 = vmatpush1.xpose.msra.mxu0 0.0
        %5167 = vmatprep.subr.mxu0 0.0
        %5168 = vmatpush1.xpose.msra.mxu0 0.0
        %5169 = vmatprep.subr.mxu0 0.0
        %5170 = vmatpush1.xpose.msra.mxu0 0.0
        %5171 = vmatprep.subr.mxu0 0.0
        %5172 = vmatpush1.xpose.msra.mxu0 0.0
        %5173 = vmatprep.subr.mxu0 0.0
        %5174 = vmatpush1.xpose.msra.mxu0 0.0
        %5175 = vmatprep.subr.mxu0 0.0
        %5176 = vmatpush1.xpose.msra.mxu0 0.0
        %5177 = vmatprep.subr.mxu0 0.0
        %5178 = vmatpush1.xpose.msra.mxu0 0.0
        %5179 = vmatprep.subr.mxu0 0.0
        %5180 = vmatpush1.xpose.msra.mxu0 0.0
        %5181 = vmatprep.subr.mxu0 0.0
        %5182 = vmatpush1.xpose.msra.mxu0 0.0
        %5183 = vmatprep.subr.mxu0 0.0
        %5184 = vmatpush1.xpose.msra.mxu0 0.0
        %5185 = vmatprep.subr.mxu0 0.0
        %5186 = vmatpush1.xpose.msra.mxu0 0.0
        %5187 = vmatprep.subr.mxu0 0.0
        %5188 = vmatpush1.xpose.msra.mxu0 0.0
        %5189 = vmatprep.subr.mxu0 0.0
        %5190 = vmatpush1.xpose.msra.mxu0 0.0
        %5191 = vmatprep.mubr.f32.mxu0 0.0
        %5192 = vmatmul.mubr.f32.gmra.mrb[0].mxu0 %v5123
        %v5193 = vpop.f32.mrb[0].mxu0
        %v5194 = vadd.f32 0.0, %v5193
        %v5195 = vpop.f32.mrb[0].mxu0
        %5196 = vdwg.mxu0
        %v5197 = vmul.f32 %v5194, 0.35355338
        %v5198 = vsel %vm1843, %v5197, -inf
        %5199 = vmax.xlane.f32.xlu0 %v5198
        %v5200 = vpop.xlane.xlu0 %5199
        %v5201 = vsub.f32 %v5197, %v5200
        %v5202 = vmul.f32 %v5201, 1.442695
        %v5203 = vpow.pop %v5202
        %v5204 = vsel %vm1843, %v5203, 0.0
        %5205 = vadd.xlane.f32.xlu0 %v5204
        %v5206 = vpop.xlane.xlu0 %5205
        %v5207 = vrcp.pop %v5206
        %v5208 = vmul.f32 %v5203, %v5207
        %5209 = vrot.lane.b32.xlu0 %v4950, 88
        %v5210 = vpop.permute.xlu0 %5209
        %v5212 = vsel %vm1857, %v5208, 0
        %v5214 = vsel %vm1861, %v5210, 0
        %5216 = vmatprep.subr.mxu0 0.0
        %5217 = vmatpush1.msra.mxu0 %v5214
        %5218 = vmatprep.subr.mxu0 0.0
        %5219 = vmatpush1.msra.mxu0 0.0
        %5220 = vmatprep.subr.mxu0 0.0
        %5221 = vmatpush1.msra.mxu0 0.0
        %5222 = vmatprep.subr.mxu0 0.0
        %5223 = vmatpush1.msra.mxu0 0.0
        %5224 = vmatprep.subr.mxu0 0.0
        %5225 = vmatpush1.msra.mxu0 0.0
        %5226 = vmatprep.subr.mxu0 0.0
        %5227 = vmatpush1.msra.mxu0 0.0
        %5228 = vmatprep.subr.mxu0 0.0
        %5229 = vmatpush1.msra.mxu0 0.0
        %5230 = vmatprep.subr.mxu0 0.0
        %5231 = vmatpush1.msra.mxu0 0.0
        %5232 = vmatprep.subr.mxu0 0.0
        %5233 = vmatpush1.msra.mxu0 0.0
        %5234 = vmatprep.subr.mxu0 0.0
        %5235 = vmatpush1.msra.mxu0 0.0
        %5236 = vmatprep.subr.mxu0 0.0
        %5237 = vmatpush1.msra.mxu0 0.0
        %5238 = vmatprep.subr.mxu0 0.0
        %5239 = vmatpush1.msra.mxu0 0.0
        %5240 = vmatprep.subr.mxu0 0.0
        %5241 = vmatpush1.msra.mxu0 0.0
        %5242 = vmatprep.subr.mxu0 0.0
        %5243 = vmatpush1.msra.mxu0 0.0
        %5244 = vmatprep.subr.mxu0 0.0
        %5245 = vmatpush1.msra.mxu0 0.0
        %5246 = vmatprep.subr.mxu0 0.0
        %5247 = vmatpush1.msra.mxu0 0.0
        %5248 = vmatprep.subr.mxu0 0.0
        %5249 = vmatpush1.msra.mxu0 0.0
        %5250 = vmatprep.subr.mxu0 0.0
        %5251 = vmatpush1.msra.mxu0 0.0
        %5252 = vmatprep.subr.mxu0 0.0
        %5253 = vmatpush1.msra.mxu0 0.0
        %5254 = vmatprep.subr.mxu0 0.0
        %5255 = vmatpush1.msra.mxu0 0.0
        %5256 = vmatprep.subr.mxu0 0.0
        %5257 = vmatpush1.msra.mxu0 0.0
        %5258 = vmatprep.subr.mxu0 0.0
        %5259 = vmatpush1.msra.mxu0 0.0
        %5260 = vmatprep.subr.mxu0 0.0
        %5261 = vmatpush1.msra.mxu0 0.0
        %5262 = vmatprep.subr.mxu0 0.0
        %5263 = vmatpush1.msra.mxu0 0.0
        %5264 = vmatprep.subr.mxu0 0.0
        %5265 = vmatpush1.msra.mxu0 0.0
        %5266 = vmatprep.subr.mxu0 0.0
        %5267 = vmatpush1.msra.mxu0 0.0
        %5268 = vmatprep.subr.mxu0 0.0
        %5269 = vmatpush1.msra.mxu0 0.0
        %5270 = vmatprep.subr.mxu0 0.0
        %5271 = vmatpush1.msra.mxu0 0.0
        %5272 = vmatprep.subr.mxu0 0.0
        %5273 = vmatpush1.msra.mxu0 0.0
        %5274 = vmatprep.subr.mxu0 0.0
        %5275 = vmatpush1.msra.mxu0 0.0
        %5276 = vmatprep.subr.mxu0 0.0
        %5277 = vmatpush1.msra.mxu0 0.0
        %5278 = vmatprep.subr.mxu0 0.0
        %5279 = vmatpush1.msra.mxu0 0.0
        %5280 = vmatprep.mubr.f32.mxu0 0.0
        %5281 = vmatmul.mubr.f32.gmra.mrb[0].mxu0 %v5212
        %v5282 = vpop.f32.mrb[0].mxu0
        %v5283 = vadd.f32 0.0, %v5282
        %v5284 = vpop.f32.mrb[0].mxu0
        %5285 = vdwg.mxu0
        %5287 = vrot.lane.b32.xlu0 %v5283, 8
        %v5288 = vpop.permute.xlu0 %5287
        %5290 = vst.msk [vmem:[#allocation2] sm:$0xf] %vm2107, %v5288
        %5291 = vrot.lane.b32.xlu0 %v4871, 112
        %v5292 = vpop.permute.xlu0 %5291
        %5293 = vrot.lane.b32.xlu0 %v4950, 112
        %v5294 = vpop.permute.xlu0 %5293
        %v5295 = vsel %vm1767, %v5292, 0
        %v5297 = vsel %vm1767, %v5294, 0
        %5299 = vmatprep.subr.mxu0 0.0
        %5300 = vmatpush1.xpose.msra.mxu0 %v5297
        %5301 = vmatprep.subr.mxu0 0.0
        %5302 = vmatpush1.xpose.msra.mxu0 0.0
        %5303 = vmatprep.subr.mxu0 0.0
        %5304 = vmatpush1.xpose.msra.mxu0 0.0
        %5305 = vmatprep.subr.mxu0 0.0
        %5306 = vmatpush1.xpose.msra.mxu0 0.0
        %5307 = vmatprep.subr.mxu0 0.0
        %5308 = vmatpush1.xpose.msra.mxu0 0.0
        %5309 = vmatprep.subr.mxu0 0.0
        %5310 = vmatpush1.xpose.msra.mxu0 0.0
        %5311 = vmatprep.subr.mxu0 0.0
        %5312 = vmatpush1.xpose.msra.mxu0 0.0
        %5313 = vmatprep.subr.mxu0 0.0
        %5314 = vmatpush1.xpose.msra.mxu0 0.0
        %5315 = vmatprep.subr.mxu0 0.0
        %5316 = vmatpush1.xpose.msra.mxu0 0.0
        %5317 = vmatprep.subr.mxu0 0.0
        %5318 = vmatpush1.xpose.msra.mxu0 0.0
        %5319 = vmatprep.subr.mxu0 0.0
        %5320 = vmatpush1.xpose.msra.mxu0 0.0
        %5321 = vmatprep.subr.mxu0 0.0
        %5322 = vmatpush1.xpose.msra.mxu0 0.0
        %5323 = vmatprep.subr.mxu0 0.0
        %5324 = vmatpush1.xpose.msra.mxu0 0.0
        %5325 = vmatprep.subr.mxu0 0.0
        %5326 = vmatpush1.xpose.msra.mxu0 0.0
        %5327 = vmatprep.subr.mxu0 0.0
        %5328 = vmatpush1.xpose.msra.mxu0 0.0
        %5329 = vmatprep.subr.mxu0 0.0
        %5330 = vmatpush1.xpose.msra.mxu0 0.0
        %5331 = vmatprep.subr.mxu0 0.0
        %5332 = vmatpush1.xpose.msra.mxu0 0.0
        %5333 = vmatprep.subr.mxu0 0.0
        %5334 = vmatpush1.xpose.msra.mxu0 0.0
        %5335 = vmatprep.subr.mxu0 0.0
        %5336 = vmatpush1.xpose.msra.mxu0 0.0
        %5337 = vmatprep.subr.mxu0 0.0
        %5338 = vmatpush1.xpose.msra.mxu0 0.0
        %5339 = vmatprep.subr.mxu0 0.0
        %5340 = vmatpush1.xpose.msra.mxu0 0.0
        %5341 = vmatprep.subr.mxu0 0.0
        %5342 = vmatpush1.xpose.msra.mxu0 0.0
        %5343 = vmatprep.subr.mxu0 0.0
        %5344 = vmatpush1.xpose.msra.mxu0 0.0
        %5345 = vmatprep.subr.mxu0 0.0
        %5346 = vmatpush1.xpose.msra.mxu0 0.0
        %5347 = vmatprep.subr.mxu0 0.0
        %5348 = vmatpush1.xpose.msra.mxu0 0.0
        %5349 = vmatprep.subr.mxu0 0.0
        %5350 = vmatpush1.xpose.msra.mxu0 0.0
        %5351 = vmatprep.subr.mxu0 0.0
        %5352 = vmatpush1.xpose.msra.mxu0 0.0
        %5353 = vmatprep.subr.mxu0 0.0
        %5354 = vmatpush1.xpose.msra.mxu0 0.0
        %5355 = vmatprep.subr.mxu0 0.0
        %5356 = vmatpush1.xpose.msra.mxu0 0.0
        %5357 = vmatprep.subr.mxu0 0.0
        %5358 = vmatpush1.xpose.msra.mxu0 0.0
        %5359 = vmatprep.subr.mxu0 0.0
        %5360 = vmatpush1.xpose.msra.mxu0 0.0
        %5361 = vmatprep.subr.mxu0 0.0
        %5362 = vmatpush1.xpose.msra.mxu0 0.0
        %5363 = vmatprep.mubr.f32.mxu0 0.0
        %5364 = vmatmul.mubr.f32.gmra.mrb[0].mxu0 %v5295
        %v5365 = vpop.f32.mrb[0].mxu0
        %v5366 = vadd.f32 0.0, %v5365
        %v5367 = vpop.f32.mrb[0].mxu0
        %5368 = vdwg.mxu0
        %v5369 = vmul.f32 %v5366, 0.35355338
        %v5370 = vsel %vm1843, %v5369, -inf
        %5371 = vmax.xlane.f32.xlu0 %v5370
        %v5372 = vpop.xlane.xlu0 %5371
        %v5373 = vsub.f32 %v5369, %v5372
        %v5374 = vmul.f32 %v5373, 1.442695
        %v5375 = vpow.pop %v5374
        %v5376 = vsel %vm1843, %v5375, 0.0
        %5377 = vadd.xlane.f32.xlu0 %v5376
        %v5378 = vpop.xlane.xlu0 %5377
        %v5379 = vrcp.pop %v5378
        %v5380 = vmul.f32 %v5375, %v5379
        %5381 = vrot.lane.b32.xlu0 %v4950, 80
        %v5382 = vpop.permute.xlu0 %5381
        %v5384 = vsel %vm1857, %v5380, 0
        %v5386 = vsel %vm1861, %v5382, 0
        %5388 = vmatprep.subr.mxu0 0.0
        %5389 = vmatpush1.msra.mxu0 %v5386
        %5390 = vmatprep.subr.mxu0 0.0
        %5391 = vmatpush1.msra.mxu0 0.0
        %5392 = vmatprep.subr.mxu0 0.0
        %5393 = vmatpush1.msra.mxu0 0.0
        %5394 = vmatprep.subr.mxu0 0.0
        %5395 = vmatpush1.msra.mxu0 0.0
        %5396 = vmatprep.subr.mxu0 0.0
        %5397 = vmatpush1.msra.mxu0 0.0
        %5398 = vmatprep.subr.mxu0 0.0
        %5399 = vmatpush1.msra.mxu0 0.0
        %5400 = vmatprep.subr.mxu0 0.0
        %5401 = vmatpush1.msra.mxu0 0.0
        %5402 = vmatprep.subr.mxu0 0.0
        %5403 = vmatpush1.msra.mxu0 0.0
        %5404 = vmatprep.subr.mxu0 0.0
        %5405 = vmatpush1.msra.mxu0 0.0
        %5406 = vmatprep.subr.mxu0 0.0
        %5407 = vmatpush1.msra.mxu0 0.0
        %5408 = vmatprep.subr.mxu0 0.0
        %5409 = vmatpush1.msra.mxu0 0.0
        %5410 = vmatprep.subr.mxu0 0.0
        %5411 = vmatpush1.msra.mxu0 0.0
        %5412 = vmatprep.subr.mxu0 0.0
        %5413 = vmatpush1.msra.mxu0 0.0
        %5414 = vmatprep.subr.mxu0 0.0
        %5415 = vmatpush1.msra.mxu0 0.0
        %5416 = vmatprep.subr.mxu0 0.0
        %5417 = vmatpush1.msra.mxu0 0.0
        %5418 = vmatprep.subr.mxu0 0.0
        %5419 = vmatpush1.msra.mxu0 0.0
        %5420 = vmatprep.subr.mxu0 0.0
        %5421 = vmatpush1.msra.mxu0 0.0
        %5422 = vmatprep.subr.mxu0 0.0
        %5423 = vmatpush1.msra.mxu0 0.0
        %5424 = vmatprep.subr.mxu0 0.0
        %5425 = vmatpush1.msra.mxu0 0.0
        %5426 = vmatprep.subr.mxu0 0.0
        %5427 = vmatpush1.msra.mxu0 0.0
        %5428 = vmatprep.subr.mxu0 0.0
        %5429 = vmatpush1.msra.mxu0 0.0
        %5430 = vmatprep.subr.mxu0 0.0
        %5431 = vmatpush1.msra.mxu0 0.0
        %5432 = vmatprep.subr.mxu0 0.0
        %5433 = vmatpush1.msra.mxu0 0.0
        %5434 = vmatprep.subr.mxu0 0.0
        %5435 = vmatpush1.msra.mxu0 0.0
        %5436 = vmatprep.subr.mxu0 0.0
        %5437 = vmatpush1.msra.mxu0 0.0
        %5438 = vmatprep.subr.mxu0 0.0
        %5439 = vmatpush1.msra.mxu0 0.0
        %5440 = vmatprep.subr.mxu0 0.0
        %5441 = vmatpush1.msra.mxu0 0.0
        %5442 = vmatprep.subr.mxu0 0.0
        %5443 = vmatpush1.msra.mxu0 0.0
        %5444 = vmatprep.subr.mxu0 0.0
        %5445 = vmatpush1.msra.mxu0 0.0
        %5446 = vmatprep.subr.mxu0 0.0
        %5447 = vmatpush1.msra.mxu0 0.0
        %5448 = vmatprep.subr.mxu0 0.0
        %5449 = vmatpush1.msra.mxu0 0.0
        %5450 = vmatprep.subr.mxu0 0.0
        %5451 = vmatpush1.msra.mxu0 0.0
        %5452 = vmatprep.mubr.f32.mxu0 0.0
        %5453 = vmatmul.mubr.f32.gmra.mrb[0].mxu0 %v5384
        %v5454 = vpop.f32.mrb[0].mxu0
        %v5455 = vadd.f32 0.0, %v5454
        %v5456 = vpop.f32.mrb[0].mxu0
        %5457 = vdwg.mxu0
        %5459 = vrot.lane.b32.xlu0 %v5455, 16
        %v5460 = vpop.permute.xlu0 %5459
        %5462 = vst.msk [vmem:[#allocation2] sm:$0xf] %vm2280, %v5460
        %5463 = vrot.lane.b32.xlu0 %v4871, 104
        %v5464 = vpop.permute.xlu0 %5463
        %5465 = vrot.lane.b32.xlu0 %v4950, 104
        %v5466 = vpop.permute.xlu0 %5465
        %v5467 = vsel %vm1767, %v5464, 0
        %v5469 = vsel %vm1767, %v5466, 0
        %5471 = vmatprep.subr.mxu0 0.0
        %5472 = vmatpush1.xpose.msra.mxu0 %v5469
        %5473 = vmatprep.subr.mxu0 0.0
        %5474 = vmatpush1.xpose.msra.mxu0 0.0
        %5475 = vmatprep.subr.mxu0 0.0
        %5476 = vmatpush1.xpose.msra.mxu0 0.0
        %5477 = vmatprep.subr.mxu0 0.0
        %5478 = vmatpush1.xpose.msra.mxu0 0.0
        %5479 = vmatprep.subr.mxu0 0.0
        %5480 = vmatpush1.xpose.msra.mxu0 0.0
        %5481 = vmatprep.subr.mxu0 0.0
        %5482 = vmatpush1.xpose.msra.mxu0 0.0
        %5483 = vmatprep.subr.mxu0 0.0
        %5484 = vmatpush1.xpose.msra.mxu0 0.0
        %5485 = vmatprep.subr.mxu0 0.0
        %5486 = vmatpush1.xpose.msra.mxu0 0.0
        %5487 = vmatprep.subr.mxu0 0.0
        %5488 = vmatpush1.xpose.msra.mxu0 0.0
        %5489 = vmatprep.subr.mxu0 0.0
        %5490 = vmatpush1.xpose.msra.mxu0 0.0
        %5491 = vmatprep.subr.mxu0 0.0
        %5492 = vmatpush1.xpose.msra.mxu0 0.0
        %5493 = vmatprep.subr.mxu0 0.0
        %5494 = vmatpush1.xpose.msra.mxu0 0.0
        %5495 = vmatprep.subr.mxu0 0.0
        %5496 = vmatpush1.xpose.msra.mxu0 0.0
        %5497 = vmatprep.subr.mxu0 0.0
        %5498 = vmatpush1.xpose.msra.mxu0 0.0
        %5499 = vmatprep.subr.mxu0 0.0
        %5500 = vmatpush1.xpose.msra.mxu0 0.0
        %5501 = vmatprep.subr.mxu0 0.0
        %5502 = vmatpush1.xpose.msra.mxu0 0.0
        %5503 = vmatprep.subr.mxu0 0.0
        %5504 = vmatpush1.xpose.msra.mxu0 0.0
        %5505 = vmatprep.subr.mxu0 0.0
        %5506 = vmatpush1.xpose.msra.mxu0 0.0
        %5507 = vmatprep.subr.mxu0 0.0
        %5508 = vmatpush1.xpose.msra.mxu0 0.0
        %5509 = vmatprep.subr.mxu0 0.0
        %5510 = vmatpush1.xpose.msra.mxu0 0.0
        %5511 = vmatprep.subr.mxu0 0.0
        %5512 = vmatpush1.xpose.msra.mxu0 0.0
        %5513 = vmatprep.subr.mxu0 0.0
        %5514 = vmatpush1.xpose.msra.mxu0 0.0
        %5515 = vmatprep.subr.mxu0 0.0
        %5516 = vmatpush1.xpose.msra.mxu0 0.0
        %5517 = vmatprep.subr.mxu0 0.0
        %5518 = vmatpush1.xpose.msra.mxu0 0.0
        %5519 = vmatprep.subr.mxu0 0.0
        %5520 = vmatpush1.xpose.msra.mxu0 0.0
        %5521 = vmatprep.subr.mxu0 0.0
        %5522 = vmatpush1.xpose.msra.mxu0 0.0
        %5523 = vmatprep.subr.mxu0 0.0
        %5524 = vmatpush1.xpose.msra.mxu0 0.0
        %5525 = vmatprep.subr.mxu0 0.0
        %5526 = vmatpush1.xpose.msra.mxu0 0.0
        %5527 = vmatprep.subr.mxu0 0.0
        %5528 = vmatpush1.xpose.msra.mxu0 0.0
        %5529 = vmatprep.subr.mxu0 0.0
        %5530 = vmatpush1.xpose.msra.mxu0 0.0
        %5531 = vmatprep.subr.mxu0 0.0
        %5532 = vmatpush1.xpose.msra.mxu0 0.0
        %5533 = vmatprep.subr.mxu0 0.0
        %5534 = vmatpush1.xpose.msra.mxu0 0.0
        %5535 = vmatprep.mubr.f32.mxu0 0.0
        %5536 = vmatmul.mubr.f32.gmra.mrb[0].mxu0 %v5467
        %v5537 = vpop.f32.mrb[0].mxu0
        %v5538 = vadd.f32 0.0, %v5537
        %v5539 = vpop.f32.mrb[0].mxu0
        %5540 = vdwg.mxu0
        %v5541 = vmul.f32 %v5538, 0.35355338
        %v5542 = vsel %vm1843, %v5541, -inf
        %5543 = vmax.xlane.f32.xlu0 %v5542
        %v5544 = vpop.xlane.xlu0 %5543
        %v5545 = vsub.f32 %v5541, %v5544
        %v5546 = vmul.f32 %v5545, 1.442695
        %v5547 = vpow.pop %v5546
        %v5548 = vsel %vm1843, %v5547, 0.0
        %5549 = vadd.xlane.f32.xlu0 %v5548
        %v5550 = vpop.xlane.xlu0 %5549
        %v5551 = vrcp.pop %v5550
        %v5552 = vmul.f32 %v5547, %v5551
        %5553 = vrot.lane.b32.xlu0 %v4950, 72
        %v5554 = vpop.permute.xlu0 %5553
        %v5556 = vsel %vm1857, %v5552, 0
        %v5558 = vsel %vm1861, %v5554, 0
        %5560 = vmatprep.subr.mxu0 0.0
        %5561 = vmatpush1.msra.mxu0 %v5558
        %5562 = vmatprep.subr.mxu0 0.0
        %5563 = vmatpush1.msra.mxu0 0.0
        %5564 = vmatprep.subr.mxu0 0.0
        %5565 = vmatpush1.msra.mxu0 0.0
        %5566 = vmatprep.subr.mxu0 0.0
        %5567 = vmatpush1.msra.mxu0 0.0
        %5568 = vmatprep.subr.mxu0 0.0
        %5569 = vmatpush1.msra.mxu0 0.0
        %5570 = vmatprep.subr.mxu0 0.0
        %5571 = vmatpush1.msra.mxu0 0.0
        %5572 = vmatprep.subr.mxu0 0.0
        %5573 = vmatpush1.msra.mxu0 0.0
        %5574 = vmatprep.subr.mxu0 0.0
        %5575 = vmatpush1.msra.mxu0 0.0
        %5576 = vmatprep.subr.mxu0 0.0
        %5577 = vmatpush1.msra.mxu0 0.0
        %5578 = vmatprep.subr.mxu0 0.0
        %5579 = vmatpush1.msra.mxu0 0.0
        %5580 = vmatprep.subr.mxu0 0.0
        %5581 = vmatpush1.msra.mxu0 0.0
        %5582 = vmatprep.subr.mxu0 0.0
        %5583 = vmatpush1.msra.mxu0 0.0
        %5584 = vmatprep.subr.mxu0 0.0
        %5585 = vmatpush1.msra.mxu0 0.0
        %5586 = vmatprep.subr.mxu0 0.0
        %5587 = vmatpush1.msra.mxu0 0.0
        %5588 = vmatprep.subr.mxu0 0.0
        %5589 = vmatpush1.msra.mxu0 0.0
        %5590 = vmatprep.subr.mxu0 0.0
        %5591 = vmatpush1.msra.mxu0 0.0
        %5592 = vmatprep.subr.mxu0 0.0
        %5593 = vmatpush1.msra.mxu0 0.0
        %5594 = vmatprep.subr.mxu0 0.0
        %5595 = vmatpush1.msra.mxu0 0.0
        %5596 = vmatprep.subr.mxu0 0.0
        %5597 = vmatpush1.msra.mxu0 0.0
        %5598 = vmatprep.subr.mxu0 0.0
        %5599 = vmatpush1.msra.mxu0 0.0
        %5600 = vmatprep.subr.mxu0 0.0
        %5601 = vmatpush1.msra.mxu0 0.0
        %5602 = vmatprep.subr.mxu0 0.0
        %5603 = vmatpush1.msra.mxu0 0.0
        %5604 = vmatprep.subr.mxu0 0.0
        %5605 = vmatpush1.msra.mxu0 0.0
        %5606 = vmatprep.subr.mxu0 0.0
        %5607 = vmatpush1.msra.mxu0 0.0
        %5608 = vmatprep.subr.mxu0 0.0
        %5609 = vmatpush1.msra.mxu0 0.0
        %5610 = vmatprep.subr.mxu0 0.0
        %5611 = vmatpush1.msra.mxu0 0.0
        %5612 = vmatprep.subr.mxu0 0.0
        %5613 = vmatpush1.msra.mxu0 0.0
        %5614 = vmatprep.subr.mxu0 0.0
        %5615 = vmatpush1.msra.mxu0 0.0
        %5616 = vmatprep.subr.mxu0 0.0
        %5617 = vmatpush1.msra.mxu0 0.0
        %5618 = vmatprep.subr.mxu0 0.0
        %5619 = vmatpush1.msra.mxu0 0.0
        %5620 = vmatprep.subr.mxu0 0.0
        %5621 = vmatpush1.msra.mxu0 0.0
        %5622 = vmatprep.subr.mxu0 0.0
        %5623 = vmatpush1.msra.mxu0 0.0
        %5624 = vmatprep.mubr.f32.mxu0 0.0
        %5625 = vmatmul.mubr.f32.gmra.mrb[0].mxu0 %v5556
        %v5626 = vpop.f32.mrb[0].mxu0
        %v5627 = vadd.f32 0.0, %v5626
        %v5628 = vpop.f32.mrb[0].mxu0
        %5629 = vdwg.mxu0
        %5631 = vrot.lane.b32.xlu0 %v5627, 24
        %v5632 = vpop.permute.xlu0 %5631
        %5634 = vst.msk [vmem:[#allocation2] sm:$0xf] %vm2453, %v5632
        %v5635 = vld [vmem:[#allocation2] sm:$0xf]
        %v5637 = vlaneseq
        %v5638 = vshrl.u32 %v5637, 7
        %v5639 = vsub.s32 0, %v5638
        %v5640 = vrot.slane %v3906, %v5639
        %v5643 = vsel %vm1690, %v5635, 0
        %5645 = vmatprep.subr.mxu0 0.0
        %5646 = vmatpush1.msra.mxu0 %v3902
        %5647 = vmatprep.subr.mxu0 0.0
        %5648 = vmatpush1.msra.mxu0 %v3903
        %5649 = vmatprep.subr.mxu0 0.0
        %5650 = vmatpush1.msra.mxu0 %v3904
        %5651 = vmatprep.subr.mxu0 0.0
        %5652 = vmatpush1.msra.mxu0 %v3905
        %5653 = vmatprep.subr.mxu0 0.0
        %5654 = vmatpush1.msra.mxu0 0.0
        %5655 = vmatprep.subr.mxu0 0.0
        %5656 = vmatpush1.msra.mxu0 0.0
        %5657 = vmatprep.subr.mxu0 0.0
        %5658 = vmatpush1.msra.mxu0 0.0
        %5659 = vmatprep.subr.mxu0 0.0
        %5660 = vmatpush1.msra.mxu0 0.0
        %5661 = vmatprep.subr.mxu0 0.0
        %5662 = vmatpush1.msra.mxu0 0.0
        %5663 = vmatprep.subr.mxu0 0.0
        %5664 = vmatpush1.msra.mxu0 0.0
        %5665 = vmatprep.subr.mxu0 0.0
        %5666 = vmatpush1.msra.mxu0 0.0
        %5667 = vmatprep.subr.mxu0 0.0
        %5668 = vmatpush1.msra.mxu0 0.0
        %5669 = vmatprep.subr.mxu0 0.0
        %5670 = vmatpush1.msra.mxu0 0.0
        %5671 = vmatprep.subr.mxu0 0.0
        %5672 = vmatpush1.msra.mxu0 0.0
        %5673 = vmatprep.subr.mxu0 0.0
        %5674 = vmatpush1.msra.mxu0 0.0
        %5675 = vmatprep.subr.mxu0 0.0
        %5676 = vmatpush1.msra.mxu0 0.0
        %5677 = vmatprep.subr.mxu0 0.0
        %5678 = vmatpush1.msra.mxu0 0.0
        %5679 = vmatprep.subr.mxu0 0.0
        %5680 = vmatpush1.msra.mxu0 0.0
        %5681 = vmatprep.subr.mxu0 0.0
        %5682 = vmatpush1.msra.mxu0 0.0
        %5683 = vmatprep.subr.mxu0 0.0
        %5684 = vmatpush1.msra.mxu0 0.0
        %5685 = vmatprep.subr.mxu0 0.0
        %5686 = vmatpush1.msra.mxu0 0.0
        %5687 = vmatprep.subr.mxu0 0.0
        %5688 = vmatpush1.msra.mxu0 0.0
        %5689 = vmatprep.subr.mxu0 0.0
        %5690 = vmatpush1.msra.mxu0 0.0
        %5691 = vmatprep.subr.mxu0 0.0
        %5692 = vmatpush1.msra.mxu0 0.0
        %5693 = vmatprep.subr.mxu0 0.0
        %5694 = vmatpush1.msra.mxu0 0.0
        %5695 = vmatprep.subr.mxu0 0.0
        %5696 = vmatpush1.msra.mxu0 0.0
        %5697 = vmatprep.subr.mxu0 0.0
        %5698 = vmatpush1.msra.mxu0 0.0
        %5699 = vmatprep.subr.mxu0 0.0
        %5700 = vmatpush1.msra.mxu0 0.0
        %5701 = vmatprep.subr.mxu0 0.0
        %5702 = vmatpush1.msra.mxu0 0.0
        %5703 = vmatprep.subr.mxu0 0.0
        %5704 = vmatpush1.msra.mxu0 0.0
        %5705 = vmatprep.subr.mxu0 0.0
        %5706 = vmatpush1.msra.mxu0 0.0
        %5707 = vmatprep.subr.mxu0 0.0
        %5708 = vmatpush1.msra.mxu0 0.0
        %5709 = vmatprep.mubr.f32.mxu0 0.0
        %5710 = vmatmul.mubr.f32.gmra.mrb[0].mxu0 %v5643
        %v5711 = vpop.f32.mrb[0].mxu0
        %v5712 = vadd.f32 %v5640, %v5711
        %v5713 = vpop.f32.mrb[0].mxu0
        %5714 = vdwg.mxu0
        %v5715 = vadd.f32 %v4794, %v5712
        %v5716 = vsel %vm2536, %v5715, 0.0
        %5717 = vadd.xlane.f32.xlu0 %v5716
        %v5718 = vpop.xlane.xlu0 %5717
        %v5719 = vmul.f32 %v5718, %v2540
        %v5720 = vsub.f32 %v5715, %v5719
        %v5721 = vmul.f32 %v5720, %v5720
        %v5722 = vsel %vm2536, %v5721, 0.0
        %5723 = vadd.xlane.f32.xlu0 %v5722
        %v5724 = vpop.xlane.xlu0 %5723
        %v5725 = vmul.f32 %v5724, %v2540
        %v5726 = vadd.f32 %v5725, 1e-05
        %v5727 = vrsqrt.pop %v5726
        %v5728 = vmul.f32 %v5720, %v5727
        %v5730 = vlaneseq
        %v5731 = vshrl.u32 %v5730, 7
        %v5732 = vsub.s32 0, %v5731
        %v5733 = vrot.slane %v3907, %v5732
        %v5735 = vmul.f32 %v5728, %v5733
        %v5737 = vlaneseq
        %v5738 = vshrl.u32 %v5737, 7
        %v5739 = vsub.s32 0, %v5738
        %v5740 = vrot.slane %v3908, %v5739
        %v5742 = vadd.f32 %v5735, %v5740
        %v5744 = vlaneseq
        %v5745 = vshrl.u32 %v5744, 7
        %v5746 = vsub.s32 0, %v5745
        %v5747 = vrot.slane %v3913, %v5746
        %v5750 = vsel %vm1690, %v5742, 0
        %5752 = vmatprep.subr.mxu0 0.0
        %5753 = vmatpush1.msra.mxu0 %v3909
        %5754 = vmatprep.subr.mxu0 0.0
        %5755 = vmatpush1.msra.mxu0 %v3910
        %5756 = vmatprep.subr.mxu0 0.0
        %5757 = vmatpush1.msra.mxu0 %v3911
        %5758 = vmatprep.subr.mxu0 0.0
        %5759 = vmatpush1.msra.mxu0 %v3912
        %5760 = vmatprep.subr.mxu0 0.0
        %5761 = vmatpush1.msra.mxu0 0.0
        %5762 = vmatprep.subr.mxu0 0.0
        %5763 = vmatpush1.msra.mxu0 0.0
        %5764 = vmatprep.subr.mxu0 0.0
        %5765 = vmatpush1.msra.mxu0 0.0
        %5766 = vmatprep.subr.mxu0 0.0
        %5767 = vmatpush1.msra.mxu0 0.0
        %5768 = vmatprep.subr.mxu0 0.0
        %5769 = vmatpush1.msra.mxu0 0.0
        %5770 = vmatprep.subr.mxu0 0.0
        %5771 = vmatpush1.msra.mxu0 0.0
        %5772 = vmatprep.subr.mxu0 0.0
        %5773 = vmatpush1.msra.mxu0 0.0
        %5774 = vmatprep.subr.mxu0 0.0
        %5775 = vmatpush1.msra.mxu0 0.0
        %5776 = vmatprep.subr.mxu0 0.0
        %5777 = vmatpush1.msra.mxu0 0.0
        %5778 = vmatprep.subr.mxu0 0.0
        %5779 = vmatpush1.msra.mxu0 0.0
        %5780 = vmatprep.subr.mxu0 0.0
        %5781 = vmatpush1.msra.mxu0 0.0
        %5782 = vmatprep.subr.mxu0 0.0
        %5783 = vmatpush1.msra.mxu0 0.0
        %5784 = vmatprep.subr.mxu0 0.0
        %5785 = vmatpush1.msra.mxu0 0.0
        %5786 = vmatprep.subr.mxu0 0.0
        %5787 = vmatpush1.msra.mxu0 0.0
        %5788 = vmatprep.subr.mxu0 0.0
        %5789 = vmatpush1.msra.mxu0 0.0
        %5790 = vmatprep.subr.mxu0 0.0
        %5791 = vmatpush1.msra.mxu0 0.0
        %5792 = vmatprep.subr.mxu0 0.0
        %5793 = vmatpush1.msra.mxu0 0.0
        %5794 = vmatprep.subr.mxu0 0.0
        %5795 = vmatpush1.msra.mxu0 0.0
        %5796 = vmatprep.subr.mxu0 0.0
        %5797 = vmatpush1.msra.mxu0 0.0
        %5798 = vmatprep.subr.mxu0 0.0
        %5799 = vmatpush1.msra.mxu0 0.0
        %5800 = vmatprep.subr.mxu0 0.0
        %5801 = vmatpush1.msra.mxu0 0.0
        %5802 = vmatprep.subr.mxu0 0.0
        %5803 = vmatpush1.msra.mxu0 0.0
        %5804 = vmatprep.subr.mxu0 0.0
        %5805 = vmatpush1.msra.mxu0 0.0
        %5806 = vmatprep.subr.mxu0 0.0
        %5807 = vmatpush1.msra.mxu0 0.0
        %5808 = vmatprep.subr.mxu0 0.0
        %5809 = vmatpush1.msra.mxu0 0.0
        %5810 = vmatprep.subr.mxu0 0.0
        %5811 = vmatpush1.msra.mxu0 0.0
        %5812 = vmatprep.subr.mxu0 0.0
        %5813 = vmatpush1.msra.mxu0 0.0
        %5814 = vmatprep.subr.mxu0 0.0
        %5815 = vmatpush1.msra.mxu0 0.0
        %5816 = vmatprep.mubr.f32.mxu0 0.0
        %5817 = vmatmul.mubr.f32.gmra.mrb[0].mxu0 %v5750
        %v5818 = vpop.f32.mrb[0].mxu0
        %v5819 = vadd.f32 %v5747, %v5818
        %v5820 = vpop.f32.mrb[0].mxu0
        %5821 = vdwg.mxu0
        %v5822 = vmax.f32 %v5819, 0.0
        %v5824 = vlaneseq
        %v5825 = vshrl.u32 %v5824, 7
        %v5826 = vsub.s32 0, %v5825
        %v5827 = vrot.slane %v3922, %v5826
        %v5830 = vsel %vm2651, %v5822, 0
        %5832 = vmatprep.subr.mxu0 0.0
        %5833 = vmatpush1.msra.mxu0 %v3914
        %5834 = vmatprep.subr.mxu0 0.0
        %5835 = vmatpush1.msra.mxu0 %v3915
        %5836 = vmatprep.subr.mxu0 0.0
        %5837 = vmatpush1.msra.mxu0 %v3916
        %5838 = vmatprep.subr.mxu0 0.0
        %5839 = vmatpush1.msra.mxu0 %v3917
        %5840 = vmatprep.subr.mxu0 0.0
        %5841 = vmatpush1.msra.mxu0 %v3918
        %5842 = vmatprep.subr.mxu0 0.0
        %5843 = vmatpush1.msra.mxu0 %v3919
        %5844 = vmatprep.subr.mxu0 0.0
        %5845 = vmatpush1.msra.mxu0 %v3920
        %5846 = vmatprep.subr.mxu0 0.0
        %5847 = vmatpush1.msra.mxu0 %v3921
        %5848 = vmatprep.subr.mxu0 0.0
        %5849 = vmatpush1.msra.mxu0 0.0
        %5850 = vmatprep.subr.mxu0 0.0
        %5851 = vmatpush1.msra.mxu0 0.0
        %5852 = vmatprep.subr.mxu0 0.0
        %5853 = vmatpush1.msra.mxu0 0.0
        %5854 = vmatprep.subr.mxu0 0.0
        %5855 = vmatpush1.msra.mxu0 0.0
        %5856 = vmatprep.subr.mxu0 0.0
        %5857 = vmatpush1.msra.mxu0 0.0
        %5858 = vmatprep.subr.mxu0 0.0
        %5859 = vmatpush1.msra.mxu0 0.0
        %5860 = vmatprep.subr.mxu0 0.0
        %5861 = vmatpush1.msra.mxu0 0.0
        %5862 = vmatprep.subr.mxu0 0.0
        %5863 = vmatpush1.msra.mxu0 0.0
        %5864 = vmatprep.subr.mxu0 0.0
        %5865 = vmatpush1.msra.mxu0 0.0
        %5866 = vmatprep.subr.mxu0 0.0
        %5867 = vmatpush1.msra.mxu0 0.0
        %5868 = vmatprep.subr.mxu0 0.0
        %5869 = vmatpush1.msra.mxu0 0.0
        %5870 = vmatprep.subr.mxu0 0.0
        %5871 = vmatpush1.msra.mxu0 0.0
        %5872 = vmatprep.subr.mxu0 0.0
        %5873 = vmatpush1.msra.mxu0 0.0
        %5874 = vmatprep.subr.mxu0 0.0
        %5875 = vmatpush1.msra.mxu0 0.0
        %5876 = vmatprep.subr.mxu0 0.0
        %5877 = vmatpush1.msra.mxu0 0.0
        %5878 = vmatprep.subr.mxu0 0.0
        %5879 = vmatpush1.msra.mxu0 0.0
        %5880 = vmatprep.subr.mxu0 0.0
        %5881 = vmatpush1.msra.mxu0 0.0
        %5882 = vmatprep.subr.mxu0 0.0
        %5883 = vmatpush1.msra.mxu0 0.0
        %5884 = vmatprep.subr.mxu0 0.0
        %5885 = vmatpush1.msra.mxu0 0.0
        %5886 = vmatprep.subr.mxu0 0.0
        %5887 = vmatpush1.msra.mxu0 0.0
        %5888 = vmatprep.subr.mxu0 0.0
        %5889 = vmatpush1.msra.mxu0 0.0
        %5890 = vmatprep.subr.mxu0 0.0
        %5891 = vmatpush1.msra.mxu0 0.0
        %5892 = vmatprep.subr.mxu0 0.0
        %5893 = vmatpush1.msra.mxu0 0.0
        %5894 = vmatprep.subr.mxu0 0.0
        %5895 = vmatpush1.msra.mxu0 0.0
        %5896 = vmatprep.mubr.f32.mxu0 0.0
        %5897 = vmatmul.mubr.f32.gmra.mrb[0].mxu0 %v5830
        %v5898 = vpop.f32.mrb[0].mxu0
        %v5899 = vadd.f32 %v5827, %v5898
        %v5900 = vpop.f32.mrb[0].mxu0
        %5901 = vdwg.mxu0
        %v5902 = vadd.f32 %v5742, %v5899
        %v5903 = vsel %vm2536, %v5902, 0.0
        %5904 = vadd.xlane.f32.xlu0 %v5903
        %v5905 = vpop.xlane.xlu0 %5904
        %v5906 = vmul.f32 %v5905, %v2540
        %v5907 = vsub.f32 %v5902, %v5906
        %v5908 = vmul.f32 %v5907, %v5907
        %v5909 = vsel %vm2536, %v5908, 0.0
        %5910 = vadd.xlane.f32.xlu0 %v5909
        %v5911 = vpop.xlane.xlu0 %5910
        %v5912 = vmul.f32 %v5911, %v2540
        %v5913 = vadd.f32 %v5912, 1e-05
        %v5914 = vrsqrt.pop %v5913
        %v5915 = vmul.f32 %v5907, %v5914
        %v5917 = vlaneseq
        %v5918 = vshrl.u32 %v5917, 7
        %v5919 = vsub.s32 0, %v5918
        %v5920 = vrot.slane %v3923, %v5919
        %v5922 = vmul.f32 %v5915, %v5920
        %v5924 = vlaneseq
        %v5925 = vshrl.u32 %v5924, 7
        %v5926 = vsub.s32 0, %v5925
        %v5927 = vrot.slane %v3924, %v5926
        %v5929 = vadd.f32 %v5922, %v5927
        %s5930 = scalar_lea.vmem %s37, 32
        %v5931 = vld [vmem:[%s5930] sm:$0xff]
        %v5932 = vld [vmem:[%s5930 + $0x8] sm:$0xff]
        %v5933 = vld [vmem:[%s5930 + $0x10] sm:$0xff]
        %v5934 = vld [vmem:[%s5930 + $0x18] sm:$0xff]
        %s5935 = scalar_lea.vmem [#allocation7], 1
        %v5936 = vld [vmem:[%s5935] sm:$0x1]
        %s5937 = scalar_lea.vmem %s41, 32
        %v5938 = vld [vmem:[%s5937] sm:$0xff]
        %v5939 = vld [vmem:[%s5937 + $0x8] sm:$0xff]
        %v5940 = vld [vmem:[%s5937 + $0x10] sm:$0xff]
        %v5941 = vld [vmem:[%s5937 + $0x18] sm:$0xff]
        %s5942 = scalar_lea.vmem [#allocation8], 1
        %v5943 = vld [vmem:[%s5942] sm:$0x1]
        %s5944 = scalar_lea.vmem [#allocation10], 1
        %v5945 = vld [vmem:[%s5944] sm:$0x1]
        %s5946 = scalar_lea.vmem [#allocation11], 1
        %v5947 = vld [vmem:[%s5946] sm:$0x1]
        %s5948 = scalar_lea.vmem %s49, 32
        %v5949 = vld [vmem:[%s5948] sm:$0xff]
        %v5950 = vld [vmem:[%s5948 + $0x8] sm:$0xff]
        %v5951 = vld [vmem:[%s5948 + $0x10] sm:$0xff]
        %v5952 = vld [vmem:[%s5948 + $0x18] sm:$0xff]
        %s5953 = scalar_lea.vmem [#allocation13], 1
        %v5954 = vld [vmem:[%s5953] sm:$0x1]
        %s5955 = scalar_lea.vmem [#allocation14], 32
        %v5956 = vld [vmem:[%s5955] sm:$0xff]
        %v5957 = vld [vmem:[%s5955 + $0x8] sm:$0xff]
        %v5958 = vld [vmem:[%s5955 + $0x10] sm:$0xff]
        %v5959 = vld [vmem:[%s5955 + $0x18] sm:$0xff]
        %s5960 = scalar_lea.vmem [#allocation16], 1
        %v5961 = vld [vmem:[%s5960] sm:$0x1]
        %s5962 = scalar_lea.vmem [#allocation17], 32
        %v5963 = vld [vmem:[%s5962] sm:$0xff]
        %v5964 = vld [vmem:[%s5962 + $0x8] sm:$0xff]
        %v5965 = vld [vmem:[%s5962 + $0x10] sm:$0xff]
        %v5966 = vld [vmem:[%s5962 + $0x18] sm:$0xff]
        %s5967 = scalar_lea.vmem [#allocation19], 1
        %v5968 = vld [vmem:[%s5967] sm:$0x1]
        %s5969 = scalar_lea.vmem [#allocation20], 1
        %v5970 = vld [vmem:[%s5969] sm:$0x1]
        %s5971 = scalar_lea.vmem [#allocation22], 1
        %v5972 = vld [vmem:[%s5971] sm:$0x1]
        %s5973 = scalar_lea.vmem [#allocation23], 32
        %v5974 = vld [vmem:[%s5973] sm:$0xff]
        %v5975 = vld [vmem:[%s5973 + $0x8] sm:$0xff]
        %v5976 = vld [vmem:[%s5973 + $0x10] sm:$0xff]
        %v5977 = vld [vmem:[%s5973 + $0x18] sm:$0xff]
        %s5978 = scalar_lea.vmem [#allocation25], 1
        %v5979 = vld [vmem:[%s5978] sm:$0x1]
        %s5980 = scalar_lea.vmem %s69, 64
        %v5981 = vld [vmem:[%s5980] sm:$0xff]
        %v5982 = vld [vmem:[%s5980 + $0x8] sm:$0xff]
        %v5983 = vld [vmem:[%s5980 + $0x10] sm:$0xff]
        %v5984 = vld [vmem:[%s5980 + $0x18] sm:$0xff]
        %v5985 = vld [vmem:[%s5980 + $0x20] sm:$0xff]
        %v5986 = vld [vmem:[%s5980 + $0x28] sm:$0xff]
        %v5987 = vld [vmem:[%s5980 + $0x30] sm:$0xff]
        %v5988 = vld [vmem:[%s5980 + $0x38] sm:$0xff]
        %s5989 = scalar_lea.vmem [#allocation26], 1
        %v5990 = vld [vmem:[%s5989] sm:$0x1]
        %s5991 = scalar_lea.vmem [#allocation28], 1
        %v5992 = vld [vmem:[%s5991] sm:$0x1]
        %s5993 = scalar_lea.vmem [#allocation29], 1
        %v5994 = vld [vmem:[%s5993] sm:$0x1]
        %v5996 = vlaneseq
        %v5997 = vshrl.u32 %v5996, 7
        %v5998 = vsub.s32 0, %v5997
        %v5999 = vrot.slane %v5936, %v5998
        %v6002 = vsel %vm1690, %v5929, 0
        %6004 = vmatprep.subr.mxu0 0.0
        %6005 = vmatpush1.msra.mxu0 %v5931
        %6006 = vmatprep.subr.mxu0 0.0
        %6007 = vmatpush1.msra.mxu0 %v5932
        %6008 = vmatprep.subr.mxu0 0.0
        %6009 = vmatpush1.msra.mxu0 %v5933
        %6010 = vmatprep.subr.mxu0 0.0
        %6011 = vmatpush1.msra.mxu0 %v5934
        %6012 = vmatprep.subr.mxu0 0.0
        %6013 = vmatpush1.msra.mxu0 0.0
        %6014 = vmatprep.subr.mxu0 0.0
        %6015 = vmatpush1.msra.mxu0 0.0
        %6016 = vmatprep.subr.mxu0 0.0
        %6017 = vmatpush1.msra.mxu0 0.0
        %6018 = vmatprep.subr.mxu0 0.0
        %6019 = vmatpush1.msra.mxu0 0.0
        %6020 = vmatprep.subr.mxu0 0.0
        %6021 = vmatpush1.msra.mxu0 0.0
        %6022 = vmatprep.subr.mxu0 0.0
        %6023 = vmatpush1.msra.mxu0 0.0
        %6024 = vmatprep.subr.mxu0 0.0
        %6025 = vmatpush1.msra.mxu0 0.0
        %6026 = vmatprep.subr.mxu0 0.0
        %6027 = vmatpush1.msra.mxu0 0.0
        %6028 = vmatprep.subr.mxu0 0.0
        %6029 = vmatpush1.msra.mxu0 0.0
        %6030 = vmatprep.subr.mxu0 0.0
        %6031 = vmatpush1.msra.mxu0 0.0
        %6032 = vmatprep.subr.mxu0 0.0
        %6033 = vmatpush1.msra.mxu0 0.0
        %6034 = vmatprep.subr.mxu0 0.0
        %6035 = vmatpush1.msra.mxu0 0.0
        %6036 = vmatprep.subr.mxu0 0.0
        %6037 = vmatpush1.msra.mxu0 0.0
        %6038 = vmatprep.subr.mxu0 0.0
        %6039 = vmatpush1.msra.mxu0 0.0
        %6040 = vmatprep.subr.mxu0 0.0
        %6041 = vmatpush1.msra.mxu0 0.0
        %6042 = vmatprep.subr.mxu0 0.0
        %6043 = vmatpush1.msra.mxu0 0.0
        %6044 = vmatprep.subr.mxu0 0.0
        %6045 = vmatpush1.msra.mxu0 0.0
        %6046 = vmatprep.subr.mxu0 0.0
        %6047 = vmatpush1.msra.mxu0 0.0
        %6048 = vmatprep.subr.mxu0 0.0
        %6049 = vmatpush1.msra.mxu0 0.0
        %6050 = vmatprep.subr.mxu0 0.0
        %6051 = vmatpush1.msra.mxu0 0.0
        %6052 = vmatprep.subr.mxu0 0.0
        %6053 = vmatpush1.msra.mxu0 0.0
        %6054 = vmatprep.subr.mxu0 0.0
        %6055 = vmatpush1.msra.mxu0 0.0
        %6056 = vmatprep.subr.mxu0 0.0
        %6057 = vmatpush1.msra.mxu0 0.0
        %6058 = vmatprep.subr.mxu0 0.0
        %6059 = vmatpush1.msra.mxu0 0.0
        %6060 = vmatprep.subr.mxu0 0.0
        %6061 = vmatpush1.msra.mxu0 0.0
        %6062 = vmatprep.subr.mxu0 0.0
        %6063 = vmatpush1.msra.mxu0 0.0
        %6064 = vmatprep.subr.mxu0 0.0
        %6065 = vmatpush1.msra.mxu0 0.0
        %6066 = vmatprep.subr.mxu0 0.0
        %6067 = vmatpush1.msra.mxu0 0.0
        %6068 = vmatprep.mubr.f32.mxu0 0.0
        %6069 = vmatmul.mubr.f32.gmra.mrb[0].mxu0 %v6002
        %v6070 = vpop.f32.mrb[0].mxu0
        %v6071 = vadd.f32 %v5999, %v6070
        %v6072 = vpop.f32.mrb[0].mxu0
        %6073 = vdwg.mxu0
        %6075 = vrot.lane.b32.xlu0 %v6071, 96
        %v6076 = vpop.permute.xlu0 %6075
        %v6077 = vsel %vm1767, %v6071, 0
        %v6079 = vsel %vm1767, %v6076, 0
        %6081 = vmatprep.subr.mxu0 0.0
        %6082 = vmatpush1.xpose.msra.mxu0 %v6079
        %6083 = vmatprep.subr.mxu0 0.0
        %6084 = vmatpush1.xpose.msra.mxu0 0.0
        %6085 = vmatprep.subr.mxu0 0.0
        %6086 = vmatpush1.xpose.msra.mxu0 0.0
        %6087 = vmatprep.subr.mxu0 0.0
        %6088 = vmatpush1.xpose.msra.mxu0 0.0
        %6089 = vmatprep.subr.mxu0 0.0
        %6090 = vmatpush1.xpose.msra.mxu0 0.0
        %6091 = vmatprep.subr.mxu0 0.0
        %6092 = vmatpush1.xpose.msra.mxu0 0.0
        %6093 = vmatprep.subr.mxu0 0.0
        %6094 = vmatpush1.xpose.msra.mxu0 0.0
        %6095 = vmatprep.subr.mxu0 0.0
        %6096 = vmatpush1.xpose.msra.mxu0 0.0
        %6097 = vmatprep.subr.mxu0 0.0
        %6098 = vmatpush1.xpose.msra.mxu0 0.0
        %6099 = vmatprep.subr.mxu0 0.0
        %6100 = vmatpush1.xpose.msra.mxu0 0.0
        %6101 = vmatprep.subr.mxu0 0.0
        %6102 = vmatpush1.xpose.msra.mxu0 0.0
        %6103 = vmatprep.subr.mxu0 0.0
        %6104 = vmatpush1.xpose.msra.mxu0 0.0
        %6105 = vmatprep.subr.mxu0 0.0
        %6106 = vmatpush1.xpose.msra.mxu0 0.0
        %6107 = vmatprep.subr.mxu0 0.0
        %6108 = vmatpush1.xpose.msra.mxu0 0.0
        %6109 = vmatprep.subr.mxu0 0.0
        %6110 = vmatpush1.xpose.msra.mxu0 0.0
        %6111 = vmatprep.subr.mxu0 0.0
        %6112 = vmatpush1.xpose.msra.mxu0 0.0
        %6113 = vmatprep.subr.mxu0 0.0
        %6114 = vmatpush1.xpose.msra.mxu0 0.0
        %6115 = vmatprep.subr.mxu0 0.0
        %6116 = vmatpush1.xpose.msra.mxu0 0.0
        %6117 = vmatprep.subr.mxu0 0.0
        %6118 = vmatpush1.xpose.msra.mxu0 0.0
        %6119 = vmatprep.subr.mxu0 0.0
        %6120 = vmatpush1.xpose.msra.mxu0 0.0
        %6121 = vmatprep.subr.mxu0 0.0
        %6122 = vmatpush1.xpose.msra.mxu0 0.0
        %6123 = vmatprep.subr.mxu0 0.0
        %6124 = vmatpush1.xpose.msra.mxu0 0.0
        %6125 = vmatprep.subr.mxu0 0.0
        %6126 = vmatpush1.xpose.msra.mxu0 0.0
        %6127 = vmatprep.subr.mxu0 0.0
        %6128 = vmatpush1.xpose.msra.mxu0 0.0
        %6129 = vmatprep.subr.mxu0 0.0
        %6130 = vmatpush1.xpose.msra.mxu0 0.0
        %6131 = vmatprep.subr.mxu0 0.0
        %6132 = vmatpush1.xpose.msra.mxu0 0.0
        %6133 = vmatprep.subr.mxu0 0.0
        %6134 = vmatpush1.xpose.msra.mxu0 0.0
        %6135 = vmatprep.subr.mxu0 0.0
        %6136 = vmatpush1.xpose.msra.mxu0 0.0
        %6137 = vmatprep.subr.mxu0 0.0
        %6138 = vmatpush1.xpose.msra.mxu0 0.0
        %6139 = vmatprep.subr.mxu0 0.0
        %6140 = vmatpush1.xpose.msra.mxu0 0.0
        %6141 = vmatprep.subr.mxu0 0.0
        %6142 = vmatpush1.xpose.msra.mxu0 0.0
        %6143 = vmatprep.subr.mxu0 0.0
        %6144 = vmatpush1.xpose.msra.mxu0 0.0
        %6145 = vmatprep.mubr.f32.mxu0 0.0
        %6146 = vmatmul.mubr.f32.gmra.mrb[0].mxu0 %v6077
        %v6147 = vpop.f32.mrb[0].mxu0
        %v6148 = vadd.f32 0.0, %v6147
        %v6149 = vpop.f32.mrb[0].mxu0
        %6150 = vdwg.mxu0
        %v6151 = vmul.f32 %v6148, 0.35355338
        %v6152 = vsel %vm1843, %v6151, -inf
        %6153 = vmax.xlane.f32.xlu0 %v6152
        %v6154 = vpop.xlane.xlu0 %6153
        %v6155 = vsub.f32 %v6151, %v6154
        %v6156 = vmul.f32 %v6155, 1.442695
        %v6157 = vpow.pop %v6156
        %v6158 = vsel %vm1843, %v6157, 0.0
        %6159 = vadd.xlane.f32.xlu0 %v6158
        %v6160 = vpop.xlane.xlu0 %6159
        %v6161 = vrcp.pop %v6160
        %v6162 = vmul.f32 %v6157, %v6161
        %6163 = vrot.lane.b32.xlu0 %v6071, 64
        %v6164 = vpop.permute.xlu0 %6163
        %v6166 = vsel %vm1857, %v6162, 0
        %v6168 = vsel %vm1861, %v6164, 0
        %6170 = vmatprep.subr.mxu0 0.0
        %6171 = vmatpush1.msra.mxu0 %v6168
        %6172 = vmatprep.subr.mxu0 0.0
        %6173 = vmatpush1.msra.mxu0 0.0
        %6174 = vmatprep.subr.mxu0 0.0
        %6175 = vmatpush1.msra.mxu0 0.0
        %6176 = vmatprep.subr.mxu0 0.0
        %6177 = vmatpush1.msra.mxu0 0.0
        %6178 = vmatprep.subr.mxu0 0.0
        %6179 = vmatpush1.msra.mxu0 0.0
        %6180 = vmatprep.subr.mxu0 0.0
        %6181 = vmatpush1.msra.mxu0 0.0
        %6182 = vmatprep.subr.mxu0 0.0
        %6183 = vmatpush1.msra.mxu0 0.0
        %6184 = vmatprep.subr.mxu0 0.0
        %6185 = vmatpush1.msra.mxu0 0.0
        %6186 = vmatprep.subr.mxu0 0.0
        %6187 = vmatpush1.msra.mxu0 0.0
        %6188 = vmatprep.subr.mxu0 0.0
        %6189 = vmatpush1.msra.mxu0 0.0
        %6190 = vmatprep.subr.mxu0 0.0
        %6191 = vmatpush1.msra.mxu0 0.0
        %6192 = vmatprep.subr.mxu0 0.0
        %6193 = vmatpush1.msra.mxu0 0.0
        %6194 = vmatprep.subr.mxu0 0.0
        %6195 = vmatpush1.msra.mxu0 0.0
        %6196 = vmatprep.subr.mxu0 0.0
        %6197 = vmatpush1.msra.mxu0 0.0
        %6198 = vmatprep.subr.mxu0 0.0
        %6199 = vmatpush1.msra.mxu0 0.0
        %6200 = vmatprep.subr.mxu0 0.0
        %6201 = vmatpush1.msra.mxu0 0.0
        %6202 = vmatprep.subr.mxu0 0.0
        %6203 = vmatpush1.msra.mxu0 0.0
        %6204 = vmatprep.subr.mxu0 0.0
        %6205 = vmatpush1.msra.mxu0 0.0
        %6206 = vmatprep.subr.mxu0 0.0
        %6207 = vmatpush1.msra.mxu0 0.0
        %6208 = vmatprep.subr.mxu0 0.0
        %6209 = vmatpush1.msra.mxu0 0.0
        %6210 = vmatprep.subr.mxu0 0.0
        %6211 = vmatpush1.msra.mxu0 0.0
        %6212 = vmatprep.subr.mxu0 0.0
        %6213 = vmatpush1.msra.mxu0 0.0
        %6214 = vmatprep.subr.mxu0 0.0
        %6215 = vmatpush1.msra.mxu0 0.0
        %6216 = vmatprep.subr.mxu0 0.0
        %6217 = vmatpush1.msra.mxu0 0.0
        %6218 = vmatprep.subr.mxu0 0.0
        %6219 = vmatpush1.msra.mxu0 0.0
        %6220 = vmatprep.subr.mxu0 0.0
        %6221 = vmatpush1.msra.mxu0 0.0
        %6222 = vmatprep.subr.mxu0 0.0
        %6223 = vmatpush1.msra.mxu0 0.0
        %6224 = vmatprep.subr.mxu0 0.0
        %6225 = vmatpush1.msra.mxu0 0.0
        %6226 = vmatprep.subr.mxu0 0.0
        %6227 = vmatpush1.msra.mxu0 0.0
        %6228 = vmatprep.subr.mxu0 0.0
        %6229 = vmatpush1.msra.mxu0 0.0
        %6230 = vmatprep.subr.mxu0 0.0
        %6231 = vmatpush1.msra.mxu0 0.0
        %6232 = vmatprep.subr.mxu0 0.0
        %6233 = vmatpush1.msra.mxu0 0.0
        %6234 = vmatprep.mubr.f32.mxu0 0.0
        %6235 = vmatmul.mubr.f32.gmra.mrb[0].mxu0 %v6166
        %v6236 = vpop.f32.mrb[0].mxu0
        %v6237 = vadd.f32 0.0, %v6236
        %v6238 = vpop.f32.mrb[0].mxu0
        %6239 = vdwg.mxu0
        %6240 = vst.msk [vmem:[#allocation2] sm:$0xf] %vm1934, %v6237
        %6241 = vrot.lane.b32.xlu0 %v6071, 120
        %v6242 = vpop.permute.xlu0 %6241
        %6243 = vrot.lane.b32.xlu0 %v6071, 88
        %v6244 = vpop.permute.xlu0 %6243
        %v6245 = vsel %vm1767, %v6242, 0
        %v6247 = vsel %vm1767, %v6244, 0
        %6249 = vmatprep.subr.mxu0 0.0
        %6250 = vmatpush1.xpose.msra.mxu0 %v6247
        %6251 = vmatprep.subr.mxu0 0.0
        %6252 = vmatpush1.xpose.msra.mxu0 0.0
        %6253 = vmatprep.subr.mxu0 0.0
        %6254 = vmatpush1.xpose.msra.mxu0 0.0
        %6255 = vmatprep.subr.mxu0 0.0
        %6256 = vmatpush1.xpose.msra.mxu0 0.0
        %6257 = vmatprep.subr.mxu0 0.0
        %6258 = vmatpush1.xpose.msra.mxu0 0.0
        %6259 = vmatprep.subr.mxu0 0.0
        %6260 = vmatpush1.xpose.msra.mxu0 0.0
        %6261 = vmatprep.subr.mxu0 0.0
        %6262 = vmatpush1.xpose.msra.mxu0 0.0
        %6263 = vmatprep.subr.mxu0 0.0
        %6264 = vmatpush1.xpose.msra.mxu0 0.0
        %6265 = vmatprep.subr.mxu0 0.0
        %6266 = vmatpush1.xpose.msra.mxu0 0.0
        %6267 = vmatprep.subr.mxu0 0.0
        %6268 = vmatpush1.xpose.msra.mxu0 0.0
        %6269 = vmatprep.subr.mxu0 0.0
        %6270 = vmatpush1.xpose.msra.mxu0 0.0
        %6271 = vmatprep.subr.mxu0 0.0
        %6272 = vmatpush1.xpose.msra.mxu0 0.0
        %6273 = vmatprep.subr.mxu0 0.0
        %6274 = vmatpush1.xpose.msra.mxu0 0.0
        %6275 = vmatprep.subr.mxu0 0.0
        %6276 = vmatpush1.xpose.msra.mxu0 0.0
        %6277 = vmatprep.subr.mxu0 0.0
        %6278 = vmatpush1.xpose.msra.mxu0 0.0
        %6279 = vmatprep.subr.mxu0 0.0
        %6280 = vmatpush1.xpose.msra.mxu0 0.0
        %6281 = vmatprep.subr.mxu0 0.0
        %6282 = vmatpush1.xpose.msra.mxu0 0.0
        %6283 = vmatprep.subr.mxu0 0.0
        %6284 = vmatpush1.xpose.msra.mxu0 0.0
        %6285 = vmatprep.subr.mxu0 0.0
        %6286 = vmatpush1.xpose.msra.mxu0 0.0
        %6287 = vmatprep.subr.mxu0 0.0
        %6288 = vmatpush1.xpose.msra.mxu0 0.0
        %6289 = vmatprep.subr.mxu0 0.0
        %6290 = vmatpush1.xpose.msra.mxu0 0.0
        %6291 = vmatprep.subr.mxu0 0.0
        %6292 = vmatpush1.xpose.msra.mxu0 0.0
        %6293 = vmatprep.subr.mxu0 0.0
        %6294 = vmatpush1.xpose.msra.mxu0 0.0
        %6295 = vmatprep.subr.mxu0 0.0
        %6296 = vmatpush1.xpose.msra.mxu0 0.0
        %6297 = vmatprep.subr.mxu0 0.0
        %6298 = vmatpush1.xpose.msra.mxu0 0.0
        %6299 = vmatprep.subr.mxu0 0.0
        %6300 = vmatpush1.xpose.msra.mxu0 0.0
        %6301 = vmatprep.subr.mxu0 0.0
        %6302 = vmatpush1.xpose.msra.mxu0 0.0
        %6303 = vmatprep.subr.mxu0 0.0
        %6304 = vmatpush1.xpose.msra.mxu0 0.0
        %6305 = vmatprep.subr.mxu0 0.0
        %6306 = vmatpush1.xpose.msra.mxu0 0.0
        %6307 = vmatprep.subr.mxu0 0.0
        %6308 = vmatpush1.xpose.msra.mxu0 0.0
        %6309 = vmatprep.subr.mxu0 0.0
        %6310 = vmatpush1.xpose.msra.mxu0 0.0
        %6311 = vmatprep.subr.mxu0 0.0
        %6312 = vmatpush1.xpose.msra.mxu0 0.0
        %6313 = vmatprep.mubr.f32.mxu0 0.0
        %6314 = vmatmul.mubr.f32.gmra.mrb[0].mxu0 %v6245
        %v6315 = vpop.f32.mrb[0].mxu0
        %v6316 = vadd.f32 0.0, %v6315
        %v6317 = vpop.f32.mrb[0].mxu0
        %6318 = vdwg.mxu0
        %v6319 = vmul.f32 %v6316, 0.35355338
        %v6320 = vsel %vm1843, %v6319, -inf
        %6321 = vmax.xlane.f32.xlu0 %v6320
        %v6322 = vpop.xlane.xlu0 %6321
        %v6323 = vsub.f32 %v6319, %v6322
        %v6324 = vmul.f32 %v6323, 1.442695
        %v6325 = vpow.pop %v6324
        %v6326 = vsel %vm1843, %v6325, 0.0
        %6327 = vadd.xlane.f32.xlu0 %v6326
        %v6328 = vpop.xlane.xlu0 %6327
        %v6329 = vrcp.pop %v6328
        %v6330 = vmul.f32 %v6325, %v6329
        %6331 = vrot.lane.b32.xlu0 %v6071, 56
        %v6332 = vpop.permute.xlu0 %6331
        %v6334 = vsel %vm1857, %v6330, 0
        %v6336 = vsel %vm1861, %v6332, 0
        %6338 = vmatprep.subr.mxu0 0.0
        %6339 = vmatpush1.msra.mxu0 %v6336
        %6340 = vmatprep.subr.mxu0 0.0
        %6341 = vmatpush1.msra.mxu0 0.0
        %6342 = vmatprep.subr.mxu0 0.0
        %6343 = vmatpush1.msra.mxu0 0.0
        %6344 = vmatprep.subr.mxu0 0.0
        %6345 = vmatpush1.msra.mxu0 0.0
        %6346 = vmatprep.subr.mxu0 0.0
        %6347 = vmatpush1.msra.mxu0 0.0
        %6348 = vmatprep.subr.mxu0 0.0
        %6349 = vmatpush1.msra.mxu0 0.0
        %6350 = vmatprep.subr.mxu0 0.0
        %6351 = vmatpush1.msra.mxu0 0.0
        %6352 = vmatprep.subr.mxu0 0.0
        %6353 = vmatpush1.msra.mxu0 0.0
        %6354 = vmatprep.subr.mxu0 0.0
        %6355 = vmatpush1.msra.mxu0 0.0
        %6356 = vmatprep.subr.mxu0 0.0
        %6357 = vmatpush1.msra.mxu0 0.0
        %6358 = vmatprep.subr.mxu0 0.0
        %6359 = vmatpush1.msra.mxu0 0.0
        %6360 = vmatprep.subr.mxu0 0.0
        %6361 = vmatpush1.msra.mxu0 0.0
        %6362 = vmatprep.subr.mxu0 0.0
        %6363 = vmatpush1.msra.mxu0 0.0
        %6364 = vmatprep.subr.mxu0 0.0
        %6365 = vmatpush1.msra.mxu0 0.0
        %6366 = vmatprep.subr.mxu0 0.0
        %6367 = vmatpush1.msra.mxu0 0.0
        %6368 = vmatprep.subr.mxu0 0.0
        %6369 = vmatpush1.msra.mxu0 0.0
        %6370 = vmatprep.subr.mxu0 0.0
        %6371 = vmatpush1.msra.mxu0 0.0
        %6372 = vmatprep.subr.mxu0 0.0
        %6373 = vmatpush1.msra.mxu0 0.0
        %6374 = vmatprep.subr.mxu0 0.0
        %6375 = vmatpush1.msra.mxu0 0.0
        %6376 = vmatprep.subr.mxu0 0.0
        %6377 = vmatpush1.msra.mxu0 0.0
        %6378 = vmatprep.subr.mxu0 0.0
        %6379 = vmatpush1.msra.mxu0 0.0
        %6380 = vmatprep.subr.mxu0 0.0
        %6381 = vmatpush1.msra.mxu0 0.0
        %6382 = vmatprep.subr.mxu0 0.0
        %6383 = vmatpush1.msra.mxu0 0.0
        %6384 = vmatprep.subr.mxu0 0.0
        %6385 = vmatpush1.msra.mxu0 0.0
        %6386 = vmatprep.subr.mxu0 0.0
        %6387 = vmatpush1.msra.mxu0 0.0
        %6388 = vmatprep.subr.mxu0 0.0
        %6389 = vmatpush1.msra.mxu0 0.0
        %6390 = vmatprep.subr.mxu0 0.0
        %6391 = vmatpush1.msra.mxu0 0.0
        %6392 = vmatprep.subr.mxu0 0.0
        %6393 = vmatpush1.msra.mxu0 0.0
        %6394 = vmatprep.subr.mxu0 0.0
        %6395 = vmatpush1.msra.mxu0 0.0
        %6396 = vmatprep.subr.mxu0 0.0
        %6397 = vmatpush1.msra.mxu0 0.0
        %6398 = vmatprep.subr.mxu0 0.0
        %6399 = vmatpush1.msra.mxu0 0.0
        %6400 = vmatprep.subr.mxu0 0.0
        %6401 = vmatpush1.msra.mxu0 0.0
        %6402 = vmatprep.mubr.f32.mxu0 0.0
        %6403 = vmatmul.mubr.f32.gmra.mrb[0].mxu0 %v6334
        %v6404 = vpop.f32.mrb[0].mxu0
        %v6405 = vadd.f32 0.0, %v6404
        %v6406 = vpop.f32.mrb[0].mxu0
        %6407 = vdwg.mxu0
        %6409 = vrot.lane.b32.xlu0 %v6405, 8
        %v6410 = vpop.permute.xlu0 %6409
        %6412 = vst.msk [vmem:[#allocation2] sm:$0xf] %vm2107, %v6410
        %6413 = vrot.lane.b32.xlu0 %v6071, 112
        %v6414 = vpop.permute.xlu0 %6413
        %6415 = vrot.lane.b32.xlu0 %v6071, 80
        %v6416 = vpop.permute.xlu0 %6415
        %v6417 = vsel %vm1767, %v6414, 0
        %v6419 = vsel %vm1767, %v6416, 0
        %6421 = vmatprep.subr.mxu0 0.0
        %6422 = vmatpush1.xpose.msra.mxu0 %v6419
        %6423 = vmatprep.subr.mxu0 0.0
        %6424 = vmatpush1.xpose.msra.mxu0 0.0
        %6425 = vmatprep.subr.mxu0 0.0
        %6426 = vmatpush1.xpose.msra.mxu0 0.0
        %6427 = vmatprep.subr.mxu0 0.0
        %6428 = vmatpush1.xpose.msra.mxu0 0.0
        %6429 = vmatprep.subr.mxu0 0.0
        %6430 = vmatpush1.xpose.msra.mxu0 0.0
        %6431 = vmatprep.subr.mxu0 0.0
        %6432 = vmatpush1.xpose.msra.mxu0 0.0
        %6433 = vmatprep.subr.mxu0 0.0
        %6434 = vmatpush1.xpose.msra.mxu0 0.0
        %6435 = vmatprep.subr.mxu0 0.0
        %6436 = vmatpush1.xpose.msra.mxu0 0.0
        %6437 = vmatprep.subr.mxu0 0.0
        %6438 = vmatpush1.xpose.msra.mxu0 0.0
        %6439 = vmatprep.subr.mxu0 0.0
        %6440 = vmatpush1.xpose.msra.mxu0 0.0
        %6441 = vmatprep.subr.mxu0 0.0
        %6442 = vmatpush1.xpose.msra.mxu0 0.0
        %6443 = vmatprep.subr.mxu0 0.0
        %6444 = vmatpush1.xpose.msra.mxu0 0.0
        %6445 = vmatprep.subr.mxu0 0.0
        %6446 = vmatpush1.xpose.msra.mxu0 0.0
        %6447 = vmatprep.subr.mxu0 0.0
        %6448 = vmatpush1.xpose.msra.mxu0 0.0
        %6449 = vmatprep.subr.mxu0 0.0
        %6450 = vmatpush1.xpose.msra.mxu0 0.0
        %6451 = vmatprep.subr.mxu0 0.0
        %6452 = vmatpush1.xpose.msra.mxu0 0.0
        %6453 = vmatprep.subr.mxu0 0.0
        %6454 = vmatpush1.xpose.msra.mxu0 0.0
        %6455 = vmatprep.subr.mxu0 0.0
        %6456 = vmatpush1.xpose.msra.mxu0 0.0
        %6457 = vmatprep.subr.mxu0 0.0
        %6458 = vmatpush1.xpose.msra.mxu0 0.0
        %6459 = vmatprep.subr.mxu0 0.0
        %6460 = vmatpush1.xpose.msra.mxu0 0.0
        %6461 = vmatprep.subr.mxu0 0.0
        %6462 = vmatpush1.xpose.msra.mxu0 0.0
        %6463 = vmatprep.subr.mxu0 0.0
        %6464 = vmatpush1.xpose.msra.mxu0 0.0
        %6465 = vmatprep.subr.mxu0 0.0
        %6466 = vmatpush1.xpose.msra.mxu0 0.0
        %6467 = vmatprep.subr.mxu0 0.0
        %6468 = vmatpush1.xpose.msra.mxu0 0.0
        %6469 = vmatprep.subr.mxu0 0.0
        %6470 = vmatpush1.xpose.msra.mxu0 0.0
        %6471 = vmatprep.subr.mxu0 0.0
        %6472 = vmatpush1.xpose.msra.mxu0 0.0
        %6473 = vmatprep.subr.mxu0 0.0
        %6474 = vmatpush1.xpose.msra.mxu0 0.0
        %6475 = vmatprep.subr.mxu0 0.0
        %6476 = vmatpush1.xpose.msra.mxu0 0.0
        %6477 = vmatprep.subr.mxu0 0.0
        %6478 = vmatpush1.xpose.msra.mxu0 0.0
        %6479 = vmatprep.subr.mxu0 0.0
        %6480 = vmatpush1.xpose.msra.mxu0 0.0
        %6481 = vmatprep.subr.mxu0 0.0
        %6482 = vmatpush1.xpose.msra.mxu0 0.0
        %6483 = vmatprep.subr.mxu0 0.0
        %6484 = vmatpush1.xpose.msra.mxu0 0.0
        %6485 = vmatprep.mubr.f32.mxu0 0.0
        %6486 = vmatmul.mubr.f32.gmra.mrb[0].mxu0 %v6417
        %v6487 = vpop.f32.mrb[0].mxu0
        %v6488 = vadd.f32 0.0, %v6487
        %v6489 = vpop.f32.mrb[0].mxu0
        %6490 = vdwg.mxu0
        %v6491 = vmul.f32 %v6488, 0.35355338
        %v6492 = vsel %vm1843, %v6491, -inf
        %6493 = vmax.xlane.f32.xlu0 %v6492
        %v6494 = vpop.xlane.xlu0 %6493
        %v6495 = vsub.f32 %v6491, %v6494
        %v6496 = vmul.f32 %v6495, 1.442695
        %v6497 = vpow.pop %v6496
        %v6498 = vsel %vm1843, %v6497, 0.0
        %6499 = vadd.xlane.f32.xlu0 %v6498
        %v6500 = vpop.xlane.xlu0 %6499
        %v6501 = vrcp.pop %v6500
        %v6502 = vmul.f32 %v6497, %v6501
        %6503 = vrot.lane.b32.xlu0 %v6071, 48
        %v6504 = vpop.permute.xlu0 %6503
        %v6506 = vsel %vm1857, %v6502, 0
        %v6508 = vsel %vm1861, %v6504, 0
        %6510 = vmatprep.subr.mxu0 0.0
        %6511 = vmatpush1.msra.mxu0 %v6508
        %6512 = vmatprep.subr.mxu0 0.0
        %6513 = vmatpush1.msra.mxu0 0.0
        %6514 = vmatprep.subr.mxu0 0.0
        %6515 = vmatpush1.msra.mxu0 0.0
        %6516 = vmatprep.subr.mxu0 0.0
        %6517 = vmatpush1.msra.mxu0 0.0
        %6518 = vmatprep.subr.mxu0 0.0
        %6519 = vmatpush1.msra.mxu0 0.0
        %6520 = vmatprep.subr.mxu0 0.0
        %6521 = vmatpush1.msra.mxu0 0.0
        %6522 = vmatprep.subr.mxu0 0.0
        %6523 = vmatpush1.msra.mxu0 0.0
        %6524 = vmatprep.subr.mxu0 0.0
        %6525 = vmatpush1.msra.mxu0 0.0
        %6526 = vmatprep.subr.mxu0 0.0
        %6527 = vmatpush1.msra.mxu0 0.0
        %6528 = vmatprep.subr.mxu0 0.0
        %6529 = vmatpush1.msra.mxu0 0.0
        %6530 = vmatprep.subr.mxu0 0.0
        %6531 = vmatpush1.msra.mxu0 0.0
        %6532 = vmatprep.subr.mxu0 0.0
        %6533 = vmatpush1.msra.mxu0 0.0
        %6534 = vmatprep.subr.mxu0 0.0
        %6535 = vmatpush1.msra.mxu0 0.0
        %6536 = vmatprep.subr.mxu0 0.0
        %6537 = vmatpush1.msra.mxu0 0.0
        %6538 = vmatprep.subr.mxu0 0.0
        %6539 = vmatpush1.msra.mxu0 0.0
        %6540 = vmatprep.subr.mxu0 0.0
        %6541 = vmatpush1.msra.mxu0 0.0
        %6542 = vmatprep.subr.mxu0 0.0
        %6543 = vmatpush1.msra.mxu0 0.0
        %6544 = vmatprep.subr.mxu0 0.0
        %6545 = vmatpush1.msra.mxu0 0.0
        %6546 = vmatprep.subr.mxu0 0.0
        %6547 = vmatpush1.msra.mxu0 0.0
        %6548 = vmatprep.subr.mxu0 0.0
        %6549 = vmatpush1.msra.mxu0 0.0
        %6550 = vmatprep.subr.mxu0 0.0
        %6551 = vmatpush1.msra.mxu0 0.0
        %6552 = vmatprep.subr.mxu0 0.0
        %6553 = vmatpush1.msra.mxu0 0.0
        %6554 = vmatprep.subr.mxu0 0.0
        %6555 = vmatpush1.msra.mxu0 0.0
        %6556 = vmatprep.subr.mxu0 0.0
        %6557 = vmatpush1.msra.mxu0 0.0
        %6558 = vmatprep.subr.mxu0 0.0
        %6559 = vmatpush1.msra.mxu0 0.0
        %6560 = vmatprep.subr.mxu0 0.0
        %6561 = vmatpush1.msra.mxu0 0.0
        %6562 = vmatprep.subr.mxu0 0.0
        %6563 = vmatpush1.msra.mxu0 0.0
        %6564 = vmatprep.subr.mxu0 0.0
        %6565 = vmatpush1.msra.mxu0 0.0
        %6566 = vmatprep.subr.mxu0 0.0
        %6567 = vmatpush1.msra.mxu0 0.0
        %6568 = vmatprep.subr.mxu0 0.0
        %6569 = vmatpush1.msra.mxu0 0.0
        %6570 = vmatprep.subr.mxu0 0.0
        %6571 = vmatpush1.msra.mxu0 0.0
        %6572 = vmatprep.subr.mxu0 0.0
        %6573 = vmatpush1.msra.mxu0 0.0
        %6574 = vmatprep.mubr.f32.mxu0 0.0
        %6575 = vmatmul.mubr.f32.gmra.mrb[0].mxu0 %v6506
        %v6576 = vpop.f32.mrb[0].mxu0
        %v6577 = vadd.f32 0.0, %v6576
        %v6578 = vpop.f32.mrb[0].mxu0
        %6579 = vdwg.mxu0
        %6581 = vrot.lane.b32.xlu0 %v6577, 16
        %v6582 = vpop.permute.xlu0 %6581
        %6584 = vst.msk [vmem:[#allocation2] sm:$0xf] %vm2280, %v6582
        %6585 = vrot.lane.b32.xlu0 %v6071, 104
        %v6586 = vpop.permute.xlu0 %6585
        %6587 = vrot.lane.b32.xlu0 %v6071, 72
        %v6588 = vpop.permute.xlu0 %6587
        %v6589 = vsel %vm1767, %v6586, 0
        %v6591 = vsel %vm1767, %v6588, 0
        %6593 = vmatprep.subr.mxu0 0.0
        %6594 = vmatpush1.xpose.msra.mxu0 %v6591
        %6595 = vmatprep.subr.mxu0 0.0
        %6596 = vmatpush1.xpose.msra.mxu0 0.0
        %6597 = vmatprep.subr.mxu0 0.0
        %6598 = vmatpush1.xpose.msra.mxu0 0.0
        %6599 = vmatprep.subr.mxu0 0.0
        %6600 = vmatpush1.xpose.msra.mxu0 0.0
        %6601 = vmatprep.subr.mxu0 0.0
        %6602 = vmatpush1.xpose.msra.mxu0 0.0
        %6603 = vmatprep.subr.mxu0 0.0
        %6604 = vmatpush1.xpose.msra.mxu0 0.0
        %6605 = vmatprep.subr.mxu0 0.0
        %6606 = vmatpush1.xpose.msra.mxu0 0.0
        %6607 = vmatprep.subr.mxu0 0.0
        %6608 = vmatpush1.xpose.msra.mxu0 0.0
        %6609 = vmatprep.subr.mxu0 0.0
        %6610 = vmatpush1.xpose.msra.mxu0 0.0
        %6611 = vmatprep.subr.mxu0 0.0
        %6612 = vmatpush1.xpose.msra.mxu0 0.0
        %6613 = vmatprep.subr.mxu0 0.0
        %6614 = vmatpush1.xpose.msra.mxu0 0.0
        %6615 = vmatprep.subr.mxu0 0.0
        %6616 = vmatpush1.xpose.msra.mxu0 0.0
        %6617 = vmatprep.subr.mxu0 0.0
        %6618 = vmatpush1.xpose.msra.mxu0 0.0
        %6619 = vmatprep.subr.mxu0 0.0
        %6620 = vmatpush1.xpose.msra.mxu0 0.0
        %6621 = vmatprep.subr.mxu0 0.0
        %6622 = vmatpush1.xpose.msra.mxu0 0.0
        %6623 = vmatprep.subr.mxu0 0.0
        %6624 = vmatpush1.xpose.msra.mxu0 0.0
        %6625 = vmatprep.subr.mxu0 0.0
        %6626 = vmatpush1.xpose.msra.mxu0 0.0
        %6627 = vmatprep.subr.mxu0 0.0
        %6628 = vmatpush1.xpose.msra.mxu0 0.0
        %6629 = vmatprep.subr.mxu0 0.0
        %6630 = vmatpush1.xpose.msra.mxu0 0.0
        %6631 = vmatprep.subr.mxu0 0.0
        %6632 = vmatpush1.xpose.msra.mxu0 0.0
        %6633 = vmatprep.subr.mxu0 0.0
        %6634 = vmatpush1.xpose.msra.mxu0 0.0
        %6635 = vmatprep.subr.mxu0 0.0
        %6636 = vmatpush1.xpose.msra.mxu0 0.0
        %6637 = vmatprep.subr.mxu0 0.0
        %6638 = vmatpush1.xpose.msra.mxu0 0.0
        %6639 = vmatprep.subr.mxu0 0.0
        %6640 = vmatpush1.xpose.msra.mxu0 0.0
        %6641 = vmatprep.subr.mxu0 0.0
        %6642 = vmatpush1.xpose.msra.mxu0 0.0
        %6643 = vmatprep.subr.mxu0 0.0
        %6644 = vmatpush1.xpose.msra.mxu0 0.0
        %6645 = vmatprep.subr.mxu0 0.0
        %6646 = vmatpush1.xpose.msra.mxu0 0.0
        %6647 = vmatprep.subr.mxu0 0.0
        %6648 = vmatpush1.xpose.msra.mxu0 0.0
        %6649 = vmatprep.subr.mxu0 0.0
        %6650 = vmatpush1.xpose.msra.mxu0 0.0
        %6651 = vmatprep.subr.mxu0 0.0
        %6652 = vmatpush1.xpose.msra.mxu0 0.0
        %6653 = vmatprep.subr.mxu0 0.0
        %6654 = vmatpush1.xpose.msra.mxu0 0.0
        %6655 = vmatprep.subr.mxu0 0.0
        %6656 = vmatpush1.xpose.msra.mxu0 0.0
        %6657 = vmatprep.mubr.f32.mxu0 0.0
        %6658 = vmatmul.mubr.f32.gmra.mrb[0].mxu0 %v6589
        %v6659 = vpop.f32.mrb[0].mxu0
        %v6660 = vadd.f32 0.0, %v6659
        %v6661 = vpop.f32.mrb[0].mxu0
        %6662 = vdwg.mxu0
        %v6663 = vmul.f32 %v6660, 0.35355338
        %v6664 = vsel %vm1843, %v6663, -inf
        %6665 = vmax.xlane.f32.xlu0 %v6664
        %v6666 = vpop.xlane.xlu0 %6665
        %v6667 = vsub.f32 %v6663, %v6666
        %v6668 = vmul.f32 %v6667, 1.442695
        %v6669 = vpow.pop %v6668
        %v6670 = vsel %vm1843, %v6669, 0.0
        %6671 = vadd.xlane.f32.xlu0 %v6670
        %v6672 = vpop.xlane.xlu0 %6671
        %v6673 = vrcp.pop %v6672
        %v6674 = vmul.f32 %v6669, %v6673
        %6675 = vrot.lane.b32.xlu0 %v6071, 40
        %v6676 = vpop.permute.xlu0 %6675
        %v6678 = vsel %vm1857, %v6674, 0
        %v6680 = vsel %vm1861, %v6676, 0
        %6682 = vmatprep.subr.mxu0 0.0
        %6683 = vmatpush1.msra.mxu0 %v6680
        %6684 = vmatprep.subr.mxu0 0.0
        %6685 = vmatpush1.msra.mxu0 0.0
        %6686 = vmatprep.subr.mxu0 0.0
        %6687 = vmatpush1.msra.mxu0 0.0
        %6688 = vmatprep.subr.mxu0 0.0
        %6689 = vmatpush1.msra.mxu0 0.0
        %6690 = vmatprep.subr.mxu0 0.0
        %6691 = vmatpush1.msra.mxu0 0.0
        %6692 = vmatprep.subr.mxu0 0.0
        %6693 = vmatpush1.msra.mxu0 0.0
        %6694 = vmatprep.subr.mxu0 0.0
        %6695 = vmatpush1.msra.mxu0 0.0
        %6696 = vmatprep.subr.mxu0 0.0
        %6697 = vmatpush1.msra.mxu0 0.0
        %6698 = vmatprep.subr.mxu0 0.0
        %6699 = vmatpush1.msra.mxu0 0.0
        %6700 = vmatprep.subr.mxu0 0.0
        %6701 = vmatpush1.msra.mxu0 0.0
        %6702 = vmatprep.subr.mxu0 0.0
        %6703 = vmatpush1.msra.mxu0 0.0
        %6704 = vmatprep.subr.mxu0 0.0
        %6705 = vmatpush1.msra.mxu0 0.0
        %6706 = vmatprep.subr.mxu0 0.0
        %6707 = vmatpush1.msra.mxu0 0.0
        %6708 = vmatprep.subr.mxu0 0.0
        %6709 = vmatpush1.msra.mxu0 0.0
        %6710 = vmatprep.subr.mxu0 0.0
        %6711 = vmatpush1.msra.mxu0 0.0
        %6712 = vmatprep.subr.mxu0 0.0
        %6713 = vmatpush1.msra.mxu0 0.0
        %6714 = vmatprep.subr.mxu0 0.0
        %6715 = vmatpush1.msra.mxu0 0.0
        %6716 = vmatprep.subr.mxu0 0.0
        %6717 = vmatpush1.msra.mxu0 0.0
        %6718 = vmatprep.subr.mxu0 0.0
        %6719 = vmatpush1.msra.mxu0 0.0
        %6720 = vmatprep.subr.mxu0 0.0
        %6721 = vmatpush1.msra.mxu0 0.0
        %6722 = vmatprep.subr.mxu0 0.0
        %6723 = vmatpush1.msra.mxu0 0.0
        %6724 = vmatprep.subr.mxu0 0.0
        %6725 = vmatpush1.msra.mxu0 0.0
        %6726 = vmatprep.subr.mxu0 0.0
        %6727 = vmatpush1.msra.mxu0 0.0
        %6728 = vmatprep.subr.mxu0 0.0
        %6729 = vmatpush1.msra.mxu0 0.0
        %6730 = vmatprep.subr.mxu0 0.0
        %6731 = vmatpush1.msra.mxu0 0.0
        %6732 = vmatprep.subr.mxu0 0.0
        %6733 = vmatpush1.msra.mxu0 0.0
        %6734 = vmatprep.subr.mxu0 0.0
        %6735 = vmatpush1.msra.mxu0 0.0
        %6736 = vmatprep.subr.mxu0 0.0
        %6737 = vmatpush1.msra.mxu0 0.0
        %6738 = vmatprep.subr.mxu0 0.0
        %6739 = vmatpush1.msra.mxu0 0.0
        %6740 = vmatprep.subr.mxu0 0.0
        %6741 = vmatpush1.msra.mxu0 0.0
        %6742 = vmatprep.subr.mxu0 0.0
        %6743 = vmatpush1.msra.mxu0 0.0
        %6744 = vmatprep.subr.mxu0 0.0
        %6745 = vmatpush1.msra.mxu0 0.0
        %6746 = vmatprep.mubr.f32.mxu0 0.0
        %6747 = vmatmul.mubr.f32.gmra.mrb[0].mxu0 %v6678
        %v6748 = vpop.f32.mrb[0].mxu0
        %v6749 = vadd.f32 0.0, %v6748
        %v6750 = vpop.f32.mrb[0].mxu0
        %6751 = vdwg.mxu0
        %6753 = vrot.lane.b32.xlu0 %v6749, 24
        %v6754 = vpop.permute.xlu0 %6753
        %6756 = vst.msk [vmem:[#allocation2] sm:$0xf] %vm2453, %v6754
        %v6757 = vld [vmem:[#allocation2] sm:$0xf]
        %v6759 = vlaneseq
        %v6760 = vshrl.u32 %v6759, 7
        %v6761 = vsub.s32 0, %v6760
        %v6762 = vrot.slane %v5943, %v6761
        %v6765 = vsel %vm1690, %v6757, 0
        %6767 = vmatprep.subr.mxu0 0.0
        %6768 = vmatpush1.msra.mxu0 %v5938
        %6769 = vmatprep.subr.mxu0 0.0
        %6770 = vmatpush1.msra.mxu0 %v5939
        %6771 = vmatprep.subr.mxu0 0.0
        %6772 = vmatpush1.msra.mxu0 %v5940
        %6773 = vmatprep.subr.mxu0 0.0
        %6774 = vmatpush1.msra.mxu0 %v5941
        %6775 = vmatprep.subr.mxu0 0.0
        %6776 = vmatpush1.msra.mxu0 0.0
        %6777 = vmatprep.subr.mxu0 0.0
        %6778 = vmatpush1.msra.mxu0 0.0
        %6779 = vmatprep.subr.mxu0 0.0
        %6780 = vmatpush1.msra.mxu0 0.0
        %6781 = vmatprep.subr.mxu0 0.0
        %6782 = vmatpush1.msra.mxu0 0.0
        %6783 = vmatprep.subr.mxu0 0.0
        %6784 = vmatpush1.msra.mxu0 0.0
        %6785 = vmatprep.subr.mxu0 0.0
        %6786 = vmatpush1.msra.mxu0 0.0
        %6787 = vmatprep.subr.mxu0 0.0
        %6788 = vmatpush1.msra.mxu0 0.0
        %6789 = vmatprep.subr.mxu0 0.0
        %6790 = vmatpush1.msra.mxu0 0.0
        %6791 = vmatprep.subr.mxu0 0.0
        %6792 = vmatpush1.msra.mxu0 0.0
        %6793 = vmatprep.subr.mxu0 0.0
        %6794 = vmatpush1.msra.mxu0 0.0
        %6795 = vmatprep.subr.mxu0 0.0
        %6796 = vmatpush1.msra.mxu0 0.0
        %6797 = vmatprep.subr.mxu0 0.0
        %6798 = vmatpush1.msra.mxu0 0.0
        %6799 = vmatprep.subr.mxu0 0.0
        %6800 = vmatpush1.msra.mxu0 0.0
        %6801 = vmatprep.subr.mxu0 0.0
        %6802 = vmatpush1.msra.mxu0 0.0
        %6803 = vmatprep.subr.mxu0 0.0
        %6804 = vmatpush1.msra.mxu0 0.0
        %6805 = vmatprep.subr.mxu0 0.0
        %6806 = vmatpush1.msra.mxu0 0.0
        %6807 = vmatprep.subr.mxu0 0.0
        %6808 = vmatpush1.msra.mxu0 0.0
        %6809 = vmatprep.subr.mxu0 0.0
        %6810 = vmatpush1.msra.mxu0 0.0
        %6811 = vmatprep.subr.mxu0 0.0
        %6812 = vmatpush1.msra.mxu0 0.0
        %6813 = vmatprep.subr.mxu0 0.0
        %6814 = vmatpush1.msra.mxu0 0.0
        %6815 = vmatprep.subr.mxu0 0.0
        %6816 = vmatpush1.msra.mxu0 0.0
        %6817 = vmatprep.subr.mxu0 0.0
        %6818 = vmatpush1.msra.mxu0 0.0
        %6819 = vmatprep.subr.mxu0 0.0
        %6820 = vmatpush1.msra.mxu0 0.0
        %6821 = vmatprep.subr.mxu0 0.0
        %6822 = vmatpush1.msra.mxu0 0.0
        %6823 = vmatprep.subr.mxu0 0.0
        %6824 = vmatpush1.msra.mxu0 0.0
        %6825 = vmatprep.subr.mxu0 0.0
        %6826 = vmatpush1.msra.mxu0 0.0
        %6827 = vmatprep.subr.mxu0 0.0
        %6828 = vmatpush1.msra.mxu0 0.0
        %6829 = vmatprep.subr.mxu0 0.0
        %6830 = vmatpush1.msra.mxu0 0.0
        %6831 = vmatprep.mubr.f32.mxu0 0.0
        %6832 = vmatmul.mubr.f32.gmra.mrb[0].mxu0 %v6765
        %v6833 = vpop.f32.mrb[0].mxu0
        %v6834 = vadd.f32 %v6762, %v6833
        %v6835 = vpop.f32.mrb[0].mxu0
        %6836 = vdwg.mxu0
        %v6837 = vadd.f32 %v5929, %v6834
        %v6838 = vsel %vm2536, %v6837, 0.0
        %6839 = vadd.xlane.f32.xlu0 %v6838
        %v6840 = vpop.xlane.xlu0 %6839
        %v6841 = vmul.f32 %v6840, %v2540
        %v6842 = vsub.f32 %v6837, %v6841
        %v6843 = vmul.f32 %v6842, %v6842
        %v6844 = vsel %vm2536, %v6843, 0.0
        %6845 = vadd.xlane.f32.xlu0 %v6844
        %v6846 = vpop.xlane.xlu0 %6845
        %v6847 = vmul.f32 %v6846, %v2540
        %v6848 = vadd.f32 %v6847, 1e-05
        %v6849 = vrsqrt.pop %v6848
        %v6850 = vmul.f32 %v6842, %v6849
        %v6852 = vlaneseq
        %v6853 = vshrl.u32 %v6852, 7
        %v6854 = vsub.s32 0, %v6853
        %v6855 = vrot.slane %v5945, %v6854
        %v6857 = vmul.f32 %v6850, %v6855
        %v6859 = vlaneseq
        %v6860 = vshrl.u32 %v6859, 7
        %v6861 = vsub.s32 0, %v6860
        %v6862 = vrot.slane %v5947, %v6861
        %v6864 = vadd.f32 %v6857, %v6862
        %v6866 = vlaneseq
        %v6867 = vshrl.u32 %v6866, 7
        %v6868 = vsub.s32 0, %v6867
        %v6869 = vrot.slane %v5954, %v6868
        %v6872 = vsel %vm1690, %v6864, 0
        %6874 = vmatprep.subr.mxu0 0.0
        %6875 = vmatpush1.msra.mxu0 %v5949
        %6876 = vmatprep.subr.mxu0 0.0
        %6877 = vmatpush1.msra.mxu0 %v5950
        %6878 = vmatprep.subr.mxu0 0.0
        %6879 = vmatpush1.msra.mxu0 %v5951
        %6880 = vmatprep.subr.mxu0 0.0
        %6881 = vmatpush1.msra.mxu0 %v5952
        %6882 = vmatprep.subr.mxu0 0.0
        %6883 = vmatpush1.msra.mxu0 0.0
        %6884 = vmatprep.subr.mxu0 0.0
        %6885 = vmatpush1.msra.mxu0 0.0
        %6886 = vmatprep.subr.mxu0 0.0
        %6887 = vmatpush1.msra.mxu0 0.0
        %6888 = vmatprep.subr.mxu0 0.0
        %6889 = vmatpush1.msra.mxu0 0.0
        %6890 = vmatprep.subr.mxu0 0.0
        %6891 = vmatpush1.msra.mxu0 0.0
        %6892 = vmatprep.subr.mxu0 0.0
        %6893 = vmatpush1.msra.mxu0 0.0
        %6894 = vmatprep.subr.mxu0 0.0
        %6895 = vmatpush1.msra.mxu0 0.0
        %6896 = vmatprep.subr.mxu0 0.0
        %6897 = vmatpush1.msra.mxu0 0.0
        %6898 = vmatprep.subr.mxu0 0.0
        %6899 = vmatpush1.msra.mxu0 0.0
        %6900 = vmatprep.subr.mxu0 0.0
        %6901 = vmatpush1.msra.mxu0 0.0
        %6902 = vmatprep.subr.mxu0 0.0
        %6903 = vmatpush1.msra.mxu0 0.0
        %6904 = vmatprep.subr.mxu0 0.0
        %6905 = vmatpush1.msra.mxu0 0.0
        %6906 = vmatprep.subr.mxu0 0.0
        %6907 = vmatpush1.msra.mxu0 0.0
        %6908 = vmatprep.subr.mxu0 0.0
        %6909 = vmatpush1.msra.mxu0 0.0
        %6910 = vmatprep.subr.mxu0 0.0
        %6911 = vmatpush1.msra.mxu0 0.0
        %6912 = vmatprep.subr.mxu0 0.0
        %6913 = vmatpush1.msra.mxu0 0.0
        %6914 = vmatprep.subr.mxu0 0.0
        %6915 = vmatpush1.msra.mxu0 0.0
        %6916 = vmatprep.subr.mxu0 0.0
        %6917 = vmatpush1.msra.mxu0 0.0
        %6918 = vmatprep.subr.mxu0 0.0
        %6919 = vmatpush1.msra.mxu0 0.0
        %6920 = vmatprep.subr.mxu0 0.0
        %6921 = vmatpush1.msra.mxu0 0.0
        %6922 = vmatprep.subr.mxu0 0.0
        %6923 = vmatpush1.msra.mxu0 0.0
        %6924 = vmatprep.subr.mxu0 0.0
        %6925 = vmatpush1.msra.mxu0 0.0
        %6926 = vmatprep.subr.mxu0 0.0
        %6927 = vmatpush1.msra.mxu0 0.0
        %6928 = vmatprep.subr.mxu0 0.0
        %6929 = vmatpush1.msra.mxu0 0.0
        %6930 = vmatprep.subr.mxu0 0.0
        %6931 = vmatpush1.msra.mxu0 0.0
        %6932 = vmatprep.subr.mxu0 0.0
        %6933 = vmatpush1.msra.mxu0 0.0
        %6934 = vmatprep.subr.mxu0 0.0
        %6935 = vmatpush1.msra.mxu0 0.0
        %6936 = vmatprep.subr.mxu0 0.0
        %6937 = vmatpush1.msra.mxu0 0.0
        %6938 = vmatprep.mubr.f32.mxu0 0.0
        %6939 = vmatmul.mubr.f32.gmra.mrb[0].mxu0 %v6872
        %v6940 = vpop.f32.mrb[0].mxu0
        %v6941 = vadd.f32 %v6869, %v6940
        %v6942 = vpop.f32.mrb[0].mxu0
        %6943 = vdwg.mxu0
        %v6945 = vlaneseq
        %v6946 = vshrl.u32 %v6945, 7
        %v6947 = vsub.s32 0, %v6946
        %v6948 = vrot.slane %v5961, %v6947
        %6950 = vmatprep.subr.mxu0 0.0
        %6951 = vmatpush1.msra.mxu0 %v5956
        %6952 = vmatprep.subr.mxu0 0.0
        %6953 = vmatpush1.msra.mxu0 %v5957
        %6954 = vmatprep.subr.mxu0 0.0
        %6955 = vmatpush1.msra.mxu0 %v5958
        %6956 = vmatprep.subr.mxu0 0.0
        %6957 = vmatpush1.msra.mxu0 %v5959
        %6958 = vmatprep.subr.mxu0 0.0
        %6959 = vmatpush1.msra.mxu0 0.0
        %6960 = vmatprep.subr.mxu0 0.0
        %6961 = vmatpush1.msra.mxu0 0.0
        %6962 = vmatprep.subr.mxu0 0.0
        %6963 = vmatpush1.msra.mxu0 0.0
        %6964 = vmatprep.subr.mxu0 0.0
        %6965 = vmatpush1.msra.mxu0 0.0
        %6966 = vmatprep.subr.mxu0 0.0
        %6967 = vmatpush1.msra.mxu0 0.0
        %6968 = vmatprep.subr.mxu0 0.0
        %6969 = vmatpush1.msra.mxu0 0.0
        %6970 = vmatprep.subr.mxu0 0.0
        %6971 = vmatpush1.msra.mxu0 0.0
        %6972 = vmatprep.subr.mxu0 0.0
        %6973 = vmatpush1.msra.mxu0 0.0
        %6974 = vmatprep.subr.mxu0 0.0
        %6975 = vmatpush1.msra.mxu0 0.0
        %6976 = vmatprep.subr.mxu0 0.0
        %6977 = vmatpush1.msra.mxu0 0.0
        %6978 = vmatprep.subr.mxu0 0.0
        %6979 = vmatpush1.msra.mxu0 0.0
        %6980 = vmatprep.subr.mxu0 0.0
        %6981 = vmatpush1.msra.mxu0 0.0
        %6982 = vmatprep.subr.mxu0 0.0
        %6983 = vmatpush1.msra.mxu0 0.0
        %6984 = vmatprep.subr.mxu0 0.0
        %6985 = vmatpush1.msra.mxu0 0.0
        %6986 = vmatprep.subr.mxu0 0.0
        %6987 = vmatpush1.msra.mxu0 0.0
        %6988 = vmatprep.subr.mxu0 0.0
        %6989 = vmatpush1.msra.mxu0 0.0
        %6990 = vmatprep.subr.mxu0 0.0
        %6991 = vmatpush1.msra.mxu0 0.0
        %6992 = vmatprep.subr.mxu0 0.0
        %6993 = vmatpush1.msra.mxu0 0.0
        %6994 = vmatprep.subr.mxu0 0.0
        %6995 = vmatpush1.msra.mxu0 0.0
        %6996 = vmatprep.subr.mxu0 0.0
        %6997 = vmatpush1.msra.mxu0 0.0
        %6998 = vmatprep.subr.mxu0 0.0
        %6999 = vmatpush1.msra.mxu0 0.0
        %7000 = vmatprep.subr.mxu0 0.0
        %7001 = vmatpush1.msra.mxu0 0.0
        %7002 = vmatprep.subr.mxu0 0.0
        %7003 = vmatpush1.msra.mxu0 0.0
        %7004 = vmatprep.subr.mxu0 0.0
        %7005 = vmatpush1.msra.mxu0 0.0
        %7006 = vmatprep.subr.mxu0 0.0
        %7007 = vmatpush1.msra.mxu0 0.0
        %7008 = vmatprep.subr.mxu0 0.0
        %7009 = vmatpush1.msra.mxu0 0.0
        %7010 = vmatprep.subr.mxu0 0.0
        %7011 = vmatpush1.msra.mxu0 0.0
        %7012 = vmatprep.subr.mxu0 0.0
        %7013 = vmatpush1.msra.mxu0 0.0
        %7014 = vmatprep.mubr.f32.mxu0 0.0
        %7015 = vmatmul.mubr.f32.gmra.mrb[0].mxu0 %v4881
        %v7016 = vpop.f32.mrb[0].mxu0
        %v7017 = vadd.f32 %v6948, %v7016
        %v7018 = vpop.f32.mrb[0].mxu0
        %7019 = vdwg.mxu0
        %v7021 = vsel %vm1767, %v6941, 0
        %v7024 = vsel %vm1767, %v7017, 0
        %7026 = vmatprep.subr.mxu0 0.0
        %7027 = vmatpush1.xpose.msra.mxu0 %v7024
        %7028 = vmatprep.subr.mxu0 0.0
        %7029 = vmatpush1.xpose.msra.mxu0 0.0
        %7030 = vmatprep.subr.mxu0 0.0
        %7031 = vmatpush1.xpose.msra.mxu0 0.0
        %7032 = vmatprep.subr.mxu0 0.0
        %7033 = vmatpush1.xpose.msra.mxu0 0.0
        %7034 = vmatprep.subr.mxu0 0.0
        %7035 = vmatpush1.xpose.msra.mxu0 0.0
        %7036 = vmatprep.subr.mxu0 0.0
        %7037 = vmatpush1.xpose.msra.mxu0 0.0
        %7038 = vmatprep.subr.mxu0 0.0
        %7039 = vmatpush1.xpose.msra.mxu0 0.0
        %7040 = vmatprep.subr.mxu0 0.0
        %7041 = vmatpush1.xpose.msra.mxu0 0.0
        %7042 = vmatprep.subr.mxu0 0.0
        %7043 = vmatpush1.xpose.msra.mxu0 0.0
        %7044 = vmatprep.subr.mxu0 0.0
        %7045 = vmatpush1.xpose.msra.mxu0 0.0
        %7046 = vmatprep.subr.mxu0 0.0
        %7047 = vmatpush1.xpose.msra.mxu0 0.0
        %7048 = vmatprep.subr.mxu0 0.0
        %7049 = vmatpush1.xpose.msra.mxu0 0.0
        %7050 = vmatprep.subr.mxu0 0.0
        %7051 = vmatpush1.xpose.msra.mxu0 0.0
        %7052 = vmatprep.subr.mxu0 0.0
        %7053 = vmatpush1.xpose.msra.mxu0 0.0
        %7054 = vmatprep.subr.mxu0 0.0
        %7055 = vmatpush1.xpose.msra.mxu0 0.0
        %7056 = vmatprep.subr.mxu0 0.0
        %7057 = vmatpush1.xpose.msra.mxu0 0.0
        %7058 = vmatprep.subr.mxu0 0.0
        %7059 = vmatpush1.xpose.msra.mxu0 0.0
        %7060 = vmatprep.subr.mxu0 0.0
        %7061 = vmatpush1.xpose.msra.mxu0 0.0
        %7062 = vmatprep.subr.mxu0 0.0
        %7063 = vmatpush1.xpose.msra.mxu0 0.0
        %7064 = vmatprep.subr.mxu0 0.0
        %7065 = vmatpush1.xpose.msra.mxu0 0.0
        %7066 = vmatprep.subr.mxu0 0.0
        %7067 = vmatpush1.xpose.msra.mxu0 0.0
        %7068 = vmatprep.subr.mxu0 0.0
        %7069 = vmatpush1.xpose.msra.mxu0 0.0
        %7070 = vmatprep.subr.mxu0 0.0
        %7071 = vmatpush1.xpose.msra.mxu0 0.0
        %7072 = vmatprep.subr.mxu0 0.0
        %7073 = vmatpush1.xpose.msra.mxu0 0.0
        %7074 = vmatprep.subr.mxu0 0.0
        %7075 = vmatpush1.xpose.msra.mxu0 0.0
        %7076 = vmatprep.subr.mxu0 0.0
        %7077 = vmatpush1.xpose.msra.mxu0 0.0
        %7078 = vmatprep.subr.mxu0 0.0
        %7079 = vmatpush1.xpose.msra.mxu0 0.0
        %7080 = vmatprep.subr.mxu0 0.0
        %7081 = vmatpush1.xpose.msra.mxu0 0.0
        %7082 = vmatprep.subr.mxu0 0.0
        %7083 = vmatpush1.xpose.msra.mxu0 0.0
        %7084 = vmatprep.subr.mxu0 0.0
        %7085 = vmatpush1.xpose.msra.mxu0 0.0
        %7086 = vmatprep.subr.mxu0 0.0
        %7087 = vmatpush1.xpose.msra.mxu0 0.0
        %7088 = vmatprep.subr.mxu0 0.0
        %7089 = vmatpush1.xpose.msra.mxu0 0.0
        %7090 = vmatprep.mubr.f32.mxu0 0.0
        %7091 = vmatmul.mubr.f32.gmra.mrb[0].mxu0 %v7021
        %v7092 = vpop.f32.mrb[0].mxu0
        %v7093 = vadd.f32 0.0, %v7092
        %v7094 = vpop.f32.mrb[0].mxu0
        %7095 = vdwg.mxu0
        %v7096 = vmul.f32 %v7093, 0.35355338
        %v7097 = vsel %vm1843, %v7096, -inf
        %7098 = vmax.xlane.f32.xlu0 %v7097
        %v7099 = vpop.xlane.xlu0 %7098
        %v7100 = vsub.f32 %v7096, %v7099
        %v7101 = vmul.f32 %v7100, 1.442695
        %v7102 = vpow.pop %v7101
        %v7103 = vsel %vm1843, %v7102, 0.0
        %7104 = vadd.xlane.f32.xlu0 %v7103
        %v7105 = vpop.xlane.xlu0 %7104
        %v7106 = vrcp.pop %v7105
        %v7107 = vmul.f32 %v7102, %v7106
        %7108 = vrot.lane.b32.xlu0 %v7017, 96
        %v7109 = vpop.permute.xlu0 %7108
        %v7111 = vsel %vm1857, %v7107, 0
        %v7113 = vsel %vm1861, %v7109, 0
        %7115 = vmatprep.subr.mxu0 0.0
        %7116 = vmatpush1.msra.mxu0 %v7113
        %7117 = vmatprep.subr.mxu0 0.0
        %7118 = vmatpush1.msra.mxu0 0.0
        %7119 = vmatprep.subr.mxu0 0.0
        %7120 = vmatpush1.msra.mxu0 0.0
        %7121 = vmatprep.subr.mxu0 0.0
        %7122 = vmatpush1.msra.mxu0 0.0
        %7123 = vmatprep.subr.mxu0 0.0
        %7124 = vmatpush1.msra.mxu0 0.0
        %7125 = vmatprep.subr.mxu0 0.0
        %7126 = vmatpush1.msra.mxu0 0.0
        %7127 = vmatprep.subr.mxu0 0.0
        %7128 = vmatpush1.msra.mxu0 0.0
        %7129 = vmatprep.subr.mxu0 0.0
        %7130 = vmatpush1.msra.mxu0 0.0
        %7131 = vmatprep.subr.mxu0 0.0
        %7132 = vmatpush1.msra.mxu0 0.0
        %7133 = vmatprep.subr.mxu0 0.0
        %7134 = vmatpush1.msra.mxu0 0.0
        %7135 = vmatprep.subr.mxu0 0.0
        %7136 = vmatpush1.msra.mxu0 0.0
        %7137 = vmatprep.subr.mxu0 0.0
        %7138 = vmatpush1.msra.mxu0 0.0
        %7139 = vmatprep.subr.mxu0 0.0
        %7140 = vmatpush1.msra.mxu0 0.0
        %7141 = vmatprep.subr.mxu0 0.0
        %7142 = vmatpush1.msra.mxu0 0.0
        %7143 = vmatprep.subr.mxu0 0.0
        %7144 = vmatpush1.msra.mxu0 0.0
        %7145 = vmatprep.subr.mxu0 0.0
        %7146 = vmatpush1.msra.mxu0 0.0
        %7147 = vmatprep.subr.mxu0 0.0
        %7148 = vmatpush1.msra.mxu0 0.0
        %7149 = vmatprep.subr.mxu0 0.0
        %7150 = vmatpush1.msra.mxu0 0.0
        %7151 = vmatprep.subr.mxu0 0.0
        %7152 = vmatpush1.msra.mxu0 0.0
        %7153 = vmatprep.subr.mxu0 0.0
        %7154 = vmatpush1.msra.mxu0 0.0
        %7155 = vmatprep.subr.mxu0 0.0
        %7156 = vmatpush1.msra.mxu0 0.0
        %7157 = vmatprep.subr.mxu0 0.0
        %7158 = vmatpush1.msra.mxu0 0.0
        %7159 = vmatprep.subr.mxu0 0.0
        %7160 = vmatpush1.msra.mxu0 0.0
        %7161 = vmatprep.subr.mxu0 0.0
        %7162 = vmatpush1.msra.mxu0 0.0
        %7163 = vmatprep.subr.mxu0 0.0
        %7164 = vmatpush1.msra.mxu0 0.0
        %7165 = vmatprep.subr.mxu0 0.0
        %7166 = vmatpush1.msra.mxu0 0.0
        %7167 = vmatprep.subr.mxu0 0.0
        %7168 = vmatpush1.msra.mxu0 0.0
        %7169 = vmatprep.subr.mxu0 0.0
        %7170 = vmatpush1.msra.mxu0 0.0
        %7171 = vmatprep.subr.mxu0 0.0
        %7172 = vmatpush1.msra.mxu0 0.0
        %7173 = vmatprep.subr.mxu0 0.0
        %7174 = vmatpush1.msra.mxu0 0.0
        %7175 = vmatprep.subr.mxu0 0.0
        %7176 = vmatpush1.msra.mxu0 0.0
        %7177 = vmatprep.subr.mxu0 0.0
        %7178 = vmatpush1.msra.mxu0 0.0
        %7179 = vmatprep.mubr.f32.mxu0 0.0
        %7180 = vmatmul.mubr.f32.gmra.mrb[0].mxu0 %v7111
        %v7181 = vpop.f32.mrb[0].mxu0
        %v7182 = vadd.f32 0.0, %v7181
        %v7183 = vpop.f32.mrb[0].mxu0
        %7184 = vdwg.mxu0
        %7185 = vst.msk [vmem:[#allocation2] sm:$0xf] %vm1934, %v7182
        %7186 = vrot.lane.b32.xlu0 %v6941, 120
        %v7187 = vpop.permute.xlu0 %7186
        %7188 = vrot.lane.b32.xlu0 %v7017, 120
        %v7189 = vpop.permute.xlu0 %7188
        %v7190 = vsel %vm1767, %v7187, 0
        %v7192 = vsel %vm1767, %v7189, 0
        %7194 = vmatprep.subr.mxu0 0.0
        %7195 = vmatpush1.xpose.msra.mxu0 %v7192
        %7196 = vmatprep.subr.mxu0 0.0
        %7197 = vmatpush1.xpose.msra.mxu0 0.0
        %7198 = vmatprep.subr.mxu0 0.0
        %7199 = vmatpush1.xpose.msra.mxu0 0.0
        %7200 = vmatprep.subr.mxu0 0.0
        %7201 = vmatpush1.xpose.msra.mxu0 0.0
        %7202 = vmatprep.subr.mxu0 0.0
        %7203 = vmatpush1.xpose.msra.mxu0 0.0
        %7204 = vmatprep.subr.mxu0 0.0
        %7205 = vmatpush1.xpose.msra.mxu0 0.0
        %7206 = vmatprep.subr.mxu0 0.0
        %7207 = vmatpush1.xpose.msra.mxu0 0.0
        %7208 = vmatprep.subr.mxu0 0.0
        %7209 = vmatpush1.xpose.msra.mxu0 0.0
        %7210 = vmatprep.subr.mxu0 0.0
        %7211 = vmatpush1.xpose.msra.mxu0 0.0
        %7212 = vmatprep.subr.mxu0 0.0
        %7213 = vmatpush1.xpose.msra.mxu0 0.0
        %7214 = vmatprep.subr.mxu0 0.0
        %7215 = vmatpush1.xpose.msra.mxu0 0.0
        %7216 = vmatprep.subr.mxu0 0.0
        %7217 = vmatpush1.xpose.msra.mxu0 0.0
        %7218 = vmatprep.subr.mxu0 0.0
        %7219 = vmatpush1.xpose.msra.mxu0 0.0
        %7220 = vmatprep.subr.mxu0 0.0
        %7221 = vmatpush1.xpose.msra.mxu0 0.0
        %7222 = vmatprep.subr.mxu0 0.0
        %7223 = vmatpush1.xpose.msra.mxu0 0.0
        %7224 = vmatprep.subr.mxu0 0.0
        %7225 = vmatpush1.xpose.msra.mxu0 0.0
        %7226 = vmatprep.subr.mxu0 0.0
        %7227 = vmatpush1.xpose.msra.mxu0 0.0
        %7228 = vmatprep.subr.mxu0 0.0
        %7229 = vmatpush1.xpose.msra.mxu0 0.0
        %7230 = vmatprep.subr.mxu0 0.0
        %7231 = vmatpush1.xpose.msra.mxu0 0.0
        %7232 = vmatprep.subr.mxu0 0.0
        %7233 = vmatpush1.xpose.msra.mxu0 0.0
        %7234 = vmatprep.subr.mxu0 0.0
        %7235 = vmatpush1.xpose.msra.mxu0 0.0
        %7236 = vmatprep.subr.mxu0 0.0
        %7237 = vmatpush1.xpose.msra.mxu0 0.0
        %7238 = vmatprep.subr.mxu0 0.0
        %7239 = vmatpush1.xpose.msra.mxu0 0.0
        %7240 = vmatprep.subr.mxu0 0.0
        %7241 = vmatpush1.xpose.msra.mxu0 0.0
        %7242 = vmatprep.subr.mxu0 0.0
        %7243 = vmatpush1.xpose.msra.mxu0 0.0
        %7244 = vmatprep.subr.mxu0 0.0
        %7245 = vmatpush1.xpose.msra.mxu0 0.0
        %7246 = vmatprep.subr.mxu0 0.0
        %7247 = vmatpush1.xpose.msra.mxu0 0.0
        %7248 = vmatprep.subr.mxu0 0.0
        %7249 = vmatpush1.xpose.msra.mxu0 0.0
        %7250 = vmatprep.subr.mxu0 0.0
        %7251 = vmatpush1.xpose.msra.mxu0 0.0
        %7252 = vmatprep.subr.mxu0 0.0
        %7253 = vmatpush1.xpose.msra.mxu0 0.0
        %7254 = vmatprep.subr.mxu0 0.0
        %7255 = vmatpush1.xpose.msra.mxu0 0.0
        %7256 = vmatprep.subr.mxu0 0.0
        %7257 = vmatpush1.xpose.msra.mxu0 0.0
        %7258 = vmatprep.mubr.f32.mxu0 0.0
        %7259 = vmatmul.mubr.f32.gmra.mrb[0].mxu0 %v7190
        %v7260 = vpop.f32.mrb[0].mxu0
        %v7261 = vadd.f32 0.0, %v7260
        %v7262 = vpop.f32.mrb[0].mxu0
        %7263 = vdwg.mxu0
        %v7264 = vmul.f32 %v7261, 0.35355338
        %v7265 = vsel %vm1843, %v7264, -inf
        %7266 = vmax.xlane.f32.xlu0 %v7265
        %v7267 = vpop.xlane.xlu0 %7266
        %v7268 = vsub.f32 %v7264, %v7267
        %v7269 = vmul.f32 %v7268, 1.442695
        %v7270 = vpow.pop %v7269
        %v7271 = vsel %vm1843, %v7270, 0.0
        %7272 = vadd.xlane.f32.xlu0 %v7271
        %v7273 = vpop.xlane.xlu0 %7272
        %v7274 = vrcp.pop %v7273
        %v7275 = vmul.f32 %v7270, %v7274
        %7276 = vrot.lane.b32.xlu0 %v7017, 88
        %v7277 = vpop.permute.xlu0 %7276
        %v7279 = vsel %vm1857, %v7275, 0
        %v7281 = vsel %vm1861, %v7277, 0
        %7283 = vmatprep.subr.mxu0 0.0
        %7284 = vmatpush1.msra.mxu0 %v7281
        %7285 = vmatprep.subr.mxu0 0.0
        %7286 = vmatpush1.msra.mxu0 0.0
        %7287 = vmatprep.subr.mxu0 0.0
        %7288 = vmatpush1.msra.mxu0 0.0
        %7289 = vmatprep.subr.mxu0 0.0
        %7290 = vmatpush1.msra.mxu0 0.0
        %7291 = vmatprep.subr.mxu0 0.0
        %7292 = vmatpush1.msra.mxu0 0.0
        %7293 = vmatprep.subr.mxu0 0.0
        %7294 = vmatpush1.msra.mxu0 0.0
        %7295 = vmatprep.subr.mxu0 0.0
        %7296 = vmatpush1.msra.mxu0 0.0
        %7297 = vmatprep.subr.mxu0 0.0
        %7298 = vmatpush1.msra.mxu0 0.0
        %7299 = vmatprep.subr.mxu0 0.0
        %7300 = vmatpush1.msra.mxu0 0.0
        %7301 = vmatprep.subr.mxu0 0.0
        %7302 = vmatpush1.msra.mxu0 0.0
        %7303 = vmatprep.subr.mxu0 0.0
        %7304 = vmatpush1.msra.mxu0 0.0
        %7305 = vmatprep.subr.mxu0 0.0
        %7306 = vmatpush1.msra.mxu0 0.0
        %7307 = vmatprep.subr.mxu0 0.0
        %7308 = vmatpush1.msra.mxu0 0.0
        %7309 = vmatprep.subr.mxu0 0.0
        %7310 = vmatpush1.msra.mxu0 0.0
        %7311 = vmatprep.subr.mxu0 0.0
        %7312 = vmatpush1.msra.mxu0 0.0
        %7313 = vmatprep.subr.mxu0 0.0
        %7314 = vmatpush1.msra.mxu0 0.0
        %7315 = vmatprep.subr.mxu0 0.0
        %7316 = vmatpush1.msra.mxu0 0.0
        %7317 = vmatprep.subr.mxu0 0.0
        %7318 = vmatpush1.msra.mxu0 0.0
        %7319 = vmatprep.subr.mxu0 0.0
        %7320 = vmatpush1.msra.mxu0 0.0
        %7321 = vmatprep.subr.mxu0 0.0
        %7322 = vmatpush1.msra.mxu0 0.0
        %7323 = vmatprep.subr.mxu0 0.0
        %7324 = vmatpush1.msra.mxu0 0.0
        %7325 = vmatprep.subr.mxu0 0.0
        %7326 = vmatpush1.msra.mxu0 0.0
        %7327 = vmatprep.subr.mxu0 0.0
        %7328 = vmatpush1.msra.mxu0 0.0
        %7329 = vmatprep.subr.mxu0 0.0
        %7330 = vmatpush1.msra.mxu0 0.0
        %7331 = vmatprep.subr.mxu0 0.0
        %7332 = vmatpush1.msra.mxu0 0.0
        %7333 = vmatprep.subr.mxu0 0.0
        %7334 = vmatpush1.msra.mxu0 0.0
        %7335 = vmatprep.subr.mxu0 0.0
        %7336 = vmatpush1.msra.mxu0 0.0
        %7337 = vmatprep.subr.mxu0 0.0
        %7338 = vmatpush1.msra.mxu0 0.0
        %7339 = vmatprep.subr.mxu0 0.0
        %7340 = vmatpush1.msra.mxu0 0.0
        %7341 = vmatprep.subr.mxu0 0.0
        %7342 = vmatpush1.msra.mxu0 0.0
        %7343 = vmatprep.subr.mxu0 0.0
        %7344 = vmatpush1.msra.mxu0 0.0
        %7345 = vmatprep.subr.mxu0 0.0
        %7346 = vmatpush1.msra.mxu0 0.0
        %7347 = vmatprep.mubr.f32.mxu0 0.0
        %7348 = vmatmul.mubr.f32.gmra.mrb[0].mxu0 %v7279
        %v7349 = vpop.f32.mrb[0].mxu0
        %v7350 = vadd.f32 0.0, %v7349
        %v7351 = vpop.f32.mrb[0].mxu0
        %7352 = vdwg.mxu0
        %7354 = vrot.lane.b32.xlu0 %v7350, 8
        %v7355 = vpop.permute.xlu0 %7354
        %7357 = vst.msk [vmem:[#allocation2] sm:$0xf] %vm2107, %v7355
        %7358 = vrot.lane.b32.xlu0 %v6941, 112
        %v7359 = vpop.permute.xlu0 %7358
        %7360 = vrot.lane.b32.xlu0 %v7017, 112
        %v7361 = vpop.permute.xlu0 %7360
        %v7362 = vsel %vm1767, %v7359, 0
        %v7364 = vsel %vm1767, %v7361, 0
        %7366 = vmatprep.subr.mxu0 0.0
        %7367 = vmatpush1.xpose.msra.mxu0 %v7364
        %7368 = vmatprep.subr.mxu0 0.0
        %7369 = vmatpush1.xpose.msra.mxu0 0.0
        %7370 = vmatprep.subr.mxu0 0.0
        %7371 = vmatpush1.xpose.msra.mxu0 0.0
        %7372 = vmatprep.subr.mxu0 0.0
        %7373 = vmatpush1.xpose.msra.mxu0 0.0
        %7374 = vmatprep.subr.mxu0 0.0
        %7375 = vmatpush1.xpose.msra.mxu0 0.0
        %7376 = vmatprep.subr.mxu0 0.0
        %7377 = vmatpush1.xpose.msra.mxu0 0.0
        %7378 = vmatprep.subr.mxu0 0.0
        %7379 = vmatpush1.xpose.msra.mxu0 0.0
        %7380 = vmatprep.subr.mxu0 0.0
        %7381 = vmatpush1.xpose.msra.mxu0 0.0
        %7382 = vmatprep.subr.mxu0 0.0
        %7383 = vmatpush1.xpose.msra.mxu0 0.0
        %7384 = vmatprep.subr.mxu0 0.0
        %7385 = vmatpush1.xpose.msra.mxu0 0.0
        %7386 = vmatprep.subr.mxu0 0.0
        %7387 = vmatpush1.xpose.msra.mxu0 0.0
        %7388 = vmatprep.subr.mxu0 0.0
        %7389 = vmatpush1.xpose.msra.mxu0 0.0
        %7390 = vmatprep.subr.mxu0 0.0
        %7391 = vmatpush1.xpose.msra.mxu0 0.0
        %7392 = vmatprep.subr.mxu0 0.0
        %7393 = vmatpush1.xpose.msra.mxu0 0.0
        %7394 = vmatprep.subr.mxu0 0.0
        %7395 = vmatpush1.xpose.msra.mxu0 0.0
        %7396 = vmatprep.subr.mxu0 0.0
        %7397 = vmatpush1.xpose.msra.mxu0 0.0
        %7398 = vmatprep.subr.mxu0 0.0
        %7399 = vmatpush1.xpose.msra.mxu0 0.0
        %7400 = vmatprep.subr.mxu0 0.0
        %7401 = vmatpush1.xpose.msra.mxu0 0.0
        %7402 = vmatprep.subr.mxu0 0.0
        %7403 = vmatpush1.xpose.msra.mxu0 0.0
        %7404 = vmatprep.subr.mxu0 0.0
        %7405 = vmatpush1.xpose.msra.mxu0 0.0
        %7406 = vmatprep.subr.mxu0 0.0
        %7407 = vmatpush1.xpose.msra.mxu0 0.0
        %7408 = vmatprep.subr.mxu0 0.0
        %7409 = vmatpush1.xpose.msra.mxu0 0.0
        %7410 = vmatprep.subr.mxu0 0.0
        %7411 = vmatpush1.xpose.msra.mxu0 0.0
        %7412 = vmatprep.subr.mxu0 0.0
        %7413 = vmatpush1.xpose.msra.mxu0 0.0
        %7414 = vmatprep.subr.mxu0 0.0
        %7415 = vmatpush1.xpose.msra.mxu0 0.0
        %7416 = vmatprep.subr.mxu0 0.0
        %7417 = vmatpush1.xpose.msra.mxu0 0.0
        %7418 = vmatprep.subr.mxu0 0.0
        %7419 = vmatpush1.xpose.msra.mxu0 0.0
        %7420 = vmatprep.subr.mxu0 0.0
        %7421 = vmatpush1.xpose.msra.mxu0 0.0
        %7422 = vmatprep.subr.mxu0 0.0
        %7423 = vmatpush1.xpose.msra.mxu0 0.0
        %7424 = vmatprep.subr.mxu0 0.0
        %7425 = vmatpush1.xpose.msra.mxu0 0.0
        %7426 = vmatprep.subr.mxu0 0.0
        %7427 = vmatpush1.xpose.msra.mxu0 0.0
        %7428 = vmatprep.subr.mxu0 0.0
        %7429 = vmatpush1.xpose.msra.mxu0 0.0
        %7430 = vmatprep.mubr.f32.mxu0 0.0
        %7431 = vmatmul.mubr.f32.gmra.mrb[0].mxu0 %v7362
        %v7432 = vpop.f32.mrb[0].mxu0
        %v7433 = vadd.f32 0.0, %v7432
        %v7434 = vpop.f32.mrb[0].mxu0
        %7435 = vdwg.mxu0
        %v7436 = vmul.f32 %v7433, 0.35355338
        %v7437 = vsel %vm1843, %v7436, -inf
        %7438 = vmax.xlane.f32.xlu0 %v7437
        %v7439 = vpop.xlane.xlu0 %7438
        %v7440 = vsub.f32 %v7436, %v7439
        %v7441 = vmul.f32 %v7440, 1.442695
        %v7442 = vpow.pop %v7441
        %v7443 = vsel %vm1843, %v7442, 0.0
        %7444 = vadd.xlane.f32.xlu0 %v7443
        %v7445 = vpop.xlane.xlu0 %7444
        %v7446 = vrcp.pop %v7445
        %v7447 = vmul.f32 %v7442, %v7446
        %7448 = vrot.lane.b32.xlu0 %v7017, 80
        %v7449 = vpop.permute.xlu0 %7448
        %v7451 = vsel %vm1857, %v7447, 0
        %v7453 = vsel %vm1861, %v7449, 0
        %7455 = vmatprep.subr.mxu0 0.0
        %7456 = vmatpush1.msra.mxu0 %v7453
        %7457 = vmatprep.subr.mxu0 0.0
        %7458 = vmatpush1.msra.mxu0 0.0
        %7459 = vmatprep.subr.mxu0 0.0
        %7460 = vmatpush1.msra.mxu0 0.0
        %7461 = vmatprep.subr.mxu0 0.0
        %7462 = vmatpush1.msra.mxu0 0.0
        %7463 = vmatprep.subr.mxu0 0.0
        %7464 = vmatpush1.msra.mxu0 0.0
        %7465 = vmatprep.subr.mxu0 0.0
        %7466 = vmatpush1.msra.mxu0 0.0
        %7467 = vmatprep.subr.mxu0 0.0
        %7468 = vmatpush1.msra.mxu0 0.0
        %7469 = vmatprep.subr.mxu0 0.0
        %7470 = vmatpush1.msra.mxu0 0.0
        %7471 = vmatprep.subr.mxu0 0.0
        %7472 = vmatpush1.msra.mxu0 0.0
        %7473 = vmatprep.subr.mxu0 0.0
        %7474 = vmatpush1.msra.mxu0 0.0
        %7475 = vmatprep.subr.mxu0 0.0
        %7476 = vmatpush1.msra.mxu0 0.0
        %7477 = vmatprep.subr.mxu0 0.0
        %7478 = vmatpush1.msra.mxu0 0.0
        %7479 = vmatprep.subr.mxu0 0.0
        %7480 = vmatpush1.msra.mxu0 0.0
        %7481 = vmatprep.subr.mxu0 0.0
        %7482 = vmatpush1.msra.mxu0 0.0
        %7483 = vmatprep.subr.mxu0 0.0
        %7484 = vmatpush1.msra.mxu0 0.0
        %7485 = vmatprep.subr.mxu0 0.0
        %7486 = vmatpush1.msra.mxu0 0.0
        %7487 = vmatprep.subr.mxu0 0.0
        %7488 = vmatpush1.msra.mxu0 0.0
        %7489 = vmatprep.subr.mxu0 0.0
        %7490 = vmatpush1.msra.mxu0 0.0
        %7491 = vmatprep.subr.mxu0 0.0
        %7492 = vmatpush1.msra.mxu0 0.0
        %7493 = vmatprep.subr.mxu0 0.0
        %7494 = vmatpush1.msra.mxu0 0.0
        %7495 = vmatprep.subr.mxu0 0.0
        %7496 = vmatpush1.msra.mxu0 0.0
        %7497 = vmatprep.subr.mxu0 0.0
        %7498 = vmatpush1.msra.mxu0 0.0
        %7499 = vmatprep.subr.mxu0 0.0
        %7500 = vmatpush1.msra.mxu0 0.0
        %7501 = vmatprep.subr.mxu0 0.0
        %7502 = vmatpush1.msra.mxu0 0.0
        %7503 = vmatprep.subr.mxu0 0.0
        %7504 = vmatpush1.msra.mxu0 0.0
        %7505 = vmatprep.subr.mxu0 0.0
        %7506 = vmatpush1.msra.mxu0 0.0
        %7507 = vmatprep.subr.mxu0 0.0
        %7508 = vmatpush1.msra.mxu0 0.0
        %7509 = vmatprep.subr.mxu0 0.0
        %7510 = vmatpush1.msra.mxu0 0.0
        %7511 = vmatprep.subr.mxu0 0.0
        %7512 = vmatpush1.msra.mxu0 0.0
        %7513 = vmatprep.subr.mxu0 0.0
        %7514 = vmatpush1.msra.mxu0 0.0
        %7515 = vmatprep.subr.mxu0 0.0
        %7516 = vmatpush1.msra.mxu0 0.0
        %7517 = vmatprep.subr.mxu0 0.0
        %7518 = vmatpush1.msra.mxu0 0.0
        %7519 = vmatprep.mubr.f32.mxu0 0.0
        %7520 = vmatmul.mubr.f32.gmra.mrb[0].mxu0 %v7451
        %v7521 = vpop.f32.mrb[0].mxu0
        %v7522 = vadd.f32 0.0, %v7521
        %v7523 = vpop.f32.mrb[0].mxu0
        %7524 = vdwg.mxu0
        %7526 = vrot.lane.b32.xlu0 %v7522, 16
        %v7527 = vpop.permute.xlu0 %7526
        %7529 = vst.msk [vmem:[#allocation2] sm:$0xf] %vm2280, %v7527
        %7530 = vrot.lane.b32.xlu0 %v6941, 104
        %v7531 = vpop.permute.xlu0 %7530
        %7532 = vrot.lane.b32.xlu0 %v7017, 104
        %v7533 = vpop.permute.xlu0 %7532
        %v7534 = vsel %vm1767, %v7531, 0
        %v7536 = vsel %vm1767, %v7533, 0
        %7538 = vmatprep.subr.mxu0 0.0
        %7539 = vmatpush1.xpose.msra.mxu0 %v7536
        %7540 = vmatprep.subr.mxu0 0.0
        %7541 = vmatpush1.xpose.msra.mxu0 0.0
        %7542 = vmatprep.subr.mxu0 0.0
        %7543 = vmatpush1.xpose.msra.mxu0 0.0
        %7544 = vmatprep.subr.mxu0 0.0
        %7545 = vmatpush1.xpose.msra.mxu0 0.0
        %7546 = vmatprep.subr.mxu0 0.0
        %7547 = vmatpush1.xpose.msra.mxu0 0.0
        %7548 = vmatprep.subr.mxu0 0.0
        %7549 = vmatpush1.xpose.msra.mxu0 0.0
        %7550 = vmatprep.subr.mxu0 0.0
        %7551 = vmatpush1.xpose.msra.mxu0 0.0
        %7552 = vmatprep.subr.mxu0 0.0
        %7553 = vmatpush1.xpose.msra.mxu0 0.0
        %7554 = vmatprep.subr.mxu0 0.0
        %7555 = vmatpush1.xpose.msra.mxu0 0.0
        %7556 = vmatprep.subr.mxu0 0.0
        %7557 = vmatpush1.xpose.msra.mxu0 0.0
        %7558 = vmatprep.subr.mxu0 0.0
        %7559 = vmatpush1.xpose.msra.mxu0 0.0
        %7560 = vmatprep.subr.mxu0 0.0
        %7561 = vmatpush1.xpose.msra.mxu0 0.0
        %7562 = vmatprep.subr.mxu0 0.0
        %7563 = vmatpush1.xpose.msra.mxu0 0.0
        %7564 = vmatprep.subr.mxu0 0.0
        %7565 = vmatpush1.xpose.msra.mxu0 0.0
        %7566 = vmatprep.subr.mxu0 0.0
        %7567 = vmatpush1.xpose.msra.mxu0 0.0
        %7568 = vmatprep.subr.mxu0 0.0
        %7569 = vmatpush1.xpose.msra.mxu0 0.0
        %7570 = vmatprep.subr.mxu0 0.0
        %7571 = vmatpush1.xpose.msra.mxu0 0.0
        %7572 = vmatprep.subr.mxu0 0.0
        %7573 = vmatpush1.xpose.msra.mxu0 0.0
        %7574 = vmatprep.subr.mxu0 0.0
        %7575 = vmatpush1.xpose.msra.mxu0 0.0
        %7576 = vmatprep.subr.mxu0 0.0
        %7577 = vmatpush1.xpose.msra.mxu0 0.0
        %7578 = vmatprep.subr.mxu0 0.0
        %7579 = vmatpush1.xpose.msra.mxu0 0.0
        %7580 = vmatprep.subr.mxu0 0.0
        %7581 = vmatpush1.xpose.msra.mxu0 0.0
        %7582 = vmatprep.subr.mxu0 0.0
        %7583 = vmatpush1.xpose.msra.mxu0 0.0
        %7584 = vmatprep.subr.mxu0 0.0
        %7585 = vmatpush1.xpose.msra.mxu0 0.0
        %7586 = vmatprep.subr.mxu0 0.0
        %7587 = vmatpush1.xpose.msra.mxu0 0.0
        %7588 = vmatprep.subr.mxu0 0.0
        %7589 = vmatpush1.xpose.msra.mxu0 0.0
        %7590 = vmatprep.subr.mxu0 0.0
        %7591 = vmatpush1.xpose.msra.mxu0 0.0
        %7592 = vmatprep.subr.mxu0 0.0
        %7593 = vmatpush1.xpose.msra.mxu0 0.0
        %7594 = vmatprep.subr.mxu0 0.0
        %7595 = vmatpush1.xpose.msra.mxu0 0.0
        %7596 = vmatprep.subr.mxu0 0.0
        %7597 = vmatpush1.xpose.msra.mxu0 0.0
        %7598 = vmatprep.subr.mxu0 0.0
        %7599 = vmatpush1.xpose.msra.mxu0 0.0
        %7600 = vmatprep.subr.mxu0 0.0
        %7601 = vmatpush1.xpose.msra.mxu0 0.0
        %7602 = vmatprep.mubr.f32.mxu0 0.0
        %7603 = vmatmul.mubr.f32.gmra.mrb[0].mxu0 %v7534
        %v7604 = vpop.f32.mrb[0].mxu0
        %v7605 = vadd.f32 0.0, %v7604
        %v7606 = vpop.f32.mrb[0].mxu0
        %7607 = vdwg.mxu0
        %v7608 = vmul.f32 %v7605, 0.35355338
        %v7609 = vsel %vm1843, %v7608, -inf
        %7610 = vmax.xlane.f32.xlu0 %v7609
        %v7611 = vpop.xlane.xlu0 %7610
        %v7612 = vsub.f32 %v7608, %v7611
        %v7613 = vmul.f32 %v7612, 1.442695
        %v7614 = vpow.pop %v7613
        %v7615 = vsel %vm1843, %v7614, 0.0
        %7616 = vadd.xlane.f32.xlu0 %v7615
        %v7617 = vpop.xlane.xlu0 %7616
        %v7618 = vrcp.pop %v7617
        %v7619 = vmul.f32 %v7614, %v7618
        %7620 = vrot.lane.b32.xlu0 %v7017, 72
        %v7621 = vpop.permute.xlu0 %7620
        %v7623 = vsel %vm1857, %v7619, 0
        %v7625 = vsel %vm1861, %v7621, 0
        %7627 = vmatprep.subr.mxu0 0.0
        %7628 = vmatpush1.msra.mxu0 %v7625
        %7629 = vmatprep.subr.mxu0 0.0
        %7630 = vmatpush1.msra.mxu0 0.0
        %7631 = vmatprep.subr.mxu0 0.0
        %7632 = vmatpush1.msra.mxu0 0.0
        %7633 = vmatprep.subr.mxu0 0.0
        %7634 = vmatpush1.msra.mxu0 0.0
        %7635 = vmatprep.subr.mxu0 0.0
        %7636 = vmatpush1.msra.mxu0 0.0
        %7637 = vmatprep.subr.mxu0 0.0
        %7638 = vmatpush1.msra.mxu0 0.0
        %7639 = vmatprep.subr.mxu0 0.0
        %7640 = vmatpush1.msra.mxu0 0.0
        %7641 = vmatprep.subr.mxu0 0.0
        %7642 = vmatpush1.msra.mxu0 0.0
        %7643 = vmatprep.subr.mxu0 0.0
        %7644 = vmatpush1.msra.mxu0 0.0
        %7645 = vmatprep.subr.mxu0 0.0
        %7646 = vmatpush1.msra.mxu0 0.0
        %7647 = vmatprep.subr.mxu0 0.0
        %7648 = vmatpush1.msra.mxu0 0.0
        %7649 = vmatprep.subr.mxu0 0.0
        %7650 = vmatpush1.msra.mxu0 0.0
        %7651 = vmatprep.subr.mxu0 0.0
        %7652 = vmatpush1.msra.mxu0 0.0
        %7653 = vmatprep.subr.mxu0 0.0
        %7654 = vmatpush1.msra.mxu0 0.0
        %7655 = vmatprep.subr.mxu0 0.0
        %7656 = vmatpush1.msra.mxu0 0.0
        %7657 = vmatprep.subr.mxu0 0.0
        %7658 = vmatpush1.msra.mxu0 0.0
        %7659 = vmatprep.subr.mxu0 0.0
        %7660 = vmatpush1.msra.mxu0 0.0
        %7661 = vmatprep.subr.mxu0 0.0
        %7662 = vmatpush1.msra.mxu0 0.0
        %7663 = vmatprep.subr.mxu0 0.0
        %7664 = vmatpush1.msra.mxu0 0.0
        %7665 = vmatprep.subr.mxu0 0.0
        %7666 = vmatpush1.msra.mxu0 0.0
        %7667 = vmatprep.subr.mxu0 0.0
        %7668 = vmatpush1.msra.mxu0 0.0
        %7669 = vmatprep.subr.mxu0 0.0
        %7670 = vmatpush1.msra.mxu0 0.0
        %7671 = vmatprep.subr.mxu0 0.0
        %7672 = vmatpush1.msra.mxu0 0.0
        %7673 = vmatprep.subr.mxu0 0.0
        %7674 = vmatpush1.msra.mxu0 0.0
        %7675 = vmatprep.subr.mxu0 0.0
        %7676 = vmatpush1.msra.mxu0 0.0
        %7677 = vmatprep.subr.mxu0 0.0
        %7678 = vmatpush1.msra.mxu0 0.0
        %7679 = vmatprep.subr.mxu0 0.0
        %7680 = vmatpush1.msra.mxu0 0.0
        %7681 = vmatprep.subr.mxu0 0.0
        %7682 = vmatpush1.msra.mxu0 0.0
        %7683 = vmatprep.subr.mxu0 0.0
        %7684 = vmatpush1.msra.mxu0 0.0
        %7685 = vmatprep.subr.mxu0 0.0
        %7686 = vmatpush1.msra.mxu0 0.0
        %7687 = vmatprep.subr.mxu0 0.0
        %7688 = vmatpush1.msra.mxu0 0.0
        %7689 = vmatprep.subr.mxu0 0.0
        %7690 = vmatpush1.msra.mxu0 0.0
        %7691 = vmatprep.mubr.f32.mxu0 0.0
        %7692 = vmatmul.mubr.f32.gmra.mrb[0].mxu0 %v7623
        %v7693 = vpop.f32.mrb[0].mxu0
        %v7694 = vadd.f32 0.0, %v7693
        %v7695 = vpop.f32.mrb[0].mxu0
        %7696 = vdwg.mxu0
        %7698 = vrot.lane.b32.xlu0 %v7694, 24
        %v7699 = vpop.permute.xlu0 %7698
        %7701 = vst.msk [vmem:[#allocation2] sm:$0xf] %vm2453, %v7699
        %v7702 = vld [vmem:[#allocation2] sm:$0xf]
        %v7704 = vlaneseq
        %v7705 = vshrl.u32 %v7704, 7
        %v7706 = vsub.s32 0, %v7705
        %v7707 = vrot.slane %v5968, %v7706
        %v7710 = vsel %vm1690, %v7702, 0
        %7712 = vmatprep.subr.mxu0 0.0
        %7713 = vmatpush1.msra.mxu0 %v5963
        %7714 = vmatprep.subr.mxu0 0.0
        %7715 = vmatpush1.msra.mxu0 %v5964
        %7716 = vmatprep.subr.mxu0 0.0
        %7717 = vmatpush1.msra.mxu0 %v5965
        %7718 = vmatprep.subr.mxu0 0.0
        %7719 = vmatpush1.msra.mxu0 %v5966
        %7720 = vmatprep.subr.mxu0 0.0
        %7721 = vmatpush1.msra.mxu0 0.0
        %7722 = vmatprep.subr.mxu0 0.0
        %7723 = vmatpush1.msra.mxu0 0.0
        %7724 = vmatprep.subr.mxu0 0.0
        %7725 = vmatpush1.msra.mxu0 0.0
        %7726 = vmatprep.subr.mxu0 0.0
        %7727 = vmatpush1.msra.mxu0 0.0
        %7728 = vmatprep.subr.mxu0 0.0
        %7729 = vmatpush1.msra.mxu0 0.0
        %7730 = vmatprep.subr.mxu0 0.0
        %7731 = vmatpush1.msra.mxu0 0.0
        %7732 = vmatprep.subr.mxu0 0.0
        %7733 = vmatpush1.msra.mxu0 0.0
        %7734 = vmatprep.subr.mxu0 0.0
        %7735 = vmatpush1.msra.mxu0 0.0
        %7736 = vmatprep.subr.mxu0 0.0
        %7737 = vmatpush1.msra.mxu0 0.0
        %7738 = vmatprep.subr.mxu0 0.0
        %7739 = vmatpush1.msra.mxu0 0.0
        %7740 = vmatprep.subr.mxu0 0.0
        %7741 = vmatpush1.msra.mxu0 0.0
        %7742 = vmatprep.subr.mxu0 0.0
        %7743 = vmatpush1.msra.mxu0 0.0
        %7744 = vmatprep.subr.mxu0 0.0
        %7745 = vmatpush1.msra.mxu0 0.0
        %7746 = vmatprep.subr.mxu0 0.0
        %7747 = vmatpush1.msra.mxu0 0.0
        %7748 = vmatprep.subr.mxu0 0.0
        %7749 = vmatpush1.msra.mxu0 0.0
        %7750 = vmatprep.subr.mxu0 0.0
        %7751 = vmatpush1.msra.mxu0 0.0
        %7752 = vmatprep.subr.mxu0 0.0
        %7753 = vmatpush1.msra.mxu0 0.0
        %7754 = vmatprep.subr.mxu0 0.0
        %7755 = vmatpush1.msra.mxu0 0.0
        %7756 = vmatprep.subr.mxu0 0.0
        %7757 = vmatpush1.msra.mxu0 0.0
        %7758 = vmatprep.subr.mxu0 0.0
        %7759 = vmatpush1.msra.mxu0 0.0
        %7760 = vmatprep.subr.mxu0 0.0
        %7761 = vmatpush1.msra.mxu0 0.0
        %7762 = vmatprep.subr.mxu0 0.0
        %7763 = vmatpush1.msra.mxu0 0.0
        %7764 = vmatprep.subr.mxu0 0.0
        %7765 = vmatpush1.msra.mxu0 0.0
        %7766 = vmatprep.subr.mxu0 0.0
        %7767 = vmatpush1.msra.mxu0 0.0
        %7768 = vmatprep.subr.mxu0 0.0
        %7769 = vmatpush1.msra.mxu0 0.0
        %7770 = vmatprep.subr.mxu0 0.0
        %7771 = vmatpush1.msra.mxu0 0.0
        %7772 = vmatprep.subr.mxu0 0.0
        %7773 = vmatpush1.msra.mxu0 0.0
        %7774 = vmatprep.subr.mxu0 0.0
        %7775 = vmatpush1.msra.mxu0 0.0
        %7776 = vmatprep.mubr.f32.mxu0 0.0
        %7777 = vmatmul.mubr.f32.gmra.mrb[0].mxu0 %v7710
        %v7778 = vpop.f32.mrb[0].mxu0
        %v7779 = vadd.f32 %v7707, %v7778
        %v7780 = vpop.f32.mrb[0].mxu0
        %7781 = vdwg.mxu0
        %v7782 = vadd.f32 %v6864, %v7779
        %v7783 = vsel %vm2536, %v7782, 0.0
        %7784 = vadd.xlane.f32.xlu0 %v7783
        %v7785 = vpop.xlane.xlu0 %7784
        %v7786 = vmul.f32 %v7785, %v2540
        %v7787 = vsub.f32 %v7782, %v7786
        %v7788 = vmul.f32 %v7787, %v7787
        %v7789 = vsel %vm2536, %v7788, 0.0
        %7790 = vadd.xlane.f32.xlu0 %v7789
        %v7791 = vpop.xlane.xlu0 %7790
        %v7792 = vmul.f32 %v7791, %v2540
        %v7793 = vadd.f32 %v7792, 1e-05
        %v7794 = vrsqrt.pop %v7793
        %v7795 = vmul.f32 %v7787, %v7794
        %v7797 = vlaneseq
        %v7798 = vshrl.u32 %v7797, 7
        %v7799 = vsub.s32 0, %v7798
        %v7800 = vrot.slane %v5970, %v7799
        %v7802 = vmul.f32 %v7795, %v7800
        %v7804 = vlaneseq
        %v7805 = vshrl.u32 %v7804, 7
        %v7806 = vsub.s32 0, %v7805
        %v7807 = vrot.slane %v5972, %v7806
        %v7809 = vadd.f32 %v7802, %v7807
        %v7811 = vlaneseq
        %v7812 = vshrl.u32 %v7811, 7
        %v7813 = vsub.s32 0, %v7812
        %v7814 = vrot.slane %v5979, %v7813
        %v7817 = vsel %vm1690, %v7809, 0
        %7819 = vmatprep.subr.mxu0 0.0
        %7820 = vmatpush1.msra.mxu0 %v5974
        %7821 = vmatprep.subr.mxu0 0.0
        %7822 = vmatpush1.msra.mxu0 %v5975
        %7823 = vmatprep.subr.mxu0 0.0
        %7824 = vmatpush1.msra.mxu0 %v5976
        %7825 = vmatprep.subr.mxu0 0.0
        %7826 = vmatpush1.msra.mxu0 %v5977
        %7827 = vmatprep.subr.mxu0 0.0
        %7828 = vmatpush1.msra.mxu0 0.0
        %7829 = vmatprep.subr.mxu0 0.0
        %7830 = vmatpush1.msra.mxu0 0.0
        %7831 = vmatprep.subr.mxu0 0.0
        %7832 = vmatpush1.msra.mxu0 0.0
        %7833 = vmatprep.subr.mxu0 0.0
        %7834 = vmatpush1.msra.mxu0 0.0
        %7835 = vmatprep.subr.mxu0 0.0
        %7836 = vmatpush1.msra.mxu0 0.0
        %7837 = vmatprep.subr.mxu0 0.0
        %7838 = vmatpush1.msra.mxu0 0.0
        %7839 = vmatprep.subr.mxu0 0.0
        %7840 = vmatpush1.msra.mxu0 0.0
        %7841 = vmatprep.subr.mxu0 0.0
        %7842 = vmatpush1.msra.mxu0 0.0
        %7843 = vmatprep.subr.mxu0 0.0
        %7844 = vmatpush1.msra.mxu0 0.0
        %7845 = vmatprep.subr.mxu0 0.0
        %7846 = vmatpush1.msra.mxu0 0.0
        %7847 = vmatprep.subr.mxu0 0.0
        %7848 = vmatpush1.msra.mxu0 0.0
        %7849 = vmatprep.subr.mxu0 0.0
        %7850 = vmatpush1.msra.mxu0 0.0
        %7851 = vmatprep.subr.mxu0 0.0
        %7852 = vmatpush1.msra.mxu0 0.0
        %7853 = vmatprep.subr.mxu0 0.0
        %7854 = vmatpush1.msra.mxu0 0.0
        %7855 = vmatprep.subr.mxu0 0.0
        %7856 = vmatpush1.msra.mxu0 0.0
        %7857 = vmatprep.subr.mxu0 0.0
        %7858 = vmatpush1.msra.mxu0 0.0
        %7859 = vmatprep.subr.mxu0 0.0
        %7860 = vmatpush1.msra.mxu0 0.0
        %7861 = vmatprep.subr.mxu0 0.0
        %7862 = vmatpush1.msra.mxu0 0.0
        %7863 = vmatprep.subr.mxu0 0.0
        %7864 = vmatpush1.msra.mxu0 0.0
        %7865 = vmatprep.subr.mxu0 0.0
        %7866 = vmatpush1.msra.mxu0 0.0
        %7867 = vmatprep.subr.mxu0 0.0
        %7868 = vmatpush1.msra.mxu0 0.0
        %7869 = vmatprep.subr.mxu0 0.0
        %7870 = vmatpush1.msra.mxu0 0.0
        %7871 = vmatprep.subr.mxu0 0.0
        %7872 = vmatpush1.msra.mxu0 0.0
        %7873 = vmatprep.subr.mxu0 0.0
        %7874 = vmatpush1.msra.mxu0 0.0
        %7875 = vmatprep.subr.mxu0 0.0
        %7876 = vmatpush1.msra.mxu0 0.0
        %7877 = vmatprep.subr.mxu0 0.0
        %7878 = vmatpush1.msra.mxu0 0.0
        %7879 = vmatprep.subr.mxu0 0.0
        %7880 = vmatpush1.msra.mxu0 0.0
        %7881 = vmatprep.subr.mxu0 0.0
        %7882 = vmatpush1.msra.mxu0 0.0
        %7883 = vmatprep.mubr.f32.mxu0 0.0
        %7884 = vmatmul.mubr.f32.gmra.mrb[0].mxu0 %v7817
        %v7885 = vpop.f32.mrb[0].mxu0
        %v7886 = vadd.f32 %v7814, %v7885
        %v7887 = vpop.f32.mrb[0].mxu0
        %7888 = vdwg.mxu0
        %v7889 = vmax.f32 %v7886, 0.0
        %v7891 = vlaneseq
        %v7892 = vshrl.u32 %v7891, 7
        %v7893 = vsub.s32 0, %v7892
        %v7894 = vrot.slane %v5990, %v7893
        %v7897 = vsel %vm2651, %v7889, 0
        %7899 = vmatprep.subr.mxu0 0.0
        %7900 = vmatpush1.msra.mxu0 %v5981
        %7901 = vmatprep.subr.mxu0 0.0
        %7902 = vmatpush1.msra.mxu0 %v5982
        %7903 = vmatprep.subr.mxu0 0.0
        %7904 = vmatpush1.msra.mxu0 %v5983
        %7905 = vmatprep.subr.mxu0 0.0
        %7906 = vmatpush1.msra.mxu0 %v5984
        %7907 = vmatprep.subr.mxu0 0.0
        %7908 = vmatpush1.msra.mxu0 %v5985
        %7909 = vmatprep.subr.mxu0 0.0
        %7910 = vmatpush1.msra.mxu0 %v5986
        %7911 = vmatprep.subr.mxu0 0.0
        %7912 = vmatpush1.msra.mxu0 %v5987
        %7913 = vmatprep.subr.mxu0 0.0
        %7914 = vmatpush1.msra.mxu0 %v5988
        %7915 = vmatprep.subr.mxu0 0.0
        %7916 = vmatpush1.msra.mxu0 0.0
        %7917 = vmatprep.subr.mxu0 0.0
        %7918 = vmatpush1.msra.mxu0 0.0
        %7919 = vmatprep.subr.mxu0 0.0
        %7920 = vmatpush1.msra.mxu0 0.0
        %7921 = vmatprep.subr.mxu0 0.0
        %7922 = vmatpush1.msra.mxu0 0.0
        %7923 = vmatprep.subr.mxu0 0.0
        %7924 = vmatpush1.msra.mxu0 0.0
        %7925 = vmatprep.subr.mxu0 0.0
        %7926 = vmatpush1.msra.mxu0 0.0
        %7927 = vmatprep.subr.mxu0 0.0
        %7928 = vmatpush1.msra.mxu0 0.0
        %7929 = vmatprep.subr.mxu0 0.0
        %7930 = vmatpush1.msra.mxu0 0.0
        %7931 = vmatprep.subr.mxu0 0.0
        %7932 = vmatpush1.msra.mxu0 0.0
        %7933 = vmatprep.subr.mxu0 0.0
        %7934 = vmatpush1.msra.mxu0 0.0
        %7935 = vmatprep.subr.mxu0 0.0
        %7936 = vmatpush1.msra.mxu0 0.0
        %7937 = vmatprep.subr.mxu0 0.0
        %7938 = vmatpush1.msra.mxu0 0.0
        %7939 = vmatprep.subr.mxu0 0.0
        %7940 = vmatpush1.msra.mxu0 0.0
        %7941 = vmatprep.subr.mxu0 0.0
        %7942 = vmatpush1.msra.mxu0 0.0
        %7943 = vmatprep.subr.mxu0 0.0
        %7944 = vmatpush1.msra.mxu0 0.0
        %7945 = vmatprep.subr.mxu0 0.0
        %7946 = vmatpush1.msra.mxu0 0.0
        %7947 = vmatprep.subr.mxu0 0.0
        %7948 = vmatpush1.msra.mxu0 0.0
        %7949 = vmatprep.subr.mxu0 0.0
        %7950 = vmatpush1.msra.mxu0 0.0
        %7951 = vmatprep.subr.mxu0 0.0
        %7952 = vmatpush1.msra.mxu0 0.0
        %7953 = vmatprep.subr.mxu0 0.0
        %7954 = vmatpush1.msra.mxu0 0.0
        %7955 = vmatprep.subr.mxu0 0.0
        %7956 = vmatpush1.msra.mxu0 0.0
        %7957 = vmatprep.subr.mxu0 0.0
        %7958 = vmatpush1.msra.mxu0 0.0
        %7959 = vmatprep.subr.mxu0 0.0
        %7960 = vmatpush1.msra.mxu0 0.0
        %7961 = vmatprep.subr.mxu0 0.0
        %7962 = vmatpush1.msra.mxu0 0.0
        %7963 = vmatprep.mubr.f32.mxu0 0.0
        %7964 = vmatmul.mubr.f32.gmra.mrb[0].mxu0 %v7897
        %v7965 = vpop.f32.mrb[0].mxu0
        %v7966 = vadd.f32 %v7894, %v7965
        %v7967 = vpop.f32.mrb[0].mxu0
        %7968 = vdwg.mxu0
        %v7969 = vadd.f32 %v7809, %v7966
        %v7970 = vsel %vm2536, %v7969, 0.0
        %7971 = vadd.xlane.f32.xlu0 %v7970
        %v7972 = vpop.xlane.xlu0 %7971
        %v7973 = vmul.f32 %v7972, %v2540
        %v7974 = vsub.f32 %v7969, %v7973
        %v7975 = vmul.f32 %v7974, %v7974
        %v7976 = vsel %vm2536, %v7975, 0.0
        %7977 = vadd.xlane.f32.xlu0 %v7976
        %v7978 = vpop.xlane.xlu0 %7977
        %v7979 = vmul.f32 %v7978, %v2540
        %v7980 = vadd.f32 %v7979, 1e-05
        %v7981 = vrsqrt.pop %v7980
        %v7982 = vmul.f32 %v7974, %v7981
        %v7984 = vlaneseq
        %v7985 = vshrl.u32 %v7984, 7
        %v7986 = vsub.s32 0, %v7985
        %v7987 = vrot.slane %v5992, %v7986
        %v7989 = vmul.f32 %v7982, %v7987
        %v7991 = vlaneseq
        %v7992 = vshrl.u32 %v7991, 7
        %v7993 = vsub.s32 0, %v7992
        %v7994 = vrot.slane %v5994, %v7993
        %v7996 = vadd.f32 %v7989, %v7994
        %v7997 = vld [vmem:[#allocation31] sm:$0x1]
        %v7998 = vld [vmem:[#allocation32] sm:$0x1]
        %v7999 = vsel %vm2536, %v7996, 0.0
        %8000 = vadd.xlane.f32.xlu0 %v7999
        %v8001 = vpop.xlane.xlu0 %8000
        %v8002 = vmul.f32 %v8001, %v2540
        %v8003 = vsub.f32 %v7996, %v8002
        %v8004 = vmul.f32 %v8003, %v8003
        %v8005 = vsel %vm2536, %v8004, 0.0
        %8006 = vadd.xlane.f32.xlu0 %v8005
        %v8007 = vpop.xlane.xlu0 %8006
        %v8008 = vmul.f32 %v8007, %v2540
        %v8009 = vadd.f32 %v8008, 1e-05
        %v8010 = vrsqrt.pop %v8009
        %v8011 = vmul.f32 %v8003, %v8010
        %v8013 = vlaneseq
        %v8014 = vshrl.u32 %v8013, 7
        %v8015 = vsub.s32 0, %v8014
        %v8016 = vrot.slane %v7997, %v8015
        %v8018 = vmul.f32 %v8011, %v8016
        %v8020 = vlaneseq
        %v8021 = vshrl.u32 %v8020, 7
        %v8022 = vsub.s32 0, %v8021
        %v8023 = vrot.slane %v7998, %v8022
        %v8025 = vadd.f32 %v8018, %v8023
        %v8026 = vld [vmem:[%s81] sm:$0xff]
        %v8027 = vld [vmem:[%s81 + $0x8] sm:$0xff]
        %v8028 = vld [vmem:[%s81 + $0x10] sm:$0xff]
        %v8029 = vld [vmem:[%s81 + $0x18] sm:$0xff]
        %v8030 = vld [vmem:[%s83] sm:$0x1]
        %v8032 = vlaneseq
        %v8033 = vshrl.u32 %v8032, 7
        %v8034 = vsub.s32 0, %v8033
        %v8035 = vrot.slane %v8030, %v8034
        %v8038 = vsel %vm1690, %v8025, 0
        %8040 = vmatprep.subr.mxu0 0.0
        %8041 = vmatpush1.msra.mxu0 %v8026
        %8042 = vmatprep.subr.mxu0 0.0
        %8043 = vmatpush1.msra.mxu0 %v8027
        %8044 = vmatprep.subr.mxu0 0.0
        %8045 = vmatpush1.msra.mxu0 %v8028
        %8046 = vmatprep.subr.mxu0 0.0
        %8047 = vmatpush1.msra.mxu0 %v8029
        %8048 = vmatprep.subr.mxu0 0.0
        %8049 = vmatpush1.msra.mxu0 0.0
        %8050 = vmatprep.subr.mxu0 0.0
        %8051 = vmatpush1.msra.mxu0 0.0
        %8052 = vmatprep.subr.mxu0 0.0
        %8053 = vmatpush1.msra.mxu0 0.0
        %8054 = vmatprep.subr.mxu0 0.0
        %8055 = vmatpush1.msra.mxu0 0.0
        %8056 = vmatprep.subr.mxu0 0.0
        %8057 = vmatpush1.msra.mxu0 0.0
        %8058 = vmatprep.subr.mxu0 0.0
        %8059 = vmatpush1.msra.mxu0 0.0
        %8060 = vmatprep.subr.mxu0 0.0
        %8061 = vmatpush1.msra.mxu0 0.0
        %8062 = vmatprep.subr.mxu0 0.0
        %8063 = vmatpush1.msra.mxu0 0.0
        %8064 = vmatprep.subr.mxu0 0.0
        %8065 = vmatpush1.msra.mxu0 0.0
        %8066 = vmatprep.subr.mxu0 0.0
        %8067 = vmatpush1.msra.mxu0 0.0
        %8068 = vmatprep.subr.mxu0 0.0
        %8069 = vmatpush1.msra.mxu0 0.0
        %8070 = vmatprep.subr.mxu0 0.0
        %8071 = vmatpush1.msra.mxu0 0.0
        %8072 = vmatprep.subr.mxu0 0.0
        %8073 = vmatpush1.msra.mxu0 0.0
        %8074 = vmatprep.subr.mxu0 0.0
        %8075 = vmatpush1.msra.mxu0 0.0
        %8076 = vmatprep.subr.mxu0 0.0
        %8077 = vmatpush1.msra.mxu0 0.0
        %8078 = vmatprep.subr.mxu0 0.0
        %8079 = vmatpush1.msra.mxu0 0.0
        %8080 = vmatprep.subr.mxu0 0.0
        %8081 = vmatpush1.msra.mxu0 0.0
        %8082 = vmatprep.subr.mxu0 0.0
        %8083 = vmatpush1.msra.mxu0 0.0
        %8084 = vmatprep.subr.mxu0 0.0
        %8085 = vmatpush1.msra.mxu0 0.0
        %8086 = vmatprep.subr.mxu0 0.0
        %8087 = vmatpush1.msra.mxu0 0.0
        %8088 = vmatprep.subr.mxu0 0.0
        %8089 = vmatpush1.msra.mxu0 0.0
        %8090 = vmatprep.subr.mxu0 0.0
        %8091 = vmatpush1.msra.mxu0 0.0
        %8092 = vmatprep.subr.mxu0 0.0
        %8093 = vmatpush1.msra.mxu0 0.0
        %8094 = vmatprep.subr.mxu0 0.0
        %8095 = vmatpush1.msra.mxu0 0.0
        %8096 = vmatprep.subr.mxu0 0.0
        %8097 = vmatpush1.msra.mxu0 0.0
        %8098 = vmatprep.subr.mxu0 0.0
        %8099 = vmatpush1.msra.mxu0 0.0
        %8100 = vmatprep.subr.mxu0 0.0
        %8101 = vmatpush1.msra.mxu0 0.0
        %8102 = vmatprep.subr.mxu0 0.0
        %8103 = vmatpush1.msra.mxu0 0.0
        %8104 = vmatprep.mubr.f32.mxu0 0.0
        %8105 = vmatmul.mubr.f32.gmra.mrb[0].mxu0 %v8038
        %v8106 = vpop.f32.mrb[0].mxu0
        %v8107 = vadd.f32 %v8035, %v8106
        %v8108 = vpop.f32.mrb[0].mxu0
        %8109 = vdwg.mxu0
        %vm8110 = vcmask 35840
        %v8111 = vsel %vm8110, %v8107, -inf
        %8112 = vmax.xlane.f32.xlu0 %v8111
        %v8113 = vpop.xlane.xlu0 %8112
        %v8114 = vsub.f32 %v8107, %v8113
        %v8115 = vmul.f32 %v8114, 1.442695
        %v8116 = vpow.pop %v8115
        %v8117 = vsel %vm8110, %v8116, 0.0
        %8118 = vadd.xlane.f32.xlu0 %v8117
        %v8119 = vpop.xlane.xlu0 %8118
        %v8120 = vlog2.pop %v8119
        %v8121 = vmul.f32 %v8120, 0.6931472
        %v8122 = vsub.f32 %v8114, %v8121
        %8123 = vst.msk [vmem:[%s1565] sm:$0xf] %vm8110, %v8122
        %p8124 = scmp.lt.s32.totalorder %s107, 1
        %s8125 = scalar_select %p8124, %s107, 1
        %s8126 = smul.addr %s8125, 4
        %s8127 = scalar_lea.vmem %s85, %s8126
        // Predicated region
        $region269: #{own_transformer_forward.1} parent=187 // pred_check
          %p8128 = pneg %p1017
        $region270: #{own_transformer_forward.1} parent=187 // pred_check_branch
          %8130 = sbr.rel (%p8128) target = $region272
        $region271: #{own_transformer_forward.1} parent=187 // pred_region
          _
        $region272: #{own_transformer_forward.1} parent=187 // pred_fallthru
          _
      $region188: #{own_transformer_forward.1} parent=5 // pred_fallthru
        _
      %p8131 = scmp.le.s32.totalorder 2, %s102
      // Predicated region
      $region273: #{own_transformer_forward.1} parent=5 // pred_check
        %p8132 = pneg %p8131
      $region274: #{own_transformer_forward.1} parent=5 // pred_check_branch
        %8134 = sbr.rel (%p8132) target = $region276
      $region275: #{own_transformer_forward.1} parent=5 // pred_region
        %s8135 = ssub.s32 %s102, 2
        // Predicated region
        $region277: #{own_transformer_forward.1} parent=275 // pred_check
          %p8136 = pneg %p1023
        $region278: #{own_transformer_forward.1} parent=275 // pred_check_branch
          %8138 = sbr.rel (%p8136) target = $region280
        $region279: #{own_transformer_forward.1} parent=275 // pred_region
          %p8139 = scmp.lt.s32.totalorder %s108, 1
          %s8140 = scalar_select %p8139, %s108, 1
          %s8141 = smul.addr %s8140, 4
          %s8142 = scalar_lea.vmem %s85, %s8141
        $region280: #{own_transformer_forward.1} parent=275 // pred_fallthru
          _
      $region276: #{own_transformer_forward.1} parent=5 // pred_fallthru
        _
    $region6: #{own_transformer_forward.1} parent=1 // loop_footer
      %s106 = sadd.s32 1, %s102
    $region7: #{own_transformer_forward.1} parent=1 // loop_footer_branch
      %101 = sbr.rel target = $region3
    $region8: #{own_transformer_forward.1} parent=1 // loop_exit
      _
    %8143 = vsyncpa [#allocation4], 1
    %s8144 = scalar_lea.sflag [#allocation4], 1
    %8145 = vsyncpa %s8144, 1
    %8146 = vsyncpa [#allocation6], 1
    %8147 = vsyncpa [#allocation9], 1
    %8148 = vsyncpa [#allocation12], 1
    %8149 = vsyncpa [#allocation15], 1
    %8150 = vsyncpa [#allocation18], 1
    %8151 = vsyncpa [#allocation21], 1
    %8152 = vsyncpa [#allocation24], 1
    %8153 = vsyncpa [#allocation27], 1
    %8154 = vsyncpa [#allocation30], 1
    %8155 = vsyncpa [#allocation33], 1

</llo_original>
